<compile_context>
chip_gen: v7x
topology: tpu7x:2x2x1
jax: 0.10.0
libtpu: 0.0.40
codegen_flags: <defaults>
</compile_context>

<pallas_src>
import functools
import math

import jax
import jax.numpy as jnp
from jax.experimental import pallas as pl
from jax.experimental.pallas import tpu as pltpu

EPS = 1e-6
MASK_NEG = -1e9


def _layer_norm(x, alpha, bias):
    # TODO(synk): reference repo's LayerNormalization may use torch.std
    # (unbiased) with eps outside the sqrt; standard LN (biased variance, eps
    # inside rsqrt, eps=1e-6) is implemented since the class body was not given.
    mean = jnp.mean(x, axis=-1, keepdims=True)
    var = jnp.mean((x - mean) ** 2, axis=-1, keepdims=True)
    return alpha * (x - mean) * jax.lax.rsqrt(var + EPS) + bias


def encoder_layer_kernel(xq_ref, xkv_ref, mask_ref,
                         wq_ref, bq_ref, wkv_ref, bkv_ref,
                         wo3_ref, bo_ref,
                         ln1a_ref, ln1b_ref, ln2a_ref, ln2b_ref,
                         w1_ref, b1_ref, w2_ref, b2_ref,
                         fna_ref, fnb_ref,
                         o_ref, *, num_heads, apply_final_norm):
    f32 = jnp.float32
    bf16 = jnp.bfloat16

    xq = xq_ref[0]                       # (TQ, D) query rows (residual stream)
    xkv = xkv_ref[0]                     # (S, D)  full sequence (keys/values)
    TQ, D = xq.shape
    S = xkv.shape[0]
    H = num_heads
    dh = D // H

    # Additive attention-mask bias (0 = keep, -1e9 = masked), built once per
    # grid step and hoisted out of the head loop.
    mask = mask_ref[0]                                       # (1, S)
    bias = jnp.where(mask > 0, 0.0, MASK_NEG).astype(f32)    # (1, S)

    ln1a = ln1a_ref[0]
    ln1b = ln1b_ref[0]

    # ---- pre-norm multi-head self-attention sublayer ----
    xnq = _layer_norm(xq, ln1a, ln1b).astype(bf16)           # (TQ, D)
    xnk = _layer_norm(xkv, ln1a, ln1b).astype(bf16)          # (S, D)

    # Q over the query tile only (scale pre-folded into wq/bq);
    # fused K|V projection over the full sequence in one wide matmul.
    q = (jnp.dot(xnq, wq_ref[...], preferred_element_type=f32)
         + bq_ref[0]).astype(bf16)                           # (TQ, D)
    kv = (jnp.dot(xnk, wkv_ref[...], preferred_element_type=f32)
          + bkv_ref[0]).astype(bf16)                         # (S, 2D)

    attn = jnp.zeros((TQ, D), f32)
    for h in range(H):                   # static unroll; slices are dh-aligned
        qh = q[:, h * dh:(h + 1) * dh]                       # (TQ, dh)
        kh = kv[:, h * dh:(h + 1) * dh]                      # (S, dh)
        vh = kv[:, D + h * dh:D + (h + 1) * dh]              # (S, dh)
        # scores: contract dh of q and k directly (no explicit kh.T)
        s = jax.lax.dot_general(qh, kh, (((1,), (1,)), ((), ())),
                                preferred_element_type=f32)  # (TQ, S)
        s = s + bias
        s = s - jnp.max(s, axis=-1, keepdims=True)
        p = jnp.exp(s)
        inv = pl.reciprocal(jnp.sum(p, axis=-1, keepdims=True), approx=True)
        ctx = jnp.dot(p.astype(bf16), vh, preferred_element_type=f32) * inv
        # fold the output projection per head (no lane-dim concat of heads)
        attn = attn + jnp.dot(ctx.astype(bf16), wo3_ref[h],
                              preferred_element_type=f32)
    x = xq + attn + bo_ref[0]

    # ---- pre-norm feed-forward sublayer (Linear -> ReLU -> Linear) ----
    xn2 = _layer_norm(x, ln2a_ref[0], ln2b_ref[0]).astype(bf16)
    h1 = jnp.dot(xn2, w1_ref[...], preferred_element_type=f32) + b1_ref[0]
    h1 = jnp.maximum(h1, 0.0).astype(bf16)
    x = x + jnp.dot(h1, w2_ref[...], preferred_element_type=f32) + b2_ref[0]

    # dropout is identity in eval mode
    if apply_final_norm:      # Encoder's final LayerNormalization, fused here
        x = _layer_norm(x, fna_ref[0], fnb_ref[0])
    o_ref[0] = x


def final_norm_kernel(x_ref, a_ref, b_ref, o_ref):
    # Only used in the degenerate zero-layer case.
    o_ref[0] = _layer_norm(x_ref[0], a_ref[0], b_ref[0])


def _choose_q_tile(seq_len, max_tile=128):
    if seq_len <= max_tile:
        return seq_len
    for t in range(max_tile, 0, -8):
        if t % 8 == 0 and seq_len % t == 0:
            return t
    return seq_len


def _prep_layer(p, num_heads):
    """Wrapper-time weight massaging: bf16 cast, K|V fusion, scale folding,
    per-head Wo layout (H, dh, D)."""
    D = p["wq"].shape[0]
    dh = D // num_heads
    scale = 1.0 / math.sqrt(dh)
    return {
        "wq": (p["wq"] * scale).astype(jnp.bfloat16),
        "bq": (p["bq"] * scale).astype(jnp.float32),
        "wkv": jnp.concatenate([p["wk"], p["wv"]], axis=1).astype(jnp.bfloat16),
        "bkv": jnp.concatenate([p["bk"], p["bv"]], axis=1).astype(jnp.float32),
        "wo3": p["wo"].reshape(num_heads, dh, D).astype(jnp.bfloat16),
        "bo": p["bo"].astype(jnp.float32),
        "ln1_a": p["ln1_a"], "ln1_b": p["ln1_b"],
        "ln2_a": p["ln2_a"], "ln2_b": p["ln2_b"],
        "w1": p["w1"].astype(jnp.bfloat16), "b1": p["b1"].astype(jnp.float32),
        "w2": p["w2"].astype(jnp.bfloat16), "b2": p["b2"].astype(jnp.float32),
    }


def run_encoder_layer(x, mask_b1s, prep, final_norm_params, num_heads,
                      apply_final_norm):
    B, S, D = x.shape
    d_ff = prep["w1"].shape[1]
    dh = D // num_heads
    TQ = _choose_q_tile(S)
    n_q = S // TQ

    def whole(shape):
        # weight blocks: whole array resident in VMEM, same block every step
        return pl.BlockSpec(shape, lambda b, q: (0,) * len(shape))

    kernel = functools.partial(encoder_layer_kernel, num_heads=num_heads,
                               apply_final_norm=apply_final_norm)
    return pl.pallas_call(
        kernel,
        out_shape=jax.ShapeDtypeStruct((B, S, D), jnp.float32),
        grid=(B, n_q),
        in_specs=[
            pl.BlockSpec((1, TQ, D), lambda b, q: (b, q, 0)),   # x (query tile)
            pl.BlockSpec((1, S, D), lambda b, q: (b, 0, 0)),    # x (full seq)
            pl.BlockSpec((1, 1, S), lambda b, q: (b, 0, 0)),    # keep-mask
            whole((D, D)), whole((1, D)),                       # wq (scaled), bq
            whole((D, 2 * D)), whole((1, 2 * D)),               # wkv, bkv
            whole((num_heads, dh, D)), whole((1, D)),           # wo per-head, bo
            whole((1, D)), whole((1, D)),                       # ln1 alpha, bias
            whole((1, D)), whole((1, D)),                       # ln2 alpha, bias
            whole((D, d_ff)), whole((1, d_ff)),                 # w1, b1
            whole((d_ff, D)), whole((1, D)),                    # w2, b2
            whole((1, D)), whole((1, D)),                       # final norm a, b
        ],
        out_specs=pl.BlockSpec((1, TQ, D), lambda b, q: (b, q, 0)),
        compiler_params=pltpu.CompilerParams(
            dimension_semantics=("parallel", "parallel"),
            vmem_limit_bytes=48 * 1024 * 1024),
    )(x, x, mask_b1s,
      prep["wq"], prep["bq"], prep["wkv"], prep["bkv"],
      prep["wo3"], prep["bo"],
      prep["ln1_a"], prep["ln1_b"], prep["ln2_a"], prep["ln2_b"],
      prep["w1"], prep["b1"], prep["w2"], prep["b2"],
      final_norm_params["alpha"], final_norm_params["bias"])


def run_final_norm(x, alpha, bias):
    B, S, D = x.shape
    return pl.pallas_call(
        final_norm_kernel,
        out_shape=jax.ShapeDtypeStruct((B, S, D), jnp.float32),
        grid=(B,),
        in_specs=[
            pl.BlockSpec((1, S, D), lambda b: (b, 0, 0)),
            pl.BlockSpec((1, D), lambda b: (0, 0)),
            pl.BlockSpec((1, D), lambda b: (0, 0)),
        ],
        out_specs=pl.BlockSpec((1, S, D), lambda b: (b, 0, 0)),
        compiler_params=pltpu.CompilerParams(dimension_semantics=("parallel",)),
    )(x, alpha, bias)


def encoder_forward(x, src_mask, layer_params, final_norm_params, num_heads):
    """x: (B, S, D) f32; src_mask: (B, 1, 1, S), nonzero = keep."""
    B, S, D = x.shape
    x = x.astype(jnp.float32)
    # (B,1,1,S) -> (B,1,S) keep-mask; additive bias is built inside the kernel
    # (no O(B*S^2) mask materialisation in HBM).
    mask_b1s = src_mask.astype(jnp.float32).reshape(B, 1, S)
    if not layer_params:
        return run_final_norm(x, final_norm_params["alpha"],
                              final_norm_params["bias"])
    preps = [_prep_layer(p, num_heads) for p in layer_params]
    for i, prep in enumerate(preps):
        x = run_encoder_layer(x, mask_b1s, prep, final_norm_params, num_heads,
                              apply_final_norm=(i == len(preps) - 1))
    return x


def init_params(key, num_layers, d_model, d_ff):
    layers = []
    for _ in range(num_layers):
        keys = jax.random.split(key, 7)
        key = keys[0]
        std = 0.02
        p = {
            "wq": std * jax.random.normal(keys[1], (d_model, d_model), jnp.float32),
            "wk": std * jax.random.normal(keys[2], (d_model, d_model), jnp.float32),
            "wv": std * jax.random.normal(keys[3], (d_model, d_model), jnp.float32),
            "wo": std * jax.random.normal(keys[4], (d_model, d_model), jnp.float32),
            "bq": jnp.zeros((1, d_model), jnp.float32),
            "bk": jnp.zeros((1, d_model), jnp.float32),
            "bv": jnp.zeros((1, d_model), jnp.float32),
            "bo": jnp.zeros((1, d_model), jnp.float32),
            "ln1_a": jnp.ones((1, d_model), jnp.float32),
            "ln1_b": jnp.zeros((1, d_model), jnp.float32),
            "ln2_a": jnp.ones((1, d_model), jnp.float32),
            "ln2_b": jnp.zeros((1, d_model), jnp.float32),
            "w1": std * jax.random.normal(keys[5], (d_model, d_ff), jnp.float32),
            "b1": jnp.zeros((1, d_ff), jnp.float32),
            "w2": std * jax.random.normal(keys[6], (d_ff, d_model), jnp.float32),
            "b2": jnp.zeros((1, d_model), jnp.float32),
        }
        layers.append(p)
    final = {"alpha": jnp.ones((1, d_model), jnp.float32),
             "bias": jnp.zeros((1, d_model), jnp.float32)}
    return layers, final


if __name__ == "__main__":
    # lane-dense small shapes: D multiple of 128, S multiple of 8, dh = 128
    B, S, D, H, DFF, L = 2, 16, 512, 4, 1024, 2

    key = jax.random.PRNGKey(0)
    kx, kp = jax.random.split(key)
    x = jax.random.normal(kx, (B, S, D), jnp.float32)

    # src_mask: (B, 1, 1, S); mask out the last 3 positions of batch element 1
    src_mask = jnp.ones((B, 1, 1, S), jnp.float32)
    src_mask = src_mask.at[1, 0, 0, S - 3:].set(0.0)

    layer_params, final_norm_params = init_params(kp, L, D, DFF)

    out = encoder_forward(x, src_mask, layer_params, final_norm_params,
                          num_heads=H)
    out = jax.block_until_ready(out)
    assert out.shape == (B, S, D)
    assert bool(jnp.all(jnp.isfinite(out)))
    print("KERNEL_OK")
</pallas_src>

<mosaic_0001>
module attributes {stable_mosaic.version = 11 : i64} {
  func.func @encoder_layer_kernel(%arg0: i32, %arg1: i32, %arg2: memref<1x16x512xf32, #tpu.memory_space<vmem>>, %arg3: memref<1x16x512xf32, #tpu.memory_space<vmem>>, %arg4: memref<1x1x16xf32, #tpu.memory_space<vmem>>, %arg5: memref<512x512xbf16, #tpu.memory_space<vmem>>, %arg6: memref<1x512xf32, #tpu.memory_space<vmem>>, %arg7: memref<512x1024xbf16, #tpu.memory_space<vmem>>, %arg8: memref<1x1024xf32, #tpu.memory_space<vmem>>, %arg9: memref<4x128x512xbf16, #tpu.memory_space<vmem>>, %arg10: memref<1x512xf32, #tpu.memory_space<vmem>>, %arg11: memref<1x512xf32, #tpu.memory_space<vmem>>, %arg12: memref<1x512xf32, #tpu.memory_space<vmem>>, %arg13: memref<1x512xf32, #tpu.memory_space<vmem>>, %arg14: memref<1x512xf32, #tpu.memory_space<vmem>>, %arg15: memref<512x1024xbf16, #tpu.memory_space<vmem>>, %arg16: memref<1x1024xf32, #tpu.memory_space<vmem>>, %arg17: memref<1024x512xbf16, #tpu.memory_space<vmem>>, %arg18: memref<1x512xf32, #tpu.memory_space<vmem>>, %arg19: memref<1x512xf32, #tpu.memory_space<vmem>>, %arg20: memref<1x512xf32, #tpu.memory_space<vmem>>, %arg21: memref<1x16x512xf32, #tpu.memory_space<vmem>>) attributes {dimension_semantics = [#tpu.dimension_semantics<parallel>, #tpu.dimension_semantics<parallel>], iteration_bounds = array<i64: 2, 1>, scalar_prefetch = 0 : i64, scratch_operands = 0 : i64, tpu.core_type = #tpu.core_type<tc>, window_params = [{transform_indices = @transform_0, window_bounds = array<i64: 1, 16, 512>}, {transform_indices = @transform_1, window_bounds = array<i64: 1, 16, 512>}, {transform_indices = @transform_2, window_bounds = array<i64: 1, 1, 16>}, {pipeline_mode = #tpu.pipeline_mode<synchronous>, transform_indices = @transform_3, window_bounds = array<i64: 512, 512>}, {pipeline_mode = #tpu.pipeline_mode<synchronous>, transform_indices = @transform_4, window_bounds = array<i64: 1, 512>}, {pipeline_mode = #tpu.pipeline_mode<synchronous>, transform_indices = @transform_5, window_bounds = array<i64: 512, 1024>}, {pipeline_mode = #tpu.pipeline_mode<synchronous>, transform_indices = @transform_6, window_bounds = array<i64: 1, 1024>}, {pipeline_mode = #tpu.pipeline_mode<synchronous>, transform_indices = @transform_7, window_bounds = array<i64: 4, 128, 512>}, {pipeline_mode = #tpu.pipeline_mode<synchronous>, transform_indices = @transform_8, window_bounds = array<i64: 1, 512>}, {pipeline_mode = #tpu.pipeline_mode<synchronous>, transform_indices = @transform_9, window_bounds = array<i64: 1, 512>}, {pipeline_mode = #tpu.pipeline_mode<synchronous>, transform_indices = @transform_10, window_bounds = array<i64: 1, 512>}, {pipeline_mode = #tpu.pipeline_mode<synchronous>, transform_indices = @transform_11, window_bounds = array<i64: 1, 512>}, {pipeline_mode = #tpu.pipeline_mode<synchronous>, transform_indices = @transform_12, window_bounds = array<i64: 1, 512>}, {pipeline_mode = #tpu.pipeline_mode<synchronous>, transform_indices = @transform_13, window_bounds = array<i64: 512, 1024>}, {pipeline_mode = #tpu.pipeline_mode<synchronous>, transform_indices = @transform_14, window_bounds = array<i64: 1, 1024>}, {pipeline_mode = #tpu.pipeline_mode<synchronous>, transform_indices = @transform_15, window_bounds = array<i64: 1024, 512>}, {pipeline_mode = #tpu.pipeline_mode<synchronous>, transform_indices = @transform_16, window_bounds = array<i64: 1, 512>}, {pipeline_mode = #tpu.pipeline_mode<synchronous>, transform_indices = @transform_17, window_bounds = array<i64: 1, 512>}, {pipeline_mode = #tpu.pipeline_mode<synchronous>, transform_indices = @transform_18, window_bounds = array<i64: 1, 512>}, {transform_indices = @transform_19, window_bounds = array<i64: 1, 16, 512>}]} {
    %c0 = arith.constant 0 : index
    %c0_0 = arith.constant 0 : index
    %c0_1 = arith.constant 0 : index
    %0 = vector.load %arg2[%c0, %c0_0, %c0_1] : memref<1x16x512xf32, #tpu.memory_space<vmem>>, vector<1x16x512xf32>
    %1 = vector.shape_cast %0 : vector<1x16x512xf32> to vector<16x512xf32>
    %c0_2 = arith.constant 0 : index
    %c0_3 = arith.constant 0 : index
    %c0_4 = arith.constant 0 : index
    %2 = vector.load %arg3[%c0_2, %c0_3, %c0_4] : memref<1x16x512xf32, #tpu.memory_space<vmem>>, vector<1x16x512xf32>
    %3 = vector.shape_cast %2 : vector<1x16x512xf32> to vector<16x512xf32>
    %c0_5 = arith.constant 0 : index
    %c0_6 = arith.constant 0 : index
    %c0_7 = arith.constant 0 : index
    %4 = vector.load %arg4[%c0_5, %c0_6, %c0_7] : memref<1x1x16xf32, #tpu.memory_space<vmem>>, vector<1x1x16xf32>
    %5 = vector.shape_cast %4 : vector<1x1x16xf32> to vector<1x16xf32>
    %cst = arith.constant 0.000000e+00 : f32
    %6 = vector.broadcast %cst : f32 to vector<1x16xf32>
    %7 = arith.cmpf ogt, %5, %6 : vector<1x16xf32>
    %cst_8 = arith.constant 0.000000e+00 : f32
    %cst_9 = arith.constant -1.000000e+09 : f32
    %8 = vector.broadcast %cst_8 : f32 to vector<1x16xf32>
    %9 = vector.broadcast %cst_9 : f32 to vector<1x16xf32>
    %10 = arith.select %7, %8, %9 : vector<1x16xi1>, vector<1x16xf32>
    %c0_10 = arith.constant 0 : index
    %c0_11 = arith.constant 0 : index
    %11 = vector.load %arg11[%c0_10, %c0_11] : memref<1x512xf32, #tpu.memory_space<vmem>>, vector<1x512xf32>
    %12 = vector.shape_cast %11 : vector<1x512xf32> to vector<512xf32>
    %c0_12 = arith.constant 0 : index
    %c0_13 = arith.constant 0 : index
    %13 = vector.load %arg12[%c0_12, %c0_13] : memref<1x512xf32, #tpu.memory_space<vmem>>, vector<1x512xf32>
    %14 = vector.shape_cast %13 : vector<1x512xf32> to vector<512xf32>
    %cst_14 = arith.constant dense<0.000000e+00> : vector<16xf32>
    %15 = vector.multi_reduction <add>, %1, %cst_14 [1] : vector<16x512xf32> to vector<16xf32>
    %16 = vector.shape_cast %15 : vector<16xf32> to vector<16x1xf32>
    %cst_15 = arith.constant 5.120000e+02 : f32
    %17 = vector.broadcast %cst_15 : f32 to vector<16x1xf32>
    %18 = arith.divf %16, %17 : vector<16x1xf32>
    %19 = vector.broadcast %18 : vector<16x1xf32> to vector<16x512xf32>
    %20 = arith.subf %1, %19 : vector<16x512xf32>
    %21 = arith.mulf %20, %20 : vector<16x512xf32>
    %cst_16 = arith.constant dense<0.000000e+00> : vector<16xf32>
    %22 = vector.multi_reduction <add>, %21, %cst_16 [1] : vector<16x512xf32> to vector<16xf32>
    %23 = vector.shape_cast %22 : vector<16xf32> to vector<16x1xf32>
    %cst_17 = arith.constant 5.120000e+02 : f32
    %24 = vector.broadcast %cst_17 : f32 to vector<16x1xf32>
    %25 = arith.divf %23, %24 : vector<16x1xf32>
    %26 = vector.broadcast %18 : vector<16x1xf32> to vector<16x512xf32>
    %27 = arith.subf %1, %26 : vector<16x512xf32>
    %28 = vector.shape_cast %12 : vector<512xf32> to vector<1x512xf32>
    %29 = vector.broadcast %28 : vector<1x512xf32> to vector<16x512xf32>
    %30 = arith.mulf %29, %27 : vector<16x512xf32>
    %cst_18 = arith.constant 9.99999997E-7 : f32
    %31 = vector.broadcast %cst_18 : f32 to vector<16x1xf32>
    %32 = arith.addf %25, %31 : vector<16x1xf32>
    %33 = math.rsqrt %32 : vector<16x1xf32>
    %34 = vector.broadcast %33 : vector<16x1xf32> to vector<16x512xf32>
    %35 = arith.mulf %30, %34 : vector<16x512xf32>
    %36 = vector.shape_cast %14 : vector<512xf32> to vector<1x512xf32>
    %37 = vector.broadcast %36 : vector<1x512xf32> to vector<16x512xf32>
    %38 = arith.addf %35, %37 : vector<16x512xf32>
    %39 = arith.truncf %38 : vector<16x512xf32> to vector<16x512xbf16>
    %cst_19 = arith.constant dense<0.000000e+00> : vector<16xf32>
    %40 = vector.multi_reduction <add>, %3, %cst_19 [1] : vector<16x512xf32> to vector<16xf32>
    %41 = vector.shape_cast %40 : vector<16xf32> to vector<16x1xf32>
    %cst_20 = arith.constant 5.120000e+02 : f32
    %42 = vector.broadcast %cst_20 : f32 to vector<16x1xf32>
    %43 = arith.divf %41, %42 : vector<16x1xf32>
    %44 = vector.broadcast %43 : vector<16x1xf32> to vector<16x512xf32>
    %45 = arith.subf %3, %44 : vector<16x512xf32>
    %46 = arith.mulf %45, %45 : vector<16x512xf32>
    %cst_21 = arith.constant dense<0.000000e+00> : vector<16xf32>
    %47 = vector.multi_reduction <add>, %46, %cst_21 [1] : vector<16x512xf32> to vector<16xf32>
    %48 = vector.shape_cast %47 : vector<16xf32> to vector<16x1xf32>
    %cst_22 = arith.constant 5.120000e+02 : f32
    %49 = vector.broadcast %cst_22 : f32 to vector<16x1xf32>
    %50 = arith.divf %48, %49 : vector<16x1xf32>
    %51 = vector.broadcast %43 : vector<16x1xf32> to vector<16x512xf32>
    %52 = arith.subf %3, %51 : vector<16x512xf32>
    %53 = vector.shape_cast %12 : vector<512xf32> to vector<1x512xf32>
    %54 = vector.broadcast %53 : vector<1x512xf32> to vector<16x512xf32>
    %55 = arith.mulf %54, %52 : vector<16x512xf32>
    %cst_23 = arith.constant 9.99999997E-7 : f32
    %56 = vector.broadcast %cst_23 : f32 to vector<16x1xf32>
    %57 = arith.addf %50, %56 : vector<16x1xf32>
    %58 = math.rsqrt %57 : vector<16x1xf32>
    %59 = vector.broadcast %58 : vector<16x1xf32> to vector<16x512xf32>
    %60 = arith.mulf %55, %59 : vector<16x512xf32>
    %61 = vector.shape_cast %14 : vector<512xf32> to vector<1x512xf32>
    %62 = vector.broadcast %61 : vector<1x512xf32> to vector<16x512xf32>
    %63 = arith.addf %60, %62 : vector<16x512xf32>
    %64 = arith.truncf %63 : vector<16x512xf32> to vector<16x512xbf16>
    %c0_24 = arith.constant 0 : index
    %c0_25 = arith.constant 0 : index
    %65 = vector.load %arg5[%c0_24, %c0_25] : memref<512x512xbf16, #tpu.memory_space<vmem>>, vector<512x512xbf16>
    %cst_26 = arith.constant dense<0.000000e+00> : vector<16x512xf32>
    %66 = tpu.matmul %39, %65, %cst_26 {dimension_numbers = #tpu.dot_dimension_numbers<[1], [0], [0], [1], [0, 0, 1, 1], [], []>} : vector<16x512xbf16>, vector<512x512xbf16>, vector<16x512xf32> -> vector<16x512xf32>
    %c0_27 = arith.constant 0 : index
    %c0_28 = arith.constant 0 : index
    %67 = vector.load %arg6[%c0_27, %c0_28] : memref<1x512xf32, #tpu.memory_space<vmem>>, vector<1x512xf32>
    %68 = vector.shape_cast %67 : vector<1x512xf32> to vector<512xf32>
    %69 = vector.shape_cast %68 : vector<512xf32> to vector<1x512xf32>
    %70 = vector.broadcast %69 : vector<1x512xf32> to vector<16x512xf32>
    %71 = arith.addf %66, %70 : vector<16x512xf32>
    %72 = arith.truncf %71 : vector<16x512xf32> to vector<16x512xbf16>
    %c0_29 = arith.constant 0 : index
    %c0_30 = arith.constant 0 : index
    %73 = vector.load %arg7[%c0_29, %c0_30] : memref<512x1024xbf16, #tpu.memory_space<vmem>>, vector<512x1024xbf16>
    %cst_31 = arith.constant dense<0.000000e+00> : vector<16x1024xf32>
    %74 = tpu.matmul %64, %73, %cst_31 {dimension_numbers = #tpu.dot_dimension_numbers<[1], [0], [0], [1], [0, 0, 1, 1], [], []>} : vector<16x512xbf16>, vector<512x1024xbf16>, vector<16x1024xf32> -> vector<16x1024xf32>
    %c0_32 = arith.constant 0 : index
    %c0_33 = arith.constant 0 : index
    %75 = vector.load %arg8[%c0_32, %c0_33] : memref<1x1024xf32, #tpu.memory_space<vmem>>, vector<1x1024xf32>
    %76 = vector.shape_cast %75 : vector<1x1024xf32> to vector<1024xf32>
    %77 = vector.shape_cast %76 : vector<1024xf32> to vector<1x1024xf32>
    %78 = vector.broadcast %77 : vector<1x1024xf32> to vector<16x1024xf32>
    %79 = arith.addf %74, %78 : vector<16x1024xf32>
    %80 = arith.truncf %79 : vector<16x1024xf32> to vector<16x1024xbf16>
    %cst_34 = arith.constant 0.000000e+00 : f32
    %81 = vector.broadcast %cst_34 : f32 to vector<16x512xf32>
    %82 = vector.extract_strided_slice %72 {offsets = [0, 0], sizes = [16, 128], strides = [1, 1]} : vector<16x512xbf16> to vector<16x128xbf16>
    %83 = vector.extract_strided_slice %80 {offsets = [0, 0], sizes = [16, 128], strides = [1, 1]} : vector<16x1024xbf16> to vector<16x128xbf16>
    %84 = vector.extract_strided_slice %80 {offsets = [0, 512], sizes = [16, 128], strides = [1, 1]} : vector<16x1024xbf16> to vector<16x128xbf16>
    %cst_35 = arith.constant dense<0.000000e+00> : vector<16x16xf32>
    %85 = tpu.matmul %82, %83, %cst_35 {dimension_numbers = #tpu.dot_dimension_numbers<[1], [1], [0], [0], [0, 0, 1, 0], [], []>} : vector<16x128xbf16>, vector<16x128xbf16>, vector<16x16xf32> -> vector<16x16xf32>
    %86 = vector.broadcast %10 : vector<1x16xf32> to vector<16x16xf32>
    %87 = arith.addf %85, %86 : vector<16x16xf32>
    %cst_36 = arith.constant dense<0xFF800000> : vector<16xf32>
    %88 = vector.multi_reduction <maximumf>, %87, %cst_36 [1] : vector<16x16xf32> to vector<16xf32>
    %89 = vector.shape_cast %88 : vector<16xf32> to vector<16x1xf32>
    %90 = vector.broadcast %89 : vector<16x1xf32> to vector<16x16xf32>
    %91 = arith.subf %87, %90 : vector<16x16xf32>
    %92 = math.exp %91 : vector<16x16xf32>
    %cst_37 = arith.constant dense<0.000000e+00> : vector<16xf32>
    %93 = vector.multi_reduction <add>, %92, %cst_37 [1] : vector<16x16xf32> to vector<16xf32>
    %94 = vector.shape_cast %93 : vector<16xf32> to vector<16x1xf32>
    %95 = tpu.reciprocal %94 {approx = true} : vector<16x1xf32> -> vector<16x1xf32>
    %96 = arith.truncf %92 : vector<16x16xf32> to vector<16x16xbf16>
    %cst_38 = arith.constant dense<0.000000e+00> : vector<16x128xf32>
    %97 = tpu.matmul %96, %84, %cst_38 {dimension_numbers = #tpu.dot_dimension_numbers<[1], [0], [0], [1], [0, 0, 1, 1], [], []>} : vector<16x16xbf16>, vector<16x128xbf16>, vector<16x128xf32> -> vector<16x128xf32>
    %98 = vector.broadcast %95 : vector<16x1xf32> to vector<16x128xf32>
    %99 = arith.mulf %97, %98 : vector<16x128xf32>
    %100 = arith.truncf %99 : vector<16x128xf32> to vector<16x128xbf16>
    %c0_39 = arith.constant 0 : index
    %c0_40 = arith.constant 0 : index
    %c0_41 = arith.constant 0 : index
    %101 = vector.load %arg9[%c0_39, %c0_40, %c0_41] : memref<4x128x512xbf16, #tpu.memory_space<vmem>>, vector<1x128x512xbf16>
    %102 = vector.shape_cast %101 : vector<1x128x512xbf16> to vector<128x512xbf16>
    %cst_42 = arith.constant dense<0.000000e+00> : vector<16x512xf32>
    %103 = tpu.matmul %100, %102, %cst_42 {dimension_numbers = #tpu.dot_dimension_numbers<[1], [0], [0], [1], [0, 0, 1, 1], [], []>} : vector<16x128xbf16>, vector<128x512xbf16>, vector<16x512xf32> -> vector<16x512xf32>
    %104 = arith.addf %81, %103 : vector<16x512xf32>
    %105 = vector.extract_strided_slice %72 {offsets = [0, 128], sizes = [16, 128], strides = [1, 1]} : vector<16x512xbf16> to vector<16x128xbf16>
    %106 = vector.extract_strided_slice %80 {offsets = [0, 128], sizes = [16, 128], strides = [1, 1]} : vector<16x1024xbf16> to vector<16x128xbf16>
    %107 = vector.extract_strided_slice %80 {offsets = [0, 640], sizes = [16, 128], strides = [1, 1]} : vector<16x1024xbf16> to vector<16x128xbf16>
    %cst_43 = arith.constant dense<0.000000e+00> : vector<16x16xf32>
    %108 = tpu.matmul %105, %106, %cst_43 {dimension_numbers = #tpu.dot_dimension_numbers<[1], [1], [0], [0], [0, 0, 1, 0], [], []>} : vector<16x128xbf16>, vector<16x128xbf16>, vector<16x16xf32> -> vector<16x16xf32>
    %109 = vector.broadcast %10 : vector<1x16xf32> to vector<16x16xf32>
    %110 = arith.addf %108, %109 : vector<16x16xf32>
    %cst_44 = arith.constant dense<0xFF800000> : vector<16xf32>
    %111 = vector.multi_reduction <maximumf>, %110, %cst_44 [1] : vector<16x16xf32> to vector<16xf32>
    %112 = vector.shape_cast %111 : vector<16xf32> to vector<16x1xf32>
    %113 = vector.broadcast %112 : vector<16x1xf32> to vector<16x16xf32>
    %114 = arith.subf %110, %113 : vector<16x16xf32>
    %115 = math.exp %114 : vector<16x16xf32>
    %cst_45 = arith.constant dense<0.000000e+00> : vector<16xf32>
    %116 = vector.multi_reduction <add>, %115, %cst_45 [1] : vector<16x16xf32> to vector<16xf32>
    %117 = vector.shape_cast %116 : vector<16xf32> to vector<16x1xf32>
    %118 = tpu.reciprocal %117 {approx = true} : vector<16x1xf32> -> vector<16x1xf32>
    %119 = arith.truncf %115 : vector<16x16xf32> to vector<16x16xbf16>
    %cst_46 = arith.constant dense<0.000000e+00> : vector<16x128xf32>
    %120 = tpu.matmul %119, %107, %cst_46 {dimension_numbers = #tpu.dot_dimension_numbers<[1], [0], [0], [1], [0, 0, 1, 1], [], []>} : vector<16x16xbf16>, vector<16x128xbf16>, vector<16x128xf32> -> vector<16x128xf32>
    %121 = vector.broadcast %118 : vector<16x1xf32> to vector<16x128xf32>
    %122 = arith.mulf %120, %121 : vector<16x128xf32>
    %123 = arith.truncf %122 : vector<16x128xf32> to vector<16x128xbf16>
    %c1 = arith.constant 1 : index
    %c0_47 = arith.constant 0 : index
    %c0_48 = arith.constant 0 : index
    %124 = vector.load %arg9[%c1, %c0_47, %c0_48] : memref<4x128x512xbf16, #tpu.memory_space<vmem>>, vector<1x128x512xbf16>
    %125 = vector.shape_cast %124 : vector<1x128x512xbf16> to vector<128x512xbf16>
    %cst_49 = arith.constant dense<0.000000e+00> : vector<16x512xf32>
    %126 = tpu.matmul %123, %125, %cst_49 {dimension_numbers = #tpu.dot_dimension_numbers<[1], [0], [0], [1], [0, 0, 1, 1], [], []>} : vector<16x128xbf16>, vector<128x512xbf16>, vector<16x512xf32> -> vector<16x512xf32>
    %127 = arith.addf %104, %126 : vector<16x512xf32>
    %128 = vector.extract_strided_slice %72 {offsets = [0, 256], sizes = [16, 128], strides = [1, 1]} : vector<16x512xbf16> to vector<16x128xbf16>
    %129 = vector.extract_strided_slice %80 {offsets = [0, 256], sizes = [16, 128], strides = [1, 1]} : vector<16x1024xbf16> to vector<16x128xbf16>
    %130 = vector.extract_strided_slice %80 {offsets = [0, 768], sizes = [16, 128], strides = [1, 1]} : vector<16x1024xbf16> to vector<16x128xbf16>
    %cst_50 = arith.constant dense<0.000000e+00> : vector<16x16xf32>
    %131 = tpu.matmul %128, %129, %cst_50 {dimension_numbers = #tpu.dot_dimension_numbers<[1], [1], [0], [0], [0, 0, 1, 0], [], []>} : vector<16x128xbf16>, vector<16x128xbf16>, vector<16x16xf32> -> vector<16x16xf32>
    %132 = vector.broadcast %10 : vector<1x16xf32> to vector<16x16xf32>
    %133 = arith.addf %131, %132 : vector<16x16xf32>
    %cst_51 = arith.constant dense<0xFF800000> : vector<16xf32>
    %134 = vector.multi_reduction <maximumf>, %133, %cst_51 [1] : vector<16x16xf32> to vector<16xf32>
    %135 = vector.shape_cast %134 : vector<16xf32> to vector<16x1xf32>
    %136 = vector.broadcast %135 : vector<16x1xf32> to vector<16x16xf32>
    %137 = arith.subf %133, %136 : vector<16x16xf32>
    %138 = math.exp %137 : vector<16x16xf32>
    %cst_52 = arith.constant dense<0.000000e+00> : vector<16xf32>
    %139 = vector.multi_reduction <add>, %138, %cst_52 [1] : vector<16x16xf32> to vector<16xf32>
    %140 = vector.shape_cast %139 : vector<16xf32> to vector<16x1xf32>
    %141 = tpu.reciprocal %140 {approx = true} : vector<16x1xf32> -> vector<16x1xf32>
    %142 = arith.truncf %138 : vector<16x16xf32> to vector<16x16xbf16>
    %cst_53 = arith.constant dense<0.000000e+00> : vector<16x128xf32>
    %143 = tpu.matmul %142, %130, %cst_53 {dimension_numbers = #tpu.dot_dimension_numbers<[1], [0], [0], [1], [0, 0, 1, 1], [], []>} : vector<16x16xbf16>, vector<16x128xbf16>, vector<16x128xf32> -> vector<16x128xf32>
    %144 = vector.broadcast %141 : vector<16x1xf32> to vector<16x128xf32>
    %145 = arith.mulf %143, %144 : vector<16x128xf32>
    %146 = arith.truncf %145 : vector<16x128xf32> to vector<16x128xbf16>
    %c2 = arith.constant 2 : index
    %c0_54 = arith.constant 0 : index
    %c0_55 = arith.constant 0 : index
    %147 = vector.load %arg9[%c2, %c0_54, %c0_55] : memref<4x128x512xbf16, #tpu.memory_space<vmem>>, vector<1x128x512xbf16>
    %148 = vector.shape_cast %147 : vector<1x128x512xbf16> to vector<128x512xbf16>
    %cst_56 = arith.constant dense<0.000000e+00> : vector<16x512xf32>
    %149 = tpu.matmul %146, %148, %cst_56 {dimension_numbers = #tpu.dot_dimension_numbers<[1], [0], [0], [1], [0, 0, 1, 1], [], []>} : vector<16x128xbf16>, vector<128x512xbf16>, vector<16x512xf32> -> vector<16x512xf32>
    %150 = arith.addf %127, %149 : vector<16x512xf32>
    %151 = vector.extract_strided_slice %72 {offsets = [0, 384], sizes = [16, 128], strides = [1, 1]} : vector<16x512xbf16> to vector<16x128xbf16>
    %152 = vector.extract_strided_slice %80 {offsets = [0, 384], sizes = [16, 128], strides = [1, 1]} : vector<16x1024xbf16> to vector<16x128xbf16>
    %153 = vector.extract_strided_slice %80 {offsets = [0, 896], sizes = [16, 128], strides = [1, 1]} : vector<16x1024xbf16> to vector<16x128xbf16>
    %cst_57 = arith.constant dense<0.000000e+00> : vector<16x16xf32>
    %154 = tpu.matmul %151, %152, %cst_57 {dimension_numbers = #tpu.dot_dimension_numbers<[1], [1], [0], [0], [0, 0, 1, 0], [], []>} : vector<16x128xbf16>, vector<16x128xbf16>, vector<16x16xf32> -> vector<16x16xf32>
    %155 = vector.broadcast %10 : vector<1x16xf32> to vector<16x16xf32>
    %156 = arith.addf %154, %155 : vector<16x16xf32>
    %cst_58 = arith.constant dense<0xFF800000> : vector<16xf32>
    %157 = vector.multi_reduction <maximumf>, %156, %cst_58 [1] : vector<16x16xf32> to vector<16xf32>
    %158 = vector.shape_cast %157 : vector<16xf32> to vector<16x1xf32>
    %159 = vector.broadcast %158 : vector<16x1xf32> to vector<16x16xf32>
    %160 = arith.subf %156, %159 : vector<16x16xf32>
    %161 = math.exp %160 : vector<16x16xf32>
    %cst_59 = arith.constant dense<0.000000e+00> : vector<16xf32>
    %162 = vector.multi_reduction <add>, %161, %cst_59 [1] : vector<16x16xf32> to vector<16xf32>
    %163 = vector.shape_cast %162 : vector<16xf32> to vector<16x1xf32>
    %164 = tpu.reciprocal %163 {approx = true} : vector<16x1xf32> -> vector<16x1xf32>
    %165 = arith.truncf %161 : vector<16x16xf32> to vector<16x16xbf16>
    %cst_60 = arith.constant dense<0.000000e+00> : vector<16x128xf32>
    %166 = tpu.matmul %165, %153, %cst_60 {dimension_numbers = #tpu.dot_dimension_numbers<[1], [0], [0], [1], [0, 0, 1, 1], [], []>} : vector<16x16xbf16>, vector<16x128xbf16>, vector<16x128xf32> -> vector<16x128xf32>
    %167 = vector.broadcast %164 : vector<16x1xf32> to vector<16x128xf32>
    %168 = arith.mulf %166, %167 : vector<16x128xf32>
    %169 = arith.truncf %168 : vector<16x128xf32> to vector<16x128xbf16>
    %c3 = arith.constant 3 : index
    %c0_61 = arith.constant 0 : index
    %c0_62 = arith.constant 0 : index
    %170 = vector.load %arg9[%c3, %c0_61, %c0_62] : memref<4x128x512xbf16, #tpu.memory_space<vmem>>, vector<1x128x512xbf16>
    %171 = vector.shape_cast %170 : vector<1x128x512xbf16> to vector<128x512xbf16>
    %cst_63 = arith.constant dense<0.000000e+00> : vector<16x512xf32>
    %172 = tpu.matmul %169, %171, %cst_63 {dimension_numbers = #tpu.dot_dimension_numbers<[1], [0], [0], [1], [0, 0, 1, 1], [], []>} : vector<16x128xbf16>, vector<128x512xbf16>, vector<16x512xf32> -> vector<16x512xf32>
    %173 = arith.addf %150, %172 : vector<16x512xf32>
    %174 = arith.addf %1, %173 : vector<16x512xf32>
    %c0_64 = arith.constant 0 : index
    %c0_65 = arith.constant 0 : index
    %175 = vector.load %arg10[%c0_64, %c0_65] : memref<1x512xf32, #tpu.memory_space<vmem>>, vector<1x512xf32>
    %176 = vector.shape_cast %175 : vector<1x512xf32> to vector<512xf32>
    %177 = vector.shape_cast %176 : vector<512xf32> to vector<1x512xf32>
    %178 = vector.broadcast %177 : vector<1x512xf32> to vector<16x512xf32>
    %179 = arith.addf %174, %178 : vector<16x512xf32>
    %c0_66 = arith.constant 0 : index
    %c0_67 = arith.constant 0 : index
    %180 = vector.load %arg13[%c0_66, %c0_67] : memref<1x512xf32, #tpu.memory_space<vmem>>, vector<1x512xf32>
    %181 = vector.shape_cast %180 : vector<1x512xf32> to vector<512xf32>
    %c0_68 = arith.constant 0 : index
    %c0_69 = arith.constant 0 : index
    %182 = vector.load %arg14[%c0_68, %c0_69] : memref<1x512xf32, #tpu.memory_space<vmem>>, vector<1x512xf32>
    %183 = vector.shape_cast %182 : vector<1x512xf32> to vector<512xf32>
    %cst_70 = arith.constant dense<0.000000e+00> : vector<16xf32>
    %184 = vector.multi_reduction <add>, %179, %cst_70 [1] : vector<16x512xf32> to vector<16xf32>
    %185 = vector.shape_cast %184 : vector<16xf32> to vector<16x1xf32>
    %cst_71 = arith.constant 5.120000e+02 : f32
    %186 = vector.broadcast %cst_71 : f32 to vector<16x1xf32>
    %187 = arith.divf %185, %186 : vector<16x1xf32>
    %188 = vector.broadcast %187 : vector<16x1xf32> to vector<16x512xf32>
    %189 = arith.subf %179, %188 : vector<16x512xf32>
    %190 = arith.mulf %189, %189 : vector<16x512xf32>
    %cst_72 = arith.constant dense<0.000000e+00> : vector<16xf32>
    %191 = vector.multi_reduction <add>, %190, %cst_72 [1] : vector<16x512xf32> to vector<16xf32>
    %192 = vector.shape_cast %191 : vector<16xf32> to vector<16x1xf32>
    %cst_73 = arith.constant 5.120000e+02 : f32
    %193 = vector.broadcast %cst_73 : f32 to vector<16x1xf32>
    %194 = arith.divf %192, %193 : vector<16x1xf32>
    %195 = vector.broadcast %187 : vector<16x1xf32> to vector<16x512xf32>
    %196 = arith.subf %179, %195 : vector<16x512xf32>
    %197 = vector.shape_cast %181 : vector<512xf32> to vector<1x512xf32>
    %198 = vector.broadcast %197 : vector<1x512xf32> to vector<16x512xf32>
    %199 = arith.mulf %198, %196 : vector<16x512xf32>
    %cst_74 = arith.constant 9.99999997E-7 : f32
    %200 = vector.broadcast %cst_74 : f32 to vector<16x1xf32>
    %201 = arith.addf %194, %200 : vector<16x1xf32>
    %202 = math.rsqrt %201 : vector<16x1xf32>
    %203 = vector.broadcast %202 : vector<16x1xf32> to vector<16x512xf32>
    %204 = arith.mulf %199, %203 : vector<16x512xf32>
    %205 = vector.shape_cast %183 : vector<512xf32> to vector<1x512xf32>
    %206 = vector.broadcast %205 : vector<1x512xf32> to vector<16x512xf32>
    %207 = arith.addf %204, %206 : vector<16x512xf32>
    %208 = arith.truncf %207 : vector<16x512xf32> to vector<16x512xbf16>
    %c0_75 = arith.constant 0 : index
    %c0_76 = arith.constant 0 : index
    %209 = vector.load %arg15[%c0_75, %c0_76] : memref<512x1024xbf16, #tpu.memory_space<vmem>>, vector<512x1024xbf16>
    %cst_77 = arith.constant dense<0.000000e+00> : vector<16x1024xf32>
    %210 = tpu.matmul %208, %209, %cst_77 {dimension_numbers = #tpu.dot_dimension_numbers<[1], [0], [0], [1], [0, 0, 1, 1], [], []>} : vector<16x512xbf16>, vector<512x1024xbf16>, vector<16x1024xf32> -> vector<16x1024xf32>
    %c0_78 = arith.constant 0 : index
    %c0_79 = arith.constant 0 : index
    %211 = vector.load %arg16[%c0_78, %c0_79] : memref<1x1024xf32, #tpu.memory_space<vmem>>, vector<1x1024xf32>
    %212 = vector.shape_cast %211 : vector<1x1024xf32> to vector<1024xf32>
    %213 = vector.shape_cast %212 : vector<1024xf32> to vector<1x1024xf32>
    %214 = vector.broadcast %213 : vector<1x1024xf32> to vector<16x1024xf32>
    %215 = arith.addf %210, %214 : vector<16x1024xf32>
    %cst_80 = arith.constant 0.000000e+00 : f32
    %216 = vector.broadcast %cst_80 : f32 to vector<16x1024xf32>
    %217 = arith.maximumf %215, %216 : vector<16x1024xf32>
    %218 = arith.truncf %217 : vector<16x1024xf32> to vector<16x1024xbf16>
    %c0_81 = arith.constant 0 : index
    %c0_82 = arith.constant 0 : index
    %219 = vector.load %arg17[%c0_81, %c0_82] : memref<1024x512xbf16, #tpu.memory_space<vmem>>, vector<1024x512xbf16>
    %cst_83 = arith.constant dense<0.000000e+00> : vector<16x512xf32>
    %220 = tpu.matmul %218, %219, %cst_83 {dimension_numbers = #tpu.dot_dimension_numbers<[1], [0], [0], [1], [0, 0, 1, 1], [], []>} : vector<16x1024xbf16>, vector<1024x512xbf16>, vector<16x512xf32> -> vector<16x512xf32>
    %221 = arith.addf %179, %220 : vector<16x512xf32>
    %c0_84 = arith.constant 0 : index
    %c0_85 = arith.constant 0 : index
    %222 = vector.load %arg18[%c0_84, %c0_85] : memref<1x512xf32, #tpu.memory_space<vmem>>, vector<1x512xf32>
    %223 = vector.shape_cast %222 : vector<1x512xf32> to vector<512xf32>
    %224 = vector.shape_cast %223 : vector<512xf32> to vector<1x512xf32>
    %225 = vector.broadcast %224 : vector<1x512xf32> to vector<16x512xf32>
    %226 = arith.addf %221, %225 : vector<16x512xf32>
    %c0_86 = arith.constant 0 : index
    %c0_87 = arith.constant 0 : index
    %c0_88 = arith.constant 0 : index
    %227 = vector.load %arg21[%c0_86, %c0_87, %c0_88] : memref<1x16x512xf32, #tpu.memory_space<vmem>>, vector<1x16x512xf32>
    %228 = vector.shape_cast %227 : vector<1x16x512xf32> to vector<16x512xf32>
    %229 = vector.shape_cast %226 : vector<16x512xf32> to vector<1x16x512xf32>
    tpu.vector_store %arg21[%c0_86, %c0_87, %c0_88], %229 {strides = array<i32>} : memref<1x16x512xf32, #tpu.memory_space<vmem>>, vector<1x16x512xf32>,
    return
  }
  func.func @transform_0(%arg0: i32, %arg1: i32) -> (i32, i32, i32) {
    %c0_i32 = arith.constant 0 : i32
    %c0_i32_0 = arith.constant 0 : i32
    return %arg0, %arg1, %c0_i32 : i32, i32, i32
  }
  func.func @transform_1(%arg0: i32, %arg1: i32) -> (i32, i32, i32) {
    %c0_i32 = arith.constant 0 : i32
    %c0_i32_0 = arith.constant 0 : i32
    %c0_i32_1 = arith.constant 0 : i32
    return %arg0, %c0_i32, %c0_i32_0 : i32, i32, i32
  }
  func.func @transform_2(%arg0: i32, %arg1: i32) -> (i32, i32, i32) {
    %c0_i32 = arith.constant 0 : i32
    %c0_i32_0 = arith.constant 0 : i32
    %c0_i32_1 = arith.constant 0 : i32
    return %arg0, %c0_i32, %c0_i32_0 : i32, i32, i32
  }
  func.func @transform_3(%arg0: i32, %arg1: i32) -> (i32, i32) {
    %c0_i32 = arith.constant 0 : i32
    %c0_i32_0 = arith.constant 0 : i32
    %c0_i32_1 = arith.constant 0 : i32
    return %c0_i32, %c0_i32_0 : i32, i32
  }
  func.func @transform_4(%arg0: i32, %arg1: i32) -> (i32, i32) {
    %c0_i32 = arith.constant 0 : i32
    %c0_i32_0 = arith.constant 0 : i32
    %c0_i32_1 = arith.constant 0 : i32
    return %c0_i32, %c0_i32_0 : i32, i32
  }
  func.func @transform_5(%arg0: i32, %arg1: i32) -> (i32, i32) {
    %c0_i32 = arith.constant 0 : i32
    %c0_i32_0 = arith.constant 0 : i32
    %c0_i32_1 = arith.constant 0 : i32
    return %c0_i32, %c0_i32_0 : i32, i32
  }
  func.func @transform_6(%arg0: i32, %arg1: i32) -> (i32, i32) {
    %c0_i32 = arith.constant 0 : i32
    %c0_i32_0 = arith.constant 0 : i32
    %c0_i32_1 = arith.constant 0 : i32
    return %c0_i32, %c0_i32_0 : i32, i32
  }
  func.func @transform_7(%arg0: i32, %arg1: i32) -> (i32, i32, i32) {
    %c0_i32 = arith.constant 0 : i32
    %c0_i32_0 = arith.constant 0 : i32
    %c0_i32_1 = arith.constant 0 : i32
    %c0_i32_2 = arith.constant 0 : i32
    return %c0_i32, %c0_i32_0, %c0_i32_1 : i32, i32, i32
  }
  func.func @transform_8(%arg0: i32, %arg1: i32) -> (i32, i32) {
    %c0_i32 = arith.constant 0 : i32
    %c0_i32_0 = arith.constant 0 : i32
    %c0_i32_1 = arith.constant 0 : i32
    return %c0_i32, %c0_i32_0 : i32, i32
  }
  func.func @transform_9(%arg0: i32, %arg1: i32) -> (i32, i32) {
    %c0_i32 = arith.constant 0 : i32
    %c0_i32_0 = arith.constant 0 : i32
    %c0_i32_1 = arith.constant 0 : i32
    return %c0_i32, %c0_i32_0 : i32, i32
  }
  func.func @transform_10(%arg0: i32, %arg1: i32) -> (i32, i32) {
    %c0_i32 = arith.constant 0 : i32
    %c0_i32_0 = arith.constant 0 : i32
    %c0_i32_1 = arith.constant 0 : i32
    return %c0_i32, %c0_i32_0 : i32, i32
  }
  func.func @transform_11(%arg0: i32, %arg1: i32) -> (i32, i32) {
    %c0_i32 = arith.constant 0 : i32
    %c0_i32_0 = arith.constant 0 : i32
    %c0_i32_1 = arith.constant 0 : i32
    return %c0_i32, %c0_i32_0 : i32, i32
  }
  func.func @transform_12(%arg0: i32, %arg1: i32) -> (i32, i32) {
    %c0_i32 = arith.constant 0 : i32
    %c0_i32_0 = arith.constant 0 : i32
    %c0_i32_1 = arith.constant 0 : i32
    return %c0_i32, %c0_i32_0 : i32, i32
  }
  func.func @transform_13(%arg0: i32, %arg1: i32) -> (i32, i32) {
    %c0_i32 = arith.constant 0 : i32
    %c0_i32_0 = arith.constant 0 : i32
    %c0_i32_1 = arith.constant 0 : i32
    return %c0_i32, %c0_i32_0 : i32, i32
  }
  func.func @transform_14(%arg0: i32, %arg1: i32) -> (i32, i32) {
    %c0_i32 = arith.constant 0 : i32
    %c0_i32_0 = arith.constant 0 : i32
    %c0_i32_1 = arith.constant 0 : i32
    return %c0_i32, %c0_i32_0 : i32, i32
  }
  func.func @transform_15(%arg0: i32, %arg1: i32) -> (i32, i32) {
    %c0_i32 = arith.constant 0 : i32
    %c0_i32_0 = arith.constant 0 : i32
    %c0_i32_1 = arith.constant 0 : i32
    return %c0_i32, %c0_i32_0 : i32, i32
  }
  func.func @transform_16(%arg0: i32, %arg1: i32) -> (i32, i32) {
    %c0_i32 = arith.constant 0 : i32
    %c0_i32_0 = arith.constant 0 : i32
    %c0_i32_1 = arith.constant 0 : i32
    return %c0_i32, %c0_i32_0 : i32, i32
  }
  func.func @transform_17(%arg0: i32, %arg1: i32) -> (i32, i32) {
    %c0_i32 = arith.constant 0 : i32
    %c0_i32_0 = arith.constant 0 : i32
    %c0_i32_1 = arith.constant 0 : i32
    return %c0_i32, %c0_i32_0 : i32, i32
  }
  func.func @transform_18(%arg0: i32, %arg1: i32) -> (i32, i32) {
    %c0_i32 = arith.constant 0 : i32
    %c0_i32_0 = arith.constant 0 : i32
    %c0_i32_1 = arith.constant 0 : i32
    return %c0_i32, %c0_i32_0 : i32, i32
  }
  func.func @transform_19(%arg0: i32, %arg1: i32) -> (i32, i32, i32) {
    %c0_i32 = arith.constant 0 : i32
    %c0_i32_0 = arith.constant 0 : i32
    return %arg0, %arg1, %c0_i32 : i32, i32, i32
  }
}

</mosaic_0001>

<llo_original>
// kernel: tpu_custom_call.1
$region0: #{tpu_custom_call.1}
  #allocation0 [shape = 'u32[]', space=smem, size = 0x4, offset = 0x4, fixed_abs, tag = 'smem constant byte address 0x4 - core index']
  #allocation1 [shape = 'u32[144,128]{1,0:T(1,128)}', space=vmem, size = 0x12000, scoped, tag = 'internal scratch']
  %s0 = inlined_call_operand.hbm [shape: f32[2,16,512], index: 0, kind: input, shape index: {}]
  %s1 = inlined_call_operand.hbm [shape: f32[2,16,512], index: 1, kind: input, shape index: {}]
  %s2 = inlined_call_operand.hbm [shape: f32[2,1,16], index: 2, kind: input, shape index: {}]
  %s3 = inlined_call_operand.hbm [shape: bf16[512,512], index: 3, kind: input, shape index: {}]
  %s4 = inlined_call_operand.hbm [shape: f32[1,512], index: 4, kind: input, shape index: {}]
  %s5 = inlined_call_operand.hbm [shape: bf16[512,1024], index: 5, kind: input, shape index: {}]
  %s6 = inlined_call_operand.vmem [shape: f32[1,1024], index: 6, kind: input, shape index: {}]
  %s7 = inlined_call_operand.hbm [shape: bf16[4,128,512], index: 7, kind: input, shape index: {}]
  %s8 = inlined_call_operand.vmem [shape: f32[1,512], index: 8, kind: input, shape index: {}]
  %s9 = inlined_call_operand.vmem [shape: f32[1,512], index: 9, kind: input, shape index: {}]
  %s10 = inlined_call_operand.vmem [shape: f32[1,512], index: 10, kind: input, shape index: {}]
  %s11 = inlined_call_operand.vmem [shape: f32[1,512], index: 11, kind: input, shape index: {}]
  %s12 = inlined_call_operand.vmem [shape: f32[1,512], index: 12, kind: input, shape index: {}]
  %s13 = inlined_call_operand.hbm [shape: bf16[512,1024], index: 13, kind: input, shape index: {}]
  %s14 = inlined_call_operand.vmem [shape: f32[1,1024], index: 14, kind: input, shape index: {}]
  %s15 = inlined_call_operand.hbm [shape: bf16[1024,512], index: 15, kind: input, shape index: {}]
  %s16 = inlined_call_operand.vmem [shape: f32[1,512], index: 16, kind: input, shape index: {}]
  %s17 = inlined_call_operand.vmem [shape: f32[1,512], index: 17, kind: input, shape index: {}]
  %s18 = inlined_call_operand.vmem [shape: f32[1,512], index: 18, kind: input, shape index: {}]
  %s19 = inlined_call_operand.hbm [shape: f32[2,16,512], index: 19, kind: output, shape index: {}]
  %s20 = sld [smem:[#allocation0]]
  $region145: #{tpu_custom_call.1} parent=0
    _
  %s22 = ssub.s32 1, %s20
  %s23 = scalar_select 0, %s22, %s20
  $region1: #{tpu_custom_call.1} parent=0
    #allocation2 [shape = 'u8[65536]{0}', space=vmem, size = 0x10000, scoped, tag = 'input window, operand 0']
    #allocation3 [shape = 's32[2]{0}', space=sflag, size = 0x8, scoped, tag = 'scoped memory for tpu_custom_call.1']
    #allocation4 [shape = 's32[2]{0}', space=sflag, size = 0x8, scoped, tag = 'scoped memory for tpu_custom_call.1']
    #allocation5 [shape = 'u8[65536]{0}', space=vmem, size = 0x10000, scoped, tag = 'input window, operand 1']
    #allocation6 [shape = 's32[2]{0}', space=sflag, size = 0x8, scoped, tag = 'scoped memory for tpu_custom_call.1']
    #allocation7 [shape = 'u8[1024]{0}', space=vmem, size = 0x400, scoped, tag = 'input window, operand 2']
    #allocation8 [shape = 'u8[524288]{0}', space=vmem, size = 0x80000, scoped, tag = 'input window, operand 3, single buffered']
    #allocation9 [shape = 's32[1]{0}', space=sflag, size = 0x4, scoped, tag = 'scoped memory for tpu_custom_call.1']
    #allocation10 [shape = 'u8[2048]{0}', space=vmem, size = 0x800, scoped, tag = 'input window, operand 4, single buffered']
    #allocation11 [shape = 'u8[1048576]{0}', space=vmem, size = 0x100000, scoped, tag = 'input window, operand 5, single buffered']
    #allocation12 [shape = 's32[1]{0}', space=sflag, size = 0x4, scoped, tag = 'scoped memory for tpu_custom_call.1']
    #allocation13 [shape = 'u8[524288]{0}', space=vmem, size = 0x80000, scoped, tag = 'input window, operand 7, single buffered']
    #allocation14 [shape = 'u8[1048576]{0}', space=vmem, size = 0x100000, scoped, tag = 'input window, operand 13, single buffered']
    #allocation15 [shape = 's32[1]{0}', space=sflag, size = 0x4, scoped, tag = 'scoped memory for tpu_custom_call.1']
    #allocation16 [shape = 'u8[1048576]{0}', space=vmem, size = 0x100000, scoped, tag = 'input window, operand 15, single buffered']
    #allocation17 [shape = 'u8[65536]{0}', space=vmem, size = 0x10000, scoped, tag = 'output window, operand 0']
    %24 = vsyncpa [#allocation3], 0
    %s25 = scalar_lea.sflag [#allocation3], 1
    %26 = vsyncpa %s25, 0
    %27 = vsyncpa [#allocation6], 0
    %s28 = scalar_lea.sflag [#allocation6], 1
    %29 = vsyncpa %s28, 0
    %30 = vsyncpa [#allocation9], 0
    %31 = vsyncpa [#allocation12], 0
    %32 = vsyncpa [#allocation15], 0
    %33 = vsyncpa [#allocation4], 0
    %s34 = scalar_lea.sflag [#allocation4], 1
    %35 = vsyncpa %s34, 0
    loop: start=0, step=1, limit=4
    $region2: #{tpu_custom_call.1} parent=1 // loop_pre_header
      _
    $region3: #{tpu_custom_call.1} parent=1 // loop_header
      %s37 = sphi 0, %s41
      %p38 = scmp.ge.s32.totalorder %s37, 4
      %s44 = sphi 0, %s56
      %s45 = sphi 0, %s52
      %s46 = sphi 0, %s44
      %s47 = sphi 0, %s45
      %s48 = sphi 0, %s46
      %s49 = sphi 0, %s47
      %s61 = sphi 0, %s63
      %s64 = sphi 0, %s61
      %s65 = sphi 0, %s64
      %s81 = sphi 0, %s65
      %s87 = sphi 0, %s89
      %s90 = sphi 0, %s87
      %s91 = sphi 0, %s90
      %s107 = sphi 0, %s91
      %s113 = sphi 0, %s115
      %s116 = sphi 0, %s113
      %s117 = sphi 0, %s116
      %s133 = sphi 0, %s117
      %s137 = sphi 0, %s137
      %s139 = sphi 0, %s137
      %s140 = sphi 0, %s139
      %s154 = sphi 0, %s140
      %s158 = sphi 0, %s158
      %s160 = sphi 0, %s158
      %s161 = sphi 0, %s160
      %s175 = sphi 0, %s161
      %s179 = sphi 0, %s179
      %s181 = sphi 0, %s179
      %s182 = sphi 0, %s181
      %s196 = sphi 0, %s182
      %s200 = sphi 0, %s200
      %s202 = sphi 0, %s200
      %s203 = sphi 0, %s202
      %s217 = sphi 0, %s203
      %s221 = sphi 0, %s221
      %s223 = sphi 0, %s221
      %s224 = sphi 0, %s223
      %s238 = sphi 0, %s224
      %s242 = sphi 0, %s242
      %s244 = sphi 0, %s242
      %s245 = sphi 0, %s244
      %s259 = sphi 0, %s245
      %s263 = sphi 0, %s263
      %s265 = sphi 0, %s263
      %s266 = sphi 0, %s265
      %s280 = sphi 0, %s266
      %s284 = sphi 0, %s284
      %s286 = sphi 0, %s284
      %s287 = sphi 0, %s286
      %s301 = sphi 0, %s287
      %s305 = sphi 0, %s305
      %s307 = sphi 0, %s305
      %s308 = sphi 0, %s307
      %s322 = sphi 0, %s308
      %s326 = sphi 0, %s326
      %s328 = sphi 0, %s326
      %s329 = sphi 0, %s328
      %s343 = sphi 0, %s329
      %s347 = sphi 0, %s347
      %s349 = sphi 0, %s347
      %s350 = sphi 0, %s349
      %s364 = sphi 0, %s350
      %s368 = sphi 0, %s368
      %s370 = sphi 0, %s368
      %s371 = sphi 0, %s370
      %s385 = sphi 0, %s371
      %s389 = sphi 0, %s389
      %s391 = sphi 0, %s389
      %s392 = sphi 0, %s391
      %s406 = sphi 0, %s392
      %s410 = sphi 0, %s410
      %s412 = sphi 0, %s410
      %s413 = sphi 0, %s412
      %s427 = sphi 0, %s413
      %s431 = sphi 0, %s431
      %s433 = sphi 0, %s431
      %s434 = sphi 0, %s433
      %s448 = sphi 0, %s434
      %s452 = sphi 0, %s452
      %s454 = sphi 0, %s452
      %s455 = sphi 0, %s454
      %s469 = sphi 0, %s455
      %s477 = sphi 0, %s479
      %s480 = sphi 0, %s477
      %s481 = sphi 0, %s480
      %s497 = sphi 0, %s481
    $region4: #{tpu_custom_call.1} parent=1 // loop_header_branch
      %40 = sbr.rel (%p38) target = $region8
    $region5: #{tpu_custom_call.1} parent=1 // loop_body
      %s42 = ssub.s32 %s37, 1
      %s43 = ssub.s32 %s37, 2
      %s50 = sadd.s32 1, %s45
      %p51 = scmp.ge.s32.totalorder %s50, 1
      %s52 = scalar_select %p51, 0, %s50
      %s53 = sadd.s32 1, %s44
      %s54 = scalar_select %p51, %s53, %s44
      %p55 = scmp.ge.s32.totalorder %s54, 2
      %s56 = scalar_select %p55, 0, %s54
      %s57 = ssub.s32 %s44, %s56
      %s58 = ssub.s32 %s45, %s52
      %s59 = sor.u32 %s57, %s58
      %p60 = scmp.eq.s32.totalorder %s59, 0
      %s62 = sadd.s32 %s61, 1
      %s63 = scalar_select %p60, %s61, %s62
      %p66 = pneg %p60
      %p67 = scmp.eq.s32.totalorder %s37, 1
      %p68 = por %p66, %p67
      %p69 = scmp.ne.s32.totalorder %s61, %s64
      %p70 = scmp.eq.s32.totalorder %s37, 0
      %p71 = por %p69, %p70
      %p72 = scmp.ne.s32.totalorder %s61, %s64
      %p73 = scmp.eq.s32.totalorder %s42, 1
      %p74 = por %p72, %p73
      %p75 = scmp.ne.s32.totalorder %s64, %s65
      %p76 = scmp.eq.s32.totalorder %s42, 0
      %p77 = por %p75, %p76
      %p78 = scmp.ne.s32.totalorder %s64, %s65
      %p79 = scmp.eq.s32.totalorder %s43, 1
      %p80 = por %p78, %p79
      %p82 = scmp.ne.s32.totalorder %s65, %s81
      %p83 = scmp.eq.s32.totalorder %s43, 0
      %p84 = por %p82, %p83
      %s85 = ssub.s32 %s44, %s56
      %p86 = scmp.eq.s32.totalorder %s85, 0
      %s88 = sadd.s32 %s87, 1
      %s89 = scalar_select %p86, %s87, %s88
      %p92 = pneg %p86
      %p93 = scmp.eq.s32.totalorder %s37, 1
      %p94 = por %p92, %p93
      %p95 = scmp.ne.s32.totalorder %s87, %s90
      %p96 = scmp.eq.s32.totalorder %s37, 0
      %p97 = por %p95, %p96
      %p98 = scmp.ne.s32.totalorder %s87, %s90
      %p99 = scmp.eq.s32.totalorder %s42, 1
      %p100 = por %p98, %p99
      %p101 = scmp.ne.s32.totalorder %s90, %s91
      %p102 = scmp.eq.s32.totalorder %s42, 0
      %p103 = por %p101, %p102
      %p104 = scmp.ne.s32.totalorder %s90, %s91
      %p105 = scmp.eq.s32.totalorder %s43, 1
      %p106 = por %p104, %p105
      %p108 = scmp.ne.s32.totalorder %s91, %s107
      %p109 = scmp.eq.s32.totalorder %s43, 0
      %p110 = por %p108, %p109
      %s111 = ssub.s32 %s44, %s56
      %p112 = scmp.eq.s32.totalorder %s111, 0
      %s114 = sadd.s32 %s113, 1
      %s115 = scalar_select %p112, %s113, %s114
      %p118 = pneg %p112
      %p119 = scmp.eq.s32.totalorder %s37, 1
      %p120 = por %p118, %p119
      %p121 = scmp.ne.s32.totalorder %s113, %s116
      %p122 = scmp.eq.s32.totalorder %s37, 0
      %p123 = por %p121, %p122
      %p124 = scmp.ne.s32.totalorder %s113, %s116
      %p125 = scmp.eq.s32.totalorder %s42, 1
      %p126 = por %p124, %p125
      %p127 = scmp.ne.s32.totalorder %s116, %s117
      %p128 = scmp.eq.s32.totalorder %s42, 0
      %p129 = por %p127, %p128
      %p130 = scmp.ne.s32.totalorder %s116, %s117
      %p131 = scmp.eq.s32.totalorder %s43, 1
      %p132 = por %p130, %p131
      %p134 = scmp.ne.s32.totalorder %s117, %s133
      %p135 = scmp.eq.s32.totalorder %s43, 0
      %p136 = por %p134, %p135
      %s138 = sadd.s32 %s137, 1
      %p141 = scmp.eq.s32.totalorder %s37, 1
      %p142 = scmp.ne.s32.totalorder %s137, %s139
      %p143 = scmp.eq.s32.totalorder %s37, 0
      %p144 = por %p142, %p143
      %p145 = scmp.ne.s32.totalorder %s137, %s139
      %p146 = scmp.eq.s32.totalorder %s42, 1
      %p147 = por %p145, %p146
      %p148 = scmp.ne.s32.totalorder %s139, %s140
      %p149 = scmp.eq.s32.totalorder %s42, 0
      %p150 = por %p148, %p149
      %p151 = scmp.ne.s32.totalorder %s139, %s140
      %p152 = scmp.eq.s32.totalorder %s43, 1
      %p153 = por %p151, %p152
      %p155 = scmp.ne.s32.totalorder %s140, %s154
      %p156 = scmp.eq.s32.totalorder %s43, 0
      %p157 = por %p155, %p156
      %s159 = sadd.s32 %s158, 1
      %p162 = scmp.eq.s32.totalorder %s37, 1
      %p163 = scmp.ne.s32.totalorder %s158, %s160
      %p164 = scmp.eq.s32.totalorder %s37, 0
      %p165 = por %p163, %p164
      %p166 = scmp.ne.s32.totalorder %s158, %s160
      %p167 = scmp.eq.s32.totalorder %s42, 1
      %p168 = por %p166, %p167
      %p169 = scmp.ne.s32.totalorder %s160, %s161
      %p170 = scmp.eq.s32.totalorder %s42, 0
      %p171 = por %p169, %p170
      %p172 = scmp.ne.s32.totalorder %s160, %s161
      %p173 = scmp.eq.s32.totalorder %s43, 1
      %p174 = por %p172, %p173
      %p176 = scmp.ne.s32.totalorder %s161, %s175
      %p177 = scmp.eq.s32.totalorder %s43, 0
      %p178 = por %p176, %p177
      %s180 = sadd.s32 %s179, 1
      %p183 = scmp.eq.s32.totalorder %s37, 1
      %p184 = scmp.ne.s32.totalorder %s179, %s181
      %p185 = scmp.eq.s32.totalorder %s37, 0
      %p186 = por %p184, %p185
      %p187 = scmp.ne.s32.totalorder %s179, %s181
      %p188 = scmp.eq.s32.totalorder %s42, 1
      %p189 = por %p187, %p188
      %p190 = scmp.ne.s32.totalorder %s181, %s182
      %p191 = scmp.eq.s32.totalorder %s42, 0
      %p192 = por %p190, %p191
      %p193 = scmp.ne.s32.totalorder %s181, %s182
      %p194 = scmp.eq.s32.totalorder %s43, 1
      %p195 = por %p193, %p194
      %p197 = scmp.ne.s32.totalorder %s182, %s196
      %p198 = scmp.eq.s32.totalorder %s43, 0
      %p199 = por %p197, %p198
      %s201 = sadd.s32 %s200, 1
      %p204 = scmp.eq.s32.totalorder %s37, 1
      %p205 = scmp.ne.s32.totalorder %s200, %s202
      %p206 = scmp.eq.s32.totalorder %s37, 0
      %p207 = por %p205, %p206
      %p208 = scmp.ne.s32.totalorder %s200, %s202
      %p209 = scmp.eq.s32.totalorder %s42, 1
      %p210 = por %p208, %p209
      %p211 = scmp.ne.s32.totalorder %s202, %s203
      %p212 = scmp.eq.s32.totalorder %s42, 0
      %p213 = por %p211, %p212
      %p214 = scmp.ne.s32.totalorder %s202, %s203
      %p215 = scmp.eq.s32.totalorder %s43, 1
      %p216 = por %p214, %p215
      %p218 = scmp.ne.s32.totalorder %s203, %s217
      %p219 = scmp.eq.s32.totalorder %s43, 0
      %p220 = por %p218, %p219
      %s222 = sadd.s32 %s221, 1
      %p225 = scmp.eq.s32.totalorder %s37, 1
      %p226 = scmp.ne.s32.totalorder %s221, %s223
      %p227 = scmp.eq.s32.totalorder %s37, 0
      %p228 = por %p226, %p227
      %p229 = scmp.ne.s32.totalorder %s221, %s223
      %p230 = scmp.eq.s32.totalorder %s42, 1
      %p231 = por %p229, %p230
      %p232 = scmp.ne.s32.totalorder %s223, %s224
      %p233 = scmp.eq.s32.totalorder %s42, 0
      %p234 = por %p232, %p233
      %p235 = scmp.ne.s32.totalorder %s223, %s224
      %p236 = scmp.eq.s32.totalorder %s43, 1
      %p237 = por %p235, %p236
      %p239 = scmp.ne.s32.totalorder %s224, %s238
      %p240 = scmp.eq.s32.totalorder %s43, 0
      %p241 = por %p239, %p240
      %s243 = sadd.s32 %s242, 1
      %p246 = scmp.eq.s32.totalorder %s37, 1
      %p247 = scmp.ne.s32.totalorder %s242, %s244
      %p248 = scmp.eq.s32.totalorder %s37, 0
      %p249 = por %p247, %p248
      %p250 = scmp.ne.s32.totalorder %s242, %s244
      %p251 = scmp.eq.s32.totalorder %s42, 1
      %p252 = por %p250, %p251
      %p253 = scmp.ne.s32.totalorder %s244, %s245
      %p254 = scmp.eq.s32.totalorder %s42, 0
      %p255 = por %p253, %p254
      %p256 = scmp.ne.s32.totalorder %s244, %s245
      %p257 = scmp.eq.s32.totalorder %s43, 1
      %p258 = por %p256, %p257
      %p260 = scmp.ne.s32.totalorder %s245, %s259
      %p261 = scmp.eq.s32.totalorder %s43, 0
      %p262 = por %p260, %p261
      %s264 = sadd.s32 %s263, 1
      %p267 = scmp.eq.s32.totalorder %s37, 1
      %p268 = scmp.ne.s32.totalorder %s263, %s265
      %p269 = scmp.eq.s32.totalorder %s37, 0
      %p270 = por %p268, %p269
      %p271 = scmp.ne.s32.totalorder %s263, %s265
      %p272 = scmp.eq.s32.totalorder %s42, 1
      %p273 = por %p271, %p272
      %p274 = scmp.ne.s32.totalorder %s265, %s266
      %p275 = scmp.eq.s32.totalorder %s42, 0
      %p276 = por %p274, %p275
      %p277 = scmp.ne.s32.totalorder %s265, %s266
      %p278 = scmp.eq.s32.totalorder %s43, 1
      %p279 = por %p277, %p278
      %p281 = scmp.ne.s32.totalorder %s266, %s280
      %p282 = scmp.eq.s32.totalorder %s43, 0
      %p283 = por %p281, %p282
      %s285 = sadd.s32 %s284, 1
      %p288 = scmp.eq.s32.totalorder %s37, 1
      %p289 = scmp.ne.s32.totalorder %s284, %s286
      %p290 = scmp.eq.s32.totalorder %s37, 0
      %p291 = por %p289, %p290
      %p292 = scmp.ne.s32.totalorder %s284, %s286
      %p293 = scmp.eq.s32.totalorder %s42, 1
      %p294 = por %p292, %p293
      %p295 = scmp.ne.s32.totalorder %s286, %s287
      %p296 = scmp.eq.s32.totalorder %s42, 0
      %p297 = por %p295, %p296
      %p298 = scmp.ne.s32.totalorder %s286, %s287
      %p299 = scmp.eq.s32.totalorder %s43, 1
      %p300 = por %p298, %p299
      %p302 = scmp.ne.s32.totalorder %s287, %s301
      %p303 = scmp.eq.s32.totalorder %s43, 0
      %p304 = por %p302, %p303
      %s306 = sadd.s32 %s305, 1
      %p309 = scmp.eq.s32.totalorder %s37, 1
      %p310 = scmp.ne.s32.totalorder %s305, %s307
      %p311 = scmp.eq.s32.totalorder %s37, 0
      %p312 = por %p310, %p311
      %p313 = scmp.ne.s32.totalorder %s305, %s307
      %p314 = scmp.eq.s32.totalorder %s42, 1
      %p315 = por %p313, %p314
      %p316 = scmp.ne.s32.totalorder %s307, %s308
      %p317 = scmp.eq.s32.totalorder %s42, 0
      %p318 = por %p316, %p317
      %p319 = scmp.ne.s32.totalorder %s307, %s308
      %p320 = scmp.eq.s32.totalorder %s43, 1
      %p321 = por %p319, %p320
      %p323 = scmp.ne.s32.totalorder %s308, %s322
      %p324 = scmp.eq.s32.totalorder %s43, 0
      %p325 = por %p323, %p324
      %s327 = sadd.s32 %s326, 1
      %p330 = scmp.eq.s32.totalorder %s37, 1
      %p331 = scmp.ne.s32.totalorder %s326, %s328
      %p332 = scmp.eq.s32.totalorder %s37, 0
      %p333 = por %p331, %p332
      %p334 = scmp.ne.s32.totalorder %s326, %s328
      %p335 = scmp.eq.s32.totalorder %s42, 1
      %p336 = por %p334, %p335
      %p337 = scmp.ne.s32.totalorder %s328, %s329
      %p338 = scmp.eq.s32.totalorder %s42, 0
      %p339 = por %p337, %p338
      %p340 = scmp.ne.s32.totalorder %s328, %s329
      %p341 = scmp.eq.s32.totalorder %s43, 1
      %p342 = por %p340, %p341
      %p344 = scmp.ne.s32.totalorder %s329, %s343
      %p345 = scmp.eq.s32.totalorder %s43, 0
      %p346 = por %p344, %p345
      %s348 = sadd.s32 %s347, 1
      %p351 = scmp.eq.s32.totalorder %s37, 1
      %p352 = scmp.ne.s32.totalorder %s347, %s349
      %p353 = scmp.eq.s32.totalorder %s37, 0
      %p354 = por %p352, %p353
      %p355 = scmp.ne.s32.totalorder %s347, %s349
      %p356 = scmp.eq.s32.totalorder %s42, 1
      %p357 = por %p355, %p356
      %p358 = scmp.ne.s32.totalorder %s349, %s350
      %p359 = scmp.eq.s32.totalorder %s42, 0
      %p360 = por %p358, %p359
      %p361 = scmp.ne.s32.totalorder %s349, %s350
      %p362 = scmp.eq.s32.totalorder %s43, 1
      %p363 = por %p361, %p362
      %p365 = scmp.ne.s32.totalorder %s350, %s364
      %p366 = scmp.eq.s32.totalorder %s43, 0
      %p367 = por %p365, %p366
      %s369 = sadd.s32 %s368, 1
      %p372 = scmp.eq.s32.totalorder %s37, 1
      %p373 = scmp.ne.s32.totalorder %s368, %s370
      %p374 = scmp.eq.s32.totalorder %s37, 0
      %p375 = por %p373, %p374
      %p376 = scmp.ne.s32.totalorder %s368, %s370
      %p377 = scmp.eq.s32.totalorder %s42, 1
      %p378 = por %p376, %p377
      %p379 = scmp.ne.s32.totalorder %s370, %s371
      %p380 = scmp.eq.s32.totalorder %s42, 0
      %p381 = por %p379, %p380
      %p382 = scmp.ne.s32.totalorder %s370, %s371
      %p383 = scmp.eq.s32.totalorder %s43, 1
      %p384 = por %p382, %p383
      %p386 = scmp.ne.s32.totalorder %s371, %s385
      %p387 = scmp.eq.s32.totalorder %s43, 0
      %p388 = por %p386, %p387
      %s390 = sadd.s32 %s389, 1
      %p393 = scmp.eq.s32.totalorder %s37, 1
      %p394 = scmp.ne.s32.totalorder %s389, %s391
      %p395 = scmp.eq.s32.totalorder %s37, 0
      %p396 = por %p394, %p395
      %p397 = scmp.ne.s32.totalorder %s389, %s391
      %p398 = scmp.eq.s32.totalorder %s42, 1
      %p399 = por %p397, %p398
      %p400 = scmp.ne.s32.totalorder %s391, %s392
      %p401 = scmp.eq.s32.totalorder %s42, 0
      %p402 = por %p400, %p401
      %p403 = scmp.ne.s32.totalorder %s391, %s392
      %p404 = scmp.eq.s32.totalorder %s43, 1
      %p405 = por %p403, %p404
      %p407 = scmp.ne.s32.totalorder %s392, %s406
      %p408 = scmp.eq.s32.totalorder %s43, 0
      %p409 = por %p407, %p408
      %s411 = sadd.s32 %s410, 1
      %p414 = scmp.eq.s32.totalorder %s37, 1
      %p415 = scmp.ne.s32.totalorder %s410, %s412
      %p416 = scmp.eq.s32.totalorder %s37, 0
      %p417 = por %p415, %p416
      %p418 = scmp.ne.s32.totalorder %s410, %s412
      %p419 = scmp.eq.s32.totalorder %s42, 1
      %p420 = por %p418, %p419
      %p421 = scmp.ne.s32.totalorder %s412, %s413
      %p422 = scmp.eq.s32.totalorder %s42, 0
      %p423 = por %p421, %p422
      %p424 = scmp.ne.s32.totalorder %s412, %s413
      %p425 = scmp.eq.s32.totalorder %s43, 1
      %p426 = por %p424, %p425
      %p428 = scmp.ne.s32.totalorder %s413, %s427
      %p429 = scmp.eq.s32.totalorder %s43, 0
      %p430 = por %p428, %p429
      %s432 = sadd.s32 %s431, 1
      %p435 = scmp.eq.s32.totalorder %s37, 1
      %p436 = scmp.ne.s32.totalorder %s431, %s433
      %p437 = scmp.eq.s32.totalorder %s37, 0
      %p438 = por %p436, %p437
      %p439 = scmp.ne.s32.totalorder %s431, %s433
      %p440 = scmp.eq.s32.totalorder %s42, 1
      %p441 = por %p439, %p440
      %p442 = scmp.ne.s32.totalorder %s433, %s434
      %p443 = scmp.eq.s32.totalorder %s42, 0
      %p444 = por %p442, %p443
      %p445 = scmp.ne.s32.totalorder %s433, %s434
      %p446 = scmp.eq.s32.totalorder %s43, 1
      %p447 = por %p445, %p446
      %p449 = scmp.ne.s32.totalorder %s434, %s448
      %p450 = scmp.eq.s32.totalorder %s43, 0
      %p451 = por %p449, %p450
      %s453 = sadd.s32 %s452, 1
      %p456 = scmp.eq.s32.totalorder %s37, 1
      %p457 = scmp.ne.s32.totalorder %s452, %s454
      %p458 = scmp.eq.s32.totalorder %s37, 0
      %p459 = por %p457, %p458
      %p460 = scmp.ne.s32.totalorder %s452, %s454
      %p461 = scmp.eq.s32.totalorder %s42, 1
      %p462 = por %p460, %p461
      %p463 = scmp.ne.s32.totalorder %s454, %s455
      %p464 = scmp.eq.s32.totalorder %s42, 0
      %p465 = por %p463, %p464
      %p466 = scmp.ne.s32.totalorder %s454, %s455
      %p467 = scmp.eq.s32.totalorder %s43, 1
      %p468 = por %p466, %p467
      %p470 = scmp.ne.s32.totalorder %s455, %s469
      %p471 = scmp.eq.s32.totalorder %s43, 0
      %p472 = por %p470, %p471
      %s473 = ssub.s32 %s44, %s56
      %s474 = ssub.s32 %s45, %s52
      %s475 = sor.u32 %s473, %s474
      %p476 = scmp.eq.s32.totalorder %s475, 0
      %s478 = sadd.s32 %s477, 1
      %s479 = scalar_select %p476, %s477, %s478
      %p482 = pneg %p476
      %p483 = scmp.eq.s32.totalorder %s37, 1
      %p484 = por %p482, %p483
      %p485 = scmp.ne.s32.totalorder %s477, %s480
      %p486 = scmp.eq.s32.totalorder %s37, 0
      %p487 = por %p485, %p486
      %p488 = scmp.ne.s32.totalorder %s477, %s480
      %p489 = scmp.eq.s32.totalorder %s42, 1
      %p490 = por %p488, %p489
      %p491 = scmp.ne.s32.totalorder %s480, %s481
      %p492 = scmp.eq.s32.totalorder %s42, 0
      %p493 = por %p491, %p492
      %p494 = scmp.ne.s32.totalorder %s480, %s481
      %p495 = scmp.eq.s32.totalorder %s43, 1
      %p496 = por %p494, %p495
      %p498 = scmp.ne.s32.totalorder %s481, %s497
      %p499 = scmp.eq.s32.totalorder %s43, 0
      %p500 = por %p498, %p499
      %p501 = scmp.le.s32.totalorder 1, %s37
      %p502 = scmp.lt.s32.totalorder %s37, 3
      %p503 = pnand %p501, %p502
      %p504 = pneg %p503
      // Predicated region
      $region9: #{tpu_custom_call.1} parent=5 // pred_check
        _
      $region10: #{tpu_custom_call.1} parent=5 // pred_check_branch
        %506 = sbr.rel (%p503) target = $region12
      $region11: #{tpu_custom_call.1} parent=5 // pred_region
        %s507 = ssub.s32 %s37, 1
        // Predicated region
        $region13: #{tpu_custom_call.1} parent=11 // pred_check
          %p508 = pneg %p150
        $region14: #{tpu_custom_call.1} parent=11 // pred_check_branch
          %510 = sbr.rel (%p508) target = $region16
        $region15: #{tpu_custom_call.1} parent=11 // pred_region
          %s512 = ssub.s32 16384, 16384
          %513 = vsyncadd [#allocation9], %s512
          %s514 = sshll.u32 [#allocation8], 4
          %s515 = int_to_ptr.vmem [resolvable:$true] %s514
          %520 = dma.hbm_to_vmem [thread:$0]  %s3, 16384, %s515, [#allocation9], 256, 256, 16
        $region16: #{tpu_custom_call.1} parent=11 // pred_fallthru
          _
        // Predicated region
        $region17: #{tpu_custom_call.1} parent=11 // pred_check
          %p521 = pneg %p171
        $region18: #{tpu_custom_call.1} parent=11 // pred_check_branch
          %523 = sbr.rel (%p521) target = $region20
        $region19: #{tpu_custom_call.1} parent=11 // pred_region
          %s525 = ssub.s32 64, 64
          %526 = vsyncadd [#allocation9], %s525
          %s528 = sshll.u32 [#allocation10], 4
          %s529 = int_to_ptr.vmem [resolvable:$true] %s528
          %531 = dma.hbm_to_vmem [thread:$0]  %s4, 64, %s529, [#allocation9]
        $region20: #{tpu_custom_call.1} parent=11 // pred_fallthru
          _
        // Predicated region
        $region21: #{tpu_custom_call.1} parent=11 // pred_check
          %p532 = pneg %p192
        $region22: #{tpu_custom_call.1} parent=11 // pred_check_branch
          %534 = sbr.rel (%p532) target = $region24
        $region23: #{tpu_custom_call.1} parent=11 // pred_region
          %s536 = ssub.s32 32768, 32768
          %537 = vsyncadd [#allocation12], %s536
          %s538 = sshll.u32 [#allocation11], 4
          %s539 = int_to_ptr.vmem [resolvable:$true] %s538
          %544 = dma.hbm_to_vmem [thread:$0]  %s5, 32768, %s539, [#allocation12], 512, 512, 32
        $region24: #{tpu_custom_call.1} parent=11 // pred_fallthru
          _
        // Predicated region
        $region25: #{tpu_custom_call.1} parent=11 // pred_check
          %p545 = pneg %p213
        $region26: #{tpu_custom_call.1} parent=11 // pred_check_branch
          %547 = sbr.rel (%p545) target = $region28
        $region27: #{tpu_custom_call.1} parent=11 // pred_region
          _
        $region28: #{tpu_custom_call.1} parent=11 // pred_fallthru
          _
        // Predicated region
        $region29: #{tpu_custom_call.1} parent=11 // pred_check
          %p548 = pneg %p234
        $region30: #{tpu_custom_call.1} parent=11 // pred_check_branch
          %550 = sbr.rel (%p548) target = $region32
        $region31: #{tpu_custom_call.1} parent=11 // pred_region
          %s552 = ssub.s32 16384, 16384
          %553 = vsyncadd [#allocation12], %s552
          %s554 = sshll.u32 [#allocation13], 4
          %s555 = int_to_ptr.vmem [resolvable:$true] %s554
          %560 = dma.hbm_to_vmem [thread:$0]  %s7, 16384, %s555, [#allocation12], 256, 256, 16
        $region32: #{tpu_custom_call.1} parent=11 // pred_fallthru
          _
        // Predicated region
        $region33: #{tpu_custom_call.1} parent=11 // pred_check
          %p561 = pneg %p255
        $region34: #{tpu_custom_call.1} parent=11 // pred_check_branch
          %563 = sbr.rel (%p561) target = $region36
        $region35: #{tpu_custom_call.1} parent=11 // pred_region
          _
        $region36: #{tpu_custom_call.1} parent=11 // pred_fallthru
          _
        // Predicated region
        $region37: #{tpu_custom_call.1} parent=11 // pred_check
          %p564 = pneg %p276
        $region38: #{tpu_custom_call.1} parent=11 // pred_check_branch
          %566 = sbr.rel (%p564) target = $region40
        $region39: #{tpu_custom_call.1} parent=11 // pred_region
          _
        $region40: #{tpu_custom_call.1} parent=11 // pred_fallthru
          _
        // Predicated region
        $region41: #{tpu_custom_call.1} parent=11 // pred_check
          %p567 = pneg %p297
        $region42: #{tpu_custom_call.1} parent=11 // pred_check_branch
          %569 = sbr.rel (%p567) target = $region44
        $region43: #{tpu_custom_call.1} parent=11 // pred_region
          _
        $region44: #{tpu_custom_call.1} parent=11 // pred_fallthru
          _
        // Predicated region
        $region45: #{tpu_custom_call.1} parent=11 // pred_check
          %p570 = pneg %p318
        $region46: #{tpu_custom_call.1} parent=11 // pred_check_branch
          %572 = sbr.rel (%p570) target = $region48
        $region47: #{tpu_custom_call.1} parent=11 // pred_region
          _
        $region48: #{tpu_custom_call.1} parent=11 // pred_fallthru
          _
        // Predicated region
        $region49: #{tpu_custom_call.1} parent=11 // pred_check
          %p573 = pneg %p339
        $region50: #{tpu_custom_call.1} parent=11 // pred_check_branch
          %575 = sbr.rel (%p573) target = $region52
        $region51: #{tpu_custom_call.1} parent=11 // pred_region
          _
        $region52: #{tpu_custom_call.1} parent=11 // pred_fallthru
          _
        // Predicated region
        $region53: #{tpu_custom_call.1} parent=11 // pred_check
          %p576 = pneg %p360
        $region54: #{tpu_custom_call.1} parent=11 // pred_check_branch
          %578 = sbr.rel (%p576) target = $region56
        $region55: #{tpu_custom_call.1} parent=11 // pred_region
          %s580 = ssub.s32 32768, 32768
          %581 = vsyncadd [#allocation15], %s580
          %s582 = sshll.u32 [#allocation14], 4
          %s583 = int_to_ptr.vmem [resolvable:$true] %s582
          %588 = dma.hbm_to_vmem [thread:$0]  %s13, 32768, %s583, [#allocation15], 512, 512, 32
        $region56: #{tpu_custom_call.1} parent=11 // pred_fallthru
          _
        // Predicated region
        $region57: #{tpu_custom_call.1} parent=11 // pred_check
          %p589 = pneg %p381
        $region58: #{tpu_custom_call.1} parent=11 // pred_check_branch
          %591 = sbr.rel (%p589) target = $region60
        $region59: #{tpu_custom_call.1} parent=11 // pred_region
          _
        $region60: #{tpu_custom_call.1} parent=11 // pred_fallthru
          _
        // Predicated region
        $region61: #{tpu_custom_call.1} parent=11 // pred_check
          %p592 = pneg %p402
        $region62: #{tpu_custom_call.1} parent=11 // pred_check_branch
          %594 = sbr.rel (%p592) target = $region64
        $region63: #{tpu_custom_call.1} parent=11 // pred_region
          %s596 = ssub.s32 32768, 32768
          %597 = vsyncadd [#allocation15], %s596
          %s598 = sshll.u32 [#allocation16], 4
          %s599 = int_to_ptr.vmem [resolvable:$true] %s598
          %604 = dma.hbm_to_vmem [thread:$0]  %s15, 32768, %s599, [#allocation15], 256, 256, 16
        $region64: #{tpu_custom_call.1} parent=11 // pred_fallthru
          _
        // Predicated region
        $region65: #{tpu_custom_call.1} parent=11 // pred_check
          %p605 = pneg %p423
        $region66: #{tpu_custom_call.1} parent=11 // pred_check_branch
          %607 = sbr.rel (%p605) target = $region68
        $region67: #{tpu_custom_call.1} parent=11 // pred_region
          _
        $region68: #{tpu_custom_call.1} parent=11 // pred_fallthru
          _
        // Predicated region
        $region69: #{tpu_custom_call.1} parent=11 // pred_check
          %p608 = pneg %p444
        $region70: #{tpu_custom_call.1} parent=11 // pred_check_branch
          %610 = sbr.rel (%p608) target = $region72
        $region71: #{tpu_custom_call.1} parent=11 // pred_region
          _
        $region72: #{tpu_custom_call.1} parent=11 // pred_fallthru
          _
        // Predicated region
        $region73: #{tpu_custom_call.1} parent=11 // pred_check
          %p611 = pneg %p465
        $region74: #{tpu_custom_call.1} parent=11 // pred_check_branch
          %613 = sbr.rel (%p611) target = $region76
        $region75: #{tpu_custom_call.1} parent=11 // pred_region
          _
        $region76: #{tpu_custom_call.1} parent=11 // pred_fallthru
          _
      $region12: #{tpu_custom_call.1} parent=5 // pred_fallthru
        _
      %p614 = scmp.lt.s32.totalorder %s37, 2
      // Predicated region
      $region77: #{tpu_custom_call.1} parent=5 // pred_check
        %p615 = pneg %p614
      $region78: #{tpu_custom_call.1} parent=5 // pred_check_branch
        %617 = sbr.rel (%p615) target = $region80
      $region79: #{tpu_custom_call.1} parent=5 // pred_region
        // Predicated region
        $region81: #{tpu_custom_call.1} parent=79 // pred_check
          %p618 = pneg %p71
        $region82: #{tpu_custom_call.1} parent=79 // pred_check_branch
          %620 = sbr.rel (%p618) target = $region84
        $region83: #{tpu_custom_call.1} parent=79 // pred_region
          %s621 = sand.u32 %s61, 1
          %s622 = scalar_lea.sflag [#allocation3], %s621
          %s623 = sand.u32 %s61, 1
          %s624 = smul.addr %s623, 64
          %s625 = scalar_lea.vmem [#allocation2], %s624
          %s626 = smul.u32 2, %s45
          %s628 = ssub.s32 1024, 1024
          %629 = vsyncadd %s622, %s628
          %s630 = smul.addr %s626, 4
          %s631 = smul.addr %s44, 8
          %s632 = sadd.s32 %s630, %s631
          %s633 = smul.addr %s632, 128
          %s634 = scalar_lea.hbm %s0, %s633
          %s635 = sshll.u32 %s625, 4
          %s636 = int_to_ptr.vmem [resolvable:$true] %s635
          %641 = dma.hbm_to_vmem [thread:$0]  %s634, 1024, %s636, %s622, 512, 512, 32
        $region84: #{tpu_custom_call.1} parent=79 // pred_fallthru
          _
        // Predicated region
        $region85: #{tpu_custom_call.1} parent=79 // pred_check
          %p642 = pneg %p97
        $region86: #{tpu_custom_call.1} parent=79 // pred_check_branch
          %644 = sbr.rel (%p642) target = $region88
        $region87: #{tpu_custom_call.1} parent=79 // pred_region
          %s645 = sand.u32 %s37, 1
          %s646 = scalar_lea.sflag [#allocation6], %s645
          %s647 = sand.u32 %s87, 1
          %s648 = smul.addr %s647, 64
          %s649 = scalar_lea.vmem [#allocation5], %s648
          %s651 = ssub.s32 1024, 1024
          %652 = vsyncadd %s646, %s651
          %s653 = smul.addr %s44, 8
          %s654 = smul.addr %s653, 128
          %s655 = scalar_lea.hbm %s1, %s654
          %s656 = sshll.u32 %s649, 4
          %s657 = int_to_ptr.vmem [resolvable:$true] %s656
          %662 = dma.hbm_to_vmem [thread:$0]  %s655, 1024, %s657, %s646, 512, 512, 32
        $region88: #{tpu_custom_call.1} parent=79 // pred_fallthru
          _
        // Predicated region
        $region89: #{tpu_custom_call.1} parent=79 // pred_check
          %p663 = pneg %p123
        $region90: #{tpu_custom_call.1} parent=79 // pred_check_branch
          %665 = sbr.rel (%p663) target = $region92
        $region91: #{tpu_custom_call.1} parent=79 // pred_region
          %s666 = sand.u32 %s37, 1
          %s667 = scalar_lea.sflag [#allocation6], %s666
          %s668 = sand.u32 %s113, 1
          %s669 = scalar_lea.vmem [#allocation7], %s668
          %s671 = ssub.s32 16, 16
          %672 = vsyncadd %s667, %s671
          %s673 = smul.addr %s44, 16
          %s674 = scalar_lea.hbm %s2, %s673
          %s676 = sshll.u32 %s669, 4
          %s677 = int_to_ptr.vmem [resolvable:$true] %s676
          %679 = dma.hbm_to_vmem [thread:$0]  %s674, 16, %s677, %s667
        $region92: #{tpu_custom_call.1} parent=79 // pred_fallthru
          _
      $region80: #{tpu_custom_call.1} parent=5 // pred_fallthru
        _
      %p680 = scmp.le.s32.totalorder 1, %s37
      %p681 = scmp.lt.s32.totalorder %s37, 3
      %p682 = pnand %p680, %p681
      %p683 = pneg %p682
      // Predicated region
      $region93: #{tpu_custom_call.1} parent=5 // pred_check
        _
      $region94: #{tpu_custom_call.1} parent=5 // pred_check_branch
        %685 = sbr.rel (%p682) target = $region96
      $region95: #{tpu_custom_call.1} parent=5 // pred_region
        %s686 = ssub.s32 %s37, 1
        %s687 = sand.u32 %s64, 1
        %s688 = scalar_lea.sflag [#allocation3], %s687
        %s689 = sand.u32 %s64, 1
        %s690 = smul.addr %s689, 64
        %s691 = scalar_lea.vmem [#allocation2], %s690
        // Predicated region
        $region97: #{tpu_custom_call.1} parent=95 // pred_check
          %p692 = pneg %p77
        $region98: #{tpu_custom_call.1} parent=95 // pred_check_branch
          %694 = sbr.rel (%p692) target = $region100
        $region99: #{tpu_custom_call.1} parent=95 // pred_region
          %695 = dma.done %s688, 1024
        $region100: #{tpu_custom_call.1} parent=95 // pred_fallthru
          _
        %s696 = sand.u32 %s42, 1
        %s697 = scalar_lea.sflag [#allocation6], %s696
        %s698 = sand.u32 %s90, 1
        %s699 = smul.addr %s698, 64
        %s700 = scalar_lea.vmem [#allocation5], %s699
        // Predicated region
        $region101: #{tpu_custom_call.1} parent=95 // pred_check
          %p701 = pneg %p103
        $region102: #{tpu_custom_call.1} parent=95 // pred_check_branch
          %703 = sbr.rel (%p701) target = $region104
        $region103: #{tpu_custom_call.1} parent=95 // pred_region
          %704 = dma.done %s697, 1024
        $region104: #{tpu_custom_call.1} parent=95 // pred_fallthru
          _
        %s705 = sand.u32 %s42, 1
        %s706 = scalar_lea.sflag [#allocation6], %s705
        %s707 = sand.u32 %s116, 1
        %s708 = scalar_lea.vmem [#allocation7], %s707
        // Predicated region
        $region105: #{tpu_custom_call.1} parent=95 // pred_check
          %p709 = pneg %p129
        $region106: #{tpu_custom_call.1} parent=95 // pred_check_branch
          %711 = sbr.rel (%p709) target = $region108
        $region107: #{tpu_custom_call.1} parent=95 // pred_region
          %712 = dma.done %s706, 16
        $region108: #{tpu_custom_call.1} parent=95 // pred_fallthru
          _
        // Predicated region
        $region109: #{tpu_custom_call.1} parent=95 // pred_check
          %p713 = pneg %p150
        $region110: #{tpu_custom_call.1} parent=95 // pred_check_branch
          %715 = sbr.rel (%p713) target = $region112
        $region111: #{tpu_custom_call.1} parent=95 // pred_region
          %716 = dma.done [#allocation9], 16384
        $region112: #{tpu_custom_call.1} parent=95 // pred_fallthru
          _
        // Predicated region
        $region113: #{tpu_custom_call.1} parent=95 // pred_check
          %p717 = pneg %p171
        $region114: #{tpu_custom_call.1} parent=95 // pred_check_branch
          %719 = sbr.rel (%p717) target = $region116
        $region115: #{tpu_custom_call.1} parent=95 // pred_region
          %720 = dma.done [#allocation9], 64
        $region116: #{tpu_custom_call.1} parent=95 // pred_fallthru
          _
        // Predicated region
        $region117: #{tpu_custom_call.1} parent=95 // pred_check
          %p721 = pneg %p192
        $region118: #{tpu_custom_call.1} parent=95 // pred_check_branch
          %723 = sbr.rel (%p721) target = $region120
        $region119: #{tpu_custom_call.1} parent=95 // pred_region
          %724 = dma.done [#allocation12], 32768
        $region120: #{tpu_custom_call.1} parent=95 // pred_fallthru
          _
        // Predicated region
        $region121: #{tpu_custom_call.1} parent=95 // pred_check
          %p725 = pneg %p234
        $region122: #{tpu_custom_call.1} parent=95 // pred_check_branch
          %727 = sbr.rel (%p725) target = $region124
        $region123: #{tpu_custom_call.1} parent=95 // pred_region
          %728 = dma.done [#allocation12], 16384
        $region124: #{tpu_custom_call.1} parent=95 // pred_fallthru
          _
        // Predicated region
        $region125: #{tpu_custom_call.1} parent=95 // pred_check
          %p729 = pneg %p360
        $region126: #{tpu_custom_call.1} parent=95 // pred_check_branch
          %731 = sbr.rel (%p729) target = $region128
        $region127: #{tpu_custom_call.1} parent=95 // pred_region
          %732 = dma.done [#allocation15], 32768
        $region128: #{tpu_custom_call.1} parent=95 // pred_fallthru
          _
        // Predicated region
        $region129: #{tpu_custom_call.1} parent=95 // pred_check
          %p733 = pneg %p402
        $region130: #{tpu_custom_call.1} parent=95 // pred_check_branch
          %735 = sbr.rel (%p733) target = $region132
        $region131: #{tpu_custom_call.1} parent=95 // pred_region
          %736 = dma.done [#allocation15], 32768
        $region132: #{tpu_custom_call.1} parent=95 // pred_fallthru
          _
        %s737 = sand.u32 %s64, 1
        %s738 = scalar_lea.sflag [#allocation3], %s737
        %s739 = sand.u32 %s64, 1
        %s740 = smul.addr %s739, 64
        %s741 = scalar_lea.vmem [#allocation2], %s740
        %p742 = pneg %p77
        %p743 = pneg %p74
        %s744 = sand.u32 %s42, 1
        %s745 = scalar_lea.sflag [#allocation6], %s744
        %s746 = sand.u32 %s90, 1
        %s747 = smul.addr %s746, 64
        %s748 = scalar_lea.vmem [#allocation5], %s747
        %p749 = pneg %p103
        %p750 = pneg %p100
        %s751 = sand.u32 %s42, 1
        %s752 = scalar_lea.sflag [#allocation6], %s751
        %s753 = sand.u32 %s116, 1
        %s754 = scalar_lea.vmem [#allocation7], %s753
        %p755 = pneg %p129
        %p756 = pneg %p126
        %p757 = pneg %p150
        %p758 = pneg %p147
        %p759 = pneg %p171
        %p760 = pneg %p168
        %p761 = pneg %p192
        %p762 = pneg %p189
        %p763 = pneg %p213
        %p764 = pneg %p210
        %p765 = pneg %p234
        %p766 = pneg %p231
        %p767 = pneg %p255
        %p768 = pneg %p252
        %p769 = pneg %p276
        %p770 = pneg %p273
        %p771 = pneg %p297
        %p772 = pneg %p294
        %p773 = pneg %p318
        %p774 = pneg %p315
        %p775 = pneg %p339
        %p776 = pneg %p336
        %p777 = pneg %p360
        %p778 = pneg %p357
        %p779 = pneg %p381
        %p780 = pneg %p378
        %p781 = pneg %p402
        %p782 = pneg %p399
        %p783 = pneg %p423
        %p784 = pneg %p420
        %p785 = pneg %p444
        %p786 = pneg %p441
        %p787 = pneg %p465
        %p788 = pneg %p462
        %p789 = pneg %p493
        %p790 = pneg %p490
        %s791 = sand.u32 %s480, 1
        %s792 = scalar_lea.sflag [#allocation4], %s791
        %s793 = sand.u32 %s480, 1
        %s794 = smul.addr %s793, 64
        %s795 = scalar_lea.vmem [#allocation17], %s794
        %s796 = smul.u32 2, %s47
        %s797 = smul.u32 2, %s47
        %v799 = vld [vmem:[%s691] sm:$0xff]
        %v800 = vld [vmem:[%s691 + $0x8] sm:$0xff]
        %v801 = vld [vmem:[%s691 + $0x10] sm:$0xff]
        %v802 = vld [vmem:[%s691 + $0x18] sm:$0xff]
        %v803 = vld [vmem:[%s691 + $0x20] sm:$0xff]
        %v804 = vld [vmem:[%s691 + $0x28] sm:$0xff]
        %v805 = vld [vmem:[%s691 + $0x30] sm:$0xff]
        %v806 = vld [vmem:[%s691 + $0x38] sm:$0xff]
        %v807 = vld [vmem:[%s700] sm:$0xff]
        %v808 = vld [vmem:[%s700 + $0x8] sm:$0xff]
        %v809 = vld [vmem:[%s700 + $0x10] sm:$0xff]
        %v810 = vld [vmem:[%s700 + $0x18] sm:$0xff]
        %v811 = vld [vmem:[%s700 + $0x20] sm:$0xff]
        %v812 = vld [vmem:[%s700 + $0x28] sm:$0xff]
        %v813 = vld [vmem:[%s700 + $0x30] sm:$0xff]
        %v814 = vld [vmem:[%s700 + $0x38] sm:$0xff]
        %v815 = vld [vmem:[%s708] sm:$0x1]
        %vm816 = vcmp.gt.f32.partialorder %v815, 0.0
        %v817 = vsel %vm816, 0.0, -1e+09
        %v818 = vld [vmem:[%s9] sm:$0xf]
        %v819 = vld [vmem:[%s10] sm:$0xf]
        %v820 = vadd.f32 %v799, %v800
        %v821 = vadd.f32 %v820, %v801
        %v822 = vadd.f32 %v821, %v802
        %823 = vadd.xlane.f32.xlu0 %v822
        %v824 = vpop.xlane.xlu0 %823
        %v825 = vadd.f32 %v803, %v804
        %v826 = vadd.f32 %v825, %v805
        %v827 = vadd.f32 %v826, %v806
        %828 = vadd.xlane.f32.xlu0 %v827
        %v829 = vpop.xlane.xlu0 %828
        %v830 = vrcp.pop 512.0
        %v831 = vmul.f32 %v824, %v830
        %v832 = vmul.f32 %v829, %v830
        %v833 = vsub.f32 %v799, %v831
        %v834 = vsub.f32 %v800, %v831
        %v835 = vsub.f32 %v801, %v831
        %v836 = vsub.f32 %v802, %v831
        %v837 = vsub.f32 %v803, %v832
        %v838 = vsub.f32 %v804, %v832
        %v839 = vsub.f32 %v805, %v832
        %v840 = vsub.f32 %v806, %v832
        %v841 = vmul.f32 %v833, %v833
        %v842 = vmul.f32 %v834, %v834
        %v843 = vmul.f32 %v835, %v835
        %v844 = vmul.f32 %v836, %v836
        %v845 = vmul.f32 %v837, %v837
        %v846 = vmul.f32 %v838, %v838
        %v847 = vmul.f32 %v839, %v839
        %v848 = vmul.f32 %v840, %v840
        %v849 = vadd.f32 %v841, %v842
        %v850 = vadd.f32 %v849, %v843
        %v851 = vadd.f32 %v850, %v844
        %852 = vadd.xlane.f32.xlu0 %v851
        %v853 = vpop.xlane.xlu0 %852
        %v854 = vadd.f32 %v845, %v846
        %v855 = vadd.f32 %v854, %v847
        %v856 = vadd.f32 %v855, %v848
        %857 = vadd.xlane.f32.xlu0 %v856
        %v858 = vpop.xlane.xlu0 %857
        %v859 = vmul.f32 %v853, %v830
        %v860 = vmul.f32 %v858, %v830
        %v862 = vlaneseq
        %v863 = vshrl.u32 %v862, 7
        %v864 = vsub.s32 0, %v863
        %v865 = vrot.slane %v818, %v864
        %v866 = vlaneseq
        %v867 = vshrl.u32 %v866, 7
        %v868 = vsub.s32 1, %v867
        %v869 = vrot.slane %v818, %v868
        %v870 = vlaneseq
        %v871 = vshrl.u32 %v870, 7
        %v872 = vsub.s32 2, %v871
        %v873 = vrot.slane %v818, %v872
        %v874 = vlaneseq
        %v875 = vshrl.u32 %v874, 7
        %v876 = vsub.s32 3, %v875
        %v877 = vrot.slane %v818, %v876
        %v882 = vmul.f32 %v865, %v833
        %v883 = vmul.f32 %v869, %v834
        %v884 = vmul.f32 %v873, %v835
        %v885 = vmul.f32 %v877, %v836
        %v886 = vmul.f32 %v865, %v837
        %v887 = vmul.f32 %v869, %v838
        %v888 = vmul.f32 %v873, %v839
        %v889 = vmul.f32 %v877, %v840
        %v890 = vadd.f32 %v859, 1e-06
        %v891 = vadd.f32 %v860, 1e-06
        %v892 = vrsqrt.pop %v890
        %v893 = vrsqrt.pop %v891
        %v894 = vmul.f32 %v882, %v892
        %v895 = vmul.f32 %v883, %v892
        %v896 = vmul.f32 %v884, %v892
        %v897 = vmul.f32 %v885, %v892
        %v898 = vmul.f32 %v886, %v893
        %v899 = vmul.f32 %v887, %v893
        %v900 = vmul.f32 %v888, %v893
        %v901 = vmul.f32 %v889, %v893
        %v903 = vlaneseq
        %v904 = vshrl.u32 %v903, 7
        %v905 = vsub.s32 0, %v904
        %v906 = vrot.slane %v819, %v905
        %v907 = vlaneseq
        %v908 = vshrl.u32 %v907, 7
        %v909 = vsub.s32 1, %v908
        %v910 = vrot.slane %v819, %v909
        %v911 = vlaneseq
        %v912 = vshrl.u32 %v911, 7
        %v913 = vsub.s32 2, %v912
        %v914 = vrot.slane %v819, %v913
        %v915 = vlaneseq
        %v916 = vshrl.u32 %v915, 7
        %v917 = vsub.s32 3, %v916
        %v918 = vrot.slane %v819, %v917
        %v923 = vadd.f32 %v894, %v906
        %v924 = vadd.f32 %v895, %v910
        %v925 = vadd.f32 %v896, %v914
        %v926 = vadd.f32 %v897, %v918
        %v927 = vadd.f32 %v898, %v906
        %v928 = vadd.f32 %v899, %v910
        %v929 = vadd.f32 %v900, %v914
        %v930 = vadd.f32 %v901, %v918
        %v931 = vpack.c.bf16 %v927, %v923
        %v932 = vpack.c.bf16 %v928, %v924
        %v933 = vpack.c.bf16 %v929, %v925
        %v934 = vpack.c.bf16 %v930, %v926
        %v935 = vadd.f32 %v807, %v808
        %v936 = vadd.f32 %v935, %v809
        %v937 = vadd.f32 %v936, %v810
        %938 = vadd.xlane.f32.xlu0 %v937
        %v939 = vpop.xlane.xlu0 %938
        %v940 = vadd.f32 %v811, %v812
        %v941 = vadd.f32 %v940, %v813
        %v942 = vadd.f32 %v941, %v814
        %943 = vadd.xlane.f32.xlu0 %v942
        %v944 = vpop.xlane.xlu0 %943
        %v945 = vmul.f32 %v939, %v830
        %v946 = vmul.f32 %v944, %v830
        %v947 = vsub.f32 %v807, %v945
        %v948 = vsub.f32 %v808, %v945
        %v949 = vsub.f32 %v809, %v945
        %v950 = vsub.f32 %v810, %v945
        %v951 = vsub.f32 %v811, %v946
        %v952 = vsub.f32 %v812, %v946
        %v953 = vsub.f32 %v813, %v946
        %v954 = vsub.f32 %v814, %v946
        %v955 = vmul.f32 %v947, %v947
        %v956 = vmul.f32 %v948, %v948
        %v957 = vmul.f32 %v949, %v949
        %v958 = vmul.f32 %v950, %v950
        %v959 = vmul.f32 %v951, %v951
        %v960 = vmul.f32 %v952, %v952
        %v961 = vmul.f32 %v953, %v953
        %v962 = vmul.f32 %v954, %v954
        %v963 = vadd.f32 %v955, %v956
        %v964 = vadd.f32 %v963, %v957
        %v965 = vadd.f32 %v964, %v958
        %966 = vadd.xlane.f32.xlu0 %v965
        %v967 = vpop.xlane.xlu0 %966
        %v968 = vadd.f32 %v959, %v960
        %v969 = vadd.f32 %v968, %v961
        %v970 = vadd.f32 %v969, %v962
        %971 = vadd.xlane.f32.xlu0 %v970
        %v972 = vpop.xlane.xlu0 %971
        %v973 = vmul.f32 %v967, %v830
        %v974 = vmul.f32 %v972, %v830
        %v975 = vmul.f32 %v865, %v947
        %v976 = vmul.f32 %v869, %v948
        %v977 = vmul.f32 %v873, %v949
        %v978 = vmul.f32 %v877, %v950
        %v979 = vmul.f32 %v865, %v951
        %v980 = vmul.f32 %v869, %v952
        %v981 = vmul.f32 %v873, %v953
        %v982 = vmul.f32 %v877, %v954
        %v983 = vadd.f32 %v973, 1e-06
        %v984 = vadd.f32 %v974, 1e-06
        %v985 = vrsqrt.pop %v983
        %v986 = vrsqrt.pop %v984
        %v987 = vmul.f32 %v975, %v985
        %v988 = vmul.f32 %v976, %v985
        %v989 = vmul.f32 %v977, %v985
        %v990 = vmul.f32 %v978, %v985
        %v991 = vmul.f32 %v979, %v986
        %v992 = vmul.f32 %v980, %v986
        %v993 = vmul.f32 %v981, %v986
        %v994 = vmul.f32 %v982, %v986
        %v995 = vadd.f32 %v987, %v906
        %v996 = vadd.f32 %v988, %v910
        %v997 = vadd.f32 %v989, %v914
        %v998 = vadd.f32 %v990, %v918
        %v999 = vadd.f32 %v991, %v906
        %v1000 = vadd.f32 %v992, %v910
        %v1001 = vadd.f32 %v993, %v914
        %v1002 = vadd.f32 %v994, %v918
        %v1003 = vpack.c.bf16 %v999, %v995
        %v1004 = vpack.c.bf16 %v1000, %v996
        %v1005 = vpack.c.bf16 %v1001, %v997
        %v1006 = vpack.c.bf16 %v1002, %v998
        %v1007 = vld [vmem:[#allocation8] sm:$0xff]
        %v1008 = vld [vmem:[#allocation8 + $0x8] sm:$0xff]
        %v1009 = vld [vmem:[#allocation8 + $0x10] sm:$0xff]
        %v1010 = vld [vmem:[#allocation8 + $0x18] sm:$0xff]
        %v1011 = vld [vmem:[#allocation8 + $0x20] sm:$0xff]
        %v1012 = vld [vmem:[#allocation8 + $0x28] sm:$0xff]
        %v1013 = vld [vmem:[#allocation8 + $0x30] sm:$0xff]
        %v1014 = vld [vmem:[#allocation8 + $0x38] sm:$0xff]
        %v1015 = vld [vmem:[#allocation8 + $0x40] sm:$0xff]
        %v1016 = vld [vmem:[#allocation8 + $0x48] sm:$0xff]
        %v1017 = vld [vmem:[#allocation8 + $0x50] sm:$0xff]
        %v1018 = vld [vmem:[#allocation8 + $0x58] sm:$0xff]
        %v1019 = vld [vmem:[#allocation8 + $0x60] sm:$0xff]
        %v1020 = vld [vmem:[#allocation8 + $0x68] sm:$0xff]
        %v1021 = vld [vmem:[#allocation8 + $0x70] sm:$0xff]
        %v1022 = vld [vmem:[#allocation8 + $0x78] sm:$0xff]
        %v1023 = vld [vmem:[#allocation8 + $0x80] sm:$0xff]
        %v1024 = vld [vmem:[#allocation8 + $0x88] sm:$0xff]
        %v1025 = vld [vmem:[#allocation8 + $0x90] sm:$0xff]
        %v1026 = vld [vmem:[#allocation8 + $0x98] sm:$0xff]
        %v1027 = vld [vmem:[#allocation8 + $0xa0] sm:$0xff]
        %v1028 = vld [vmem:[#allocation8 + $0xa8] sm:$0xff]
        %v1029 = vld [vmem:[#allocation8 + $0xb0] sm:$0xff]
        %v1030 = vld [vmem:[#allocation8 + $0xb8] sm:$0xff]
        %v1031 = vld [vmem:[#allocation8 + $0xc0] sm:$0xff]
        %v1032 = vld [vmem:[#allocation8 + $0xc8] sm:$0xff]
        %v1033 = vld [vmem:[#allocation8 + $0xd0] sm:$0xff]
        %v1034 = vld [vmem:[#allocation8 + $0xd8] sm:$0xff]
        %v1035 = vld [vmem:[#allocation8 + $0xe0] sm:$0xff]
        %v1036 = vld [vmem:[#allocation8 + $0xe8] sm:$0xff]
        %v1037 = vld [vmem:[#allocation8 + $0xf0] sm:$0xff]
        %v1038 = vld [vmem:[#allocation8 + $0xf8] sm:$0xff]
        %v1039 = vld [vmem:[#allocation8 + $0x100] sm:$0xff]
        %v1040 = vld [vmem:[#allocation8 + $0x108] sm:$0xff]
        %v1041 = vld [vmem:[#allocation8 + $0x110] sm:$0xff]
        %v1042 = vld [vmem:[#allocation8 + $0x118] sm:$0xff]
        %v1043 = vld [vmem:[#allocation8 + $0x120] sm:$0xff]
        %v1044 = vld [vmem:[#allocation8 + $0x128] sm:$0xff]
        %v1045 = vld [vmem:[#allocation8 + $0x130] sm:$0xff]
        %v1046 = vld [vmem:[#allocation8 + $0x138] sm:$0xff]
        %v1047 = vld [vmem:[#allocation8 + $0x140] sm:$0xff]
        %v1048 = vld [vmem:[#allocation8 + $0x148] sm:$0xff]
        %v1049 = vld [vmem:[#allocation8 + $0x150] sm:$0xff]
        %v1050 = vld [vmem:[#allocation8 + $0x158] sm:$0xff]
        %v1051 = vld [vmem:[#allocation8 + $0x160] sm:$0xff]
        %v1052 = vld [vmem:[#allocation8 + $0x168] sm:$0xff]
        %v1053 = vld [vmem:[#allocation8 + $0x170] sm:$0xff]
        %v1054 = vld [vmem:[#allocation8 + $0x178] sm:$0xff]
        %v1055 = vld [vmem:[#allocation8 + $0x180] sm:$0xff]
        %v1056 = vld [vmem:[#allocation8 + $0x188] sm:$0xff]
        %v1057 = vld [vmem:[#allocation8 + $0x190] sm:$0xff]
        %v1058 = vld [vmem:[#allocation8 + $0x198] sm:$0xff]
        %v1059 = vld [vmem:[#allocation8 + $0x1a0] sm:$0xff]
        %v1060 = vld [vmem:[#allocation8 + $0x1a8] sm:$0xff]
        %v1061 = vld [vmem:[#allocation8 + $0x1b0] sm:$0xff]
        %v1062 = vld [vmem:[#allocation8 + $0x1b8] sm:$0xff]
        %v1063 = vld [vmem:[#allocation8 + $0x1c0] sm:$0xff]
        %v1064 = vld [vmem:[#allocation8 + $0x1c8] sm:$0xff]
        %v1065 = vld [vmem:[#allocation8 + $0x1d0] sm:$0xff]
        %v1066 = vld [vmem:[#allocation8 + $0x1d8] sm:$0xff]
        %v1067 = vld [vmem:[#allocation8 + $0x1e0] sm:$0xff]
        %v1068 = vld [vmem:[#allocation8 + $0x1e8] sm:$0xff]
        %v1069 = vld [vmem:[#allocation8 + $0x1f0] sm:$0xff]
        %v1070 = vld [vmem:[#allocation8 + $0x1f8] sm:$0xff]
        %v1071 = vld [vmem:[#allocation8 + $0x200] sm:$0xff]
        %v1072 = vld [vmem:[#allocation8 + $0x208] sm:$0xff]
        %v1073 = vld [vmem:[#allocation8 + $0x210] sm:$0xff]
        %v1074 = vld [vmem:[#allocation8 + $0x218] sm:$0xff]
        %v1075 = vld [vmem:[#allocation8 + $0x220] sm:$0xff]
        %v1076 = vld [vmem:[#allocation8 + $0x228] sm:$0xff]
        %v1077 = vld [vmem:[#allocation8 + $0x230] sm:$0xff]
        %v1078 = vld [vmem:[#allocation8 + $0x238] sm:$0xff]
        %v1079 = vld [vmem:[#allocation8 + $0x240] sm:$0xff]
        %v1080 = vld [vmem:[#allocation8 + $0x248] sm:$0xff]
        %v1081 = vld [vmem:[#allocation8 + $0x250] sm:$0xff]
        %v1082 = vld [vmem:[#allocation8 + $0x258] sm:$0xff]
        %v1083 = vld [vmem:[#allocation8 + $0x260] sm:$0xff]
        %v1084 = vld [vmem:[#allocation8 + $0x268] sm:$0xff]
        %v1085 = vld [vmem:[#allocation8 + $0x270] sm:$0xff]
        %v1086 = vld [vmem:[#allocation8 + $0x278] sm:$0xff]
        %v1087 = vld [vmem:[#allocation8 + $0x280] sm:$0xff]
        %v1088 = vld [vmem:[#allocation8 + $0x288] sm:$0xff]
        %v1089 = vld [vmem:[#allocation8 + $0x290] sm:$0xff]
        %v1090 = vld [vmem:[#allocation8 + $0x298] sm:$0xff]
        %v1091 = vld [vmem:[#allocation8 + $0x2a0] sm:$0xff]
        %v1092 = vld [vmem:[#allocation8 + $0x2a8] sm:$0xff]
        %v1093 = vld [vmem:[#allocation8 + $0x2b0] sm:$0xff]
        %v1094 = vld [vmem:[#allocation8 + $0x2b8] sm:$0xff]
        %v1095 = vld [vmem:[#allocation8 + $0x2c0] sm:$0xff]
        %v1096 = vld [vmem:[#allocation8 + $0x2c8] sm:$0xff]
        %v1097 = vld [vmem:[#allocation8 + $0x2d0] sm:$0xff]
        %v1098 = vld [vmem:[#allocation8 + $0x2d8] sm:$0xff]
        %v1099 = vld [vmem:[#allocation8 + $0x2e0] sm:$0xff]
        %v1100 = vld [vmem:[#allocation8 + $0x2e8] sm:$0xff]
        %v1101 = vld [vmem:[#allocation8 + $0x2f0] sm:$0xff]
        %v1102 = vld [vmem:[#allocation8 + $0x2f8] sm:$0xff]
        %v1103 = vld [vmem:[#allocation8 + $0x300] sm:$0xff]
        %v1104 = vld [vmem:[#allocation8 + $0x308] sm:$0xff]
        %v1105 = vld [vmem:[#allocation8 + $0x310] sm:$0xff]
        %v1106 = vld [vmem:[#allocation8 + $0x318] sm:$0xff]
        %v1107 = vld [vmem:[#allocation8 + $0x320] sm:$0xff]
        %v1108 = vld [vmem:[#allocation8 + $0x328] sm:$0xff]
        %v1109 = vld [vmem:[#allocation8 + $0x330] sm:$0xff]
        %v1110 = vld [vmem:[#allocation8 + $0x338] sm:$0xff]
        %v1111 = vld [vmem:[#allocation8 + $0x340] sm:$0xff]
        %v1112 = vld [vmem:[#allocation8 + $0x348] sm:$0xff]
        %v1113 = vld [vmem:[#allocation8 + $0x350] sm:$0xff]
        %v1114 = vld [vmem:[#allocation8 + $0x358] sm:$0xff]
        %v1115 = vld [vmem:[#allocation8 + $0x360] sm:$0xff]
        %v1116 = vld [vmem:[#allocation8 + $0x368] sm:$0xff]
        %v1117 = vld [vmem:[#allocation8 + $0x370] sm:$0xff]
        %v1118 = vld [vmem:[#allocation8 + $0x378] sm:$0xff]
        %v1119 = vld [vmem:[#allocation8 + $0x380] sm:$0xff]
        %v1120 = vld [vmem:[#allocation8 + $0x388] sm:$0xff]
        %v1121 = vld [vmem:[#allocation8 + $0x390] sm:$0xff]
        %v1122 = vld [vmem:[#allocation8 + $0x398] sm:$0xff]
        %v1123 = vld [vmem:[#allocation8 + $0x3a0] sm:$0xff]
        %v1124 = vld [vmem:[#allocation8 + $0x3a8] sm:$0xff]
        %v1125 = vld [vmem:[#allocation8 + $0x3b0] sm:$0xff]
        %v1126 = vld [vmem:[#allocation8 + $0x3b8] sm:$0xff]
        %v1127 = vld [vmem:[#allocation8 + $0x3c0] sm:$0xff]
        %v1128 = vld [vmem:[#allocation8 + $0x3c8] sm:$0xff]
        %v1129 = vld [vmem:[#allocation8 + $0x3d0] sm:$0xff]
        %v1130 = vld [vmem:[#allocation8 + $0x3d8] sm:$0xff]
        %v1131 = vld [vmem:[#allocation8 + $0x3e0] sm:$0xff]
        %v1132 = vld [vmem:[#allocation8 + $0x3e8] sm:$0xff]
        %v1133 = vld [vmem:[#allocation8 + $0x3f0] sm:$0xff]
        %v1134 = vld [vmem:[#allocation8 + $0x3f8] sm:$0xff]
        %v1135 = vld [vmem:[#allocation10] sm:$0xf]
        %v1137 = vlaneseq
        %v1138 = vshrl.u32 %v1137, 7
        %v1139 = vsub.s32 0, %v1138
        %v1140 = vrot.slane %v1135, %v1139
        %v1141 = vlaneseq
        %v1142 = vshrl.u32 %v1141, 7
        %v1143 = vsub.s32 1, %v1142
        %v1144 = vrot.slane %v1135, %v1143
        %v1145 = vlaneseq
        %v1146 = vshrl.u32 %v1145, 7
        %v1147 = vsub.s32 2, %v1146
        %v1148 = vrot.slane %v1135, %v1147
        %v1149 = vlaneseq
        %v1150 = vshrl.u32 %v1149, 7
        %v1151 = vsub.s32 3, %v1150
        %v1152 = vrot.slane %v1135, %v1151
        %v1285 = vunpack.c.l.b16 %v1007
        %v1286 = vunpack.c.h.b16 %v1007
        %v1287 = vunpack.c.l.b16 %v1008
        %v1288 = vunpack.c.h.b16 %v1008
        %v1289 = vunpack.c.l.b16 %v1009
        %v1290 = vunpack.c.h.b16 %v1009
        %v1291 = vunpack.c.l.b16 %v1010
        %v1292 = vunpack.c.h.b16 %v1010
        %v1293 = vunpack.c.l.b16 %v1011
        %v1294 = vunpack.c.h.b16 %v1011
        %v1295 = vunpack.c.l.b16 %v1012
        %v1296 = vunpack.c.h.b16 %v1012
        %v1297 = vunpack.c.l.b16 %v1013
        %v1298 = vunpack.c.h.b16 %v1013
        %v1299 = vunpack.c.l.b16 %v1014
        %v1300 = vunpack.c.h.b16 %v1014
        %v1301 = vunpack.c.l.b16 %v1015
        %v1302 = vunpack.c.h.b16 %v1015
        %v1303 = vunpack.c.l.b16 %v1016
        %v1304 = vunpack.c.h.b16 %v1016
        %v1305 = vunpack.c.l.b16 %v1017
        %v1306 = vunpack.c.h.b16 %v1017
        %v1307 = vunpack.c.l.b16 %v1018
        %v1308 = vunpack.c.h.b16 %v1018
        %v1309 = vunpack.c.l.b16 %v1019
        %v1310 = vunpack.c.h.b16 %v1019
        %v1311 = vunpack.c.l.b16 %v1020
        %v1312 = vunpack.c.h.b16 %v1020
        %v1313 = vunpack.c.l.b16 %v1021
        %v1314 = vunpack.c.h.b16 %v1021
        %v1315 = vunpack.c.l.b16 %v1022
        %v1316 = vunpack.c.h.b16 %v1022
        %v1317 = vunpack.c.l.b16 %v1023
        %v1318 = vunpack.c.h.b16 %v1023
        %v1319 = vunpack.c.l.b16 %v1024
        %v1320 = vunpack.c.h.b16 %v1024
        %v1321 = vunpack.c.l.b16 %v1025
        %v1322 = vunpack.c.h.b16 %v1025
        %v1323 = vunpack.c.l.b16 %v1026
        %v1324 = vunpack.c.h.b16 %v1026
        %v1325 = vunpack.c.l.b16 %v1027
        %v1326 = vunpack.c.h.b16 %v1027
        %v1327 = vunpack.c.l.b16 %v1028
        %v1328 = vunpack.c.h.b16 %v1028
        %v1329 = vunpack.c.l.b16 %v1029
        %v1330 = vunpack.c.h.b16 %v1029
        %v1331 = vunpack.c.l.b16 %v1030
        %v1332 = vunpack.c.h.b16 %v1030
        %v1333 = vunpack.c.l.b16 %v1031
        %v1334 = vunpack.c.h.b16 %v1031
        %v1335 = vunpack.c.l.b16 %v1032
        %v1336 = vunpack.c.h.b16 %v1032
        %v1337 = vunpack.c.l.b16 %v1033
        %v1338 = vunpack.c.h.b16 %v1033
        %v1339 = vunpack.c.l.b16 %v1034
        %v1340 = vunpack.c.h.b16 %v1034
        %v1341 = vunpack.c.l.b16 %v1035
        %v1342 = vunpack.c.h.b16 %v1035
        %v1343 = vunpack.c.l.b16 %v1036
        %v1344 = vunpack.c.h.b16 %v1036
        %v1345 = vunpack.c.l.b16 %v1037
        %v1346 = vunpack.c.h.b16 %v1037
        %v1347 = vunpack.c.l.b16 %v1038
        %v1348 = vunpack.c.h.b16 %v1038
        %v1349 = vunpack.c.l.b16 %v1039
        %v1350 = vunpack.c.h.b16 %v1039
        %v1351 = vunpack.c.l.b16 %v1040
        %v1352 = vunpack.c.h.b16 %v1040
        %v1353 = vunpack.c.l.b16 %v1041
        %v1354 = vunpack.c.h.b16 %v1041
        %v1355 = vunpack.c.l.b16 %v1042
        %v1356 = vunpack.c.h.b16 %v1042
        %v1357 = vunpack.c.l.b16 %v1043
        %v1358 = vunpack.c.h.b16 %v1043
        %v1359 = vunpack.c.l.b16 %v1044
        %v1360 = vunpack.c.h.b16 %v1044
        %v1361 = vunpack.c.l.b16 %v1045
        %v1362 = vunpack.c.h.b16 %v1045
        %v1363 = vunpack.c.l.b16 %v1046
        %v1364 = vunpack.c.h.b16 %v1046
        %v1365 = vunpack.c.l.b16 %v1047
        %v1366 = vunpack.c.h.b16 %v1047
        %v1367 = vunpack.c.l.b16 %v1048
        %v1368 = vunpack.c.h.b16 %v1048
        %v1369 = vunpack.c.l.b16 %v1049
        %v1370 = vunpack.c.h.b16 %v1049
        %v1371 = vunpack.c.l.b16 %v1050
        %v1372 = vunpack.c.h.b16 %v1050
        %v1373 = vunpack.c.l.b16 %v1051
        %v1374 = vunpack.c.h.b16 %v1051
        %v1375 = vunpack.c.l.b16 %v1052
        %v1376 = vunpack.c.h.b16 %v1052
        %v1377 = vunpack.c.l.b16 %v1053
        %v1378 = vunpack.c.h.b16 %v1053
        %v1379 = vunpack.c.l.b16 %v1054
        %v1380 = vunpack.c.h.b16 %v1054
        %v1381 = vunpack.c.l.b16 %v1055
        %v1382 = vunpack.c.h.b16 %v1055
        %v1383 = vunpack.c.l.b16 %v1056
        %v1384 = vunpack.c.h.b16 %v1056
        %v1385 = vunpack.c.l.b16 %v1057
        %v1386 = vunpack.c.h.b16 %v1057
        %v1387 = vunpack.c.l.b16 %v1058
        %v1388 = vunpack.c.h.b16 %v1058
        %v1389 = vunpack.c.l.b16 %v1059
        %v1390 = vunpack.c.h.b16 %v1059
        %v1391 = vunpack.c.l.b16 %v1060
        %v1392 = vunpack.c.h.b16 %v1060
        %v1393 = vunpack.c.l.b16 %v1061
        %v1394 = vunpack.c.h.b16 %v1061
        %v1395 = vunpack.c.l.b16 %v1062
        %v1396 = vunpack.c.h.b16 %v1062
        %v1397 = vunpack.c.l.b16 %v1063
        %v1398 = vunpack.c.h.b16 %v1063
        %v1399 = vunpack.c.l.b16 %v1064
        %v1400 = vunpack.c.h.b16 %v1064
        %v1401 = vunpack.c.l.b16 %v1065
        %v1402 = vunpack.c.h.b16 %v1065
        %v1403 = vunpack.c.l.b16 %v1066
        %v1404 = vunpack.c.h.b16 %v1066
        %v1405 = vunpack.c.l.b16 %v1067
        %v1406 = vunpack.c.h.b16 %v1067
        %v1407 = vunpack.c.l.b16 %v1068
        %v1408 = vunpack.c.h.b16 %v1068
        %v1409 = vunpack.c.l.b16 %v1069
        %v1410 = vunpack.c.h.b16 %v1069
        %v1411 = vunpack.c.l.b16 %v1070
        %v1412 = vunpack.c.h.b16 %v1070
        %v1413 = vunpack.c.l.b16 %v1071
        %v1414 = vunpack.c.h.b16 %v1071
        %v1415 = vunpack.c.l.b16 %v1072
        %v1416 = vunpack.c.h.b16 %v1072
        %v1417 = vunpack.c.l.b16 %v1073
        %v1418 = vunpack.c.h.b16 %v1073
        %v1419 = vunpack.c.l.b16 %v1074
        %v1420 = vunpack.c.h.b16 %v1074
        %v1421 = vunpack.c.l.b16 %v1075
        %v1422 = vunpack.c.h.b16 %v1075
        %v1423 = vunpack.c.l.b16 %v1076
        %v1424 = vunpack.c.h.b16 %v1076
        %v1425 = vunpack.c.l.b16 %v1077
        %v1426 = vunpack.c.h.b16 %v1077
        %v1427 = vunpack.c.l.b16 %v1078
        %v1428 = vunpack.c.h.b16 %v1078
        %v1429 = vunpack.c.l.b16 %v1079
        %v1430 = vunpack.c.h.b16 %v1079
        %v1431 = vunpack.c.l.b16 %v1080
        %v1432 = vunpack.c.h.b16 %v1080
        %v1433 = vunpack.c.l.b16 %v1081
        %v1434 = vunpack.c.h.b16 %v1081
        %v1435 = vunpack.c.l.b16 %v1082
        %v1436 = vunpack.c.h.b16 %v1082
        %v1437 = vunpack.c.l.b16 %v1083
        %v1438 = vunpack.c.h.b16 %v1083
        %v1439 = vunpack.c.l.b16 %v1084
        %v1440 = vunpack.c.h.b16 %v1084
        %v1441 = vunpack.c.l.b16 %v1085
        %v1442 = vunpack.c.h.b16 %v1085
        %v1443 = vunpack.c.l.b16 %v1086
        %v1444 = vunpack.c.h.b16 %v1086
        %v1445 = vunpack.c.l.b16 %v1087
        %v1446 = vunpack.c.h.b16 %v1087
        %v1447 = vunpack.c.l.b16 %v1088
        %v1448 = vunpack.c.h.b16 %v1088
        %v1449 = vunpack.c.l.b16 %v1089
        %v1450 = vunpack.c.h.b16 %v1089
        %v1451 = vunpack.c.l.b16 %v1090
        %v1452 = vunpack.c.h.b16 %v1090
        %v1453 = vunpack.c.l.b16 %v1091
        %v1454 = vunpack.c.h.b16 %v1091
        %v1455 = vunpack.c.l.b16 %v1092
        %v1456 = vunpack.c.h.b16 %v1092
        %v1457 = vunpack.c.l.b16 %v1093
        %v1458 = vunpack.c.h.b16 %v1093
        %v1459 = vunpack.c.l.b16 %v1094
        %v1460 = vunpack.c.h.b16 %v1094
        %v1461 = vunpack.c.l.b16 %v1095
        %v1462 = vunpack.c.h.b16 %v1095
        %v1463 = vunpack.c.l.b16 %v1096
        %v1464 = vunpack.c.h.b16 %v1096
        %v1465 = vunpack.c.l.b16 %v1097
        %v1466 = vunpack.c.h.b16 %v1097
        %v1467 = vunpack.c.l.b16 %v1098
        %v1468 = vunpack.c.h.b16 %v1098
        %v1469 = vunpack.c.l.b16 %v1099
        %v1470 = vunpack.c.h.b16 %v1099
        %v1471 = vunpack.c.l.b16 %v1100
        %v1472 = vunpack.c.h.b16 %v1100
        %v1473 = vunpack.c.l.b16 %v1101
        %v1474 = vunpack.c.h.b16 %v1101
        %v1475 = vunpack.c.l.b16 %v1102
        %v1476 = vunpack.c.h.b16 %v1102
        %v1477 = vunpack.c.l.b16 %v1103
        %v1478 = vunpack.c.h.b16 %v1103
        %v1479 = vunpack.c.l.b16 %v1104
        %v1480 = vunpack.c.h.b16 %v1104
        %v1481 = vunpack.c.l.b16 %v1105
        %v1482 = vunpack.c.h.b16 %v1105
        %v1483 = vunpack.c.l.b16 %v1106
        %v1484 = vunpack.c.h.b16 %v1106
        %v1485 = vunpack.c.l.b16 %v1107
        %v1486 = vunpack.c.h.b16 %v1107
        %v1487 = vunpack.c.l.b16 %v1108
        %v1488 = vunpack.c.h.b16 %v1108
        %v1489 = vunpack.c.l.b16 %v1109
        %v1490 = vunpack.c.h.b16 %v1109
        %v1491 = vunpack.c.l.b16 %v1110
        %v1492 = vunpack.c.h.b16 %v1110
        %v1493 = vunpack.c.l.b16 %v1111
        %v1494 = vunpack.c.h.b16 %v1111
        %v1495 = vunpack.c.l.b16 %v1112
        %v1496 = vunpack.c.h.b16 %v1112
        %v1497 = vunpack.c.l.b16 %v1113
        %v1498 = vunpack.c.h.b16 %v1113
        %v1499 = vunpack.c.l.b16 %v1114
        %v1500 = vunpack.c.h.b16 %v1114
        %v1501 = vunpack.c.l.b16 %v1115
        %v1502 = vunpack.c.h.b16 %v1115
        %v1503 = vunpack.c.l.b16 %v1116
        %v1504 = vunpack.c.h.b16 %v1116
        %v1505 = vunpack.c.l.b16 %v1117
        %v1506 = vunpack.c.h.b16 %v1117
        %v1507 = vunpack.c.l.b16 %v1118
        %v1508 = vunpack.c.h.b16 %v1118
        %v1509 = vunpack.c.l.b16 %v1119
        %v1510 = vunpack.c.h.b16 %v1119
        %v1511 = vunpack.c.l.b16 %v1120
        %v1512 = vunpack.c.h.b16 %v1120
        %v1513 = vunpack.c.l.b16 %v1121
        %v1514 = vunpack.c.h.b16 %v1121
        %v1515 = vunpack.c.l.b16 %v1122
        %v1516 = vunpack.c.h.b16 %v1122
        %v1517 = vunpack.c.l.b16 %v1123
        %v1518 = vunpack.c.h.b16 %v1123
        %v1519 = vunpack.c.l.b16 %v1124
        %v1520 = vunpack.c.h.b16 %v1124
        %v1521 = vunpack.c.l.b16 %v1125
        %v1522 = vunpack.c.h.b16 %v1125
        %v1523 = vunpack.c.l.b16 %v1126
        %v1524 = vunpack.c.h.b16 %v1126
        %v1525 = vunpack.c.l.b16 %v1127
        %v1526 = vunpack.c.h.b16 %v1127
        %v1527 = vunpack.c.l.b16 %v1128
        %v1528 = vunpack.c.h.b16 %v1128
        %v1529 = vunpack.c.l.b16 %v1129
        %v1530 = vunpack.c.h.b16 %v1129
        %v1531 = vunpack.c.l.b16 %v1130
        %v1532 = vunpack.c.h.b16 %v1130
        %v1533 = vunpack.c.l.b16 %v1131
        %v1534 = vunpack.c.h.b16 %v1131
        %v1535 = vunpack.c.l.b16 %v1132
        %v1536 = vunpack.c.h.b16 %v1132
        %v1537 = vunpack.c.l.b16 %v1133
        %v1538 = vunpack.c.h.b16 %v1133
        %v1539 = vunpack.c.l.b16 %v1134
        %v1540 = vunpack.c.h.b16 %v1134
        %v1541 = vpack.c.b16 %v1289, %v1285
        %v1542 = vpack.c.b16 %v1290, %v1286
        %v1543 = vpack.c.b16 %v1291, %v1287
        %v1544 = vpack.c.b16 %v1292, %v1288
        %v1545 = vpack.c.b16 %v1297, %v1293
        %v1546 = vpack.c.b16 %v1298, %v1294
        %v1547 = vpack.c.b16 %v1299, %v1295
        %v1548 = vpack.c.b16 %v1300, %v1296
        %v1549 = vpack.c.b16 %v1305, %v1301
        %v1550 = vpack.c.b16 %v1306, %v1302
        %v1551 = vpack.c.b16 %v1307, %v1303
        %v1552 = vpack.c.b16 %v1308, %v1304
        %v1553 = vpack.c.b16 %v1313, %v1309
        %v1554 = vpack.c.b16 %v1314, %v1310
        %v1555 = vpack.c.b16 %v1315, %v1311
        %v1556 = vpack.c.b16 %v1316, %v1312
        %v1557 = vpack.c.b16 %v1321, %v1317
        %v1558 = vpack.c.b16 %v1322, %v1318
        %v1559 = vpack.c.b16 %v1323, %v1319
        %v1560 = vpack.c.b16 %v1324, %v1320
        %v1561 = vpack.c.b16 %v1329, %v1325
        %v1562 = vpack.c.b16 %v1330, %v1326
        %v1563 = vpack.c.b16 %v1331, %v1327
        %v1564 = vpack.c.b16 %v1332, %v1328
        %v1565 = vpack.c.b16 %v1337, %v1333
        %v1566 = vpack.c.b16 %v1338, %v1334
        %v1567 = vpack.c.b16 %v1339, %v1335
        %v1568 = vpack.c.b16 %v1340, %v1336
        %v1569 = vpack.c.b16 %v1345, %v1341
        %v1570 = vpack.c.b16 %v1346, %v1342
        %v1571 = vpack.c.b16 %v1347, %v1343
        %v1572 = vpack.c.b16 %v1348, %v1344
        %v1573 = vpack.c.b16 %v1353, %v1349
        %v1574 = vpack.c.b16 %v1354, %v1350
        %v1575 = vpack.c.b16 %v1355, %v1351
        %v1576 = vpack.c.b16 %v1356, %v1352
        %v1577 = vpack.c.b16 %v1361, %v1357
        %v1578 = vpack.c.b16 %v1362, %v1358
        %v1579 = vpack.c.b16 %v1363, %v1359
        %v1580 = vpack.c.b16 %v1364, %v1360
        %v1581 = vpack.c.b16 %v1369, %v1365
        %v1582 = vpack.c.b16 %v1370, %v1366
        %v1583 = vpack.c.b16 %v1371, %v1367
        %v1584 = vpack.c.b16 %v1372, %v1368
        %v1585 = vpack.c.b16 %v1377, %v1373
        %v1586 = vpack.c.b16 %v1378, %v1374
        %v1587 = vpack.c.b16 %v1379, %v1375
        %v1588 = vpack.c.b16 %v1380, %v1376
        %v1589 = vpack.c.b16 %v1385, %v1381
        %v1590 = vpack.c.b16 %v1386, %v1382
        %v1591 = vpack.c.b16 %v1387, %v1383
        %v1592 = vpack.c.b16 %v1388, %v1384
        %v1593 = vpack.c.b16 %v1393, %v1389
        %v1594 = vpack.c.b16 %v1394, %v1390
        %v1595 = vpack.c.b16 %v1395, %v1391
        %v1596 = vpack.c.b16 %v1396, %v1392
        %v1597 = vpack.c.b16 %v1401, %v1397
        %v1598 = vpack.c.b16 %v1402, %v1398
        %v1599 = vpack.c.b16 %v1403, %v1399
        %v1600 = vpack.c.b16 %v1404, %v1400
        %v1601 = vpack.c.b16 %v1409, %v1405
        %v1602 = vpack.c.b16 %v1410, %v1406
        %v1603 = vpack.c.b16 %v1411, %v1407
        %v1604 = vpack.c.b16 %v1412, %v1408
        %v1605 = vpack.c.b16 %v1417, %v1413
        %v1606 = vpack.c.b16 %v1418, %v1414
        %v1607 = vpack.c.b16 %v1419, %v1415
        %v1608 = vpack.c.b16 %v1420, %v1416
        %v1609 = vpack.c.b16 %v1425, %v1421
        %v1610 = vpack.c.b16 %v1426, %v1422
        %v1611 = vpack.c.b16 %v1427, %v1423
        %v1612 = vpack.c.b16 %v1428, %v1424
        %v1613 = vpack.c.b16 %v1433, %v1429
        %v1614 = vpack.c.b16 %v1434, %v1430
        %v1615 = vpack.c.b16 %v1435, %v1431
        %v1616 = vpack.c.b16 %v1436, %v1432
        %v1617 = vpack.c.b16 %v1441, %v1437
        %v1618 = vpack.c.b16 %v1442, %v1438
        %v1619 = vpack.c.b16 %v1443, %v1439
        %v1620 = vpack.c.b16 %v1444, %v1440
        %v1621 = vpack.c.b16 %v1449, %v1445
        %v1622 = vpack.c.b16 %v1450, %v1446
        %v1623 = vpack.c.b16 %v1451, %v1447
        %v1624 = vpack.c.b16 %v1452, %v1448
        %v1625 = vpack.c.b16 %v1457, %v1453
        %v1626 = vpack.c.b16 %v1458, %v1454
        %v1627 = vpack.c.b16 %v1459, %v1455
        %v1628 = vpack.c.b16 %v1460, %v1456
        %v1629 = vpack.c.b16 %v1465, %v1461
        %v1630 = vpack.c.b16 %v1466, %v1462
        %v1631 = vpack.c.b16 %v1467, %v1463
        %v1632 = vpack.c.b16 %v1468, %v1464
        %v1633 = vpack.c.b16 %v1473, %v1469
        %v1634 = vpack.c.b16 %v1474, %v1470
        %v1635 = vpack.c.b16 %v1475, %v1471
        %v1636 = vpack.c.b16 %v1476, %v1472
        %v1637 = vpack.c.b16 %v1481, %v1477
        %v1638 = vpack.c.b16 %v1482, %v1478
        %v1639 = vpack.c.b16 %v1483, %v1479
        %v1640 = vpack.c.b16 %v1484, %v1480
        %v1641 = vpack.c.b16 %v1489, %v1485
        %v1642 = vpack.c.b16 %v1490, %v1486
        %v1643 = vpack.c.b16 %v1491, %v1487
        %v1644 = vpack.c.b16 %v1492, %v1488
        %v1645 = vpack.c.b16 %v1497, %v1493
        %v1646 = vpack.c.b16 %v1498, %v1494
        %v1647 = vpack.c.b16 %v1499, %v1495
        %v1648 = vpack.c.b16 %v1500, %v1496
        %v1649 = vpack.c.b16 %v1505, %v1501
        %v1650 = vpack.c.b16 %v1506, %v1502
        %v1651 = vpack.c.b16 %v1507, %v1503
        %v1652 = vpack.c.b16 %v1508, %v1504
        %v1653 = vpack.c.b16 %v1513, %v1509
        %v1654 = vpack.c.b16 %v1514, %v1510
        %v1655 = vpack.c.b16 %v1515, %v1511
        %v1656 = vpack.c.b16 %v1516, %v1512
        %v1657 = vpack.c.b16 %v1521, %v1517
        %v1658 = vpack.c.b16 %v1522, %v1518
        %v1659 = vpack.c.b16 %v1523, %v1519
        %v1660 = vpack.c.b16 %v1524, %v1520
        %v1661 = vpack.c.b16 %v1529, %v1525
        %v1662 = vpack.c.b16 %v1530, %v1526
        %v1663 = vpack.c.b16 %v1531, %v1527
        %v1664 = vpack.c.b16 %v1532, %v1528
        %v1665 = vpack.c.b16 %v1537, %v1533
        %v1666 = vpack.c.b16 %v1538, %v1534
        %v1667 = vpack.c.b16 %v1539, %v1535
        %v1668 = vpack.c.b16 %v1540, %v1536
        %1797 = vmatprep.subr.bf16.mxu0 %v1542
        %1798 = vmatpush1.bf16.msra.mxu0 %v1541
        %1799 = vmatprep.subr.bf16.mxu0 %v1546
        %1800 = vmatpush1.bf16.msra.mxu0 %v1545
        %1801 = vmatprep.subr.bf16.mxu0 %v1550
        %1802 = vmatpush1.bf16.msra.mxu0 %v1549
        %1803 = vmatprep.subr.bf16.mxu0 %v1554
        %1804 = vmatpush1.bf16.msra.mxu0 %v1553
        %1805 = vmatprep.subr.bf16.mxu0 %v1558
        %1806 = vmatpush1.bf16.msra.mxu0 %v1557
        %1807 = vmatprep.subr.bf16.mxu0 %v1562
        %1808 = vmatpush1.bf16.msra.mxu0 %v1561
        %1809 = vmatprep.subr.bf16.mxu0 %v1566
        %1810 = vmatpush1.bf16.msra.mxu0 %v1565
        %1811 = vmatprep.subr.bf16.mxu0 %v1570
        %1812 = vmatpush1.bf16.msra.mxu0 %v1569
        %1813 = vmatprep.subr.bf16.mxu0 %v1574
        %1814 = vmatpush1.bf16.msra.mxu0 %v1573
        %1815 = vmatprep.subr.bf16.mxu0 %v1578
        %1816 = vmatpush1.bf16.msra.mxu0 %v1577
        %1817 = vmatprep.subr.bf16.mxu0 %v1582
        %1818 = vmatpush1.bf16.msra.mxu0 %v1581
        %1819 = vmatprep.subr.bf16.mxu0 %v1586
        %1820 = vmatpush1.bf16.msra.mxu0 %v1585
        %1821 = vmatprep.subr.bf16.mxu0 %v1590
        %1822 = vmatpush1.bf16.msra.mxu0 %v1589
        %1823 = vmatprep.subr.bf16.mxu0 %v1594
        %1824 = vmatpush1.bf16.msra.mxu0 %v1593
        %1825 = vmatprep.subr.bf16.mxu0 %v1598
        %1826 = vmatpush1.bf16.msra.mxu0 %v1597
        %1827 = vmatprep.subr.bf16.mxu0 %v1602
        %1828 = vmatpush1.bf16.msra.mxu0 %v1601
        %1829 = vmatprep.mubr.bf16.mxu0 %v932
        %1830 = vmatmul.mubr.bf16.gmra.mrb[0].mxu0 %v931
        %v1831 = vpop.f32.mrb[0].mxu0
        %v1832 = vadd.f32 %v1140, %v1831
        %v1833 = vpop.f32.mrb[0].mxu0
        %v1834 = vadd.f32 %v1144, %v1833
        %v1835 = vpop.f32.mrb[0].mxu0
        %v1836 = vadd.f32 %v1140, %v1835
        %v1837 = vpop.f32.mrb[0].mxu0
        %v1838 = vadd.f32 %v1144, %v1837
        %1839 = vdwg.mxu0
        %1840 = vmatprep.subr.bf16.mxu0 %v1606
        %1841 = vmatpush1.bf16.msra.mxu0 %v1605
        %1842 = vmatprep.subr.bf16.mxu0 %v1610
        %1843 = vmatpush1.bf16.msra.mxu0 %v1609
        %1844 = vmatprep.subr.bf16.mxu0 %v1614
        %1845 = vmatpush1.bf16.msra.mxu0 %v1613
        %1846 = vmatprep.subr.bf16.mxu0 %v1618
        %1847 = vmatpush1.bf16.msra.mxu0 %v1617
        %1848 = vmatprep.subr.bf16.mxu0 %v1622
        %1849 = vmatpush1.bf16.msra.mxu0 %v1621
        %1850 = vmatprep.subr.bf16.mxu0 %v1626
        %1851 = vmatpush1.bf16.msra.mxu0 %v1625
        %1852 = vmatprep.subr.bf16.mxu0 %v1630
        %1853 = vmatpush1.bf16.msra.mxu0 %v1629
        %1854 = vmatprep.subr.bf16.mxu0 %v1634
        %1855 = vmatpush1.bf16.msra.mxu0 %v1633
        %1856 = vmatprep.subr.bf16.mxu0 %v1638
        %1857 = vmatpush1.bf16.msra.mxu0 %v1637
        %1858 = vmatprep.subr.bf16.mxu0 %v1642
        %1859 = vmatpush1.bf16.msra.mxu0 %v1641
        %1860 = vmatprep.subr.bf16.mxu0 %v1646
        %1861 = vmatpush1.bf16.msra.mxu0 %v1645
        %1862 = vmatprep.subr.bf16.mxu0 %v1650
        %1863 = vmatpush1.bf16.msra.mxu0 %v1649
        %1864 = vmatprep.subr.bf16.mxu0 %v1654
        %1865 = vmatpush1.bf16.msra.mxu0 %v1653
        %1866 = vmatprep.subr.bf16.mxu0 %v1658
        %1867 = vmatpush1.bf16.msra.mxu0 %v1657
        %1868 = vmatprep.subr.bf16.mxu0 %v1662
        %1869 = vmatpush1.bf16.msra.mxu0 %v1661
        %1870 = vmatprep.subr.bf16.mxu0 %v1666
        %1871 = vmatpush1.bf16.msra.mxu0 %v1665
        %1872 = vmatprep.mubr.bf16.mxu0 %v934
        %1873 = vmatmul.mubr.bf16.gmra.mrb[0].mxu0 %v933
        %v1874 = vpop.f32.mrb[0].mxu0
        %v1875 = vadd.f32 %v1832, %v1874
        %v1876 = vpop.f32.mrb[0].mxu0
        %v1877 = vadd.f32 %v1834, %v1876
        %v1878 = vpop.f32.mrb[0].mxu0
        %v1879 = vadd.f32 %v1836, %v1878
        %v1880 = vpop.f32.mrb[0].mxu0
        %v1881 = vadd.f32 %v1838, %v1880
        %1882 = vdwg.mxu0
        %1883 = vmatprep.subr.bf16.mxu0 %v1544
        %1884 = vmatpush1.bf16.msra.mxu0 %v1543
        %1885 = vmatprep.subr.bf16.mxu0 %v1548
        %1886 = vmatpush1.bf16.msra.mxu0 %v1547
        %1887 = vmatprep.subr.bf16.mxu0 %v1552
        %1888 = vmatpush1.bf16.msra.mxu0 %v1551
        %1889 = vmatprep.subr.bf16.mxu0 %v1556
        %1890 = vmatpush1.bf16.msra.mxu0 %v1555
        %1891 = vmatprep.subr.bf16.mxu0 %v1560
        %1892 = vmatpush1.bf16.msra.mxu0 %v1559
        %1893 = vmatprep.subr.bf16.mxu0 %v1564
        %1894 = vmatpush1.bf16.msra.mxu0 %v1563
        %1895 = vmatprep.subr.bf16.mxu0 %v1568
        %1896 = vmatpush1.bf16.msra.mxu0 %v1567
        %1897 = vmatprep.subr.bf16.mxu0 %v1572
        %1898 = vmatpush1.bf16.msra.mxu0 %v1571
        %1899 = vmatprep.subr.bf16.mxu0 %v1576
        %1900 = vmatpush1.bf16.msra.mxu0 %v1575
        %1901 = vmatprep.subr.bf16.mxu0 %v1580
        %1902 = vmatpush1.bf16.msra.mxu0 %v1579
        %1903 = vmatprep.subr.bf16.mxu0 %v1584
        %1904 = vmatpush1.bf16.msra.mxu0 %v1583
        %1905 = vmatprep.subr.bf16.mxu0 %v1588
        %1906 = vmatpush1.bf16.msra.mxu0 %v1587
        %1907 = vmatprep.subr.bf16.mxu0 %v1592
        %1908 = vmatpush1.bf16.msra.mxu0 %v1591
        %1909 = vmatprep.subr.bf16.mxu0 %v1596
        %1910 = vmatpush1.bf16.msra.mxu0 %v1595
        %1911 = vmatprep.subr.bf16.mxu0 %v1600
        %1912 = vmatpush1.bf16.msra.mxu0 %v1599
        %1913 = vmatprep.subr.bf16.mxu0 %v1604
        %1914 = vmatpush1.bf16.msra.mxu0 %v1603
        %1915 = vmatprep.mubr.bf16.mxu0 %v932
        %1916 = vmatmul.mubr.bf16.gmra.mrb[0].mxu0 %v931
        %v1917 = vpop.f32.mrb[0].mxu0
        %v1918 = vadd.f32 %v1148, %v1917
        %v1919 = vpop.f32.mrb[0].mxu0
        %v1920 = vadd.f32 %v1152, %v1919
        %v1921 = vpop.f32.mrb[0].mxu0
        %v1922 = vadd.f32 %v1148, %v1921
        %v1923 = vpop.f32.mrb[0].mxu0
        %v1924 = vadd.f32 %v1152, %v1923
        %1925 = vdwg.mxu0
        %1926 = vmatprep.subr.bf16.mxu0 %v1608
        %1927 = vmatpush1.bf16.msra.mxu0 %v1607
        %1928 = vmatprep.subr.bf16.mxu0 %v1612
        %1929 = vmatpush1.bf16.msra.mxu0 %v1611
        %1930 = vmatprep.subr.bf16.mxu0 %v1616
        %1931 = vmatpush1.bf16.msra.mxu0 %v1615
        %1932 = vmatprep.subr.bf16.mxu0 %v1620
        %1933 = vmatpush1.bf16.msra.mxu0 %v1619
        %1934 = vmatprep.subr.bf16.mxu0 %v1624
        %1935 = vmatpush1.bf16.msra.mxu0 %v1623
        %1936 = vmatprep.subr.bf16.mxu0 %v1628
        %1937 = vmatpush1.bf16.msra.mxu0 %v1627
        %1938 = vmatprep.subr.bf16.mxu0 %v1632
        %1939 = vmatpush1.bf16.msra.mxu0 %v1631
        %1940 = vmatprep.subr.bf16.mxu0 %v1636
        %1941 = vmatpush1.bf16.msra.mxu0 %v1635
        %1942 = vmatprep.subr.bf16.mxu0 %v1640
        %1943 = vmatpush1.bf16.msra.mxu0 %v1639
        %1944 = vmatprep.subr.bf16.mxu0 %v1644
        %1945 = vmatpush1.bf16.msra.mxu0 %v1643
        %1946 = vmatprep.subr.bf16.mxu0 %v1648
        %1947 = vmatpush1.bf16.msra.mxu0 %v1647
        %1948 = vmatprep.subr.bf16.mxu0 %v1652
        %1949 = vmatpush1.bf16.msra.mxu0 %v1651
        %1950 = vmatprep.subr.bf16.mxu0 %v1656
        %1951 = vmatpush1.bf16.msra.mxu0 %v1655
        %1952 = vmatprep.subr.bf16.mxu0 %v1660
        %1953 = vmatpush1.bf16.msra.mxu0 %v1659
        %1954 = vmatprep.subr.bf16.mxu0 %v1664
        %1955 = vmatpush1.bf16.msra.mxu0 %v1663
        %1956 = vmatprep.subr.bf16.mxu0 %v1668
        %1957 = vmatpush1.bf16.msra.mxu0 %v1667
        %1958 = vmatprep.mubr.bf16.mxu0 %v934
        %1959 = vmatmul.mubr.bf16.gmra.mrb[0].mxu0 %v933
        %v1960 = vpop.f32.mrb[0].mxu0
        %v1961 = vadd.f32 %v1918, %v1960
        %v1962 = vpop.f32.mrb[0].mxu0
        %v1963 = vadd.f32 %v1920, %v1962
        %v1964 = vpop.f32.mrb[0].mxu0
        %v1965 = vadd.f32 %v1922, %v1964
        %v1966 = vpop.f32.mrb[0].mxu0
        %v1967 = vadd.f32 %v1924, %v1966
        %1968 = vdwg.mxu0
        %v1969 = vpack.c.bf16 %v1879, %v1875
        %v1970 = vpack.c.bf16 %v1881, %v1877
        %v1971 = vpack.c.bf16 %v1965, %v1961
        %v1972 = vpack.c.bf16 %v1967, %v1963
        %v1973 = vld [vmem:[#allocation11] sm:$0xff]
        %v1974 = vld [vmem:[#allocation11 + $0x8] sm:$0xff]
        %v1975 = vld [vmem:[#allocation11 + $0x10] sm:$0xff]
        %v1976 = vld [vmem:[#allocation11 + $0x18] sm:$0xff]
        %v1977 = vld [vmem:[#allocation11 + $0x20] sm:$0xff]
        %v1978 = vld [vmem:[#allocation11 + $0x28] sm:$0xff]
        %v1979 = vld [vmem:[#allocation11 + $0x30] sm:$0xff]
        %v1980 = vld [vmem:[#allocation11 + $0x38] sm:$0xff]
        %v1981 = vld [vmem:[#allocation11 + $0x40] sm:$0xff]
        %v1982 = vld [vmem:[#allocation11 + $0x48] sm:$0xff]
        %v1983 = vld [vmem:[#allocation11 + $0x50] sm:$0xff]
        %v1984 = vld [vmem:[#allocation11 + $0x58] sm:$0xff]
        %v1985 = vld [vmem:[#allocation11 + $0x60] sm:$0xff]
        %v1986 = vld [vmem:[#allocation11 + $0x68] sm:$0xff]
        %v1987 = vld [vmem:[#allocation11 + $0x70] sm:$0xff]
        %v1988 = vld [vmem:[#allocation11 + $0x78] sm:$0xff]
        %v1989 = vld [vmem:[#allocation11 + $0x80] sm:$0xff]
        %v1990 = vld [vmem:[#allocation11 + $0x88] sm:$0xff]
        %v1991 = vld [vmem:[#allocation11 + $0x90] sm:$0xff]
        %v1992 = vld [vmem:[#allocation11 + $0x98] sm:$0xff]
        %v1993 = vld [vmem:[#allocation11 + $0xa0] sm:$0xff]
        %v1994 = vld [vmem:[#allocation11 + $0xa8] sm:$0xff]
        %v1995 = vld [vmem:[#allocation11 + $0xb0] sm:$0xff]
        %v1996 = vld [vmem:[#allocation11 + $0xb8] sm:$0xff]
        %v1997 = vld [vmem:[#allocation11 + $0xc0] sm:$0xff]
        %v1998 = vld [vmem:[#allocation11 + $0xc8] sm:$0xff]
        %v1999 = vld [vmem:[#allocation11 + $0xd0] sm:$0xff]
        %v2000 = vld [vmem:[#allocation11 + $0xd8] sm:$0xff]
        %v2001 = vld [vmem:[#allocation11 + $0xe0] sm:$0xff]
        %v2002 = vld [vmem:[#allocation11 + $0xe8] sm:$0xff]
        %v2003 = vld [vmem:[#allocation11 + $0xf0] sm:$0xff]
        %v2004 = vld [vmem:[#allocation11 + $0xf8] sm:$0xff]
        %v2005 = vld [vmem:[#allocation11 + $0x100] sm:$0xff]
        %v2006 = vld [vmem:[#allocation11 + $0x108] sm:$0xff]
        %v2007 = vld [vmem:[#allocation11 + $0x110] sm:$0xff]
        %v2008 = vld [vmem:[#allocation11 + $0x118] sm:$0xff]
        %v2009 = vld [vmem:[#allocation11 + $0x120] sm:$0xff]
        %v2010 = vld [vmem:[#allocation11 + $0x128] sm:$0xff]
        %v2011 = vld [vmem:[#allocation11 + $0x130] sm:$0xff]
        %v2012 = vld [vmem:[#allocation11 + $0x138] sm:$0xff]
        %v2013 = vld [vmem:[#allocation11 + $0x140] sm:$0xff]
        %v2014 = vld [vmem:[#allocation11 + $0x148] sm:$0xff]
        %v2015 = vld [vmem:[#allocation11 + $0x150] sm:$0xff]
        %v2016 = vld [vmem:[#allocation11 + $0x158] sm:$0xff]
        %v2017 = vld [vmem:[#allocation11 + $0x160] sm:$0xff]
        %v2018 = vld [vmem:[#allocation11 + $0x168] sm:$0xff]
        %v2019 = vld [vmem:[#allocation11 + $0x170] sm:$0xff]
        %v2020 = vld [vmem:[#allocation11 + $0x178] sm:$0xff]
        %v2021 = vld [vmem:[#allocation11 + $0x180] sm:$0xff]
        %v2022 = vld [vmem:[#allocation11 + $0x188] sm:$0xff]
        %v2023 = vld [vmem:[#allocation11 + $0x190] sm:$0xff]
        %v2024 = vld [vmem:[#allocation11 + $0x198] sm:$0xff]
        %v2025 = vld [vmem:[#allocation11 + $0x1a0] sm:$0xff]
        %v2026 = vld [vmem:[#allocation11 + $0x1a8] sm:$0xff]
        %v2027 = vld [vmem:[#allocation11 + $0x1b0] sm:$0xff]
        %v2028 = vld [vmem:[#allocation11 + $0x1b8] sm:$0xff]
        %v2029 = vld [vmem:[#allocation11 + $0x1c0] sm:$0xff]
        %v2030 = vld [vmem:[#allocation11 + $0x1c8] sm:$0xff]
        %v2031 = vld [vmem:[#allocation11 + $0x1d0] sm:$0xff]
        %v2032 = vld [vmem:[#allocation11 + $0x1d8] sm:$0xff]
        %v2033 = vld [vmem:[#allocation11 + $0x1e0] sm:$0xff]
        %v2034 = vld [vmem:[#allocation11 + $0x1e8] sm:$0xff]
        %v2035 = vld [vmem:[#allocation11 + $0x1f0] sm:$0xff]
        %v2036 = vld [vmem:[#allocation11 + $0x1f8] sm:$0xff]
        %v2037 = vld [vmem:[#allocation11 + $0x200] sm:$0xff]
        %v2038 = vld [vmem:[#allocation11 + $0x208] sm:$0xff]
        %v2039 = vld [vmem:[#allocation11 + $0x210] sm:$0xff]
        %v2040 = vld [vmem:[#allocation11 + $0x218] sm:$0xff]
        %v2041 = vld [vmem:[#allocation11 + $0x220] sm:$0xff]
        %v2042 = vld [vmem:[#allocation11 + $0x228] sm:$0xff]
        %v2043 = vld [vmem:[#allocation11 + $0x230] sm:$0xff]
        %v2044 = vld [vmem:[#allocation11 + $0x238] sm:$0xff]
        %v2045 = vld [vmem:[#allocation11 + $0x240] sm:$0xff]
        %v2046 = vld [vmem:[#allocation11 + $0x248] sm:$0xff]
        %v2047 = vld [vmem:[#allocation11 + $0x250] sm:$0xff]
        %v2048 = vld [vmem:[#allocation11 + $0x258] sm:$0xff]
        %v2049 = vld [vmem:[#allocation11 + $0x260] sm:$0xff]
        %v2050 = vld [vmem:[#allocation11 + $0x268] sm:$0xff]
        %v2051 = vld [vmem:[#allocation11 + $0x270] sm:$0xff]
        %v2052 = vld [vmem:[#allocation11 + $0x278] sm:$0xff]
        %v2053 = vld [vmem:[#allocation11 + $0x280] sm:$0xff]
        %v2054 = vld [vmem:[#allocation11 + $0x288] sm:$0xff]
        %v2055 = vld [vmem:[#allocation11 + $0x290] sm:$0xff]
        %v2056 = vld [vmem:[#allocation11 + $0x298] sm:$0xff]
        %v2057 = vld [vmem:[#allocation11 + $0x2a0] sm:$0xff]
        %v2058 = vld [vmem:[#allocation11 + $0x2a8] sm:$0xff]
        %v2059 = vld [vmem:[#allocation11 + $0x2b0] sm:$0xff]
        %v2060 = vld [vmem:[#allocation11 + $0x2b8] sm:$0xff]
        %v2061 = vld [vmem:[#allocation11 + $0x2c0] sm:$0xff]
        %v2062 = vld [vmem:[#allocation11 + $0x2c8] sm:$0xff]
        %v2063 = vld [vmem:[#allocation11 + $0x2d0] sm:$0xff]
        %v2064 = vld [vmem:[#allocation11 + $0x2d8] sm:$0xff]
        %v2065 = vld [vmem:[#allocation11 + $0x2e0] sm:$0xff]
        %v2066 = vld [vmem:[#allocation11 + $0x2e8] sm:$0xff]
        %v2067 = vld [vmem:[#allocation11 + $0x2f0] sm:$0xff]
        %v2068 = vld [vmem:[#allocation11 + $0x2f8] sm:$0xff]
        %v2069 = vld [vmem:[#allocation11 + $0x300] sm:$0xff]
        %v2070 = vld [vmem:[#allocation11 + $0x308] sm:$0xff]
        %v2071 = vld [vmem:[#allocation11 + $0x310] sm:$0xff]
        %v2072 = vld [vmem:[#allocation11 + $0x318] sm:$0xff]
        %v2073 = vld [vmem:[#allocation11 + $0x320] sm:$0xff]
        %v2074 = vld [vmem:[#allocation11 + $0x328] sm:$0xff]
        %v2075 = vld [vmem:[#allocation11 + $0x330] sm:$0xff]
        %v2076 = vld [vmem:[#allocation11 + $0x338] sm:$0xff]
        %v2077 = vld [vmem:[#allocation11 + $0x340] sm:$0xff]
        %v2078 = vld [vmem:[#allocation11 + $0x348] sm:$0xff]
        %v2079 = vld [vmem:[#allocation11 + $0x350] sm:$0xff]
        %v2080 = vld [vmem:[#allocation11 + $0x358] sm:$0xff]
        %v2081 = vld [vmem:[#allocation11 + $0x360] sm:$0xff]
        %v2082 = vld [vmem:[#allocation11 + $0x368] sm:$0xff]
        %v2083 = vld [vmem:[#allocation11 + $0x370] sm:$0xff]
        %v2084 = vld [vmem:[#allocation11 + $0x378] sm:$0xff]
        %v2085 = vld [vmem:[#allocation11 + $0x380] sm:$0xff]
        %v2086 = vld [vmem:[#allocation11 + $0x388] sm:$0xff]
        %v2087 = vld [vmem:[#allocation11 + $0x390] sm:$0xff]
        %v2088 = vld [vmem:[#allocation11 + $0x398] sm:$0xff]
        %v2089 = vld [vmem:[#allocation11 + $0x3a0] sm:$0xff]
        %v2090 = vld [vmem:[#allocation11 + $0x3a8] sm:$0xff]
        %v2091 = vld [vmem:[#allocation11 + $0x3b0] sm:$0xff]
        %v2092 = vld [vmem:[#allocation11 + $0x3b8] sm:$0xff]
        %v2093 = vld [vmem:[#allocation11 + $0x3c0] sm:$0xff]
        %v2094 = vld [vmem:[#allocation11 + $0x3c8] sm:$0xff]
        %v2095 = vld [vmem:[#allocation11 + $0x3d0] sm:$0xff]
        %v2096 = vld [vmem:[#allocation11 + $0x3d8] sm:$0xff]
        %v2097 = vld [vmem:[#allocation11 + $0x3e0] sm:$0xff]
        %v2098 = vld [vmem:[#allocation11 + $0x3e8] sm:$0xff]
        %v2099 = vld [vmem:[#allocation11 + $0x3f0] sm:$0xff]
        %v2100 = vld [vmem:[#allocation11 + $0x3f8] sm:$0xff]
        %v2101 = vld [vmem:[#allocation11 + $0x400] sm:$0xff]
        %v2102 = vld [vmem:[#allocation11 + $0x408] sm:$0xff]
        %v2103 = vld [vmem:[#allocation11 + $0x410] sm:$0xff]
        %v2104 = vld [vmem:[#allocation11 + $0x418] sm:$0xff]
        %v2105 = vld [vmem:[#allocation11 + $0x420] sm:$0xff]
        %v2106 = vld [vmem:[#allocation11 + $0x428] sm:$0xff]
        %v2107 = vld [vmem:[#allocation11 + $0x430] sm:$0xff]
        %v2108 = vld [vmem:[#allocation11 + $0x438] sm:$0xff]
        %v2109 = vld [vmem:[#allocation11 + $0x440] sm:$0xff]
        %v2110 = vld [vmem:[#allocation11 + $0x448] sm:$0xff]
        %v2111 = vld [vmem:[#allocation11 + $0x450] sm:$0xff]
        %v2112 = vld [vmem:[#allocation11 + $0x458] sm:$0xff]
        %v2113 = vld [vmem:[#allocation11 + $0x460] sm:$0xff]
        %v2114 = vld [vmem:[#allocation11 + $0x468] sm:$0xff]
        %v2115 = vld [vmem:[#allocation11 + $0x470] sm:$0xff]
        %v2116 = vld [vmem:[#allocation11 + $0x478] sm:$0xff]
        %v2117 = vld [vmem:[#allocation11 + $0x480] sm:$0xff]
        %v2118 = vld [vmem:[#allocation11 + $0x488] sm:$0xff]
        %v2119 = vld [vmem:[#allocation11 + $0x490] sm:$0xff]
        %v2120 = vld [vmem:[#allocation11 + $0x498] sm:$0xff]
        %v2121 = vld [vmem:[#allocation11 + $0x4a0] sm:$0xff]
        %v2122 = vld [vmem:[#allocation11 + $0x4a8] sm:$0xff]
        %v2123 = vld [vmem:[#allocation11 + $0x4b0] sm:$0xff]
        %v2124 = vld [vmem:[#allocation11 + $0x4b8] sm:$0xff]
        %v2125 = vld [vmem:[#allocation11 + $0x4c0] sm:$0xff]
        %v2126 = vld [vmem:[#allocation11 + $0x4c8] sm:$0xff]
        %v2127 = vld [vmem:[#allocation11 + $0x4d0] sm:$0xff]
        %v2128 = vld [vmem:[#allocation11 + $0x4d8] sm:$0xff]
        %v2129 = vld [vmem:[#allocation11 + $0x4e0] sm:$0xff]
        %v2130 = vld [vmem:[#allocation11 + $0x4e8] sm:$0xff]
        %v2131 = vld [vmem:[#allocation11 + $0x4f0] sm:$0xff]
        %v2132 = vld [vmem:[#allocation11 + $0x4f8] sm:$0xff]
        %v2133 = vld [vmem:[#allocation11 + $0x500] sm:$0xff]
        %v2134 = vld [vmem:[#allocation11 + $0x508] sm:$0xff]
        %v2135 = vld [vmem:[#allocation11 + $0x510] sm:$0xff]
        %v2136 = vld [vmem:[#allocation11 + $0x518] sm:$0xff]
        %v2137 = vld [vmem:[#allocation11 + $0x520] sm:$0xff]
        %v2138 = vld [vmem:[#allocation11 + $0x528] sm:$0xff]
        %v2139 = vld [vmem:[#allocation11 + $0x530] sm:$0xff]
        %v2140 = vld [vmem:[#allocation11 + $0x538] sm:$0xff]
        %v2141 = vld [vmem:[#allocation11 + $0x540] sm:$0xff]
        %v2142 = vld [vmem:[#allocation11 + $0x548] sm:$0xff]
        %v2143 = vld [vmem:[#allocation11 + $0x550] sm:$0xff]
        %v2144 = vld [vmem:[#allocation11 + $0x558] sm:$0xff]
        %v2145 = vld [vmem:[#allocation11 + $0x560] sm:$0xff]
        %v2146 = vld [vmem:[#allocation11 + $0x568] sm:$0xff]
        %v2147 = vld [vmem:[#allocation11 + $0x570] sm:$0xff]
        %v2148 = vld [vmem:[#allocation11 + $0x578] sm:$0xff]
        %v2149 = vld [vmem:[#allocation11 + $0x580] sm:$0xff]
        %v2150 = vld [vmem:[#allocation11 + $0x588] sm:$0xff]
        %v2151 = vld [vmem:[#allocation11 + $0x590] sm:$0xff]
        %v2152 = vld [vmem:[#allocation11 + $0x598] sm:$0xff]
        %v2153 = vld [vmem:[#allocation11 + $0x5a0] sm:$0xff]
        %v2154 = vld [vmem:[#allocation11 + $0x5a8] sm:$0xff]
        %v2155 = vld [vmem:[#allocation11 + $0x5b0] sm:$0xff]
        %v2156 = vld [vmem:[#allocation11 + $0x5b8] sm:$0xff]
        %v2157 = vld [vmem:[#allocation11 + $0x5c0] sm:$0xff]
        %v2158 = vld [vmem:[#allocation11 + $0x5c8] sm:$0xff]
        %v2159 = vld [vmem:[#allocation11 + $0x5d0] sm:$0xff]
        %v2160 = vld [vmem:[#allocation11 + $0x5d8] sm:$0xff]
        %v2161 = vld [vmem:[#allocation11 + $0x5e0] sm:$0xff]
        %v2162 = vld [vmem:[#allocation11 + $0x5e8] sm:$0xff]
        %v2163 = vld [vmem:[#allocation11 + $0x5f0] sm:$0xff]
        %v2164 = vld [vmem:[#allocation11 + $0x5f8] sm:$0xff]
        %v2165 = vld [vmem:[#allocation11 + $0x600] sm:$0xff]
        %v2166 = vld [vmem:[#allocation11 + $0x608] sm:$0xff]
        %v2167 = vld [vmem:[#allocation11 + $0x610] sm:$0xff]
        %v2168 = vld [vmem:[#allocation11 + $0x618] sm:$0xff]
        %v2169 = vld [vmem:[#allocation11 + $0x620] sm:$0xff]
        %v2170 = vld [vmem:[#allocation11 + $0x628] sm:$0xff]
        %v2171 = vld [vmem:[#allocation11 + $0x630] sm:$0xff]
        %v2172 = vld [vmem:[#allocation11 + $0x638] sm:$0xff]
        %v2173 = vld [vmem:[#allocation11 + $0x640] sm:$0xff]
        %v2174 = vld [vmem:[#allocation11 + $0x648] sm:$0xff]
        %v2175 = vld [vmem:[#allocation11 + $0x650] sm:$0xff]
        %v2176 = vld [vmem:[#allocation11 + $0x658] sm:$0xff]
        %v2177 = vld [vmem:[#allocation11 + $0x660] sm:$0xff]
        %v2178 = vld [vmem:[#allocation11 + $0x668] sm:$0xff]
        %v2179 = vld [vmem:[#allocation11 + $0x670] sm:$0xff]
        %v2180 = vld [vmem:[#allocation11 + $0x678] sm:$0xff]
        %v2181 = vld [vmem:[#allocation11 + $0x680] sm:$0xff]
        %v2182 = vld [vmem:[#allocation11 + $0x688] sm:$0xff]
        %v2183 = vld [vmem:[#allocation11 + $0x690] sm:$0xff]
        %v2184 = vld [vmem:[#allocation11 + $0x698] sm:$0xff]
        %v2185 = vld [vmem:[#allocation11 + $0x6a0] sm:$0xff]
        %v2186 = vld [vmem:[#allocation11 + $0x6a8] sm:$0xff]
        %v2187 = vld [vmem:[#allocation11 + $0x6b0] sm:$0xff]
        %v2188 = vld [vmem:[#allocation11 + $0x6b8] sm:$0xff]
        %v2189 = vld [vmem:[#allocation11 + $0x6c0] sm:$0xff]
        %v2190 = vld [vmem:[#allocation11 + $0x6c8] sm:$0xff]
        %v2191 = vld [vmem:[#allocation11 + $0x6d0] sm:$0xff]
        %v2192 = vld [vmem:[#allocation11 + $0x6d8] sm:$0xff]
        %v2193 = vld [vmem:[#allocation11 + $0x6e0] sm:$0xff]
        %v2194 = vld [vmem:[#allocation11 + $0x6e8] sm:$0xff]
        %v2195 = vld [vmem:[#allocation11 + $0x6f0] sm:$0xff]
        %v2196 = vld [vmem:[#allocation11 + $0x6f8] sm:$0xff]
        %v2197 = vld [vmem:[#allocation11 + $0x700] sm:$0xff]
        %v2198 = vld [vmem:[#allocation11 + $0x708] sm:$0xff]
        %v2199 = vld [vmem:[#allocation11 + $0x710] sm:$0xff]
        %v2200 = vld [vmem:[#allocation11 + $0x718] sm:$0xff]
        %v2201 = vld [vmem:[#allocation11 + $0x720] sm:$0xff]
        %v2202 = vld [vmem:[#allocation11 + $0x728] sm:$0xff]
        %v2203 = vld [vmem:[#allocation11 + $0x730] sm:$0xff]
        %v2204 = vld [vmem:[#allocation11 + $0x738] sm:$0xff]
        %v2205 = vld [vmem:[#allocation11 + $0x740] sm:$0xff]
        %v2206 = vld [vmem:[#allocation11 + $0x748] sm:$0xff]
        %v2207 = vld [vmem:[#allocation11 + $0x750] sm:$0xff]
        %v2208 = vld [vmem:[#allocation11 + $0x758] sm:$0xff]
        %v2209 = vld [vmem:[#allocation11 + $0x760] sm:$0xff]
        %v2210 = vld [vmem:[#allocation11 + $0x768] sm:$0xff]
        %v2211 = vld [vmem:[#allocation11 + $0x770] sm:$0xff]
        %v2212 = vld [vmem:[#allocation11 + $0x778] sm:$0xff]
        %v2213 = vld [vmem:[#allocation11 + $0x780] sm:$0xff]
        %v2214 = vld [vmem:[#allocation11 + $0x788] sm:$0xff]
        %v2215 = vld [vmem:[#allocation11 + $0x790] sm:$0xff]
        %v2216 = vld [vmem:[#allocation11 + $0x798] sm:$0xff]
        %v2217 = vld [vmem:[#allocation11 + $0x7a0] sm:$0xff]
        %v2218 = vld [vmem:[#allocation11 + $0x7a8] sm:$0xff]
        %v2219 = vld [vmem:[#allocation11 + $0x7b0] sm:$0xff]
        %v2220 = vld [vmem:[#allocation11 + $0x7b8] sm:$0xff]
        %v2221 = vld [vmem:[#allocation11 + $0x7c0] sm:$0xff]
        %v2222 = vld [vmem:[#allocation11 + $0x7c8] sm:$0xff]
        %v2223 = vld [vmem:[#allocation11 + $0x7d0] sm:$0xff]
        %v2224 = vld [vmem:[#allocation11 + $0x7d8] sm:$0xff]
        %v2225 = vld [vmem:[#allocation11 + $0x7e0] sm:$0xff]
        %v2226 = vld [vmem:[#allocation11 + $0x7e8] sm:$0xff]
        %v2227 = vld [vmem:[#allocation11 + $0x7f0] sm:$0xff]
        %v2228 = vld [vmem:[#allocation11 + $0x7f8] sm:$0xff]
        %v2229 = vld [vmem:[%s6] sm:$0xff]
        %v2231 = vlaneseq
        %v2232 = vshrl.u32 %v2231, 7
        %v2233 = vsub.s32 0, %v2232
        %v2234 = vrot.slane %v2229, %v2233
        %v2235 = vlaneseq
        %v2236 = vshrl.u32 %v2235, 7
        %v2237 = vsub.s32 1, %v2236
        %v2238 = vrot.slane %v2229, %v2237
        %v2239 = vlaneseq
        %v2240 = vshrl.u32 %v2239, 7
        %v2241 = vsub.s32 2, %v2240
        %v2242 = vrot.slane %v2229, %v2241
        %v2243 = vlaneseq
        %v2244 = vshrl.u32 %v2243, 7
        %v2245 = vsub.s32 3, %v2244
        %v2246 = vrot.slane %v2229, %v2245
        %v2247 = vlaneseq
        %v2248 = vshrl.u32 %v2247, 7
        %v2249 = vsub.s32 4, %v2248
        %v2250 = vrot.slane %v2229, %v2249
        %v2251 = vlaneseq
        %v2252 = vshrl.u32 %v2251, 7
        %v2253 = vsub.s32 5, %v2252
        %v2254 = vrot.slane %v2229, %v2253
        %v2255 = vlaneseq
        %v2256 = vshrl.u32 %v2255, 7
        %v2257 = vsub.s32 6, %v2256
        %v2258 = vrot.slane %v2229, %v2257
        %v2259 = vlaneseq
        %v2260 = vshrl.u32 %v2259, 7
        %v2261 = vsub.s32 7, %v2260
        %v2262 = vrot.slane %v2229, %v2261
        %v2527 = vunpack.c.l.b16 %v1973
        %v2528 = vunpack.c.h.b16 %v1973
        %v2529 = vunpack.c.l.b16 %v1974
        %v2530 = vunpack.c.h.b16 %v1974
        %v2531 = vunpack.c.l.b16 %v1975
        %v2532 = vunpack.c.h.b16 %v1975
        %v2533 = vunpack.c.l.b16 %v1976
        %v2534 = vunpack.c.h.b16 %v1976
        %v2535 = vunpack.c.l.b16 %v1977
        %v2536 = vunpack.c.h.b16 %v1977
        %v2537 = vunpack.c.l.b16 %v1978
        %v2538 = vunpack.c.h.b16 %v1978
        %v2539 = vunpack.c.l.b16 %v1979
        %v2540 = vunpack.c.h.b16 %v1979
        %v2541 = vunpack.c.l.b16 %v1980
        %v2542 = vunpack.c.h.b16 %v1980
        %v2543 = vunpack.c.l.b16 %v1981
        %v2544 = vunpack.c.h.b16 %v1981
        %v2545 = vunpack.c.l.b16 %v1982
        %v2546 = vunpack.c.h.b16 %v1982
        %v2547 = vunpack.c.l.b16 %v1983
        %v2548 = vunpack.c.h.b16 %v1983
        %v2549 = vunpack.c.l.b16 %v1984
        %v2550 = vunpack.c.h.b16 %v1984
        %v2551 = vunpack.c.l.b16 %v1985
        %v2552 = vunpack.c.h.b16 %v1985
        %v2553 = vunpack.c.l.b16 %v1986
        %v2554 = vunpack.c.h.b16 %v1986
        %v2555 = vunpack.c.l.b16 %v1987
        %v2556 = vunpack.c.h.b16 %v1987
        %v2557 = vunpack.c.l.b16 %v1988
        %v2558 = vunpack.c.h.b16 %v1988
        %v2559 = vunpack.c.l.b16 %v1989
        %v2560 = vunpack.c.h.b16 %v1989
        %v2561 = vunpack.c.l.b16 %v1990
        %v2562 = vunpack.c.h.b16 %v1990
        %v2563 = vunpack.c.l.b16 %v1991
        %v2564 = vunpack.c.h.b16 %v1991
        %v2565 = vunpack.c.l.b16 %v1992
        %v2566 = vunpack.c.h.b16 %v1992
        %v2567 = vunpack.c.l.b16 %v1993
        %v2568 = vunpack.c.h.b16 %v1993
        %v2569 = vunpack.c.l.b16 %v1994
        %v2570 = vunpack.c.h.b16 %v1994
        %v2571 = vunpack.c.l.b16 %v1995
        %v2572 = vunpack.c.h.b16 %v1995
        %v2573 = vunpack.c.l.b16 %v1996
        %v2574 = vunpack.c.h.b16 %v1996
        %v2575 = vunpack.c.l.b16 %v1997
        %v2576 = vunpack.c.h.b16 %v1997
        %v2577 = vunpack.c.l.b16 %v1998
        %v2578 = vunpack.c.h.b16 %v1998
        %v2579 = vunpack.c.l.b16 %v1999
        %v2580 = vunpack.c.h.b16 %v1999
        %v2581 = vunpack.c.l.b16 %v2000
        %v2582 = vunpack.c.h.b16 %v2000
        %v2583 = vunpack.c.l.b16 %v2001
        %v2584 = vunpack.c.h.b16 %v2001
        %v2585 = vunpack.c.l.b16 %v2002
        %v2586 = vunpack.c.h.b16 %v2002
        %v2587 = vunpack.c.l.b16 %v2003
        %v2588 = vunpack.c.h.b16 %v2003
        %v2589 = vunpack.c.l.b16 %v2004
        %v2590 = vunpack.c.h.b16 %v2004
        %v2591 = vunpack.c.l.b16 %v2005
        %v2592 = vunpack.c.h.b16 %v2005
        %v2593 = vunpack.c.l.b16 %v2006
        %v2594 = vunpack.c.h.b16 %v2006
        %v2595 = vunpack.c.l.b16 %v2007
        %v2596 = vunpack.c.h.b16 %v2007
        %v2597 = vunpack.c.l.b16 %v2008
        %v2598 = vunpack.c.h.b16 %v2008
        %v2599 = vunpack.c.l.b16 %v2009
        %v2600 = vunpack.c.h.b16 %v2009
        %v2601 = vunpack.c.l.b16 %v2010
        %v2602 = vunpack.c.h.b16 %v2010
        %v2603 = vunpack.c.l.b16 %v2011
        %v2604 = vunpack.c.h.b16 %v2011
        %v2605 = vunpack.c.l.b16 %v2012
        %v2606 = vunpack.c.h.b16 %v2012
        %v2607 = vunpack.c.l.b16 %v2013
        %v2608 = vunpack.c.h.b16 %v2013
        %v2609 = vunpack.c.l.b16 %v2014
        %v2610 = vunpack.c.h.b16 %v2014
        %v2611 = vunpack.c.l.b16 %v2015
        %v2612 = vunpack.c.h.b16 %v2015
        %v2613 = vunpack.c.l.b16 %v2016
        %v2614 = vunpack.c.h.b16 %v2016
        %v2615 = vunpack.c.l.b16 %v2017
        %v2616 = vunpack.c.h.b16 %v2017
        %v2617 = vunpack.c.l.b16 %v2018
        %v2618 = vunpack.c.h.b16 %v2018
        %v2619 = vunpack.c.l.b16 %v2019
        %v2620 = vunpack.c.h.b16 %v2019
        %v2621 = vunpack.c.l.b16 %v2020
        %v2622 = vunpack.c.h.b16 %v2020
        %v2623 = vunpack.c.l.b16 %v2021
        %v2624 = vunpack.c.h.b16 %v2021
        %v2625 = vunpack.c.l.b16 %v2022
        %v2626 = vunpack.c.h.b16 %v2022
        %v2627 = vunpack.c.l.b16 %v2023
        %v2628 = vunpack.c.h.b16 %v2023
        %v2629 = vunpack.c.l.b16 %v2024
        %v2630 = vunpack.c.h.b16 %v2024
        %v2631 = vunpack.c.l.b16 %v2025
        %v2632 = vunpack.c.h.b16 %v2025
        %v2633 = vunpack.c.l.b16 %v2026
        %v2634 = vunpack.c.h.b16 %v2026
        %v2635 = vunpack.c.l.b16 %v2027
        %v2636 = vunpack.c.h.b16 %v2027
        %v2637 = vunpack.c.l.b16 %v2028
        %v2638 = vunpack.c.h.b16 %v2028
        %v2639 = vunpack.c.l.b16 %v2029
        %v2640 = vunpack.c.h.b16 %v2029
        %v2641 = vunpack.c.l.b16 %v2030
        %v2642 = vunpack.c.h.b16 %v2030
        %v2643 = vunpack.c.l.b16 %v2031
        %v2644 = vunpack.c.h.b16 %v2031
        %v2645 = vunpack.c.l.b16 %v2032
        %v2646 = vunpack.c.h.b16 %v2032
        %v2647 = vunpack.c.l.b16 %v2033
        %v2648 = vunpack.c.h.b16 %v2033
        %v2649 = vunpack.c.l.b16 %v2034
        %v2650 = vunpack.c.h.b16 %v2034
        %v2651 = vunpack.c.l.b16 %v2035
        %v2652 = vunpack.c.h.b16 %v2035
        %v2653 = vunpack.c.l.b16 %v2036
        %v2654 = vunpack.c.h.b16 %v2036
        %v2655 = vunpack.c.l.b16 %v2037
        %v2656 = vunpack.c.h.b16 %v2037
        %v2657 = vunpack.c.l.b16 %v2038
        %v2658 = vunpack.c.h.b16 %v2038
        %v2659 = vunpack.c.l.b16 %v2039
        %v2660 = vunpack.c.h.b16 %v2039
        %v2661 = vunpack.c.l.b16 %v2040
        %v2662 = vunpack.c.h.b16 %v2040
        %v2663 = vunpack.c.l.b16 %v2041
        %v2664 = vunpack.c.h.b16 %v2041
        %v2665 = vunpack.c.l.b16 %v2042
        %v2666 = vunpack.c.h.b16 %v2042
        %v2667 = vunpack.c.l.b16 %v2043
        %v2668 = vunpack.c.h.b16 %v2043
        %v2669 = vunpack.c.l.b16 %v2044
        %v2670 = vunpack.c.h.b16 %v2044
        %v2671 = vunpack.c.l.b16 %v2045
        %v2672 = vunpack.c.h.b16 %v2045
        %v2673 = vunpack.c.l.b16 %v2046
        %v2674 = vunpack.c.h.b16 %v2046
        %v2675 = vunpack.c.l.b16 %v2047
        %v2676 = vunpack.c.h.b16 %v2047
        %v2677 = vunpack.c.l.b16 %v2048
        %v2678 = vunpack.c.h.b16 %v2048
        %v2679 = vunpack.c.l.b16 %v2049
        %v2680 = vunpack.c.h.b16 %v2049
        %v2681 = vunpack.c.l.b16 %v2050
        %v2682 = vunpack.c.h.b16 %v2050
        %v2683 = vunpack.c.l.b16 %v2051
        %v2684 = vunpack.c.h.b16 %v2051
        %v2685 = vunpack.c.l.b16 %v2052
        %v2686 = vunpack.c.h.b16 %v2052
        %v2687 = vunpack.c.l.b16 %v2053
        %v2688 = vunpack.c.h.b16 %v2053
        %v2689 = vunpack.c.l.b16 %v2054
        %v2690 = vunpack.c.h.b16 %v2054
        %v2691 = vunpack.c.l.b16 %v2055
        %v2692 = vunpack.c.h.b16 %v2055
        %v2693 = vunpack.c.l.b16 %v2056
        %v2694 = vunpack.c.h.b16 %v2056
        %v2695 = vunpack.c.l.b16 %v2057
        %v2696 = vunpack.c.h.b16 %v2057
        %v2697 = vunpack.c.l.b16 %v2058
        %v2698 = vunpack.c.h.b16 %v2058
        %v2699 = vunpack.c.l.b16 %v2059
        %v2700 = vunpack.c.h.b16 %v2059
        %v2701 = vunpack.c.l.b16 %v2060
        %v2702 = vunpack.c.h.b16 %v2060
        %v2703 = vunpack.c.l.b16 %v2061
        %v2704 = vunpack.c.h.b16 %v2061
        %v2705 = vunpack.c.l.b16 %v2062
        %v2706 = vunpack.c.h.b16 %v2062
        %v2707 = vunpack.c.l.b16 %v2063
        %v2708 = vunpack.c.h.b16 %v2063
        %v2709 = vunpack.c.l.b16 %v2064
        %v2710 = vunpack.c.h.b16 %v2064
        %v2711 = vunpack.c.l.b16 %v2065
        %v2712 = vunpack.c.h.b16 %v2065
        %v2713 = vunpack.c.l.b16 %v2066
        %v2714 = vunpack.c.h.b16 %v2066
        %v2715 = vunpack.c.l.b16 %v2067
        %v2716 = vunpack.c.h.b16 %v2067
        %v2717 = vunpack.c.l.b16 %v2068
        %v2718 = vunpack.c.h.b16 %v2068
        %v2719 = vunpack.c.l.b16 %v2069
        %v2720 = vunpack.c.h.b16 %v2069
        %v2721 = vunpack.c.l.b16 %v2070
        %v2722 = vunpack.c.h.b16 %v2070
        %v2723 = vunpack.c.l.b16 %v2071
        %v2724 = vunpack.c.h.b16 %v2071
        %v2725 = vunpack.c.l.b16 %v2072
        %v2726 = vunpack.c.h.b16 %v2072
        %v2727 = vunpack.c.l.b16 %v2073
        %v2728 = vunpack.c.h.b16 %v2073
        %v2729 = vunpack.c.l.b16 %v2074
        %v2730 = vunpack.c.h.b16 %v2074
        %v2731 = vunpack.c.l.b16 %v2075
        %v2732 = vunpack.c.h.b16 %v2075
        %v2733 = vunpack.c.l.b16 %v2076
        %v2734 = vunpack.c.h.b16 %v2076
        %v2735 = vunpack.c.l.b16 %v2077
        %v2736 = vunpack.c.h.b16 %v2077
        %v2737 = vunpack.c.l.b16 %v2078
        %v2738 = vunpack.c.h.b16 %v2078
        %v2739 = vunpack.c.l.b16 %v2079
        %v2740 = vunpack.c.h.b16 %v2079
        %v2741 = vunpack.c.l.b16 %v2080
        %v2742 = vunpack.c.h.b16 %v2080
        %v2743 = vunpack.c.l.b16 %v2081
        %v2744 = vunpack.c.h.b16 %v2081
        %v2745 = vunpack.c.l.b16 %v2082
        %v2746 = vunpack.c.h.b16 %v2082
        %v2747 = vunpack.c.l.b16 %v2083
        %v2748 = vunpack.c.h.b16 %v2083
        %v2749 = vunpack.c.l.b16 %v2084
        %v2750 = vunpack.c.h.b16 %v2084
        %v2751 = vunpack.c.l.b16 %v2085
        %v2752 = vunpack.c.h.b16 %v2085
        %v2753 = vunpack.c.l.b16 %v2086
        %v2754 = vunpack.c.h.b16 %v2086
        %v2755 = vunpack.c.l.b16 %v2087
        %v2756 = vunpack.c.h.b16 %v2087
        %v2757 = vunpack.c.l.b16 %v2088
        %v2758 = vunpack.c.h.b16 %v2088
        %v2759 = vunpack.c.l.b16 %v2089
        %v2760 = vunpack.c.h.b16 %v2089
        %v2761 = vunpack.c.l.b16 %v2090
        %v2762 = vunpack.c.h.b16 %v2090
        %v2763 = vunpack.c.l.b16 %v2091
        %v2764 = vunpack.c.h.b16 %v2091
        %v2765 = vunpack.c.l.b16 %v2092
        %v2766 = vunpack.c.h.b16 %v2092
        %v2767 = vunpack.c.l.b16 %v2093
        %v2768 = vunpack.c.h.b16 %v2093
        %v2769 = vunpack.c.l.b16 %v2094
        %v2770 = vunpack.c.h.b16 %v2094
        %v2771 = vunpack.c.l.b16 %v2095
        %v2772 = vunpack.c.h.b16 %v2095
        %v2773 = vunpack.c.l.b16 %v2096
        %v2774 = vunpack.c.h.b16 %v2096
        %v2775 = vunpack.c.l.b16 %v2097
        %v2776 = vunpack.c.h.b16 %v2097
        %v2777 = vunpack.c.l.b16 %v2098
        %v2778 = vunpack.c.h.b16 %v2098
        %v2779 = vunpack.c.l.b16 %v2099
        %v2780 = vunpack.c.h.b16 %v2099
        %v2781 = vunpack.c.l.b16 %v2100
        %v2782 = vunpack.c.h.b16 %v2100
        %v2783 = vunpack.c.l.b16 %v2101
        %v2784 = vunpack.c.h.b16 %v2101
        %v2785 = vunpack.c.l.b16 %v2102
        %v2786 = vunpack.c.h.b16 %v2102
        %v2787 = vunpack.c.l.b16 %v2103
        %v2788 = vunpack.c.h.b16 %v2103
        %v2789 = vunpack.c.l.b16 %v2104
        %v2790 = vunpack.c.h.b16 %v2104
        %v2791 = vunpack.c.l.b16 %v2105
        %v2792 = vunpack.c.h.b16 %v2105
        %v2793 = vunpack.c.l.b16 %v2106
        %v2794 = vunpack.c.h.b16 %v2106
        %v2795 = vunpack.c.l.b16 %v2107
        %v2796 = vunpack.c.h.b16 %v2107
        %v2797 = vunpack.c.l.b16 %v2108
        %v2798 = vunpack.c.h.b16 %v2108
        %v2799 = vunpack.c.l.b16 %v2109
        %v2800 = vunpack.c.h.b16 %v2109
        %v2801 = vunpack.c.l.b16 %v2110
        %v2802 = vunpack.c.h.b16 %v2110
        %v2803 = vunpack.c.l.b16 %v2111
        %v2804 = vunpack.c.h.b16 %v2111
        %v2805 = vunpack.c.l.b16 %v2112
        %v2806 = vunpack.c.h.b16 %v2112
        %v2807 = vunpack.c.l.b16 %v2113
        %v2808 = vunpack.c.h.b16 %v2113
        %v2809 = vunpack.c.l.b16 %v2114
        %v2810 = vunpack.c.h.b16 %v2114
        %v2811 = vunpack.c.l.b16 %v2115
        %v2812 = vunpack.c.h.b16 %v2115
        %v2813 = vunpack.c.l.b16 %v2116
        %v2814 = vunpack.c.h.b16 %v2116
        %v2815 = vunpack.c.l.b16 %v2117
        %v2816 = vunpack.c.h.b16 %v2117
        %v2817 = vunpack.c.l.b16 %v2118
        %v2818 = vunpack.c.h.b16 %v2118
        %v2819 = vunpack.c.l.b16 %v2119
        %v2820 = vunpack.c.h.b16 %v2119
        %v2821 = vunpack.c.l.b16 %v2120
        %v2822 = vunpack.c.h.b16 %v2120
        %v2823 = vunpack.c.l.b16 %v2121
        %v2824 = vunpack.c.h.b16 %v2121
        %v2825 = vunpack.c.l.b16 %v2122
        %v2826 = vunpack.c.h.b16 %v2122
        %v2827 = vunpack.c.l.b16 %v2123
        %v2828 = vunpack.c.h.b16 %v2123
        %v2829 = vunpack.c.l.b16 %v2124
        %v2830 = vunpack.c.h.b16 %v2124
        %v2831 = vunpack.c.l.b16 %v2125
        %v2832 = vunpack.c.h.b16 %v2125
        %v2833 = vunpack.c.l.b16 %v2126
        %v2834 = vunpack.c.h.b16 %v2126
        %v2835 = vunpack.c.l.b16 %v2127
        %v2836 = vunpack.c.h.b16 %v2127
        %v2837 = vunpack.c.l.b16 %v2128
        %v2838 = vunpack.c.h.b16 %v2128
        %v2839 = vunpack.c.l.b16 %v2129
        %v2840 = vunpack.c.h.b16 %v2129
        %v2841 = vunpack.c.l.b16 %v2130
        %v2842 = vunpack.c.h.b16 %v2130
        %v2843 = vunpack.c.l.b16 %v2131
        %v2844 = vunpack.c.h.b16 %v2131
        %v2845 = vunpack.c.l.b16 %v2132
        %v2846 = vunpack.c.h.b16 %v2132
        %v2847 = vunpack.c.l.b16 %v2133
        %v2848 = vunpack.c.h.b16 %v2133
        %v2849 = vunpack.c.l.b16 %v2134
        %v2850 = vunpack.c.h.b16 %v2134
        %v2851 = vunpack.c.l.b16 %v2135
        %v2852 = vunpack.c.h.b16 %v2135
        %v2853 = vunpack.c.l.b16 %v2136
        %v2854 = vunpack.c.h.b16 %v2136
        %v2855 = vunpack.c.l.b16 %v2137
        %v2856 = vunpack.c.h.b16 %v2137
        %v2857 = vunpack.c.l.b16 %v2138
        %v2858 = vunpack.c.h.b16 %v2138
        %v2859 = vunpack.c.l.b16 %v2139
        %v2860 = vunpack.c.h.b16 %v2139
        %v2861 = vunpack.c.l.b16 %v2140
        %v2862 = vunpack.c.h.b16 %v2140
        %v2863 = vunpack.c.l.b16 %v2141
        %v2864 = vunpack.c.h.b16 %v2141
        %v2865 = vunpack.c.l.b16 %v2142
        %v2866 = vunpack.c.h.b16 %v2142
        %v2867 = vunpack.c.l.b16 %v2143
        %v2868 = vunpack.c.h.b16 %v2143
        %v2869 = vunpack.c.l.b16 %v2144
        %v2870 = vunpack.c.h.b16 %v2144
        %v2871 = vunpack.c.l.b16 %v2145
        %v2872 = vunpack.c.h.b16 %v2145
        %v2873 = vunpack.c.l.b16 %v2146
        %v2874 = vunpack.c.h.b16 %v2146
        %v2875 = vunpack.c.l.b16 %v2147
        %v2876 = vunpack.c.h.b16 %v2147
        %v2877 = vunpack.c.l.b16 %v2148
        %v2878 = vunpack.c.h.b16 %v2148
        %v2879 = vunpack.c.l.b16 %v2149
        %v2880 = vunpack.c.h.b16 %v2149
        %v2881 = vunpack.c.l.b16 %v2150
        %v2882 = vunpack.c.h.b16 %v2150
        %v2883 = vunpack.c.l.b16 %v2151
        %v2884 = vunpack.c.h.b16 %v2151
        %v2885 = vunpack.c.l.b16 %v2152
        %v2886 = vunpack.c.h.b16 %v2152
        %v2887 = vunpack.c.l.b16 %v2153
        %v2888 = vunpack.c.h.b16 %v2153
        %v2889 = vunpack.c.l.b16 %v2154
        %v2890 = vunpack.c.h.b16 %v2154
        %v2891 = vunpack.c.l.b16 %v2155
        %v2892 = vunpack.c.h.b16 %v2155
        %v2893 = vunpack.c.l.b16 %v2156
        %v2894 = vunpack.c.h.b16 %v2156
        %v2895 = vunpack.c.l.b16 %v2157
        %v2896 = vunpack.c.h.b16 %v2157
        %v2897 = vunpack.c.l.b16 %v2158
        %v2898 = vunpack.c.h.b16 %v2158
        %v2899 = vunpack.c.l.b16 %v2159
        %v2900 = vunpack.c.h.b16 %v2159
        %v2901 = vunpack.c.l.b16 %v2160
        %v2902 = vunpack.c.h.b16 %v2160
        %v2903 = vunpack.c.l.b16 %v2161
        %v2904 = vunpack.c.h.b16 %v2161
        %v2905 = vunpack.c.l.b16 %v2162
        %v2906 = vunpack.c.h.b16 %v2162
        %v2907 = vunpack.c.l.b16 %v2163
        %v2908 = vunpack.c.h.b16 %v2163
        %v2909 = vunpack.c.l.b16 %v2164
        %v2910 = vunpack.c.h.b16 %v2164
        %v2911 = vunpack.c.l.b16 %v2165
        %v2912 = vunpack.c.h.b16 %v2165
        %v2913 = vunpack.c.l.b16 %v2166
        %v2914 = vunpack.c.h.b16 %v2166
        %v2915 = vunpack.c.l.b16 %v2167
        %v2916 = vunpack.c.h.b16 %v2167
        %v2917 = vunpack.c.l.b16 %v2168
        %v2918 = vunpack.c.h.b16 %v2168
        %v2919 = vunpack.c.l.b16 %v2169
        %v2920 = vunpack.c.h.b16 %v2169
        %v2921 = vunpack.c.l.b16 %v2170
        %v2922 = vunpack.c.h.b16 %v2170
        %v2923 = vunpack.c.l.b16 %v2171
        %v2924 = vunpack.c.h.b16 %v2171
        %v2925 = vunpack.c.l.b16 %v2172
        %v2926 = vunpack.c.h.b16 %v2172
        %v2927 = vunpack.c.l.b16 %v2173
        %v2928 = vunpack.c.h.b16 %v2173
        %v2929 = vunpack.c.l.b16 %v2174
        %v2930 = vunpack.c.h.b16 %v2174
        %v2931 = vunpack.c.l.b16 %v2175
        %v2932 = vunpack.c.h.b16 %v2175
        %v2933 = vunpack.c.l.b16 %v2176
        %v2934 = vunpack.c.h.b16 %v2176
        %v2935 = vunpack.c.l.b16 %v2177
        %v2936 = vunpack.c.h.b16 %v2177
        %v2937 = vunpack.c.l.b16 %v2178
        %v2938 = vunpack.c.h.b16 %v2178
        %v2939 = vunpack.c.l.b16 %v2179
        %v2940 = vunpack.c.h.b16 %v2179
        %v2941 = vunpack.c.l.b16 %v2180
        %v2942 = vunpack.c.h.b16 %v2180
        %v2943 = vunpack.c.l.b16 %v2181
        %v2944 = vunpack.c.h.b16 %v2181
        %v2945 = vunpack.c.l.b16 %v2182
        %v2946 = vunpack.c.h.b16 %v2182
        %v2947 = vunpack.c.l.b16 %v2183
        %v2948 = vunpack.c.h.b16 %v2183
        %v2949 = vunpack.c.l.b16 %v2184
        %v2950 = vunpack.c.h.b16 %v2184
        %v2951 = vunpack.c.l.b16 %v2185
        %v2952 = vunpack.c.h.b16 %v2185
        %v2953 = vunpack.c.l.b16 %v2186
        %v2954 = vunpack.c.h.b16 %v2186
        %v2955 = vunpack.c.l.b16 %v2187
        %v2956 = vunpack.c.h.b16 %v2187
        %v2957 = vunpack.c.l.b16 %v2188
        %v2958 = vunpack.c.h.b16 %v2188
        %v2959 = vunpack.c.l.b16 %v2189
        %v2960 = vunpack.c.h.b16 %v2189
        %v2961 = vunpack.c.l.b16 %v2190
        %v2962 = vunpack.c.h.b16 %v2190
        %v2963 = vunpack.c.l.b16 %v2191
        %v2964 = vunpack.c.h.b16 %v2191
        %v2965 = vunpack.c.l.b16 %v2192
        %v2966 = vunpack.c.h.b16 %v2192
        %v2967 = vunpack.c.l.b16 %v2193
        %v2968 = vunpack.c.h.b16 %v2193
        %v2969 = vunpack.c.l.b16 %v2194
        %v2970 = vunpack.c.h.b16 %v2194
        %v2971 = vunpack.c.l.b16 %v2195
        %v2972 = vunpack.c.h.b16 %v2195
        %v2973 = vunpack.c.l.b16 %v2196
        %v2974 = vunpack.c.h.b16 %v2196
        %v2975 = vunpack.c.l.b16 %v2197
        %v2976 = vunpack.c.h.b16 %v2197
        %v2977 = vunpack.c.l.b16 %v2198
        %v2978 = vunpack.c.h.b16 %v2198
        %v2979 = vunpack.c.l.b16 %v2199
        %v2980 = vunpack.c.h.b16 %v2199
        %v2981 = vunpack.c.l.b16 %v2200
        %v2982 = vunpack.c.h.b16 %v2200
        %v2983 = vunpack.c.l.b16 %v2201
        %v2984 = vunpack.c.h.b16 %v2201
        %v2985 = vunpack.c.l.b16 %v2202
        %v2986 = vunpack.c.h.b16 %v2202
        %v2987 = vunpack.c.l.b16 %v2203
        %v2988 = vunpack.c.h.b16 %v2203
        %v2989 = vunpack.c.l.b16 %v2204
        %v2990 = vunpack.c.h.b16 %v2204
        %v2991 = vunpack.c.l.b16 %v2205
        %v2992 = vunpack.c.h.b16 %v2205
        %v2993 = vunpack.c.l.b16 %v2206
        %v2994 = vunpack.c.h.b16 %v2206
        %v2995 = vunpack.c.l.b16 %v2207
        %v2996 = vunpack.c.h.b16 %v2207
        %v2997 = vunpack.c.l.b16 %v2208
        %v2998 = vunpack.c.h.b16 %v2208
        %v2999 = vunpack.c.l.b16 %v2209
        %v3000 = vunpack.c.h.b16 %v2209
        %v3001 = vunpack.c.l.b16 %v2210
        %v3002 = vunpack.c.h.b16 %v2210
        %v3003 = vunpack.c.l.b16 %v2211
        %v3004 = vunpack.c.h.b16 %v2211
        %v3005 = vunpack.c.l.b16 %v2212
        %v3006 = vunpack.c.h.b16 %v2212
        %v3007 = vunpack.c.l.b16 %v2213
        %v3008 = vunpack.c.h.b16 %v2213
        %v3009 = vunpack.c.l.b16 %v2214
        %v3010 = vunpack.c.h.b16 %v2214
        %v3011 = vunpack.c.l.b16 %v2215
        %v3012 = vunpack.c.h.b16 %v2215
        %v3013 = vunpack.c.l.b16 %v2216
        %v3014 = vunpack.c.h.b16 %v2216
        %v3015 = vunpack.c.l.b16 %v2217
        %v3016 = vunpack.c.h.b16 %v2217
        %v3017 = vunpack.c.l.b16 %v2218
        %v3018 = vunpack.c.h.b16 %v2218
        %v3019 = vunpack.c.l.b16 %v2219
        %v3020 = vunpack.c.h.b16 %v2219
        %v3021 = vunpack.c.l.b16 %v2220
        %v3022 = vunpack.c.h.b16 %v2220
        %v3023 = vunpack.c.l.b16 %v2221
        %v3024 = vunpack.c.h.b16 %v2221
        %v3025 = vunpack.c.l.b16 %v2222
        %v3026 = vunpack.c.h.b16 %v2222
        %v3027 = vunpack.c.l.b16 %v2223
        %v3028 = vunpack.c.h.b16 %v2223
        %v3029 = vunpack.c.l.b16 %v2224
        %v3030 = vunpack.c.h.b16 %v2224
        %v3031 = vunpack.c.l.b16 %v2225
        %v3032 = vunpack.c.h.b16 %v2225
        %v3033 = vunpack.c.l.b16 %v2226
        %v3034 = vunpack.c.h.b16 %v2226
        %v3035 = vunpack.c.l.b16 %v2227
        %v3036 = vunpack.c.h.b16 %v2227
        %v3037 = vunpack.c.l.b16 %v2228
        %v3038 = vunpack.c.h.b16 %v2228
        %v3039 = vpack.c.b16 %v2535, %v2527
        %v3040 = vpack.c.b16 %v2536, %v2528
        %v3041 = vpack.c.b16 %v2537, %v2529
        %v3042 = vpack.c.b16 %v2538, %v2530
        %v3043 = vpack.c.b16 %v2539, %v2531
        %v3044 = vpack.c.b16 %v2540, %v2532
        %v3045 = vpack.c.b16 %v2541, %v2533
        %v3046 = vpack.c.b16 %v2542, %v2534
        %v3047 = vpack.c.b16 %v2551, %v2543
        %v3048 = vpack.c.b16 %v2552, %v2544
        %v3049 = vpack.c.b16 %v2553, %v2545
        %v3050 = vpack.c.b16 %v2554, %v2546
        %v3051 = vpack.c.b16 %v2555, %v2547
        %v3052 = vpack.c.b16 %v2556, %v2548
        %v3053 = vpack.c.b16 %v2557, %v2549
        %v3054 = vpack.c.b16 %v2558, %v2550
        %v3055 = vpack.c.b16 %v2567, %v2559
        %v3056 = vpack.c.b16 %v2568, %v2560
        %v3057 = vpack.c.b16 %v2569, %v2561
        %v3058 = vpack.c.b16 %v2570, %v2562
        %v3059 = vpack.c.b16 %v2571, %v2563
        %v3060 = vpack.c.b16 %v2572, %v2564
        %v3061 = vpack.c.b16 %v2573, %v2565
        %v3062 = vpack.c.b16 %v2574, %v2566
        %v3063 = vpack.c.b16 %v2583, %v2575
        %v3064 = vpack.c.b16 %v2584, %v2576
        %v3065 = vpack.c.b16 %v2585, %v2577
        %v3066 = vpack.c.b16 %v2586, %v2578
        %v3067 = vpack.c.b16 %v2587, %v2579
        %v3068 = vpack.c.b16 %v2588, %v2580
        %v3069 = vpack.c.b16 %v2589, %v2581
        %v3070 = vpack.c.b16 %v2590, %v2582
        %v3071 = vpack.c.b16 %v2599, %v2591
        %v3072 = vpack.c.b16 %v2600, %v2592
        %v3073 = vpack.c.b16 %v2601, %v2593
        %v3074 = vpack.c.b16 %v2602, %v2594
        %v3075 = vpack.c.b16 %v2603, %v2595
        %v3076 = vpack.c.b16 %v2604, %v2596
        %v3077 = vpack.c.b16 %v2605, %v2597
        %v3078 = vpack.c.b16 %v2606, %v2598
        %v3079 = vpack.c.b16 %v2615, %v2607
        %v3080 = vpack.c.b16 %v2616, %v2608
        %v3081 = vpack.c.b16 %v2617, %v2609
        %v3082 = vpack.c.b16 %v2618, %v2610
        %v3083 = vpack.c.b16 %v2619, %v2611
        %v3084 = vpack.c.b16 %v2620, %v2612
        %v3085 = vpack.c.b16 %v2621, %v2613
        %v3086 = vpack.c.b16 %v2622, %v2614
        %v3087 = vpack.c.b16 %v2631, %v2623
        %v3088 = vpack.c.b16 %v2632, %v2624
        %v3089 = vpack.c.b16 %v2633, %v2625
        %v3090 = vpack.c.b16 %v2634, %v2626
        %v3091 = vpack.c.b16 %v2635, %v2627
        %v3092 = vpack.c.b16 %v2636, %v2628
        %v3093 = vpack.c.b16 %v2637, %v2629
        %v3094 = vpack.c.b16 %v2638, %v2630
        %v3095 = vpack.c.b16 %v2647, %v2639
        %v3096 = vpack.c.b16 %v2648, %v2640
        %v3097 = vpack.c.b16 %v2649, %v2641
        %v3098 = vpack.c.b16 %v2650, %v2642
        %v3099 = vpack.c.b16 %v2651, %v2643
        %v3100 = vpack.c.b16 %v2652, %v2644
        %v3101 = vpack.c.b16 %v2653, %v2645
        %v3102 = vpack.c.b16 %v2654, %v2646
        %v3103 = vpack.c.b16 %v2663, %v2655
        %v3104 = vpack.c.b16 %v2664, %v2656
        %v3105 = vpack.c.b16 %v2665, %v2657
        %v3106 = vpack.c.b16 %v2666, %v2658
        %v3107 = vpack.c.b16 %v2667, %v2659
        %v3108 = vpack.c.b16 %v2668, %v2660
        %v3109 = vpack.c.b16 %v2669, %v2661
        %v3110 = vpack.c.b16 %v2670, %v2662
        %v3111 = vpack.c.b16 %v2679, %v2671
        %v3112 = vpack.c.b16 %v2680, %v2672
        %v3113 = vpack.c.b16 %v2681, %v2673
        %v3114 = vpack.c.b16 %v2682, %v2674
        %v3115 = vpack.c.b16 %v2683, %v2675
        %v3116 = vpack.c.b16 %v2684, %v2676
        %v3117 = vpack.c.b16 %v2685, %v2677
        %v3118 = vpack.c.b16 %v2686, %v2678
        %v3119 = vpack.c.b16 %v2695, %v2687
        %v3120 = vpack.c.b16 %v2696, %v2688
        %v3121 = vpack.c.b16 %v2697, %v2689
        %v3122 = vpack.c.b16 %v2698, %v2690
        %v3123 = vpack.c.b16 %v2699, %v2691
        %v3124 = vpack.c.b16 %v2700, %v2692
        %v3125 = vpack.c.b16 %v2701, %v2693
        %v3126 = vpack.c.b16 %v2702, %v2694
        %v3127 = vpack.c.b16 %v2711, %v2703
        %v3128 = vpack.c.b16 %v2712, %v2704
        %v3129 = vpack.c.b16 %v2713, %v2705
        %v3130 = vpack.c.b16 %v2714, %v2706
        %v3131 = vpack.c.b16 %v2715, %v2707
        %v3132 = vpack.c.b16 %v2716, %v2708
        %v3133 = vpack.c.b16 %v2717, %v2709
        %v3134 = vpack.c.b16 %v2718, %v2710
        %v3135 = vpack.c.b16 %v2727, %v2719
        %v3136 = vpack.c.b16 %v2728, %v2720
        %v3137 = vpack.c.b16 %v2729, %v2721
        %v3138 = vpack.c.b16 %v2730, %v2722
        %v3139 = vpack.c.b16 %v2731, %v2723
        %v3140 = vpack.c.b16 %v2732, %v2724
        %v3141 = vpack.c.b16 %v2733, %v2725
        %v3142 = vpack.c.b16 %v2734, %v2726
        %v3143 = vpack.c.b16 %v2743, %v2735
        %v3144 = vpack.c.b16 %v2744, %v2736
        %v3145 = vpack.c.b16 %v2745, %v2737
        %v3146 = vpack.c.b16 %v2746, %v2738
        %v3147 = vpack.c.b16 %v2747, %v2739
        %v3148 = vpack.c.b16 %v2748, %v2740
        %v3149 = vpack.c.b16 %v2749, %v2741
        %v3150 = vpack.c.b16 %v2750, %v2742
        %v3151 = vpack.c.b16 %v2759, %v2751
        %v3152 = vpack.c.b16 %v2760, %v2752
        %v3153 = vpack.c.b16 %v2761, %v2753
        %v3154 = vpack.c.b16 %v2762, %v2754
        %v3155 = vpack.c.b16 %v2763, %v2755
        %v3156 = vpack.c.b16 %v2764, %v2756
        %v3157 = vpack.c.b16 %v2765, %v2757
        %v3158 = vpack.c.b16 %v2766, %v2758
        %v3159 = vpack.c.b16 %v2775, %v2767
        %v3160 = vpack.c.b16 %v2776, %v2768
        %v3161 = vpack.c.b16 %v2777, %v2769
        %v3162 = vpack.c.b16 %v2778, %v2770
        %v3163 = vpack.c.b16 %v2779, %v2771
        %v3164 = vpack.c.b16 %v2780, %v2772
        %v3165 = vpack.c.b16 %v2781, %v2773
        %v3166 = vpack.c.b16 %v2782, %v2774
        %v3167 = vpack.c.b16 %v2791, %v2783
        %v3168 = vpack.c.b16 %v2792, %v2784
        %v3169 = vpack.c.b16 %v2793, %v2785
        %v3170 = vpack.c.b16 %v2794, %v2786
        %v3171 = vpack.c.b16 %v2795, %v2787
        %v3172 = vpack.c.b16 %v2796, %v2788
        %v3173 = vpack.c.b16 %v2797, %v2789
        %v3174 = vpack.c.b16 %v2798, %v2790
        %v3175 = vpack.c.b16 %v2807, %v2799
        %v3176 = vpack.c.b16 %v2808, %v2800
        %v3177 = vpack.c.b16 %v2809, %v2801
        %v3178 = vpack.c.b16 %v2810, %v2802
        %v3179 = vpack.c.b16 %v2811, %v2803
        %v3180 = vpack.c.b16 %v2812, %v2804
        %v3181 = vpack.c.b16 %v2813, %v2805
        %v3182 = vpack.c.b16 %v2814, %v2806
        %v3183 = vpack.c.b16 %v2823, %v2815
        %v3184 = vpack.c.b16 %v2824, %v2816
        %v3185 = vpack.c.b16 %v2825, %v2817
        %v3186 = vpack.c.b16 %v2826, %v2818
        %v3187 = vpack.c.b16 %v2827, %v2819
        %v3188 = vpack.c.b16 %v2828, %v2820
        %v3189 = vpack.c.b16 %v2829, %v2821
        %v3190 = vpack.c.b16 %v2830, %v2822
        %v3191 = vpack.c.b16 %v2839, %v2831
        %v3192 = vpack.c.b16 %v2840, %v2832
        %v3193 = vpack.c.b16 %v2841, %v2833
        %v3194 = vpack.c.b16 %v2842, %v2834
        %v3195 = vpack.c.b16 %v2843, %v2835
        %v3196 = vpack.c.b16 %v2844, %v2836
        %v3197 = vpack.c.b16 %v2845, %v2837
        %v3198 = vpack.c.b16 %v2846, %v2838
        %v3199 = vpack.c.b16 %v2855, %v2847
        %v3200 = vpack.c.b16 %v2856, %v2848
        %v3201 = vpack.c.b16 %v2857, %v2849
        %v3202 = vpack.c.b16 %v2858, %v2850
        %v3203 = vpack.c.b16 %v2859, %v2851
        %v3204 = vpack.c.b16 %v2860, %v2852
        %v3205 = vpack.c.b16 %v2861, %v2853
        %v3206 = vpack.c.b16 %v2862, %v2854
        %v3207 = vpack.c.b16 %v2871, %v2863
        %v3208 = vpack.c.b16 %v2872, %v2864
        %v3209 = vpack.c.b16 %v2873, %v2865
        %v3210 = vpack.c.b16 %v2874, %v2866
        %v3211 = vpack.c.b16 %v2875, %v2867
        %v3212 = vpack.c.b16 %v2876, %v2868
        %v3213 = vpack.c.b16 %v2877, %v2869
        %v3214 = vpack.c.b16 %v2878, %v2870
        %v3215 = vpack.c.b16 %v2887, %v2879
        %v3216 = vpack.c.b16 %v2888, %v2880
        %v3217 = vpack.c.b16 %v2889, %v2881
        %v3218 = vpack.c.b16 %v2890, %v2882
        %v3219 = vpack.c.b16 %v2891, %v2883
        %v3220 = vpack.c.b16 %v2892, %v2884
        %v3221 = vpack.c.b16 %v2893, %v2885
        %v3222 = vpack.c.b16 %v2894, %v2886
        %v3223 = vpack.c.b16 %v2903, %v2895
        %v3224 = vpack.c.b16 %v2904, %v2896
        %v3225 = vpack.c.b16 %v2905, %v2897
        %v3226 = vpack.c.b16 %v2906, %v2898
        %v3227 = vpack.c.b16 %v2907, %v2899
        %v3228 = vpack.c.b16 %v2908, %v2900
        %v3229 = vpack.c.b16 %v2909, %v2901
        %v3230 = vpack.c.b16 %v2910, %v2902
        %v3231 = vpack.c.b16 %v2919, %v2911
        %v3232 = vpack.c.b16 %v2920, %v2912
        %v3233 = vpack.c.b16 %v2921, %v2913
        %v3234 = vpack.c.b16 %v2922, %v2914
        %v3235 = vpack.c.b16 %v2923, %v2915
        %v3236 = vpack.c.b16 %v2924, %v2916
        %v3237 = vpack.c.b16 %v2925, %v2917
        %v3238 = vpack.c.b16 %v2926, %v2918
        %v3239 = vpack.c.b16 %v2935, %v2927
        %v3240 = vpack.c.b16 %v2936, %v2928
        %v3241 = vpack.c.b16 %v2937, %v2929
        %v3242 = vpack.c.b16 %v2938, %v2930
        %v3243 = vpack.c.b16 %v2939, %v2931
        %v3244 = vpack.c.b16 %v2940, %v2932
        %v3245 = vpack.c.b16 %v2941, %v2933
        %v3246 = vpack.c.b16 %v2942, %v2934
        %v3247 = vpack.c.b16 %v2951, %v2943
        %v3248 = vpack.c.b16 %v2952, %v2944
        %v3249 = vpack.c.b16 %v2953, %v2945
        %v3250 = vpack.c.b16 %v2954, %v2946
        %v3251 = vpack.c.b16 %v2955, %v2947
        %v3252 = vpack.c.b16 %v2956, %v2948
        %v3253 = vpack.c.b16 %v2957, %v2949
        %v3254 = vpack.c.b16 %v2958, %v2950
        %v3255 = vpack.c.b16 %v2967, %v2959
        %v3256 = vpack.c.b16 %v2968, %v2960
        %v3257 = vpack.c.b16 %v2969, %v2961
        %v3258 = vpack.c.b16 %v2970, %v2962
        %v3259 = vpack.c.b16 %v2971, %v2963
        %v3260 = vpack.c.b16 %v2972, %v2964
        %v3261 = vpack.c.b16 %v2973, %v2965
        %v3262 = vpack.c.b16 %v2974, %v2966
        %v3263 = vpack.c.b16 %v2983, %v2975
        %v3264 = vpack.c.b16 %v2984, %v2976
        %v3265 = vpack.c.b16 %v2985, %v2977
        %v3266 = vpack.c.b16 %v2986, %v2978
        %v3267 = vpack.c.b16 %v2987, %v2979
        %v3268 = vpack.c.b16 %v2988, %v2980
        %v3269 = vpack.c.b16 %v2989, %v2981
        %v3270 = vpack.c.b16 %v2990, %v2982
        %v3271 = vpack.c.b16 %v2999, %v2991
        %v3272 = vpack.c.b16 %v3000, %v2992
        %v3273 = vpack.c.b16 %v3001, %v2993
        %v3274 = vpack.c.b16 %v3002, %v2994
        %v3275 = vpack.c.b16 %v3003, %v2995
        %v3276 = vpack.c.b16 %v3004, %v2996
        %v3277 = vpack.c.b16 %v3005, %v2997
        %v3278 = vpack.c.b16 %v3006, %v2998
        %v3279 = vpack.c.b16 %v3015, %v3007
        %v3280 = vpack.c.b16 %v3016, %v3008
        %v3281 = vpack.c.b16 %v3017, %v3009
        %v3282 = vpack.c.b16 %v3018, %v3010
        %v3283 = vpack.c.b16 %v3019, %v3011
        %v3284 = vpack.c.b16 %v3020, %v3012
        %v3285 = vpack.c.b16 %v3021, %v3013
        %v3286 = vpack.c.b16 %v3022, %v3014
        %v3287 = vpack.c.b16 %v3031, %v3023
        %v3288 = vpack.c.b16 %v3032, %v3024
        %v3289 = vpack.c.b16 %v3033, %v3025
        %v3290 = vpack.c.b16 %v3034, %v3026
        %v3291 = vpack.c.b16 %v3035, %v3027
        %v3292 = vpack.c.b16 %v3036, %v3028
        %v3293 = vpack.c.b16 %v3037, %v3029
        %v3294 = vpack.c.b16 %v3038, %v3030
        %3551 = vmatprep.subr.bf16.mxu0 %v3040
        %3552 = vmatpush1.bf16.msra.mxu0 %v3039
        %3553 = vmatprep.subr.bf16.mxu0 %v3048
        %3554 = vmatpush1.bf16.msra.mxu0 %v3047
        %3555 = vmatprep.subr.bf16.mxu0 %v3056
        %3556 = vmatpush1.bf16.msra.mxu0 %v3055
        %3557 = vmatprep.subr.bf16.mxu0 %v3064
        %3558 = vmatpush1.bf16.msra.mxu0 %v3063
        %3559 = vmatprep.subr.bf16.mxu0 %v3072
        %3560 = vmatpush1.bf16.msra.mxu0 %v3071
        %3561 = vmatprep.subr.bf16.mxu0 %v3080
        %3562 = vmatpush1.bf16.msra.mxu0 %v3079
        %3563 = vmatprep.subr.bf16.mxu0 %v3088
        %3564 = vmatpush1.bf16.msra.mxu0 %v3087
        %3565 = vmatprep.subr.bf16.mxu0 %v3096
        %3566 = vmatpush1.bf16.msra.mxu0 %v3095
        %3567 = vmatprep.subr.bf16.mxu0 %v3104
        %3568 = vmatpush1.bf16.msra.mxu0 %v3103
        %3569 = vmatprep.subr.bf16.mxu0 %v3112
        %3570 = vmatpush1.bf16.msra.mxu0 %v3111
        %3571 = vmatprep.subr.bf16.mxu0 %v3120
        %3572 = vmatpush1.bf16.msra.mxu0 %v3119
        %3573 = vmatprep.subr.bf16.mxu0 %v3128
        %3574 = vmatpush1.bf16.msra.mxu0 %v3127
        %3575 = vmatprep.subr.bf16.mxu0 %v3136
        %3576 = vmatpush1.bf16.msra.mxu0 %v3135
        %3577 = vmatprep.subr.bf16.mxu0 %v3144
        %3578 = vmatpush1.bf16.msra.mxu0 %v3143
        %3579 = vmatprep.subr.bf16.mxu0 %v3152
        %3580 = vmatpush1.bf16.msra.mxu0 %v3151
        %3581 = vmatprep.subr.bf16.mxu0 %v3160
        %3582 = vmatpush1.bf16.msra.mxu0 %v3159
        %3583 = vmatprep.mubr.bf16.mxu0 %v1004
        %3584 = vmatmul.mubr.bf16.gmra.mrb[0].mxu0 %v1003
        %v3585 = vpop.f32.mrb[0].mxu0
        %v3586 = vadd.f32 %v2234, %v3585
        %v3587 = vpop.f32.mrb[0].mxu0
        %v3588 = vadd.f32 %v2238, %v3587
        %v3589 = vpop.f32.mrb[0].mxu0
        %v3590 = vadd.f32 %v2234, %v3589
        %v3591 = vpop.f32.mrb[0].mxu0
        %v3592 = vadd.f32 %v2238, %v3591
        %3593 = vdwg.mxu0
        %3594 = vmatprep.subr.bf16.mxu0 %v3168
        %3595 = vmatpush1.bf16.msra.mxu0 %v3167
        %3596 = vmatprep.subr.bf16.mxu0 %v3176
        %3597 = vmatpush1.bf16.msra.mxu0 %v3175
        %3598 = vmatprep.subr.bf16.mxu0 %v3184
        %3599 = vmatpush1.bf16.msra.mxu0 %v3183
        %3600 = vmatprep.subr.bf16.mxu0 %v3192
        %3601 = vmatpush1.bf16.msra.mxu0 %v3191
        %3602 = vmatprep.subr.bf16.mxu0 %v3200
        %3603 = vmatpush1.bf16.msra.mxu0 %v3199
        %3604 = vmatprep.subr.bf16.mxu0 %v3208
        %3605 = vmatpush1.bf16.msra.mxu0 %v3207
        %3606 = vmatprep.subr.bf16.mxu0 %v3216
        %3607 = vmatpush1.bf16.msra.mxu0 %v3215
        %3608 = vmatprep.subr.bf16.mxu0 %v3224
        %3609 = vmatpush1.bf16.msra.mxu0 %v3223
        %3610 = vmatprep.subr.bf16.mxu0 %v3232
        %3611 = vmatpush1.bf16.msra.mxu0 %v3231
        %3612 = vmatprep.subr.bf16.mxu0 %v3240
        %3613 = vmatpush1.bf16.msra.mxu0 %v3239
        %3614 = vmatprep.subr.bf16.mxu0 %v3248
        %3615 = vmatpush1.bf16.msra.mxu0 %v3247
        %3616 = vmatprep.subr.bf16.mxu0 %v3256
        %3617 = vmatpush1.bf16.msra.mxu0 %v3255
        %3618 = vmatprep.subr.bf16.mxu0 %v3264
        %3619 = vmatpush1.bf16.msra.mxu0 %v3263
        %3620 = vmatprep.subr.bf16.mxu0 %v3272
        %3621 = vmatpush1.bf16.msra.mxu0 %v3271
        %3622 = vmatprep.subr.bf16.mxu0 %v3280
        %3623 = vmatpush1.bf16.msra.mxu0 %v3279
        %3624 = vmatprep.subr.bf16.mxu0 %v3288
        %3625 = vmatpush1.bf16.msra.mxu0 %v3287
        %3626 = vmatprep.mubr.bf16.mxu0 %v1006
        %3627 = vmatmul.mubr.bf16.gmra.mrb[0].mxu0 %v1005
        %v3628 = vpop.f32.mrb[0].mxu0
        %v3629 = vadd.f32 %v3586, %v3628
        %v3630 = vpop.f32.mrb[0].mxu0
        %v3631 = vadd.f32 %v3588, %v3630
        %v3632 = vpop.f32.mrb[0].mxu0
        %v3633 = vadd.f32 %v3590, %v3632
        %v3634 = vpop.f32.mrb[0].mxu0
        %v3635 = vadd.f32 %v3592, %v3634
        %3636 = vdwg.mxu0
        %3637 = vmatprep.subr.bf16.mxu0 %v3042
        %3638 = vmatpush1.bf16.msra.mxu0 %v3041
        %3639 = vmatprep.subr.bf16.mxu0 %v3050
        %3640 = vmatpush1.bf16.msra.mxu0 %v3049
        %3641 = vmatprep.subr.bf16.mxu0 %v3058
        %3642 = vmatpush1.bf16.msra.mxu0 %v3057
        %3643 = vmatprep.subr.bf16.mxu0 %v3066
        %3644 = vmatpush1.bf16.msra.mxu0 %v3065
        %3645 = vmatprep.subr.bf16.mxu0 %v3074
        %3646 = vmatpush1.bf16.msra.mxu0 %v3073
        %3647 = vmatprep.subr.bf16.mxu0 %v3082
        %3648 = vmatpush1.bf16.msra.mxu0 %v3081
        %3649 = vmatprep.subr.bf16.mxu0 %v3090
        %3650 = vmatpush1.bf16.msra.mxu0 %v3089
        %3651 = vmatprep.subr.bf16.mxu0 %v3098
        %3652 = vmatpush1.bf16.msra.mxu0 %v3097
        %3653 = vmatprep.subr.bf16.mxu0 %v3106
        %3654 = vmatpush1.bf16.msra.mxu0 %v3105
        %3655 = vmatprep.subr.bf16.mxu0 %v3114
        %3656 = vmatpush1.bf16.msra.mxu0 %v3113
        %3657 = vmatprep.subr.bf16.mxu0 %v3122
        %3658 = vmatpush1.bf16.msra.mxu0 %v3121
        %3659 = vmatprep.subr.bf16.mxu0 %v3130
        %3660 = vmatpush1.bf16.msra.mxu0 %v3129
        %3661 = vmatprep.subr.bf16.mxu0 %v3138
        %3662 = vmatpush1.bf16.msra.mxu0 %v3137
        %3663 = vmatprep.subr.bf16.mxu0 %v3146
        %3664 = vmatpush1.bf16.msra.mxu0 %v3145
        %3665 = vmatprep.subr.bf16.mxu0 %v3154
        %3666 = vmatpush1.bf16.msra.mxu0 %v3153
        %3667 = vmatprep.subr.bf16.mxu0 %v3162
        %3668 = vmatpush1.bf16.msra.mxu0 %v3161
        %3669 = vmatprep.mubr.bf16.mxu0 %v1004
        %3670 = vmatmul.mubr.bf16.gmra.mrb[0].mxu0 %v1003
        %v3671 = vpop.f32.mrb[0].mxu0
        %v3672 = vadd.f32 %v2242, %v3671
        %v3673 = vpop.f32.mrb[0].mxu0
        %v3674 = vadd.f32 %v2246, %v3673
        %v3675 = vpop.f32.mrb[0].mxu0
        %v3676 = vadd.f32 %v2242, %v3675
        %v3677 = vpop.f32.mrb[0].mxu0
        %v3678 = vadd.f32 %v2246, %v3677
        %3679 = vdwg.mxu0
        %3680 = vmatprep.subr.bf16.mxu0 %v3170
        %3681 = vmatpush1.bf16.msra.mxu0 %v3169
        %3682 = vmatprep.subr.bf16.mxu0 %v3178
        %3683 = vmatpush1.bf16.msra.mxu0 %v3177
        %3684 = vmatprep.subr.bf16.mxu0 %v3186
        %3685 = vmatpush1.bf16.msra.mxu0 %v3185
        %3686 = vmatprep.subr.bf16.mxu0 %v3194
        %3687 = vmatpush1.bf16.msra.mxu0 %v3193
        %3688 = vmatprep.subr.bf16.mxu0 %v3202
        %3689 = vmatpush1.bf16.msra.mxu0 %v3201
        %3690 = vmatprep.subr.bf16.mxu0 %v3210
        %3691 = vmatpush1.bf16.msra.mxu0 %v3209
        %3692 = vmatprep.subr.bf16.mxu0 %v3218
        %3693 = vmatpush1.bf16.msra.mxu0 %v3217
        %3694 = vmatprep.subr.bf16.mxu0 %v3226
        %3695 = vmatpush1.bf16.msra.mxu0 %v3225
        %3696 = vmatprep.subr.bf16.mxu0 %v3234
        %3697 = vmatpush1.bf16.msra.mxu0 %v3233
        %3698 = vmatprep.subr.bf16.mxu0 %v3242
        %3699 = vmatpush1.bf16.msra.mxu0 %v3241
        %3700 = vmatprep.subr.bf16.mxu0 %v3250
        %3701 = vmatpush1.bf16.msra.mxu0 %v3249
        %3702 = vmatprep.subr.bf16.mxu0 %v3258
        %3703 = vmatpush1.bf16.msra.mxu0 %v3257
        %3704 = vmatprep.subr.bf16.mxu0 %v3266
        %3705 = vmatpush1.bf16.msra.mxu0 %v3265
        %3706 = vmatprep.subr.bf16.mxu0 %v3274
        %3707 = vmatpush1.bf16.msra.mxu0 %v3273
        %3708 = vmatprep.subr.bf16.mxu0 %v3282
        %3709 = vmatpush1.bf16.msra.mxu0 %v3281
        %3710 = vmatprep.subr.bf16.mxu0 %v3290
        %3711 = vmatpush1.bf16.msra.mxu0 %v3289
        %3712 = vmatprep.mubr.bf16.mxu0 %v1006
        %3713 = vmatmul.mubr.bf16.gmra.mrb[0].mxu0 %v1005
        %v3714 = vpop.f32.mrb[0].mxu0
        %v3715 = vadd.f32 %v3672, %v3714
        %v3716 = vpop.f32.mrb[0].mxu0
        %v3717 = vadd.f32 %v3674, %v3716
        %v3718 = vpop.f32.mrb[0].mxu0
        %v3719 = vadd.f32 %v3676, %v3718
        %v3720 = vpop.f32.mrb[0].mxu0
        %v3721 = vadd.f32 %v3678, %v3720
        %3722 = vdwg.mxu0
        %3723 = vmatprep.subr.bf16.mxu0 %v3044
        %3724 = vmatpush1.bf16.msra.mxu0 %v3043
        %3725 = vmatprep.subr.bf16.mxu0 %v3052
        %3726 = vmatpush1.bf16.msra.mxu0 %v3051
        %3727 = vmatprep.subr.bf16.mxu0 %v3060
        %3728 = vmatpush1.bf16.msra.mxu0 %v3059
        %3729 = vmatprep.subr.bf16.mxu0 %v3068
        %3730 = vmatpush1.bf16.msra.mxu0 %v3067
        %3731 = vmatprep.subr.bf16.mxu0 %v3076
        %3732 = vmatpush1.bf16.msra.mxu0 %v3075
        %3733 = vmatprep.subr.bf16.mxu0 %v3084
        %3734 = vmatpush1.bf16.msra.mxu0 %v3083
        %3735 = vmatprep.subr.bf16.mxu0 %v3092
        %3736 = vmatpush1.bf16.msra.mxu0 %v3091
        %3737 = vmatprep.subr.bf16.mxu0 %v3100
        %3738 = vmatpush1.bf16.msra.mxu0 %v3099
        %3739 = vmatprep.subr.bf16.mxu0 %v3108
        %3740 = vmatpush1.bf16.msra.mxu0 %v3107
        %3741 = vmatprep.subr.bf16.mxu0 %v3116
        %3742 = vmatpush1.bf16.msra.mxu0 %v3115
        %3743 = vmatprep.subr.bf16.mxu0 %v3124
        %3744 = vmatpush1.bf16.msra.mxu0 %v3123
        %3745 = vmatprep.subr.bf16.mxu0 %v3132
        %3746 = vmatpush1.bf16.msra.mxu0 %v3131
        %3747 = vmatprep.subr.bf16.mxu0 %v3140
        %3748 = vmatpush1.bf16.msra.mxu0 %v3139
        %3749 = vmatprep.subr.bf16.mxu0 %v3148
        %3750 = vmatpush1.bf16.msra.mxu0 %v3147
        %3751 = vmatprep.subr.bf16.mxu0 %v3156
        %3752 = vmatpush1.bf16.msra.mxu0 %v3155
        %3753 = vmatprep.subr.bf16.mxu0 %v3164
        %3754 = vmatpush1.bf16.msra.mxu0 %v3163
        %3755 = vmatprep.mubr.bf16.mxu0 %v1004
        %3756 = vmatmul.mubr.bf16.gmra.mrb[0].mxu0 %v1003
        %v3757 = vpop.f32.mrb[0].mxu0
        %v3758 = vadd.f32 %v2250, %v3757
        %v3759 = vpop.f32.mrb[0].mxu0
        %v3760 = vadd.f32 %v2254, %v3759
        %v3761 = vpop.f32.mrb[0].mxu0
        %v3762 = vadd.f32 %v2250, %v3761
        %v3763 = vpop.f32.mrb[0].mxu0
        %v3764 = vadd.f32 %v2254, %v3763
        %3765 = vdwg.mxu0
        %3766 = vmatprep.subr.bf16.mxu0 %v3172
        %3767 = vmatpush1.bf16.msra.mxu0 %v3171
        %3768 = vmatprep.subr.bf16.mxu0 %v3180
        %3769 = vmatpush1.bf16.msra.mxu0 %v3179
        %3770 = vmatprep.subr.bf16.mxu0 %v3188
        %3771 = vmatpush1.bf16.msra.mxu0 %v3187
        %3772 = vmatprep.subr.bf16.mxu0 %v3196
        %3773 = vmatpush1.bf16.msra.mxu0 %v3195
        %3774 = vmatprep.subr.bf16.mxu0 %v3204
        %3775 = vmatpush1.bf16.msra.mxu0 %v3203
        %3776 = vmatprep.subr.bf16.mxu0 %v3212
        %3777 = vmatpush1.bf16.msra.mxu0 %v3211
        %3778 = vmatprep.subr.bf16.mxu0 %v3220
        %3779 = vmatpush1.bf16.msra.mxu0 %v3219
        %3780 = vmatprep.subr.bf16.mxu0 %v3228
        %3781 = vmatpush1.bf16.msra.mxu0 %v3227
        %3782 = vmatprep.subr.bf16.mxu0 %v3236
        %3783 = vmatpush1.bf16.msra.mxu0 %v3235
        %3784 = vmatprep.subr.bf16.mxu0 %v3244
        %3785 = vmatpush1.bf16.msra.mxu0 %v3243
        %3786 = vmatprep.subr.bf16.mxu0 %v3252
        %3787 = vmatpush1.bf16.msra.mxu0 %v3251
        %3788 = vmatprep.subr.bf16.mxu0 %v3260
        %3789 = vmatpush1.bf16.msra.mxu0 %v3259
        %3790 = vmatprep.subr.bf16.mxu0 %v3268
        %3791 = vmatpush1.bf16.msra.mxu0 %v3267
        %3792 = vmatprep.subr.bf16.mxu0 %v3276
        %3793 = vmatpush1.bf16.msra.mxu0 %v3275
        %3794 = vmatprep.subr.bf16.mxu0 %v3284
        %3795 = vmatpush1.bf16.msra.mxu0 %v3283
        %3796 = vmatprep.subr.bf16.mxu0 %v3292
        %3797 = vmatpush1.bf16.msra.mxu0 %v3291
        %3798 = vmatprep.mubr.bf16.mxu0 %v1006
        %3799 = vmatmul.mubr.bf16.gmra.mrb[0].mxu0 %v1005
        %v3800 = vpop.f32.mrb[0].mxu0
        %v3801 = vadd.f32 %v3758, %v3800
        %v3802 = vpop.f32.mrb[0].mxu0
        %v3803 = vadd.f32 %v3760, %v3802
        %v3804 = vpop.f32.mrb[0].mxu0
        %v3805 = vadd.f32 %v3762, %v3804
        %v3806 = vpop.f32.mrb[0].mxu0
        %v3807 = vadd.f32 %v3764, %v3806
        %3808 = vdwg.mxu0
        %3809 = vmatprep.subr.bf16.mxu0 %v3046
        %3810 = vmatpush1.bf16.msra.mxu0 %v3045
        %3811 = vmatprep.subr.bf16.mxu0 %v3054
        %3812 = vmatpush1.bf16.msra.mxu0 %v3053
        %3813 = vmatprep.subr.bf16.mxu0 %v3062
        %3814 = vmatpush1.bf16.msra.mxu0 %v3061
        %3815 = vmatprep.subr.bf16.mxu0 %v3070
        %3816 = vmatpush1.bf16.msra.mxu0 %v3069
        %3817 = vmatprep.subr.bf16.mxu0 %v3078
        %3818 = vmatpush1.bf16.msra.mxu0 %v3077
        %3819 = vmatprep.subr.bf16.mxu0 %v3086
        %3820 = vmatpush1.bf16.msra.mxu0 %v3085
        %3821 = vmatprep.subr.bf16.mxu0 %v3094
        %3822 = vmatpush1.bf16.msra.mxu0 %v3093
        %3823 = vmatprep.subr.bf16.mxu0 %v3102
        %3824 = vmatpush1.bf16.msra.mxu0 %v3101
        %3825 = vmatprep.subr.bf16.mxu0 %v3110
        %3826 = vmatpush1.bf16.msra.mxu0 %v3109
        %3827 = vmatprep.subr.bf16.mxu0 %v3118
        %3828 = vmatpush1.bf16.msra.mxu0 %v3117
        %3829 = vmatprep.subr.bf16.mxu0 %v3126
        %3830 = vmatpush1.bf16.msra.mxu0 %v3125
        %3831 = vmatprep.subr.bf16.mxu0 %v3134
        %3832 = vmatpush1.bf16.msra.mxu0 %v3133
        %3833 = vmatprep.subr.bf16.mxu0 %v3142
        %3834 = vmatpush1.bf16.msra.mxu0 %v3141
        %3835 = vmatprep.subr.bf16.mxu0 %v3150
        %3836 = vmatpush1.bf16.msra.mxu0 %v3149
        %3837 = vmatprep.subr.bf16.mxu0 %v3158
        %3838 = vmatpush1.bf16.msra.mxu0 %v3157
        %3839 = vmatprep.subr.bf16.mxu0 %v3166
        %3840 = vmatpush1.bf16.msra.mxu0 %v3165
        %3841 = vmatprep.mubr.bf16.mxu0 %v1004
        %3842 = vmatmul.mubr.bf16.gmra.mrb[0].mxu0 %v1003
        %v3843 = vpop.f32.mrb[0].mxu0
        %v3844 = vadd.f32 %v2258, %v3843
        %v3845 = vpop.f32.mrb[0].mxu0
        %v3846 = vadd.f32 %v2262, %v3845
        %v3847 = vpop.f32.mrb[0].mxu0
        %v3848 = vadd.f32 %v2258, %v3847
        %v3849 = vpop.f32.mrb[0].mxu0
        %v3850 = vadd.f32 %v2262, %v3849
        %3851 = vdwg.mxu0
        %3852 = vmatprep.subr.bf16.mxu0 %v3174
        %3853 = vmatpush1.bf16.msra.mxu0 %v3173
        %3854 = vmatprep.subr.bf16.mxu0 %v3182
        %3855 = vmatpush1.bf16.msra.mxu0 %v3181
        %3856 = vmatprep.subr.bf16.mxu0 %v3190
        %3857 = vmatpush1.bf16.msra.mxu0 %v3189
        %3858 = vmatprep.subr.bf16.mxu0 %v3198
        %3859 = vmatpush1.bf16.msra.mxu0 %v3197
        %3860 = vmatprep.subr.bf16.mxu0 %v3206
        %3861 = vmatpush1.bf16.msra.mxu0 %v3205
        %3862 = vmatprep.subr.bf16.mxu0 %v3214
        %3863 = vmatpush1.bf16.msra.mxu0 %v3213
        %3864 = vmatprep.subr.bf16.mxu0 %v3222
        %3865 = vmatpush1.bf16.msra.mxu0 %v3221
        %3866 = vmatprep.subr.bf16.mxu0 %v3230
        %3867 = vmatpush1.bf16.msra.mxu0 %v3229
        %3868 = vmatprep.subr.bf16.mxu0 %v3238
        %3869 = vmatpush1.bf16.msra.mxu0 %v3237
        %3870 = vmatprep.subr.bf16.mxu0 %v3246
        %3871 = vmatpush1.bf16.msra.mxu0 %v3245
        %3872 = vmatprep.subr.bf16.mxu0 %v3254
        %3873 = vmatpush1.bf16.msra.mxu0 %v3253
        %3874 = vmatprep.subr.bf16.mxu0 %v3262
        %3875 = vmatpush1.bf16.msra.mxu0 %v3261
        %3876 = vmatprep.subr.bf16.mxu0 %v3270
        %3877 = vmatpush1.bf16.msra.mxu0 %v3269
        %3878 = vmatprep.subr.bf16.mxu0 %v3278
        %3879 = vmatpush1.bf16.msra.mxu0 %v3277
        %3880 = vmatprep.subr.bf16.mxu0 %v3286
        %3881 = vmatpush1.bf16.msra.mxu0 %v3285
        %3882 = vmatprep.subr.bf16.mxu0 %v3294
        %3883 = vmatpush1.bf16.msra.mxu0 %v3293
        %3884 = vmatprep.mubr.bf16.mxu0 %v1006
        %3885 = vmatmul.mubr.bf16.gmra.mrb[0].mxu0 %v1005
        %v3886 = vpop.f32.mrb[0].mxu0
        %v3887 = vadd.f32 %v3844, %v3886
        %v3888 = vpop.f32.mrb[0].mxu0
        %v3889 = vadd.f32 %v3846, %v3888
        %v3890 = vpop.f32.mrb[0].mxu0
        %v3891 = vadd.f32 %v3848, %v3890
        %v3892 = vpop.f32.mrb[0].mxu0
        %v3893 = vadd.f32 %v3850, %v3892
        %3894 = vdwg.mxu0
        %v3895 = vpack.c.bf16 %v3633, %v3629
        %v3896 = vpack.c.bf16 %v3635, %v3631
        %v3897 = vpack.c.bf16 %v3719, %v3715
        %v3898 = vpack.c.bf16 %v3721, %v3717
        %v3899 = vpack.c.bf16 %v3805, %v3801
        %v3900 = vpack.c.bf16 %v3807, %v3803
        %v3901 = vpack.c.bf16 %v3891, %v3887
        %v3902 = vpack.c.bf16 %v3893, %v3889
        %v3904 = vlaneseq
        %v3905 = vshrl.u32 %v3904, 7
        %v3906 = vsub.s32 0, %v3905
        %v3907 = vrot.slane %v817, %v3906
        %3909 = vmatprep.subr.bf16.mxu0 0
        %3910 = vmatpush1.bf16.xpose.msra.mxu0 %v3895
        %3911 = vmatprep.subr.bf16.mxu0 0
        %3912 = vmatpush1.bf16.xpose.msra.mxu0 0
        %3913 = vmatprep.subr.bf16.mxu0 0
        %3914 = vmatpush1.bf16.xpose.msra.mxu0 0
        %3915 = vmatprep.subr.bf16.mxu0 0
        %3916 = vmatpush1.bf16.xpose.msra.mxu0 0
        %3917 = vmatprep.subr.bf16.mxu0 0
        %3918 = vmatpush1.bf16.xpose.msra.mxu0 0
        %3919 = vmatprep.subr.bf16.mxu0 0
        %3920 = vmatpush1.bf16.xpose.msra.mxu0 0
        %3921 = vmatprep.subr.bf16.mxu0 0
        %3922 = vmatpush1.bf16.xpose.msra.mxu0 0
        %3923 = vmatprep.subr.bf16.mxu0 0
        %3924 = vmatpush1.bf16.xpose.msra.mxu0 0
        %3925 = vmatprep.subr.bf16.mxu0 0
        %3926 = vmatpush1.bf16.xpose.msra.mxu0 0
        %3927 = vmatprep.subr.bf16.mxu0 0
        %3928 = vmatpush1.bf16.xpose.msra.mxu0 0
        %3929 = vmatprep.subr.bf16.mxu0 0
        %3930 = vmatpush1.bf16.xpose.msra.mxu0 0
        %3931 = vmatprep.subr.bf16.mxu0 0
        %3932 = vmatpush1.bf16.xpose.msra.mxu0 0
        %3933 = vmatprep.subr.bf16.mxu0 0
        %3934 = vmatpush1.bf16.xpose.msra.mxu0 0
        %3935 = vmatprep.subr.bf16.mxu0 0
        %3936 = vmatpush1.bf16.xpose.msra.mxu0 0
        %3937 = vmatprep.subr.bf16.mxu0 0
        %3938 = vmatpush1.bf16.xpose.msra.mxu0 0
        %3939 = vmatprep.subr.bf16.mxu0 0
        %3940 = vmatpush1.bf16.xpose.msra.mxu0 0
        %3941 = vmatprep.mubr.bf16.mxu0 0
        %3942 = vmatmul.mubr.bf16.gmra.mrb[0].mxu0 %v1969
        %v3943 = vpop.f32.mrb[0].mxu0
        %v3944 = vadd.f32 %v3907, %v3943
        %v3945 = vpop.f32.mrb[0].mxu0
        %v3946 = vpop.f32.mrb[0].mxu0
        %v3947 = vadd.f32 %v3907, %v3946
        %v3948 = vpop.f32.mrb[0].mxu0
        %3949 = vdwg.mxu0
        %vm3950 = vcmask 130048
        %v3951 = vsel %vm3950, %v3944, -inf
        %3952 = vmax.xlane.f32.xlu0 %v3951
        %v3953 = vpop.xlane.xlu0 %3952
        %v3954 = vsel %vm3950, %v3947, -inf
        %3955 = vmax.xlane.f32.xlu0 %v3954
        %v3956 = vpop.xlane.xlu0 %3955
        %v3957 = vsub.f32 %v3944, %v3953
        %v3958 = vsub.f32 %v3947, %v3956
        %v3959 = vmul.f32 %v3957, 1.442695
        %v3960 = vpow.pop %v3959
        %v3961 = vmul.f32 %v3958, 1.442695
        %v3962 = vpow.pop %v3961
        %v3963 = vsel %vm3950, %v3960, 0.0
        %3964 = vadd.xlane.f32.xlu0 %v3963
        %v3965 = vpop.xlane.xlu0 %3964
        %v3966 = vsel %vm3950, %v3962, 0.0
        %3967 = vadd.xlane.f32.xlu0 %v3966
        %v3968 = vpop.xlane.xlu0 %3967
        %v3969 = vrcp.pop %v3965
        %v3970 = vrcp.pop %v3968
        %v3971 = vpack.c.bf16 %v3962, %v3960
        %v3973 = vsel %vm3950, %v3971, 0
        %3975 = vmatprep.subr.bf16.mxu0 0
        %3976 = vmatpush1.bf16.msra.mxu0 %v3899
        %3977 = vmatprep.subr.bf16.mxu0 0
        %3978 = vmatpush1.bf16.msra.mxu0 0
        %3979 = vmatprep.subr.bf16.mxu0 0
        %3980 = vmatpush1.bf16.msra.mxu0 0
        %3981 = vmatprep.subr.bf16.mxu0 0
        %3982 = vmatpush1.bf16.msra.mxu0 0
        %3983 = vmatprep.subr.bf16.mxu0 0
        %3984 = vmatpush1.bf16.msra.mxu0 0
        %3985 = vmatprep.subr.bf16.mxu0 0
        %3986 = vmatpush1.bf16.msra.mxu0 0
        %3987 = vmatprep.subr.bf16.mxu0 0
        %3988 = vmatpush1.bf16.msra.mxu0 0
        %3989 = vmatprep.subr.bf16.mxu0 0
        %3990 = vmatpush1.bf16.msra.mxu0 0
        %3991 = vmatprep.subr.bf16.mxu0 0
        %3992 = vmatpush1.bf16.msra.mxu0 0
        %3993 = vmatprep.subr.bf16.mxu0 0
        %3994 = vmatpush1.bf16.msra.mxu0 0
        %3995 = vmatprep.subr.bf16.mxu0 0
        %3996 = vmatpush1.bf16.msra.mxu0 0
        %3997 = vmatprep.subr.bf16.mxu0 0
        %3998 = vmatpush1.bf16.msra.mxu0 0
        %3999 = vmatprep.subr.bf16.mxu0 0
        %4000 = vmatpush1.bf16.msra.mxu0 0
        %4001 = vmatprep.subr.bf16.mxu0 0
        %4002 = vmatpush1.bf16.msra.mxu0 0
        %4003 = vmatprep.subr.bf16.mxu0 0
        %4004 = vmatpush1.bf16.msra.mxu0 0
        %4005 = vmatprep.subr.bf16.mxu0 0
        %4006 = vmatpush1.bf16.msra.mxu0 0
        %4007 = vmatprep.mubr.bf16.mxu0 0
        %4008 = vmatmul.mubr.bf16.gmra.mrb[0].mxu0 %v3973
        %v4009 = vpop.f32.mrb[0].mxu0
        %v4010 = vadd.f32 0.0, %v4009
        %v4011 = vpop.f32.mrb[0].mxu0
        %v4012 = vpop.f32.mrb[0].mxu0
        %v4013 = vadd.f32 0.0, %v4012
        %v4014 = vpop.f32.mrb[0].mxu0
        %4015 = vdwg.mxu0
        %v4016 = vmul.f32 %v4010, %v3969
        %v4017 = vmul.f32 %v4013, %v3970
        %v4018 = vpack.c.bf16 %v4017, %v4016
        %v4019 = vld [vmem:[#allocation13] sm:$0xff]
        %v4020 = vld [vmem:[#allocation13 + $0x8] sm:$0xff]
        %v4021 = vld [vmem:[#allocation13 + $0x10] sm:$0xff]
        %v4022 = vld [vmem:[#allocation13 + $0x18] sm:$0xff]
        %v4023 = vld [vmem:[#allocation13 + $0x20] sm:$0xff]
        %v4024 = vld [vmem:[#allocation13 + $0x28] sm:$0xff]
        %v4025 = vld [vmem:[#allocation13 + $0x30] sm:$0xff]
        %v4026 = vld [vmem:[#allocation13 + $0x38] sm:$0xff]
        %v4027 = vld [vmem:[#allocation13 + $0x40] sm:$0xff]
        %v4028 = vld [vmem:[#allocation13 + $0x48] sm:$0xff]
        %v4029 = vld [vmem:[#allocation13 + $0x50] sm:$0xff]
        %v4030 = vld [vmem:[#allocation13 + $0x58] sm:$0xff]
        %v4031 = vld [vmem:[#allocation13 + $0x60] sm:$0xff]
        %v4032 = vld [vmem:[#allocation13 + $0x68] sm:$0xff]
        %v4033 = vld [vmem:[#allocation13 + $0x70] sm:$0xff]
        %v4034 = vld [vmem:[#allocation13 + $0x78] sm:$0xff]
        %v4035 = vld [vmem:[#allocation13 + $0x80] sm:$0xff]
        %v4036 = vld [vmem:[#allocation13 + $0x88] sm:$0xff]
        %v4037 = vld [vmem:[#allocation13 + $0x90] sm:$0xff]
        %v4038 = vld [vmem:[#allocation13 + $0x98] sm:$0xff]
        %v4039 = vld [vmem:[#allocation13 + $0xa0] sm:$0xff]
        %v4040 = vld [vmem:[#allocation13 + $0xa8] sm:$0xff]
        %v4041 = vld [vmem:[#allocation13 + $0xb0] sm:$0xff]
        %v4042 = vld [vmem:[#allocation13 + $0xb8] sm:$0xff]
        %v4043 = vld [vmem:[#allocation13 + $0xc0] sm:$0xff]
        %v4044 = vld [vmem:[#allocation13 + $0xc8] sm:$0xff]
        %v4045 = vld [vmem:[#allocation13 + $0xd0] sm:$0xff]
        %v4046 = vld [vmem:[#allocation13 + $0xd8] sm:$0xff]
        %v4047 = vld [vmem:[#allocation13 + $0xe0] sm:$0xff]
        %v4048 = vld [vmem:[#allocation13 + $0xe8] sm:$0xff]
        %v4049 = vld [vmem:[#allocation13 + $0xf0] sm:$0xff]
        %v4050 = vld [vmem:[#allocation13 + $0xf8] sm:$0xff]
        %4051 = vmatprep.subr.bf16.mxu0 0
        %4052 = vmatpush1.bf16.xpose.msra.mxu0 %v3896
        %4053 = vmatprep.subr.bf16.mxu0 0
        %4054 = vmatpush1.bf16.xpose.msra.mxu0 0
        %4055 = vmatprep.subr.bf16.mxu0 0
        %4056 = vmatpush1.bf16.xpose.msra.mxu0 0
        %4057 = vmatprep.subr.bf16.mxu0 0
        %4058 = vmatpush1.bf16.xpose.msra.mxu0 0
        %4059 = vmatprep.subr.bf16.mxu0 0
        %4060 = vmatpush1.bf16.xpose.msra.mxu0 0
        %4061 = vmatprep.subr.bf16.mxu0 0
        %4062 = vmatpush1.bf16.xpose.msra.mxu0 0
        %4063 = vmatprep.subr.bf16.mxu0 0
        %4064 = vmatpush1.bf16.xpose.msra.mxu0 0
        %4065 = vmatprep.subr.bf16.mxu0 0
        %4066 = vmatpush1.bf16.xpose.msra.mxu0 0
        %4067 = vmatprep.subr.bf16.mxu0 0
        %4068 = vmatpush1.bf16.xpose.msra.mxu0 0
        %4069 = vmatprep.subr.bf16.mxu0 0
        %4070 = vmatpush1.bf16.xpose.msra.mxu0 0
        %4071 = vmatprep.subr.bf16.mxu0 0
        %4072 = vmatpush1.bf16.xpose.msra.mxu0 0
        %4073 = vmatprep.subr.bf16.mxu0 0
        %4074 = vmatpush1.bf16.xpose.msra.mxu0 0
        %4075 = vmatprep.subr.bf16.mxu0 0
        %4076 = vmatpush1.bf16.xpose.msra.mxu0 0
        %4077 = vmatprep.subr.bf16.mxu0 0
        %4078 = vmatpush1.bf16.xpose.msra.mxu0 0
        %4079 = vmatprep.subr.bf16.mxu0 0
        %4080 = vmatpush1.bf16.xpose.msra.mxu0 0
        %4081 = vmatprep.subr.bf16.mxu0 0
        %4082 = vmatpush1.bf16.xpose.msra.mxu0 0
        %4083 = vmatprep.mubr.bf16.mxu0 0
        %4084 = vmatmul.mubr.bf16.gmra.mrb[0].mxu0 %v1970
        %v4085 = vpop.f32.mrb[0].mxu0
        %v4086 = vadd.f32 %v3907, %v4085
        %v4087 = vpop.f32.mrb[0].mxu0
        %v4088 = vpop.f32.mrb[0].mxu0
        %v4089 = vadd.f32 %v3907, %v4088
        %v4090 = vpop.f32.mrb[0].mxu0
        %4091 = vdwg.mxu0
        %v4092 = vsel %vm3950, %v4086, -inf
        %4093 = vmax.xlane.f32.xlu0 %v4092
        %v4094 = vpop.xlane.xlu0 %4093
        %v4095 = vsel %vm3950, %v4089, -inf
        %4096 = vmax.xlane.f32.xlu0 %v4095
        %v4097 = vpop.xlane.xlu0 %4096
        %v4098 = vsub.f32 %v4086, %v4094
        %v4099 = vsub.f32 %v4089, %v4097
        %v4100 = vmul.f32 %v4098, 1.442695
        %v4101 = vpow.pop %v4100
        %v4102 = vmul.f32 %v4099, 1.442695
        %v4103 = vpow.pop %v4102
        %v4104 = vsel %vm3950, %v4101, 0.0
        %4105 = vadd.xlane.f32.xlu0 %v4104
        %v4106 = vpop.xlane.xlu0 %4105
        %v4107 = vsel %vm3950, %v4103, 0.0
        %4108 = vadd.xlane.f32.xlu0 %v4107
        %v4109 = vpop.xlane.xlu0 %4108
        %v4110 = vrcp.pop %v4106
        %v4111 = vrcp.pop %v4109
        %v4112 = vpack.c.bf16 %v4103, %v4101
        %v4114 = vsel %vm3950, %v4112, 0
        %4116 = vmatprep.subr.bf16.mxu0 0
        %4117 = vmatpush1.bf16.msra.mxu0 %v3900
        %4118 = vmatprep.subr.bf16.mxu0 0
        %4119 = vmatpush1.bf16.msra.mxu0 0
        %4120 = vmatprep.subr.bf16.mxu0 0
        %4121 = vmatpush1.bf16.msra.mxu0 0
        %4122 = vmatprep.subr.bf16.mxu0 0
        %4123 = vmatpush1.bf16.msra.mxu0 0
        %4124 = vmatprep.subr.bf16.mxu0 0
        %4125 = vmatpush1.bf16.msra.mxu0 0
        %4126 = vmatprep.subr.bf16.mxu0 0
        %4127 = vmatpush1.bf16.msra.mxu0 0
        %4128 = vmatprep.subr.bf16.mxu0 0
        %4129 = vmatpush1.bf16.msra.mxu0 0
        %4130 = vmatprep.subr.bf16.mxu0 0
        %4131 = vmatpush1.bf16.msra.mxu0 0
        %4132 = vmatprep.subr.bf16.mxu0 0
        %4133 = vmatpush1.bf16.msra.mxu0 0
        %4134 = vmatprep.subr.bf16.mxu0 0
        %4135 = vmatpush1.bf16.msra.mxu0 0
        %4136 = vmatprep.subr.bf16.mxu0 0
        %4137 = vmatpush1.bf16.msra.mxu0 0
        %4138 = vmatprep.subr.bf16.mxu0 0
        %4139 = vmatpush1.bf16.msra.mxu0 0
        %4140 = vmatprep.subr.bf16.mxu0 0
        %4141 = vmatpush1.bf16.msra.mxu0 0
        %4142 = vmatprep.subr.bf16.mxu0 0
        %4143 = vmatpush1.bf16.msra.mxu0 0
        %4144 = vmatprep.subr.bf16.mxu0 0
        %4145 = vmatpush1.bf16.msra.mxu0 0
        %4146 = vmatprep.subr.bf16.mxu0 0
        %4147 = vmatpush1.bf16.msra.mxu0 0
        %4148 = vmatprep.mubr.bf16.mxu0 0
        %4149 = vmatmul.mubr.bf16.gmra.mrb[0].mxu0 %v4114
        %v4150 = vpop.f32.mrb[0].mxu0
        %v4151 = vadd.f32 0.0, %v4150
        %v4152 = vpop.f32.mrb[0].mxu0
        %v4153 = vpop.f32.mrb[0].mxu0
        %v4154 = vadd.f32 0.0, %v4153
        %v4155 = vpop.f32.mrb[0].mxu0
        %4156 = vdwg.mxu0
        %v4157 = vmul.f32 %v4151, %v4110
        %v4158 = vmul.f32 %v4154, %v4111
        %v4159 = vpack.c.bf16 %v4158, %v4157
        %s4160 = scalar_lea.vmem [#allocation13], 256
        %v4161 = vld [vmem:[%s4160] sm:$0xff]
        %v4162 = vld [vmem:[%s4160 + $0x8] sm:$0xff]
        %v4163 = vld [vmem:[%s4160 + $0x10] sm:$0xff]
        %v4164 = vld [vmem:[%s4160 + $0x18] sm:$0xff]
        %v4165 = vld [vmem:[%s4160 + $0x20] sm:$0xff]
        %v4166 = vld [vmem:[%s4160 + $0x28] sm:$0xff]
        %v4167 = vld [vmem:[%s4160 + $0x30] sm:$0xff]
        %v4168 = vld [vmem:[%s4160 + $0x38] sm:$0xff]
        %v4169 = vld [vmem:[%s4160 + $0x40] sm:$0xff]
        %v4170 = vld [vmem:[%s4160 + $0x48] sm:$0xff]
        %v4171 = vld [vmem:[%s4160 + $0x50] sm:$0xff]
        %v4172 = vld [vmem:[%s4160 + $0x58] sm:$0xff]
        %v4173 = vld [vmem:[%s4160 + $0x60] sm:$0xff]
        %v4174 = vld [vmem:[%s4160 + $0x68] sm:$0xff]
        %v4175 = vld [vmem:[%s4160 + $0x70] sm:$0xff]
        %v4176 = vld [vmem:[%s4160 + $0x78] sm:$0xff]
        %v4177 = vld [vmem:[%s4160 + $0x80] sm:$0xff]
        %v4178 = vld [vmem:[%s4160 + $0x88] sm:$0xff]
        %v4179 = vld [vmem:[%s4160 + $0x90] sm:$0xff]
        %v4180 = vld [vmem:[%s4160 + $0x98] sm:$0xff]
        %v4181 = vld [vmem:[%s4160 + $0xa0] sm:$0xff]
        %v4182 = vld [vmem:[%s4160 + $0xa8] sm:$0xff]
        %v4183 = vld [vmem:[%s4160 + $0xb0] sm:$0xff]
        %v4184 = vld [vmem:[%s4160 + $0xb8] sm:$0xff]
        %v4185 = vld [vmem:[%s4160 + $0xc0] sm:$0xff]
        %v4186 = vld [vmem:[%s4160 + $0xc8] sm:$0xff]
        %v4187 = vld [vmem:[%s4160 + $0xd0] sm:$0xff]
        %v4188 = vld [vmem:[%s4160 + $0xd8] sm:$0xff]
        %v4189 = vld [vmem:[%s4160 + $0xe0] sm:$0xff]
        %v4190 = vld [vmem:[%s4160 + $0xe8] sm:$0xff]
        %v4191 = vld [vmem:[%s4160 + $0xf0] sm:$0xff]
        %v4192 = vld [vmem:[%s4160 + $0xf8] sm:$0xff]
        %v4225 = vunpack.c.l.b16 %v4161
        %v4226 = vunpack.c.h.b16 %v4161
        %v4227 = vunpack.c.l.b16 %v4162
        %v4228 = vunpack.c.h.b16 %v4162
        %v4229 = vunpack.c.l.b16 %v4163
        %v4230 = vunpack.c.h.b16 %v4163
        %v4231 = vunpack.c.l.b16 %v4164
        %v4232 = vunpack.c.h.b16 %v4164
        %v4233 = vunpack.c.l.b16 %v4165
        %v4234 = vunpack.c.h.b16 %v4165
        %v4235 = vunpack.c.l.b16 %v4166
        %v4236 = vunpack.c.h.b16 %v4166
        %v4237 = vunpack.c.l.b16 %v4167
        %v4238 = vunpack.c.h.b16 %v4167
        %v4239 = vunpack.c.l.b16 %v4168
        %v4240 = vunpack.c.h.b16 %v4168
        %v4241 = vunpack.c.l.b16 %v4169
        %v4242 = vunpack.c.h.b16 %v4169
        %v4243 = vunpack.c.l.b16 %v4170
        %v4244 = vunpack.c.h.b16 %v4170
        %v4245 = vunpack.c.l.b16 %v4171
        %v4246 = vunpack.c.h.b16 %v4171
        %v4247 = vunpack.c.l.b16 %v4172
        %v4248 = vunpack.c.h.b16 %v4172
        %v4249 = vunpack.c.l.b16 %v4173
        %v4250 = vunpack.c.h.b16 %v4173
        %v4251 = vunpack.c.l.b16 %v4174
        %v4252 = vunpack.c.h.b16 %v4174
        %v4253 = vunpack.c.l.b16 %v4175
        %v4254 = vunpack.c.h.b16 %v4175
        %v4255 = vunpack.c.l.b16 %v4176
        %v4256 = vunpack.c.h.b16 %v4176
        %v4257 = vunpack.c.l.b16 %v4177
        %v4258 = vunpack.c.h.b16 %v4177
        %v4259 = vunpack.c.l.b16 %v4178
        %v4260 = vunpack.c.h.b16 %v4178
        %v4261 = vunpack.c.l.b16 %v4179
        %v4262 = vunpack.c.h.b16 %v4179
        %v4263 = vunpack.c.l.b16 %v4180
        %v4264 = vunpack.c.h.b16 %v4180
        %v4265 = vunpack.c.l.b16 %v4181
        %v4266 = vunpack.c.h.b16 %v4181
        %v4267 = vunpack.c.l.b16 %v4182
        %v4268 = vunpack.c.h.b16 %v4182
        %v4269 = vunpack.c.l.b16 %v4183
        %v4270 = vunpack.c.h.b16 %v4183
        %v4271 = vunpack.c.l.b16 %v4184
        %v4272 = vunpack.c.h.b16 %v4184
        %v4273 = vunpack.c.l.b16 %v4185
        %v4274 = vunpack.c.h.b16 %v4185
        %v4275 = vunpack.c.l.b16 %v4186
        %v4276 = vunpack.c.h.b16 %v4186
        %v4277 = vunpack.c.l.b16 %v4187
        %v4278 = vunpack.c.h.b16 %v4187
        %v4279 = vunpack.c.l.b16 %v4188
        %v4280 = vunpack.c.h.b16 %v4188
        %v4281 = vunpack.c.l.b16 %v4189
        %v4282 = vunpack.c.h.b16 %v4189
        %v4283 = vunpack.c.l.b16 %v4190
        %v4284 = vunpack.c.h.b16 %v4190
        %v4285 = vunpack.c.l.b16 %v4191
        %v4286 = vunpack.c.h.b16 %v4191
        %v4287 = vunpack.c.l.b16 %v4192
        %v4288 = vunpack.c.h.b16 %v4192
        %v4289 = vpack.c.b16 %v4229, %v4225
        %v4290 = vpack.c.b16 %v4230, %v4226
        %v4291 = vpack.c.b16 %v4231, %v4227
        %v4292 = vpack.c.b16 %v4232, %v4228
        %v4293 = vpack.c.b16 %v4237, %v4233
        %v4294 = vpack.c.b16 %v4238, %v4234
        %v4295 = vpack.c.b16 %v4239, %v4235
        %v4296 = vpack.c.b16 %v4240, %v4236
        %v4297 = vpack.c.b16 %v4245, %v4241
        %v4298 = vpack.c.b16 %v4246, %v4242
        %v4299 = vpack.c.b16 %v4247, %v4243
        %v4300 = vpack.c.b16 %v4248, %v4244
        %v4301 = vpack.c.b16 %v4253, %v4249
        %v4302 = vpack.c.b16 %v4254, %v4250
        %v4303 = vpack.c.b16 %v4255, %v4251
        %v4304 = vpack.c.b16 %v4256, %v4252
        %v4305 = vpack.c.b16 %v4261, %v4257
        %v4306 = vpack.c.b16 %v4262, %v4258
        %v4307 = vpack.c.b16 %v4263, %v4259
        %v4308 = vpack.c.b16 %v4264, %v4260
        %v4309 = vpack.c.b16 %v4269, %v4265
        %v4310 = vpack.c.b16 %v4270, %v4266
        %v4311 = vpack.c.b16 %v4271, %v4267
        %v4312 = vpack.c.b16 %v4272, %v4268
        %v4313 = vpack.c.b16 %v4277, %v4273
        %v4314 = vpack.c.b16 %v4278, %v4274
        %v4315 = vpack.c.b16 %v4279, %v4275
        %v4316 = vpack.c.b16 %v4280, %v4276
        %v4317 = vpack.c.b16 %v4285, %v4281
        %v4318 = vpack.c.b16 %v4286, %v4282
        %v4319 = vpack.c.b16 %v4287, %v4283
        %v4320 = vpack.c.b16 %v4288, %v4284
        %4353 = vmatprep.subr.bf16.mxu0 %v4290
        %4354 = vmatpush1.bf16.msra.mxu0 %v4289
        %4355 = vmatprep.subr.bf16.mxu0 %v4294
        %4356 = vmatpush1.bf16.msra.mxu0 %v4293
        %4357 = vmatprep.subr.bf16.mxu0 %v4298
        %4358 = vmatpush1.bf16.msra.mxu0 %v4297
        %4359 = vmatprep.subr.bf16.mxu0 %v4302
        %4360 = vmatpush1.bf16.msra.mxu0 %v4301
        %4361 = vmatprep.subr.bf16.mxu0 %v4306
        %4362 = vmatpush1.bf16.msra.mxu0 %v4305
        %4363 = vmatprep.subr.bf16.mxu0 %v4310
        %4364 = vmatpush1.bf16.msra.mxu0 %v4309
        %4365 = vmatprep.subr.bf16.mxu0 %v4314
        %4366 = vmatpush1.bf16.msra.mxu0 %v4313
        %4367 = vmatprep.subr.bf16.mxu0 %v4318
        %4368 = vmatpush1.bf16.msra.mxu0 %v4317
        %4369 = vmatprep.subr.bf16.mxu0 0
        %4370 = vmatpush1.bf16.msra.mxu0 0
        %4371 = vmatprep.subr.bf16.mxu0 0
        %4372 = vmatpush1.bf16.msra.mxu0 0
        %4373 = vmatprep.subr.bf16.mxu0 0
        %4374 = vmatpush1.bf16.msra.mxu0 0
        %4375 = vmatprep.subr.bf16.mxu0 0
        %4376 = vmatpush1.bf16.msra.mxu0 0
        %4377 = vmatprep.subr.bf16.mxu0 0
        %4378 = vmatpush1.bf16.msra.mxu0 0
        %4379 = vmatprep.subr.bf16.mxu0 0
        %4380 = vmatpush1.bf16.msra.mxu0 0
        %4381 = vmatprep.subr.bf16.mxu0 0
        %4382 = vmatpush1.bf16.msra.mxu0 0
        %4383 = vmatprep.subr.bf16.mxu0 0
        %4384 = vmatpush1.bf16.msra.mxu0 0
        %4385 = vmatprep.mubr.bf16.mxu0 0
        %4386 = vmatmul.mubr.bf16.gmra.mrb[0].mxu0 %v4159
        %v4387 = vpop.f32.mrb[0].mxu0
        %v4388 = vadd.f32 0.0, %v4387
        %v4389 = vpop.f32.mrb[0].mxu0
        %v4390 = vadd.f32 0.0, %v4389
        %v4391 = vpop.f32.mrb[0].mxu0
        %v4392 = vadd.f32 0.0, %v4391
        %v4393 = vpop.f32.mrb[0].mxu0
        %v4394 = vadd.f32 0.0, %v4393
        %4395 = vdwg.mxu0
        %4396 = vmatprep.subr.bf16.mxu0 %v4292
        %4397 = vmatpush1.bf16.msra.mxu0 %v4291
        %4398 = vmatprep.subr.bf16.mxu0 %v4296
        %4399 = vmatpush1.bf16.msra.mxu0 %v4295
        %4400 = vmatprep.subr.bf16.mxu0 %v4300
        %4401 = vmatpush1.bf16.msra.mxu0 %v4299
        %4402 = vmatprep.subr.bf16.mxu0 %v4304
        %4403 = vmatpush1.bf16.msra.mxu0 %v4303
        %4404 = vmatprep.subr.bf16.mxu0 %v4308
        %4405 = vmatpush1.bf16.msra.mxu0 %v4307
        %4406 = vmatprep.subr.bf16.mxu0 %v4312
        %4407 = vmatpush1.bf16.msra.mxu0 %v4311
        %4408 = vmatprep.subr.bf16.mxu0 %v4316
        %4409 = vmatpush1.bf16.msra.mxu0 %v4315
        %4410 = vmatprep.subr.bf16.mxu0 %v4320
        %4411 = vmatpush1.bf16.msra.mxu0 %v4319
        %4412 = vmatprep.subr.bf16.mxu0 0
        %4413 = vmatpush1.bf16.msra.mxu0 0
        %4414 = vmatprep.subr.bf16.mxu0 0
        %4415 = vmatpush1.bf16.msra.mxu0 0
        %4416 = vmatprep.subr.bf16.mxu0 0
        %4417 = vmatpush1.bf16.msra.mxu0 0
        %4418 = vmatprep.subr.bf16.mxu0 0
        %4419 = vmatpush1.bf16.msra.mxu0 0
        %4420 = vmatprep.subr.bf16.mxu0 0
        %4421 = vmatpush1.bf16.msra.mxu0 0
        %4422 = vmatprep.subr.bf16.mxu0 0
        %4423 = vmatpush1.bf16.msra.mxu0 0
        %4424 = vmatprep.subr.bf16.mxu0 0
        %4425 = vmatpush1.bf16.msra.mxu0 0
        %4426 = vmatprep.subr.bf16.mxu0 0
        %4427 = vmatpush1.bf16.msra.mxu0 0
        %4428 = vmatprep.mubr.bf16.mxu0 0
        %4429 = vmatmul.mubr.bf16.gmra.mrb[0].mxu0 %v4159
        %v4430 = vpop.f32.mrb[0].mxu0
        %v4431 = vadd.f32 0.0, %v4430
        %v4432 = vpop.f32.mrb[0].mxu0
        %v4433 = vadd.f32 0.0, %v4432
        %v4434 = vpop.f32.mrb[0].mxu0
        %v4435 = vadd.f32 0.0, %v4434
        %v4436 = vpop.f32.mrb[0].mxu0
        %v4437 = vadd.f32 0.0, %v4436
        %4438 = vdwg.mxu0
        %v4471 = vunpack.c.l.b16 %v4019
        %v4472 = vunpack.c.h.b16 %v4019
        %v4473 = vunpack.c.l.b16 %v4020
        %v4474 = vunpack.c.h.b16 %v4020
        %v4475 = vunpack.c.l.b16 %v4021
        %v4476 = vunpack.c.h.b16 %v4021
        %v4477 = vunpack.c.l.b16 %v4022
        %v4478 = vunpack.c.h.b16 %v4022
        %v4479 = vunpack.c.l.b16 %v4023
        %v4480 = vunpack.c.h.b16 %v4023
        %v4481 = vunpack.c.l.b16 %v4024
        %v4482 = vunpack.c.h.b16 %v4024
        %v4483 = vunpack.c.l.b16 %v4025
        %v4484 = vunpack.c.h.b16 %v4025
        %v4485 = vunpack.c.l.b16 %v4026
        %v4486 = vunpack.c.h.b16 %v4026
        %v4487 = vunpack.c.l.b16 %v4027
        %v4488 = vunpack.c.h.b16 %v4027
        %v4489 = vunpack.c.l.b16 %v4028
        %v4490 = vunpack.c.h.b16 %v4028
        %v4491 = vunpack.c.l.b16 %v4029
        %v4492 = vunpack.c.h.b16 %v4029
        %v4493 = vunpack.c.l.b16 %v4030
        %v4494 = vunpack.c.h.b16 %v4030
        %v4495 = vunpack.c.l.b16 %v4031
        %v4496 = vunpack.c.h.b16 %v4031
        %v4497 = vunpack.c.l.b16 %v4032
        %v4498 = vunpack.c.h.b16 %v4032
        %v4499 = vunpack.c.l.b16 %v4033
        %v4500 = vunpack.c.h.b16 %v4033
        %v4501 = vunpack.c.l.b16 %v4034
        %v4502 = vunpack.c.h.b16 %v4034
        %v4503 = vunpack.c.l.b16 %v4035
        %v4504 = vunpack.c.h.b16 %v4035
        %v4505 = vunpack.c.l.b16 %v4036
        %v4506 = vunpack.c.h.b16 %v4036
        %v4507 = vunpack.c.l.b16 %v4037
        %v4508 = vunpack.c.h.b16 %v4037
        %v4509 = vunpack.c.l.b16 %v4038
        %v4510 = vunpack.c.h.b16 %v4038
        %v4511 = vunpack.c.l.b16 %v4039
        %v4512 = vunpack.c.h.b16 %v4039
        %v4513 = vunpack.c.l.b16 %v4040
        %v4514 = vunpack.c.h.b16 %v4040
        %v4515 = vunpack.c.l.b16 %v4041
        %v4516 = vunpack.c.h.b16 %v4041
        %v4517 = vunpack.c.l.b16 %v4042
        %v4518 = vunpack.c.h.b16 %v4042
        %v4519 = vunpack.c.l.b16 %v4043
        %v4520 = vunpack.c.h.b16 %v4043
        %v4521 = vunpack.c.l.b16 %v4044
        %v4522 = vunpack.c.h.b16 %v4044
        %v4523 = vunpack.c.l.b16 %v4045
        %v4524 = vunpack.c.h.b16 %v4045
        %v4525 = vunpack.c.l.b16 %v4046
        %v4526 = vunpack.c.h.b16 %v4046
        %v4527 = vunpack.c.l.b16 %v4047
        %v4528 = vunpack.c.h.b16 %v4047
        %v4529 = vunpack.c.l.b16 %v4048
        %v4530 = vunpack.c.h.b16 %v4048
        %v4531 = vunpack.c.l.b16 %v4049
        %v4532 = vunpack.c.h.b16 %v4049
        %v4533 = vunpack.c.l.b16 %v4050
        %v4534 = vunpack.c.h.b16 %v4050
        %v4535 = vpack.c.b16 %v4475, %v4471
        %v4536 = vpack.c.b16 %v4476, %v4472
        %v4537 = vpack.c.b16 %v4477, %v4473
        %v4538 = vpack.c.b16 %v4478, %v4474
        %v4539 = vpack.c.b16 %v4483, %v4479
        %v4540 = vpack.c.b16 %v4484, %v4480
        %v4541 = vpack.c.b16 %v4485, %v4481
        %v4542 = vpack.c.b16 %v4486, %v4482
        %v4543 = vpack.c.b16 %v4491, %v4487
        %v4544 = vpack.c.b16 %v4492, %v4488
        %v4545 = vpack.c.b16 %v4493, %v4489
        %v4546 = vpack.c.b16 %v4494, %v4490
        %v4547 = vpack.c.b16 %v4499, %v4495
        %v4548 = vpack.c.b16 %v4500, %v4496
        %v4549 = vpack.c.b16 %v4501, %v4497
        %v4550 = vpack.c.b16 %v4502, %v4498
        %v4551 = vpack.c.b16 %v4507, %v4503
        %v4552 = vpack.c.b16 %v4508, %v4504
        %v4553 = vpack.c.b16 %v4509, %v4505
        %v4554 = vpack.c.b16 %v4510, %v4506
        %v4555 = vpack.c.b16 %v4515, %v4511
        %v4556 = vpack.c.b16 %v4516, %v4512
        %v4557 = vpack.c.b16 %v4517, %v4513
        %v4558 = vpack.c.b16 %v4518, %v4514
        %v4559 = vpack.c.b16 %v4523, %v4519
        %v4560 = vpack.c.b16 %v4524, %v4520
        %v4561 = vpack.c.b16 %v4525, %v4521
        %v4562 = vpack.c.b16 %v4526, %v4522
        %v4563 = vpack.c.b16 %v4531, %v4527
        %v4564 = vpack.c.b16 %v4532, %v4528
        %v4565 = vpack.c.b16 %v4533, %v4529
        %v4566 = vpack.c.b16 %v4534, %v4530
        %4599 = vmatprep.subr.bf16.mxu0 %v4536
        %4600 = vmatpush1.bf16.msra.mxu0 %v4535
        %4601 = vmatprep.subr.bf16.mxu0 %v4540
        %4602 = vmatpush1.bf16.msra.mxu0 %v4539
        %4603 = vmatprep.subr.bf16.mxu0 %v4544
        %4604 = vmatpush1.bf16.msra.mxu0 %v4543
        %4605 = vmatprep.subr.bf16.mxu0 %v4548
        %4606 = vmatpush1.bf16.msra.mxu0 %v4547
        %4607 = vmatprep.subr.bf16.mxu0 %v4552
        %4608 = vmatpush1.bf16.msra.mxu0 %v4551
        %4609 = vmatprep.subr.bf16.mxu0 %v4556
        %4610 = vmatpush1.bf16.msra.mxu0 %v4555
        %4611 = vmatprep.subr.bf16.mxu0 %v4560
        %4612 = vmatpush1.bf16.msra.mxu0 %v4559
        %4613 = vmatprep.subr.bf16.mxu0 %v4564
        %4614 = vmatpush1.bf16.msra.mxu0 %v4563
        %4615 = vmatprep.subr.bf16.mxu0 0
        %4616 = vmatpush1.bf16.msra.mxu0 0
        %4617 = vmatprep.subr.bf16.mxu0 0
        %4618 = vmatpush1.bf16.msra.mxu0 0
        %4619 = vmatprep.subr.bf16.mxu0 0
        %4620 = vmatpush1.bf16.msra.mxu0 0
        %4621 = vmatprep.subr.bf16.mxu0 0
        %4622 = vmatpush1.bf16.msra.mxu0 0
        %4623 = vmatprep.subr.bf16.mxu0 0
        %4624 = vmatpush1.bf16.msra.mxu0 0
        %4625 = vmatprep.subr.bf16.mxu0 0
        %4626 = vmatpush1.bf16.msra.mxu0 0
        %4627 = vmatprep.subr.bf16.mxu0 0
        %4628 = vmatpush1.bf16.msra.mxu0 0
        %4629 = vmatprep.subr.bf16.mxu0 0
        %4630 = vmatpush1.bf16.msra.mxu0 0
        %4631 = vmatprep.mubr.bf16.mxu0 0
        %4632 = vmatmul.mubr.bf16.gmra.mrb[0].mxu0 %v4018
        %v4633 = vpop.f32.mrb[0].mxu0
        %v4634 = vadd.f32 %v4388, %v4633
        %v4635 = vpop.f32.mrb[0].mxu0
        %v4636 = vadd.f32 %v4390, %v4635
        %v4637 = vpop.f32.mrb[0].mxu0
        %v4638 = vadd.f32 %v4392, %v4637
        %v4639 = vpop.f32.mrb[0].mxu0
        %v4640 = vadd.f32 %v4394, %v4639
        %4641 = vdwg.mxu0
        %4642 = vmatprep.subr.bf16.mxu0 %v4538
        %4643 = vmatpush1.bf16.msra.mxu0 %v4537
        %4644 = vmatprep.subr.bf16.mxu0 %v4542
        %4645 = vmatpush1.bf16.msra.mxu0 %v4541
        %4646 = vmatprep.subr.bf16.mxu0 %v4546
        %4647 = vmatpush1.bf16.msra.mxu0 %v4545
        %4648 = vmatprep.subr.bf16.mxu0 %v4550
        %4649 = vmatpush1.bf16.msra.mxu0 %v4549
        %4650 = vmatprep.subr.bf16.mxu0 %v4554
        %4651 = vmatpush1.bf16.msra.mxu0 %v4553
        %4652 = vmatprep.subr.bf16.mxu0 %v4558
        %4653 = vmatpush1.bf16.msra.mxu0 %v4557
        %4654 = vmatprep.subr.bf16.mxu0 %v4562
        %4655 = vmatpush1.bf16.msra.mxu0 %v4561
        %4656 = vmatprep.subr.bf16.mxu0 %v4566
        %4657 = vmatpush1.bf16.msra.mxu0 %v4565
        %4658 = vmatprep.subr.bf16.mxu0 0
        %4659 = vmatpush1.bf16.msra.mxu0 0
        %4660 = vmatprep.subr.bf16.mxu0 0
        %4661 = vmatpush1.bf16.msra.mxu0 0
        %4662 = vmatprep.subr.bf16.mxu0 0
        %4663 = vmatpush1.bf16.msra.mxu0 0
        %4664 = vmatprep.subr.bf16.mxu0 0
        %4665 = vmatpush1.bf16.msra.mxu0 0
        %4666 = vmatprep.subr.bf16.mxu0 0
        %4667 = vmatpush1.bf16.msra.mxu0 0
        %4668 = vmatprep.subr.bf16.mxu0 0
        %4669 = vmatpush1.bf16.msra.mxu0 0
        %4670 = vmatprep.subr.bf16.mxu0 0
        %4671 = vmatpush1.bf16.msra.mxu0 0
        %4672 = vmatprep.subr.bf16.mxu0 0
        %4673 = vmatpush1.bf16.msra.mxu0 0
        %4674 = vmatprep.mubr.bf16.mxu0 0
        %4675 = vmatmul.mubr.bf16.gmra.mrb[0].mxu0 %v4018
        %v4676 = vpop.f32.mrb[0].mxu0
        %v4677 = vadd.f32 %v4431, %v4676
        %v4678 = vpop.f32.mrb[0].mxu0
        %v4679 = vadd.f32 %v4433, %v4678
        %v4680 = vpop.f32.mrb[0].mxu0
        %v4681 = vadd.f32 %v4435, %v4680
        %v4682 = vpop.f32.mrb[0].mxu0
        %v4683 = vadd.f32 %v4437, %v4682
        %4684 = vdwg.mxu0
        %4685 = vmatprep.subr.bf16.mxu0 0
        %4686 = vmatpush1.bf16.xpose.msra.mxu0 %v3897
        %4687 = vmatprep.subr.bf16.mxu0 0
        %4688 = vmatpush1.bf16.xpose.msra.mxu0 0
        %4689 = vmatprep.subr.bf16.mxu0 0
        %4690 = vmatpush1.bf16.xpose.msra.mxu0 0
        %4691 = vmatprep.subr.bf16.mxu0 0
        %4692 = vmatpush1.bf16.xpose.msra.mxu0 0
        %4693 = vmatprep.subr.bf16.mxu0 0
        %4694 = vmatpush1.bf16.xpose.msra.mxu0 0
        %4695 = vmatprep.subr.bf16.mxu0 0
        %4696 = vmatpush1.bf16.xpose.msra.mxu0 0
        %4697 = vmatprep.subr.bf16.mxu0 0
        %4698 = vmatpush1.bf16.xpose.msra.mxu0 0
        %4699 = vmatprep.subr.bf16.mxu0 0
        %4700 = vmatpush1.bf16.xpose.msra.mxu0 0
        %4701 = vmatprep.subr.bf16.mxu0 0
        %4702 = vmatpush1.bf16.xpose.msra.mxu0 0
        %4703 = vmatprep.subr.bf16.mxu0 0
        %4704 = vmatpush1.bf16.xpose.msra.mxu0 0
        %4705 = vmatprep.subr.bf16.mxu0 0
        %4706 = vmatpush1.bf16.xpose.msra.mxu0 0
        %4707 = vmatprep.subr.bf16.mxu0 0
        %4708 = vmatpush1.bf16.xpose.msra.mxu0 0
        %4709 = vmatprep.subr.bf16.mxu0 0
        %4710 = vmatpush1.bf16.xpose.msra.mxu0 0
        %4711 = vmatprep.subr.bf16.mxu0 0
        %4712 = vmatpush1.bf16.xpose.msra.mxu0 0
        %4713 = vmatprep.subr.bf16.mxu0 0
        %4714 = vmatpush1.bf16.xpose.msra.mxu0 0
        %4715 = vmatprep.subr.bf16.mxu0 0
        %4716 = vmatpush1.bf16.xpose.msra.mxu0 0
        %4717 = vmatprep.mubr.bf16.mxu0 0
        %4718 = vmatmul.mubr.bf16.gmra.mrb[0].mxu0 %v1971
        %v4719 = vpop.f32.mrb[0].mxu0
        %v4720 = vadd.f32 %v3907, %v4719
        %v4721 = vpop.f32.mrb[0].mxu0
        %v4722 = vpop.f32.mrb[0].mxu0
        %v4723 = vadd.f32 %v3907, %v4722
        %v4724 = vpop.f32.mrb[0].mxu0
        %4725 = vdwg.mxu0
        %v4726 = vsel %vm3950, %v4720, -inf
        %4727 = vmax.xlane.f32.xlu0 %v4726
        %v4728 = vpop.xlane.xlu0 %4727
        %v4729 = vsel %vm3950, %v4723, -inf
        %4730 = vmax.xlane.f32.xlu0 %v4729
        %v4731 = vpop.xlane.xlu0 %4730
        %v4732 = vsub.f32 %v4720, %v4728
        %v4733 = vsub.f32 %v4723, %v4731
        %v4734 = vmul.f32 %v4732, 1.442695
        %v4735 = vpow.pop %v4734
        %v4736 = vmul.f32 %v4733, 1.442695
        %v4737 = vpow.pop %v4736
        %v4738 = vsel %vm3950, %v4735, 0.0
        %4739 = vadd.xlane.f32.xlu0 %v4738
        %v4740 = vpop.xlane.xlu0 %4739
        %v4741 = vsel %vm3950, %v4737, 0.0
        %4742 = vadd.xlane.f32.xlu0 %v4741
        %v4743 = vpop.xlane.xlu0 %4742
        %v4744 = vrcp.pop %v4740
        %v4745 = vrcp.pop %v4743
        %v4746 = vpack.c.bf16 %v4737, %v4735
        %v4748 = vsel %vm3950, %v4746, 0
        %4750 = vmatprep.subr.bf16.mxu0 0
        %4751 = vmatpush1.bf16.msra.mxu0 %v3901
        %4752 = vmatprep.subr.bf16.mxu0 0
        %4753 = vmatpush1.bf16.msra.mxu0 0
        %4754 = vmatprep.subr.bf16.mxu0 0
        %4755 = vmatpush1.bf16.msra.mxu0 0
        %4756 = vmatprep.subr.bf16.mxu0 0
        %4757 = vmatpush1.bf16.msra.mxu0 0
        %4758 = vmatprep.subr.bf16.mxu0 0
        %4759 = vmatpush1.bf16.msra.mxu0 0
        %4760 = vmatprep.subr.bf16.mxu0 0
        %4761 = vmatpush1.bf16.msra.mxu0 0
        %4762 = vmatprep.subr.bf16.mxu0 0
        %4763 = vmatpush1.bf16.msra.mxu0 0
        %4764 = vmatprep.subr.bf16.mxu0 0
        %4765 = vmatpush1.bf16.msra.mxu0 0
        %4766 = vmatprep.subr.bf16.mxu0 0
        %4767 = vmatpush1.bf16.msra.mxu0 0
        %4768 = vmatprep.subr.bf16.mxu0 0
        %4769 = vmatpush1.bf16.msra.mxu0 0
        %4770 = vmatprep.subr.bf16.mxu0 0
        %4771 = vmatpush1.bf16.msra.mxu0 0
        %4772 = vmatprep.subr.bf16.mxu0 0
        %4773 = vmatpush1.bf16.msra.mxu0 0
        %4774 = vmatprep.subr.bf16.mxu0 0
        %4775 = vmatpush1.bf16.msra.mxu0 0
        %4776 = vmatprep.subr.bf16.mxu0 0
        %4777 = vmatpush1.bf16.msra.mxu0 0
        %4778 = vmatprep.subr.bf16.mxu0 0
        %4779 = vmatpush1.bf16.msra.mxu0 0
        %4780 = vmatprep.subr.bf16.mxu0 0
        %4781 = vmatpush1.bf16.msra.mxu0 0
        %4782 = vmatprep.mubr.bf16.mxu0 0
        %4783 = vmatmul.mubr.bf16.gmra.mrb[0].mxu0 %v4748
        %v4784 = vpop.f32.mrb[0].mxu0
        %v4785 = vadd.f32 0.0, %v4784
        %v4786 = vpop.f32.mrb[0].mxu0
        %v4787 = vpop.f32.mrb[0].mxu0
        %v4788 = vadd.f32 0.0, %v4787
        %v4789 = vpop.f32.mrb[0].mxu0
        %4790 = vdwg.mxu0
        %v4791 = vmul.f32 %v4785, %v4744
        %v4792 = vmul.f32 %v4788, %v4745
        %v4793 = vpack.c.bf16 %v4792, %v4791
        %s4794 = scalar_lea.vmem [#allocation13], 512
        %v4795 = vld [vmem:[%s4794] sm:$0xff]
        %v4796 = vld [vmem:[%s4794 + $0x8] sm:$0xff]
        %v4797 = vld [vmem:[%s4794 + $0x10] sm:$0xff]
        %v4798 = vld [vmem:[%s4794 + $0x18] sm:$0xff]
        %v4799 = vld [vmem:[%s4794 + $0x20] sm:$0xff]
        %v4800 = vld [vmem:[%s4794 + $0x28] sm:$0xff]
        %v4801 = vld [vmem:[%s4794 + $0x30] sm:$0xff]
        %v4802 = vld [vmem:[%s4794 + $0x38] sm:$0xff]
        %v4803 = vld [vmem:[%s4794 + $0x40] sm:$0xff]
        %v4804 = vld [vmem:[%s4794 + $0x48] sm:$0xff]
        %v4805 = vld [vmem:[%s4794 + $0x50] sm:$0xff]
        %v4806 = vld [vmem:[%s4794 + $0x58] sm:$0xff]
        %v4807 = vld [vmem:[%s4794 + $0x60] sm:$0xff]
        %v4808 = vld [vmem:[%s4794 + $0x68] sm:$0xff]
        %v4809 = vld [vmem:[%s4794 + $0x70] sm:$0xff]
        %v4810 = vld [vmem:[%s4794 + $0x78] sm:$0xff]
        %v4811 = vld [vmem:[%s4794 + $0x80] sm:$0xff]
        %v4812 = vld [vmem:[%s4794 + $0x88] sm:$0xff]
        %v4813 = vld [vmem:[%s4794 + $0x90] sm:$0xff]
        %v4814 = vld [vmem:[%s4794 + $0x98] sm:$0xff]
        %v4815 = vld [vmem:[%s4794 + $0xa0] sm:$0xff]
        %v4816 = vld [vmem:[%s4794 + $0xa8] sm:$0xff]
        %v4817 = vld [vmem:[%s4794 + $0xb0] sm:$0xff]
        %v4818 = vld [vmem:[%s4794 + $0xb8] sm:$0xff]
        %v4819 = vld [vmem:[%s4794 + $0xc0] sm:$0xff]
        %v4820 = vld [vmem:[%s4794 + $0xc8] sm:$0xff]
        %v4821 = vld [vmem:[%s4794 + $0xd0] sm:$0xff]
        %v4822 = vld [vmem:[%s4794 + $0xd8] sm:$0xff]
        %v4823 = vld [vmem:[%s4794 + $0xe0] sm:$0xff]
        %v4824 = vld [vmem:[%s4794 + $0xe8] sm:$0xff]
        %v4825 = vld [vmem:[%s4794 + $0xf0] sm:$0xff]
        %v4826 = vld [vmem:[%s4794 + $0xf8] sm:$0xff]
        %v4859 = vunpack.c.l.b16 %v4795
        %v4860 = vunpack.c.h.b16 %v4795
        %v4861 = vunpack.c.l.b16 %v4796
        %v4862 = vunpack.c.h.b16 %v4796
        %v4863 = vunpack.c.l.b16 %v4797
        %v4864 = vunpack.c.h.b16 %v4797
        %v4865 = vunpack.c.l.b16 %v4798
        %v4866 = vunpack.c.h.b16 %v4798
        %v4867 = vunpack.c.l.b16 %v4799
        %v4868 = vunpack.c.h.b16 %v4799
        %v4869 = vunpack.c.l.b16 %v4800
        %v4870 = vunpack.c.h.b16 %v4800
        %v4871 = vunpack.c.l.b16 %v4801
        %v4872 = vunpack.c.h.b16 %v4801
        %v4873 = vunpack.c.l.b16 %v4802
        %v4874 = vunpack.c.h.b16 %v4802
        %v4875 = vunpack.c.l.b16 %v4803
        %v4876 = vunpack.c.h.b16 %v4803
        %v4877 = vunpack.c.l.b16 %v4804
        %v4878 = vunpack.c.h.b16 %v4804
        %v4879 = vunpack.c.l.b16 %v4805
        %v4880 = vunpack.c.h.b16 %v4805
        %v4881 = vunpack.c.l.b16 %v4806
        %v4882 = vunpack.c.h.b16 %v4806
        %v4883 = vunpack.c.l.b16 %v4807
        %v4884 = vunpack.c.h.b16 %v4807
        %v4885 = vunpack.c.l.b16 %v4808
        %v4886 = vunpack.c.h.b16 %v4808
        %v4887 = vunpack.c.l.b16 %v4809
        %v4888 = vunpack.c.h.b16 %v4809
        %v4889 = vunpack.c.l.b16 %v4810
        %v4890 = vunpack.c.h.b16 %v4810
        %v4891 = vunpack.c.l.b16 %v4811
        %v4892 = vunpack.c.h.b16 %v4811
        %v4893 = vunpack.c.l.b16 %v4812
        %v4894 = vunpack.c.h.b16 %v4812
        %v4895 = vunpack.c.l.b16 %v4813
        %v4896 = vunpack.c.h.b16 %v4813
        %v4897 = vunpack.c.l.b16 %v4814
        %v4898 = vunpack.c.h.b16 %v4814
        %v4899 = vunpack.c.l.b16 %v4815
        %v4900 = vunpack.c.h.b16 %v4815
        %v4901 = vunpack.c.l.b16 %v4816
        %v4902 = vunpack.c.h.b16 %v4816
        %v4903 = vunpack.c.l.b16 %v4817
        %v4904 = vunpack.c.h.b16 %v4817
        %v4905 = vunpack.c.l.b16 %v4818
        %v4906 = vunpack.c.h.b16 %v4818
        %v4907 = vunpack.c.l.b16 %v4819
        %v4908 = vunpack.c.h.b16 %v4819
        %v4909 = vunpack.c.l.b16 %v4820
        %v4910 = vunpack.c.h.b16 %v4820
        %v4911 = vunpack.c.l.b16 %v4821
        %v4912 = vunpack.c.h.b16 %v4821
        %v4913 = vunpack.c.l.b16 %v4822
        %v4914 = vunpack.c.h.b16 %v4822
        %v4915 = vunpack.c.l.b16 %v4823
        %v4916 = vunpack.c.h.b16 %v4823
        %v4917 = vunpack.c.l.b16 %v4824
        %v4918 = vunpack.c.h.b16 %v4824
        %v4919 = vunpack.c.l.b16 %v4825
        %v4920 = vunpack.c.h.b16 %v4825
        %v4921 = vunpack.c.l.b16 %v4826
        %v4922 = vunpack.c.h.b16 %v4826
        %v4923 = vpack.c.b16 %v4863, %v4859
        %v4924 = vpack.c.b16 %v4864, %v4860
        %v4925 = vpack.c.b16 %v4865, %v4861
        %v4926 = vpack.c.b16 %v4866, %v4862
        %v4927 = vpack.c.b16 %v4871, %v4867
        %v4928 = vpack.c.b16 %v4872, %v4868
        %v4929 = vpack.c.b16 %v4873, %v4869
        %v4930 = vpack.c.b16 %v4874, %v4870
        %v4931 = vpack.c.b16 %v4879, %v4875
        %v4932 = vpack.c.b16 %v4880, %v4876
        %v4933 = vpack.c.b16 %v4881, %v4877
        %v4934 = vpack.c.b16 %v4882, %v4878
        %v4935 = vpack.c.b16 %v4887, %v4883
        %v4936 = vpack.c.b16 %v4888, %v4884
        %v4937 = vpack.c.b16 %v4889, %v4885
        %v4938 = vpack.c.b16 %v4890, %v4886
        %v4939 = vpack.c.b16 %v4895, %v4891
        %v4940 = vpack.c.b16 %v4896, %v4892
        %v4941 = vpack.c.b16 %v4897, %v4893
        %v4942 = vpack.c.b16 %v4898, %v4894
        %v4943 = vpack.c.b16 %v4903, %v4899
        %v4944 = vpack.c.b16 %v4904, %v4900
        %v4945 = vpack.c.b16 %v4905, %v4901
        %v4946 = vpack.c.b16 %v4906, %v4902
        %v4947 = vpack.c.b16 %v4911, %v4907
        %v4948 = vpack.c.b16 %v4912, %v4908
        %v4949 = vpack.c.b16 %v4913, %v4909
        %v4950 = vpack.c.b16 %v4914, %v4910
        %v4951 = vpack.c.b16 %v4919, %v4915
        %v4952 = vpack.c.b16 %v4920, %v4916
        %v4953 = vpack.c.b16 %v4921, %v4917
        %v4954 = vpack.c.b16 %v4922, %v4918
        %4987 = vmatprep.subr.bf16.mxu0 %v4924
        %4988 = vmatpush1.bf16.msra.mxu0 %v4923
        %4989 = vmatprep.subr.bf16.mxu0 %v4928
        %4990 = vmatpush1.bf16.msra.mxu0 %v4927
        %4991 = vmatprep.subr.bf16.mxu0 %v4932
        %4992 = vmatpush1.bf16.msra.mxu0 %v4931
        %4993 = vmatprep.subr.bf16.mxu0 %v4936
        %4994 = vmatpush1.bf16.msra.mxu0 %v4935
        %4995 = vmatprep.subr.bf16.mxu0 %v4940
        %4996 = vmatpush1.bf16.msra.mxu0 %v4939
        %4997 = vmatprep.subr.bf16.mxu0 %v4944
        %4998 = vmatpush1.bf16.msra.mxu0 %v4943
        %4999 = vmatprep.subr.bf16.mxu0 %v4948
        %5000 = vmatpush1.bf16.msra.mxu0 %v4947
        %5001 = vmatprep.subr.bf16.mxu0 %v4952
        %5002 = vmatpush1.bf16.msra.mxu0 %v4951
        %5003 = vmatprep.subr.bf16.mxu0 0
        %5004 = vmatpush1.bf16.msra.mxu0 0
        %5005 = vmatprep.subr.bf16.mxu0 0
        %5006 = vmatpush1.bf16.msra.mxu0 0
        %5007 = vmatprep.subr.bf16.mxu0 0
        %5008 = vmatpush1.bf16.msra.mxu0 0
        %5009 = vmatprep.subr.bf16.mxu0 0
        %5010 = vmatpush1.bf16.msra.mxu0 0
        %5011 = vmatprep.subr.bf16.mxu0 0
        %5012 = vmatpush1.bf16.msra.mxu0 0
        %5013 = vmatprep.subr.bf16.mxu0 0
        %5014 = vmatpush1.bf16.msra.mxu0 0
        %5015 = vmatprep.subr.bf16.mxu0 0
        %5016 = vmatpush1.bf16.msra.mxu0 0
        %5017 = vmatprep.subr.bf16.mxu0 0
        %5018 = vmatpush1.bf16.msra.mxu0 0
        %5019 = vmatprep.mubr.bf16.mxu0 0
        %5020 = vmatmul.mubr.bf16.gmra.mrb[0].mxu0 %v4793
        %v5021 = vpop.f32.mrb[0].mxu0
        %v5022 = vadd.f32 0.0, %v5021
        %v5023 = vpop.f32.mrb[0].mxu0
        %v5024 = vadd.f32 0.0, %v5023
        %v5025 = vpop.f32.mrb[0].mxu0
        %v5026 = vadd.f32 0.0, %v5025
        %v5027 = vpop.f32.mrb[0].mxu0
        %v5028 = vadd.f32 0.0, %v5027
        %5029 = vdwg.mxu0
        %5030 = vmatprep.subr.bf16.mxu0 %v4926
        %5031 = vmatpush1.bf16.msra.mxu0 %v4925
        %5032 = vmatprep.subr.bf16.mxu0 %v4930
        %5033 = vmatpush1.bf16.msra.mxu0 %v4929
        %5034 = vmatprep.subr.bf16.mxu0 %v4934
        %5035 = vmatpush1.bf16.msra.mxu0 %v4933
        %5036 = vmatprep.subr.bf16.mxu0 %v4938
        %5037 = vmatpush1.bf16.msra.mxu0 %v4937
        %5038 = vmatprep.subr.bf16.mxu0 %v4942
        %5039 = vmatpush1.bf16.msra.mxu0 %v4941
        %5040 = vmatprep.subr.bf16.mxu0 %v4946
        %5041 = vmatpush1.bf16.msra.mxu0 %v4945
        %5042 = vmatprep.subr.bf16.mxu0 %v4950
        %5043 = vmatpush1.bf16.msra.mxu0 %v4949
        %5044 = vmatprep.subr.bf16.mxu0 %v4954
        %5045 = vmatpush1.bf16.msra.mxu0 %v4953
        %5046 = vmatprep.subr.bf16.mxu0 0
        %5047 = vmatpush1.bf16.msra.mxu0 0
        %5048 = vmatprep.subr.bf16.mxu0 0
        %5049 = vmatpush1.bf16.msra.mxu0 0
        %5050 = vmatprep.subr.bf16.mxu0 0
        %5051 = vmatpush1.bf16.msra.mxu0 0
        %5052 = vmatprep.subr.bf16.mxu0 0
        %5053 = vmatpush1.bf16.msra.mxu0 0
        %5054 = vmatprep.subr.bf16.mxu0 0
        %5055 = vmatpush1.bf16.msra.mxu0 0
        %5056 = vmatprep.subr.bf16.mxu0 0
        %5057 = vmatpush1.bf16.msra.mxu0 0
        %5058 = vmatprep.subr.bf16.mxu0 0
        %5059 = vmatpush1.bf16.msra.mxu0 0
        %5060 = vmatprep.subr.bf16.mxu0 0
        %5061 = vmatpush1.bf16.msra.mxu0 0
        %5062 = vmatprep.mubr.bf16.mxu0 0
        %5063 = vmatmul.mubr.bf16.gmra.mrb[0].mxu0 %v4793
        %v5064 = vpop.f32.mrb[0].mxu0
        %v5065 = vadd.f32 0.0, %v5064
        %v5066 = vpop.f32.mrb[0].mxu0
        %v5067 = vadd.f32 0.0, %v5066
        %v5068 = vpop.f32.mrb[0].mxu0
        %v5069 = vadd.f32 0.0, %v5068
        %v5070 = vpop.f32.mrb[0].mxu0
        %v5071 = vadd.f32 0.0, %v5070
        %5072 = vdwg.mxu0
        %v5073 = vadd.f32 %v4634, %v5022
        %v5074 = vadd.f32 %v4636, %v5024
        %v5075 = vadd.f32 %v4677, %v5065
        %v5076 = vadd.f32 %v4679, %v5067
        %v5077 = vadd.f32 %v4638, %v5026
        %v5078 = vadd.f32 %v4640, %v5028
        %v5079 = vadd.f32 %v4681, %v5069
        %v5080 = vadd.f32 %v4683, %v5071
        %5081 = vmatprep.subr.bf16.mxu0 0
        %5082 = vmatpush1.bf16.xpose.msra.mxu0 %v3898
        %5083 = vmatprep.subr.bf16.mxu0 0
        %5084 = vmatpush1.bf16.xpose.msra.mxu0 0
        %5085 = vmatprep.subr.bf16.mxu0 0
        %5086 = vmatpush1.bf16.xpose.msra.mxu0 0
        %5087 = vmatprep.subr.bf16.mxu0 0
        %5088 = vmatpush1.bf16.xpose.msra.mxu0 0
        %5089 = vmatprep.subr.bf16.mxu0 0
        %5090 = vmatpush1.bf16.xpose.msra.mxu0 0
        %5091 = vmatprep.subr.bf16.mxu0 0
        %5092 = vmatpush1.bf16.xpose.msra.mxu0 0
        %5093 = vmatprep.subr.bf16.mxu0 0
        %5094 = vmatpush1.bf16.xpose.msra.mxu0 0
        %5095 = vmatprep.subr.bf16.mxu0 0
        %5096 = vmatpush1.bf16.xpose.msra.mxu0 0
        %5097 = vmatprep.subr.bf16.mxu0 0
        %5098 = vmatpush1.bf16.xpose.msra.mxu0 0
        %5099 = vmatprep.subr.bf16.mxu0 0
        %5100 = vmatpush1.bf16.xpose.msra.mxu0 0
        %5101 = vmatprep.subr.bf16.mxu0 0
        %5102 = vmatpush1.bf16.xpose.msra.mxu0 0
        %5103 = vmatprep.subr.bf16.mxu0 0
        %5104 = vmatpush1.bf16.xpose.msra.mxu0 0
        %5105 = vmatprep.subr.bf16.mxu0 0
        %5106 = vmatpush1.bf16.xpose.msra.mxu0 0
        %5107 = vmatprep.subr.bf16.mxu0 0
        %5108 = vmatpush1.bf16.xpose.msra.mxu0 0
        %5109 = vmatprep.subr.bf16.mxu0 0
        %5110 = vmatpush1.bf16.xpose.msra.mxu0 0
        %5111 = vmatprep.subr.bf16.mxu0 0
        %5112 = vmatpush1.bf16.xpose.msra.mxu0 0
        %5113 = vmatprep.mubr.bf16.mxu0 0
        %5114 = vmatmul.mubr.bf16.gmra.mrb[0].mxu0 %v1972
        %v5115 = vpop.f32.mrb[0].mxu0
        %v5116 = vadd.f32 %v3907, %v5115
        %v5117 = vpop.f32.mrb[0].mxu0
        %v5118 = vpop.f32.mrb[0].mxu0
        %v5119 = vadd.f32 %v3907, %v5118
        %v5120 = vpop.f32.mrb[0].mxu0
        %5121 = vdwg.mxu0
        %v5122 = vsel %vm3950, %v5116, -inf
        %5123 = vmax.xlane.f32.xlu0 %v5122
        %v5124 = vpop.xlane.xlu0 %5123
        %v5125 = vsel %vm3950, %v5119, -inf
        %5126 = vmax.xlane.f32.xlu0 %v5125
        %v5127 = vpop.xlane.xlu0 %5126
        %v5128 = vsub.f32 %v5116, %v5124
        %v5129 = vsub.f32 %v5119, %v5127
        %v5130 = vmul.f32 %v5128, 1.442695
        %v5131 = vpow.pop %v5130
        %v5132 = vmul.f32 %v5129, 1.442695
        %v5133 = vpow.pop %v5132
        %v5134 = vsel %vm3950, %v5131, 0.0
        %5135 = vadd.xlane.f32.xlu0 %v5134
        %v5136 = vpop.xlane.xlu0 %5135
        %v5137 = vsel %vm3950, %v5133, 0.0
        %5138 = vadd.xlane.f32.xlu0 %v5137
        %v5139 = vpop.xlane.xlu0 %5138
        %v5140 = vrcp.pop %v5136
        %v5141 = vrcp.pop %v5139
        %v5142 = vpack.c.bf16 %v5133, %v5131
        %v5144 = vsel %vm3950, %v5142, 0
        %5146 = vmatprep.subr.bf16.mxu0 0
        %5147 = vmatpush1.bf16.msra.mxu0 %v3902
        %5148 = vmatprep.subr.bf16.mxu0 0
        %5149 = vmatpush1.bf16.msra.mxu0 0
        %5150 = vmatprep.subr.bf16.mxu0 0
        %5151 = vmatpush1.bf16.msra.mxu0 0
        %5152 = vmatprep.subr.bf16.mxu0 0
        %5153 = vmatpush1.bf16.msra.mxu0 0
        %5154 = vmatprep.subr.bf16.mxu0 0
        %5155 = vmatpush1.bf16.msra.mxu0 0
        %5156 = vmatprep.subr.bf16.mxu0 0
        %5157 = vmatpush1.bf16.msra.mxu0 0
        %5158 = vmatprep.subr.bf16.mxu0 0
        %5159 = vmatpush1.bf16.msra.mxu0 0
        %5160 = vmatprep.subr.bf16.mxu0 0
        %5161 = vmatpush1.bf16.msra.mxu0 0
        %5162 = vmatprep.subr.bf16.mxu0 0
        %5163 = vmatpush1.bf16.msra.mxu0 0
        %5164 = vmatprep.subr.bf16.mxu0 0
        %5165 = vmatpush1.bf16.msra.mxu0 0
        %5166 = vmatprep.subr.bf16.mxu0 0
        %5167 = vmatpush1.bf16.msra.mxu0 0
        %5168 = vmatprep.subr.bf16.mxu0 0
        %5169 = vmatpush1.bf16.msra.mxu0 0
        %5170 = vmatprep.subr.bf16.mxu0 0
        %5171 = vmatpush1.bf16.msra.mxu0 0
        %5172 = vmatprep.subr.bf16.mxu0 0
        %5173 = vmatpush1.bf16.msra.mxu0 0
        %5174 = vmatprep.subr.bf16.mxu0 0
        %5175 = vmatpush1.bf16.msra.mxu0 0
        %5176 = vmatprep.subr.bf16.mxu0 0
        %5177 = vmatpush1.bf16.msra.mxu0 0
        %5178 = vmatprep.mubr.bf16.mxu0 0
        %5179 = vmatmul.mubr.bf16.gmra.mrb[0].mxu0 %v5144
        %v5180 = vpop.f32.mrb[0].mxu0
        %v5181 = vadd.f32 0.0, %v5180
        %v5182 = vpop.f32.mrb[0].mxu0
        %v5183 = vpop.f32.mrb[0].mxu0
        %v5184 = vadd.f32 0.0, %v5183
        %v5185 = vpop.f32.mrb[0].mxu0
        %5186 = vdwg.mxu0
        %v5187 = vmul.f32 %v5181, %v5140
        %v5188 = vmul.f32 %v5184, %v5141
        %v5189 = vpack.c.bf16 %v5188, %v5187
        %s5190 = scalar_lea.vmem [#allocation13], 768
        %v5191 = vld [vmem:[%s5190] sm:$0xff]
        %v5192 = vld [vmem:[%s5190 + $0x8] sm:$0xff]
        %v5193 = vld [vmem:[%s5190 + $0x10] sm:$0xff]
        %v5194 = vld [vmem:[%s5190 + $0x18] sm:$0xff]
        %v5195 = vld [vmem:[%s5190 + $0x20] sm:$0xff]
        %v5196 = vld [vmem:[%s5190 + $0x28] sm:$0xff]
        %v5197 = vld [vmem:[%s5190 + $0x30] sm:$0xff]
        %v5198 = vld [vmem:[%s5190 + $0x38] sm:$0xff]
        %v5199 = vld [vmem:[%s5190 + $0x40] sm:$0xff]
        %v5200 = vld [vmem:[%s5190 + $0x48] sm:$0xff]
        %v5201 = vld [vmem:[%s5190 + $0x50] sm:$0xff]
        %v5202 = vld [vmem:[%s5190 + $0x58] sm:$0xff]
        %v5203 = vld [vmem:[%s5190 + $0x60] sm:$0xff]
        %v5204 = vld [vmem:[%s5190 + $0x68] sm:$0xff]
        %v5205 = vld [vmem:[%s5190 + $0x70] sm:$0xff]
        %v5206 = vld [vmem:[%s5190 + $0x78] sm:$0xff]
        %v5207 = vld [vmem:[%s5190 + $0x80] sm:$0xff]
        %v5208 = vld [vmem:[%s5190 + $0x88] sm:$0xff]
        %v5209 = vld [vmem:[%s5190 + $0x90] sm:$0xff]
        %v5210 = vld [vmem:[%s5190 + $0x98] sm:$0xff]
        %v5211 = vld [vmem:[%s5190 + $0xa0] sm:$0xff]
        %v5212 = vld [vmem:[%s5190 + $0xa8] sm:$0xff]
        %v5213 = vld [vmem:[%s5190 + $0xb0] sm:$0xff]
        %v5214 = vld [vmem:[%s5190 + $0xb8] sm:$0xff]
        %v5215 = vld [vmem:[%s5190 + $0xc0] sm:$0xff]
        %v5216 = vld [vmem:[%s5190 + $0xc8] sm:$0xff]
        %v5217 = vld [vmem:[%s5190 + $0xd0] sm:$0xff]
        %v5218 = vld [vmem:[%s5190 + $0xd8] sm:$0xff]
        %v5219 = vld [vmem:[%s5190 + $0xe0] sm:$0xff]
        %v5220 = vld [vmem:[%s5190 + $0xe8] sm:$0xff]
        %v5221 = vld [vmem:[%s5190 + $0xf0] sm:$0xff]
        %v5222 = vld [vmem:[%s5190 + $0xf8] sm:$0xff]
        %v5255 = vunpack.c.l.b16 %v5191
        %v5256 = vunpack.c.h.b16 %v5191
        %v5257 = vunpack.c.l.b16 %v5192
        %v5258 = vunpack.c.h.b16 %v5192
        %v5259 = vunpack.c.l.b16 %v5193
        %v5260 = vunpack.c.h.b16 %v5193
        %v5261 = vunpack.c.l.b16 %v5194
        %v5262 = vunpack.c.h.b16 %v5194
        %v5263 = vunpack.c.l.b16 %v5195
        %v5264 = vunpack.c.h.b16 %v5195
        %v5265 = vunpack.c.l.b16 %v5196
        %v5266 = vunpack.c.h.b16 %v5196
        %v5267 = vunpack.c.l.b16 %v5197
        %v5268 = vunpack.c.h.b16 %v5197
        %v5269 = vunpack.c.l.b16 %v5198
        %v5270 = vunpack.c.h.b16 %v5198
        %v5271 = vunpack.c.l.b16 %v5199
        %v5272 = vunpack.c.h.b16 %v5199
        %v5273 = vunpack.c.l.b16 %v5200
        %v5274 = vunpack.c.h.b16 %v5200
        %v5275 = vunpack.c.l.b16 %v5201
        %v5276 = vunpack.c.h.b16 %v5201
        %v5277 = vunpack.c.l.b16 %v5202
        %v5278 = vunpack.c.h.b16 %v5202
        %v5279 = vunpack.c.l.b16 %v5203
        %v5280 = vunpack.c.h.b16 %v5203
        %v5281 = vunpack.c.l.b16 %v5204
        %v5282 = vunpack.c.h.b16 %v5204
        %v5283 = vunpack.c.l.b16 %v5205
        %v5284 = vunpack.c.h.b16 %v5205
        %v5285 = vunpack.c.l.b16 %v5206
        %v5286 = vunpack.c.h.b16 %v5206
        %v5287 = vunpack.c.l.b16 %v5207
        %v5288 = vunpack.c.h.b16 %v5207
        %v5289 = vunpack.c.l.b16 %v5208
        %v5290 = vunpack.c.h.b16 %v5208
        %v5291 = vunpack.c.l.b16 %v5209
        %v5292 = vunpack.c.h.b16 %v5209
        %v5293 = vunpack.c.l.b16 %v5210
        %v5294 = vunpack.c.h.b16 %v5210
        %v5295 = vunpack.c.l.b16 %v5211
        %v5296 = vunpack.c.h.b16 %v5211
        %v5297 = vunpack.c.l.b16 %v5212
        %v5298 = vunpack.c.h.b16 %v5212
        %v5299 = vunpack.c.l.b16 %v5213
        %v5300 = vunpack.c.h.b16 %v5213
        %v5301 = vunpack.c.l.b16 %v5214
        %v5302 = vunpack.c.h.b16 %v5214
        %v5303 = vunpack.c.l.b16 %v5215
        %v5304 = vunpack.c.h.b16 %v5215
        %v5305 = vunpack.c.l.b16 %v5216
        %v5306 = vunpack.c.h.b16 %v5216
        %v5307 = vunpack.c.l.b16 %v5217
        %v5308 = vunpack.c.h.b16 %v5217
        %v5309 = vunpack.c.l.b16 %v5218
        %v5310 = vunpack.c.h.b16 %v5218
        %v5311 = vunpack.c.l.b16 %v5219
        %v5312 = vunpack.c.h.b16 %v5219
        %v5313 = vunpack.c.l.b16 %v5220
        %v5314 = vunpack.c.h.b16 %v5220
        %v5315 = vunpack.c.l.b16 %v5221
        %v5316 = vunpack.c.h.b16 %v5221
        %v5317 = vunpack.c.l.b16 %v5222
        %v5318 = vunpack.c.h.b16 %v5222
        %v5319 = vpack.c.b16 %v5259, %v5255
        %v5320 = vpack.c.b16 %v5260, %v5256
        %v5321 = vpack.c.b16 %v5261, %v5257
        %v5322 = vpack.c.b16 %v5262, %v5258
        %v5323 = vpack.c.b16 %v5267, %v5263
        %v5324 = vpack.c.b16 %v5268, %v5264
        %v5325 = vpack.c.b16 %v5269, %v5265
        %v5326 = vpack.c.b16 %v5270, %v5266
        %v5327 = vpack.c.b16 %v5275, %v5271
        %v5328 = vpack.c.b16 %v5276, %v5272
        %v5329 = vpack.c.b16 %v5277, %v5273
        %v5330 = vpack.c.b16 %v5278, %v5274
        %v5331 = vpack.c.b16 %v5283, %v5279
        %v5332 = vpack.c.b16 %v5284, %v5280
        %v5333 = vpack.c.b16 %v5285, %v5281
        %v5334 = vpack.c.b16 %v5286, %v5282
        %v5335 = vpack.c.b16 %v5291, %v5287
        %v5336 = vpack.c.b16 %v5292, %v5288
        %v5337 = vpack.c.b16 %v5293, %v5289
        %v5338 = vpack.c.b16 %v5294, %v5290
        %v5339 = vpack.c.b16 %v5299, %v5295
        %v5340 = vpack.c.b16 %v5300, %v5296
        %v5341 = vpack.c.b16 %v5301, %v5297
        %v5342 = vpack.c.b16 %v5302, %v5298
        %v5343 = vpack.c.b16 %v5307, %v5303
        %v5344 = vpack.c.b16 %v5308, %v5304
        %v5345 = vpack.c.b16 %v5309, %v5305
        %v5346 = vpack.c.b16 %v5310, %v5306
        %v5347 = vpack.c.b16 %v5315, %v5311
        %v5348 = vpack.c.b16 %v5316, %v5312
        %v5349 = vpack.c.b16 %v5317, %v5313
        %v5350 = vpack.c.b16 %v5318, %v5314
        %5383 = vmatprep.subr.bf16.mxu0 %v5320
        %5384 = vmatpush1.bf16.msra.mxu0 %v5319
        %5385 = vmatprep.subr.bf16.mxu0 %v5324
        %5386 = vmatpush1.bf16.msra.mxu0 %v5323
        %5387 = vmatprep.subr.bf16.mxu0 %v5328
        %5388 = vmatpush1.bf16.msra.mxu0 %v5327
        %5389 = vmatprep.subr.bf16.mxu0 %v5332
        %5390 = vmatpush1.bf16.msra.mxu0 %v5331
        %5391 = vmatprep.subr.bf16.mxu0 %v5336
        %5392 = vmatpush1.bf16.msra.mxu0 %v5335
        %5393 = vmatprep.subr.bf16.mxu0 %v5340
        %5394 = vmatpush1.bf16.msra.mxu0 %v5339
        %5395 = vmatprep.subr.bf16.mxu0 %v5344
        %5396 = vmatpush1.bf16.msra.mxu0 %v5343
        %5397 = vmatprep.subr.bf16.mxu0 %v5348
        %5398 = vmatpush1.bf16.msra.mxu0 %v5347
        %5399 = vmatprep.subr.bf16.mxu0 0
        %5400 = vmatpush1.bf16.msra.mxu0 0
        %5401 = vmatprep.subr.bf16.mxu0 0
        %5402 = vmatpush1.bf16.msra.mxu0 0
        %5403 = vmatprep.subr.bf16.mxu0 0
        %5404 = vmatpush1.bf16.msra.mxu0 0
        %5405 = vmatprep.subr.bf16.mxu0 0
        %5406 = vmatpush1.bf16.msra.mxu0 0
        %5407 = vmatprep.subr.bf16.mxu0 0
        %5408 = vmatpush1.bf16.msra.mxu0 0
        %5409 = vmatprep.subr.bf16.mxu0 0
        %5410 = vmatpush1.bf16.msra.mxu0 0
        %5411 = vmatprep.subr.bf16.mxu0 0
        %5412 = vmatpush1.bf16.msra.mxu0 0
        %5413 = vmatprep.subr.bf16.mxu0 0
        %5414 = vmatpush1.bf16.msra.mxu0 0
        %5415 = vmatprep.mubr.bf16.mxu0 0
        %5416 = vmatmul.mubr.bf16.gmra.mrb[0].mxu0 %v5189
        %v5417 = vpop.f32.mrb[0].mxu0
        %v5418 = vadd.f32 0.0, %v5417
        %v5419 = vpop.f32.mrb[0].mxu0
        %v5420 = vadd.f32 0.0, %v5419
        %v5421 = vpop.f32.mrb[0].mxu0
        %v5422 = vadd.f32 0.0, %v5421
        %v5423 = vpop.f32.mrb[0].mxu0
        %v5424 = vadd.f32 0.0, %v5423
        %5425 = vdwg.mxu0
        %5426 = vmatprep.subr.bf16.mxu0 %v5322
        %5427 = vmatpush1.bf16.msra.mxu0 %v5321
        %5428 = vmatprep.subr.bf16.mxu0 %v5326
        %5429 = vmatpush1.bf16.msra.mxu0 %v5325
        %5430 = vmatprep.subr.bf16.mxu0 %v5330
        %5431 = vmatpush1.bf16.msra.mxu0 %v5329
        %5432 = vmatprep.subr.bf16.mxu0 %v5334
        %5433 = vmatpush1.bf16.msra.mxu0 %v5333
        %5434 = vmatprep.subr.bf16.mxu0 %v5338
        %5435 = vmatpush1.bf16.msra.mxu0 %v5337
        %5436 = vmatprep.subr.bf16.mxu0 %v5342
        %5437 = vmatpush1.bf16.msra.mxu0 %v5341
        %5438 = vmatprep.subr.bf16.mxu0 %v5346
        %5439 = vmatpush1.bf16.msra.mxu0 %v5345
        %5440 = vmatprep.subr.bf16.mxu0 %v5350
        %5441 = vmatpush1.bf16.msra.mxu0 %v5349
        %5442 = vmatprep.subr.bf16.mxu0 0
        %5443 = vmatpush1.bf16.msra.mxu0 0
        %5444 = vmatprep.subr.bf16.mxu0 0
        %5445 = vmatpush1.bf16.msra.mxu0 0
        %5446 = vmatprep.subr.bf16.mxu0 0
        %5447 = vmatpush1.bf16.msra.mxu0 0
        %5448 = vmatprep.subr.bf16.mxu0 0
        %5449 = vmatpush1.bf16.msra.mxu0 0
        %5450 = vmatprep.subr.bf16.mxu0 0
        %5451 = vmatpush1.bf16.msra.mxu0 0
        %5452 = vmatprep.subr.bf16.mxu0 0
        %5453 = vmatpush1.bf16.msra.mxu0 0
        %5454 = vmatprep.subr.bf16.mxu0 0
        %5455 = vmatpush1.bf16.msra.mxu0 0
        %5456 = vmatprep.subr.bf16.mxu0 0
        %5457 = vmatpush1.bf16.msra.mxu0 0
        %5458 = vmatprep.mubr.bf16.mxu0 0
        %5459 = vmatmul.mubr.bf16.gmra.mrb[0].mxu0 %v5189
        %v5460 = vpop.f32.mrb[0].mxu0
        %v5461 = vadd.f32 0.0, %v5460
        %v5462 = vpop.f32.mrb[0].mxu0
        %v5463 = vadd.f32 0.0, %v5462
        %v5464 = vpop.f32.mrb[0].mxu0
        %v5465 = vadd.f32 0.0, %v5464
        %v5466 = vpop.f32.mrb[0].mxu0
        %v5467 = vadd.f32 0.0, %v5466
        %5468 = vdwg.mxu0
        %v5469 = vadd.f32 %v5073, %v5418
        %v5470 = vadd.f32 %v5074, %v5420
        %v5471 = vadd.f32 %v5075, %v5461
        %v5472 = vadd.f32 %v5076, %v5463
        %v5473 = vadd.f32 %v5077, %v5422
        %v5474 = vadd.f32 %v5078, %v5424
        %v5475 = vadd.f32 %v5079, %v5465
        %v5476 = vadd.f32 %v5080, %v5467
        %v5477 = vadd.f32 %v799, %v5469
        %v5478 = vadd.f32 %v800, %v5470
        %v5479 = vadd.f32 %v801, %v5471
        %v5480 = vadd.f32 %v802, %v5472
        %v5481 = vadd.f32 %v803, %v5473
        %v5482 = vadd.f32 %v804, %v5474
        %v5483 = vadd.f32 %v805, %v5475
        %v5484 = vadd.f32 %v806, %v5476
        %v5485 = vld [vmem:[%s8] sm:$0xf]
        %v5487 = vlaneseq
        %v5488 = vshrl.u32 %v5487, 7
        %v5489 = vsub.s32 0, %v5488
        %v5490 = vrot.slane %v5485, %v5489
        %v5491 = vlaneseq
        %v5492 = vshrl.u32 %v5491, 7
        %v5493 = vsub.s32 1, %v5492
        %v5494 = vrot.slane %v5485, %v5493
        %v5495 = vlaneseq
        %v5496 = vshrl.u32 %v5495, 7
        %v5497 = vsub.s32 2, %v5496
        %v5498 = vrot.slane %v5485, %v5497
        %v5499 = vlaneseq
        %v5500 = vshrl.u32 %v5499, 7
        %v5501 = vsub.s32 3, %v5500
        %v5502 = vrot.slane %v5485, %v5501
        %v5507 = vadd.f32 %v5477, %v5490
        %v5508 = vadd.f32 %v5478, %v5494
        %v5509 = vadd.f32 %v5479, %v5498
        %v5510 = vadd.f32 %v5480, %v5502
        %v5511 = vadd.f32 %v5481, %v5490
        %v5512 = vadd.f32 %v5482, %v5494
        %v5513 = vadd.f32 %v5483, %v5498
        %v5514 = vadd.f32 %v5484, %v5502
        %v5515 = vld [vmem:[%s11] sm:$0xf]
        %v5516 = vld [vmem:[%s12] sm:$0xf]
        %v5517 = vadd.f32 %v5507, %v5508
        %v5518 = vadd.f32 %v5517, %v5509
        %v5519 = vadd.f32 %v5518, %v5510
        %5520 = vadd.xlane.f32.xlu0 %v5519
        %v5521 = vpop.xlane.xlu0 %5520
        %v5522 = vadd.f32 %v5511, %v5512
        %v5523 = vadd.f32 %v5522, %v5513
        %v5524 = vadd.f32 %v5523, %v5514
        %5525 = vadd.xlane.f32.xlu0 %v5524
        %v5526 = vpop.xlane.xlu0 %5525
        %v5527 = vmul.f32 %v5521, %v830
        %v5528 = vmul.f32 %v5526, %v830
        %v5529 = vsub.f32 %v5507, %v5527
        %v5530 = vsub.f32 %v5508, %v5527
        %v5531 = vsub.f32 %v5509, %v5527
        %v5532 = vsub.f32 %v5510, %v5527
        %v5533 = vsub.f32 %v5511, %v5528
        %v5534 = vsub.f32 %v5512, %v5528
        %v5535 = vsub.f32 %v5513, %v5528
        %v5536 = vsub.f32 %v5514, %v5528
        %v5537 = vmul.f32 %v5529, %v5529
        %v5538 = vmul.f32 %v5530, %v5530
        %v5539 = vmul.f32 %v5531, %v5531
        %v5540 = vmul.f32 %v5532, %v5532
        %v5541 = vmul.f32 %v5533, %v5533
        %v5542 = vmul.f32 %v5534, %v5534
        %v5543 = vmul.f32 %v5535, %v5535
        %v5544 = vmul.f32 %v5536, %v5536
        %v5545 = vadd.f32 %v5537, %v5538
        %v5546 = vadd.f32 %v5545, %v5539
        %v5547 = vadd.f32 %v5546, %v5540
        %5548 = vadd.xlane.f32.xlu0 %v5547
        %v5549 = vpop.xlane.xlu0 %5548
        %v5550 = vadd.f32 %v5541, %v5542
        %v5551 = vadd.f32 %v5550, %v5543
        %v5552 = vadd.f32 %v5551, %v5544
        %5553 = vadd.xlane.f32.xlu0 %v5552
        %v5554 = vpop.xlane.xlu0 %5553
        %v5555 = vmul.f32 %v5549, %v830
        %v5556 = vmul.f32 %v5554, %v830
        %v5558 = vlaneseq
        %v5559 = vshrl.u32 %v5558, 7
        %v5560 = vsub.s32 0, %v5559
        %v5561 = vrot.slane %v5515, %v5560
        %v5562 = vlaneseq
        %v5563 = vshrl.u32 %v5562, 7
        %v5564 = vsub.s32 1, %v5563
        %v5565 = vrot.slane %v5515, %v5564
        %v5566 = vlaneseq
        %v5567 = vshrl.u32 %v5566, 7
        %v5568 = vsub.s32 2, %v5567
        %v5569 = vrot.slane %v5515, %v5568
        %v5570 = vlaneseq
        %v5571 = vshrl.u32 %v5570, 7
        %v5572 = vsub.s32 3, %v5571
        %v5573 = vrot.slane %v5515, %v5572
        %v5578 = vmul.f32 %v5561, %v5529
        %v5579 = vmul.f32 %v5565, %v5530
        %v5580 = vmul.f32 %v5569, %v5531
        %v5581 = vmul.f32 %v5573, %v5532
        %v5582 = vmul.f32 %v5561, %v5533
        %v5583 = vmul.f32 %v5565, %v5534
        %v5584 = vmul.f32 %v5569, %v5535
        %v5585 = vmul.f32 %v5573, %v5536
        %v5586 = vadd.f32 %v5555, 1e-06
        %v5587 = vadd.f32 %v5556, 1e-06
        %v5588 = vrsqrt.pop %v5586
        %v5589 = vrsqrt.pop %v5587
        %v5590 = vmul.f32 %v5578, %v5588
        %v5591 = vmul.f32 %v5579, %v5588
        %v5592 = vmul.f32 %v5580, %v5588
        %v5593 = vmul.f32 %v5581, %v5588
        %v5594 = vmul.f32 %v5582, %v5589
        %v5595 = vmul.f32 %v5583, %v5589
        %v5596 = vmul.f32 %v5584, %v5589
        %v5597 = vmul.f32 %v5585, %v5589
        %v5599 = vlaneseq
        %v5600 = vshrl.u32 %v5599, 7
        %v5601 = vsub.s32 0, %v5600
        %v5602 = vrot.slane %v5516, %v5601
        %v5603 = vlaneseq
        %v5604 = vshrl.u32 %v5603, 7
        %v5605 = vsub.s32 1, %v5604
        %v5606 = vrot.slane %v5516, %v5605
        %v5607 = vlaneseq
        %v5608 = vshrl.u32 %v5607, 7
        %v5609 = vsub.s32 2, %v5608
        %v5610 = vrot.slane %v5516, %v5609
        %v5611 = vlaneseq
        %v5612 = vshrl.u32 %v5611, 7
        %v5613 = vsub.s32 3, %v5612
        %v5614 = vrot.slane %v5516, %v5613
        %v5619 = vadd.f32 %v5590, %v5602
        %v5620 = vadd.f32 %v5591, %v5606
        %v5621 = vadd.f32 %v5592, %v5610
        %v5622 = vadd.f32 %v5593, %v5614
        %v5623 = vadd.f32 %v5594, %v5602
        %v5624 = vadd.f32 %v5595, %v5606
        %v5625 = vadd.f32 %v5596, %v5610
        %v5626 = vadd.f32 %v5597, %v5614
        %v5627 = vpack.c.bf16 %v5623, %v5619
        %v5628 = vpack.c.bf16 %v5624, %v5620
        %v5629 = vpack.c.bf16 %v5625, %v5621
        %v5630 = vpack.c.bf16 %v5626, %v5622
        %v5631 = vld [vmem:[#allocation14] sm:$0xff]
        %v5632 = vld [vmem:[#allocation14 + $0x8] sm:$0xff]
        %v5633 = vld [vmem:[#allocation14 + $0x10] sm:$0xff]
        %v5634 = vld [vmem:[#allocation14 + $0x18] sm:$0xff]
        %v5635 = vld [vmem:[#allocation14 + $0x20] sm:$0xff]
        %v5636 = vld [vmem:[#allocation14 + $0x28] sm:$0xff]
        %v5637 = vld [vmem:[#allocation14 + $0x30] sm:$0xff]
        %v5638 = vld [vmem:[#allocation14 + $0x38] sm:$0xff]
        %v5639 = vld [vmem:[#allocation14 + $0x40] sm:$0xff]
        %v5640 = vld [vmem:[#allocation14 + $0x48] sm:$0xff]
        %v5641 = vld [vmem:[#allocation14 + $0x50] sm:$0xff]
        %v5642 = vld [vmem:[#allocation14 + $0x58] sm:$0xff]
        %v5643 = vld [vmem:[#allocation14 + $0x60] sm:$0xff]
        %v5644 = vld [vmem:[#allocation14 + $0x68] sm:$0xff]
        %v5645 = vld [vmem:[#allocation14 + $0x70] sm:$0xff]
        %v5646 = vld [vmem:[#allocation14 + $0x78] sm:$0xff]
        %v5647 = vld [vmem:[#allocation14 + $0x80] sm:$0xff]
        %v5648 = vld [vmem:[#allocation14 + $0x88] sm:$0xff]
        %v5649 = vld [vmem:[#allocation14 + $0x90] sm:$0xff]
        %v5650 = vld [vmem:[#allocation14 + $0x98] sm:$0xff]
        %v5651 = vld [vmem:[#allocation14 + $0xa0] sm:$0xff]
        %v5652 = vld [vmem:[#allocation14 + $0xa8] sm:$0xff]
        %v5653 = vld [vmem:[#allocation14 + $0xb0] sm:$0xff]
        %v5654 = vld [vmem:[#allocation14 + $0xb8] sm:$0xff]
        %v5655 = vld [vmem:[#allocation14 + $0xc0] sm:$0xff]
        %v5656 = vld [vmem:[#allocation14 + $0xc8] sm:$0xff]
        %v5657 = vld [vmem:[#allocation14 + $0xd0] sm:$0xff]
        %v5658 = vld [vmem:[#allocation14 + $0xd8] sm:$0xff]
        %v5659 = vld [vmem:[#allocation14 + $0xe0] sm:$0xff]
        %v5660 = vld [vmem:[#allocation14 + $0xe8] sm:$0xff]
        %v5661 = vld [vmem:[#allocation14 + $0xf0] sm:$0xff]
        %v5662 = vld [vmem:[#allocation14 + $0xf8] sm:$0xff]
        %v5663 = vld [vmem:[#allocation14 + $0x100] sm:$0xff]
        %v5664 = vld [vmem:[#allocation14 + $0x108] sm:$0xff]
        %v5665 = vld [vmem:[#allocation14 + $0x110] sm:$0xff]
        %v5666 = vld [vmem:[#allocation14 + $0x118] sm:$0xff]
        %v5667 = vld [vmem:[#allocation14 + $0x120] sm:$0xff]
        %v5668 = vld [vmem:[#allocation14 + $0x128] sm:$0xff]
        %v5669 = vld [vmem:[#allocation14 + $0x130] sm:$0xff]
        %v5670 = vld [vmem:[#allocation14 + $0x138] sm:$0xff]
        %v5671 = vld [vmem:[#allocation14 + $0x140] sm:$0xff]
        %v5672 = vld [vmem:[#allocation14 + $0x148] sm:$0xff]
        %v5673 = vld [vmem:[#allocation14 + $0x150] sm:$0xff]
        %v5674 = vld [vmem:[#allocation14 + $0x158] sm:$0xff]
        %v5675 = vld [vmem:[#allocation14 + $0x160] sm:$0xff]
        %v5676 = vld [vmem:[#allocation14 + $0x168] sm:$0xff]
        %v5677 = vld [vmem:[#allocation14 + $0x170] sm:$0xff]
        %v5678 = vld [vmem:[#allocation14 + $0x178] sm:$0xff]
        %v5679 = vld [vmem:[#allocation14 + $0x180] sm:$0xff]
        %v5680 = vld [vmem:[#allocation14 + $0x188] sm:$0xff]
        %v5681 = vld [vmem:[#allocation14 + $0x190] sm:$0xff]
        %v5682 = vld [vmem:[#allocation14 + $0x198] sm:$0xff]
        %v5683 = vld [vmem:[#allocation14 + $0x1a0] sm:$0xff]
        %v5684 = vld [vmem:[#allocation14 + $0x1a8] sm:$0xff]
        %v5685 = vld [vmem:[#allocation14 + $0x1b0] sm:$0xff]
        %v5686 = vld [vmem:[#allocation14 + $0x1b8] sm:$0xff]
        %v5687 = vld [vmem:[#allocation14 + $0x1c0] sm:$0xff]
        %v5688 = vld [vmem:[#allocation14 + $0x1c8] sm:$0xff]
        %v5689 = vld [vmem:[#allocation14 + $0x1d0] sm:$0xff]
        %v5690 = vld [vmem:[#allocation14 + $0x1d8] sm:$0xff]
        %v5691 = vld [vmem:[#allocation14 + $0x1e0] sm:$0xff]
        %v5692 = vld [vmem:[#allocation14 + $0x1e8] sm:$0xff]
        %v5693 = vld [vmem:[#allocation14 + $0x1f0] sm:$0xff]
        %v5694 = vld [vmem:[#allocation14 + $0x1f8] sm:$0xff]
        %v5695 = vld [vmem:[#allocation14 + $0x200] sm:$0xff]
        %v5696 = vld [vmem:[#allocation14 + $0x208] sm:$0xff]
        %v5697 = vld [vmem:[#allocation14 + $0x210] sm:$0xff]
        %v5698 = vld [vmem:[#allocation14 + $0x218] sm:$0xff]
        %v5699 = vld [vmem:[#allocation14 + $0x220] sm:$0xff]
        %v5700 = vld [vmem:[#allocation14 + $0x228] sm:$0xff]
        %v5701 = vld [vmem:[#allocation14 + $0x230] sm:$0xff]
        %v5702 = vld [vmem:[#allocation14 + $0x238] sm:$0xff]
        %v5703 = vld [vmem:[#allocation14 + $0x240] sm:$0xff]
        %v5704 = vld [vmem:[#allocation14 + $0x248] sm:$0xff]
        %v5705 = vld [vmem:[#allocation14 + $0x250] sm:$0xff]
        %v5706 = vld [vmem:[#allocation14 + $0x258] sm:$0xff]
        %v5707 = vld [vmem:[#allocation14 + $0x260] sm:$0xff]
        %v5708 = vld [vmem:[#allocation14 + $0x268] sm:$0xff]
        %v5709 = vld [vmem:[#allocation14 + $0x270] sm:$0xff]
        %v5710 = vld [vmem:[#allocation14 + $0x278] sm:$0xff]
        %v5711 = vld [vmem:[#allocation14 + $0x280] sm:$0xff]
        %v5712 = vld [vmem:[#allocation14 + $0x288] sm:$0xff]
        %v5713 = vld [vmem:[#allocation14 + $0x290] sm:$0xff]
        %v5714 = vld [vmem:[#allocation14 + $0x298] sm:$0xff]
        %v5715 = vld [vmem:[#allocation14 + $0x2a0] sm:$0xff]
        %v5716 = vld [vmem:[#allocation14 + $0x2a8] sm:$0xff]
        %v5717 = vld [vmem:[#allocation14 + $0x2b0] sm:$0xff]
        %v5718 = vld [vmem:[#allocation14 + $0x2b8] sm:$0xff]
        %v5719 = vld [vmem:[#allocation14 + $0x2c0] sm:$0xff]
        %v5720 = vld [vmem:[#allocation14 + $0x2c8] sm:$0xff]
        %v5721 = vld [vmem:[#allocation14 + $0x2d0] sm:$0xff]
        %v5722 = vld [vmem:[#allocation14 + $0x2d8] sm:$0xff]
        %v5723 = vld [vmem:[#allocation14 + $0x2e0] sm:$0xff]
        %v5724 = vld [vmem:[#allocation14 + $0x2e8] sm:$0xff]
        %v5725 = vld [vmem:[#allocation14 + $0x2f0] sm:$0xff]
        %v5726 = vld [vmem:[#allocation14 + $0x2f8] sm:$0xff]
        %v5727 = vld [vmem:[#allocation14 + $0x300] sm:$0xff]
        %v5728 = vld [vmem:[#allocation14 + $0x308] sm:$0xff]
        %v5729 = vld [vmem:[#allocation14 + $0x310] sm:$0xff]
        %v5730 = vld [vmem:[#allocation14 + $0x318] sm:$0xff]
        %v5731 = vld [vmem:[#allocation14 + $0x320] sm:$0xff]
        %v5732 = vld [vmem:[#allocation14 + $0x328] sm:$0xff]
        %v5733 = vld [vmem:[#allocation14 + $0x330] sm:$0xff]
        %v5734 = vld [vmem:[#allocation14 + $0x338] sm:$0xff]
        %v5735 = vld [vmem:[#allocation14 + $0x340] sm:$0xff]
        %v5736 = vld [vmem:[#allocation14 + $0x348] sm:$0xff]
        %v5737 = vld [vmem:[#allocation14 + $0x350] sm:$0xff]
        %v5738 = vld [vmem:[#allocation14 + $0x358] sm:$0xff]
        %v5739 = vld [vmem:[#allocation14 + $0x360] sm:$0xff]
        %v5740 = vld [vmem:[#allocation14 + $0x368] sm:$0xff]
        %v5741 = vld [vmem:[#allocation14 + $0x370] sm:$0xff]
        %v5742 = vld [vmem:[#allocation14 + $0x378] sm:$0xff]
        %v5743 = vld [vmem:[#allocation14 + $0x380] sm:$0xff]
        %v5744 = vld [vmem:[#allocation14 + $0x388] sm:$0xff]
        %v5745 = vld [vmem:[#allocation14 + $0x390] sm:$0xff]
        %v5746 = vld [vmem:[#allocation14 + $0x398] sm:$0xff]
        %v5747 = vld [vmem:[#allocation14 + $0x3a0] sm:$0xff]
        %v5748 = vld [vmem:[#allocation14 + $0x3a8] sm:$0xff]
        %v5749 = vld [vmem:[#allocation14 + $0x3b0] sm:$0xff]
        %v5750 = vld [vmem:[#allocation14 + $0x3b8] sm:$0xff]
        %v5751 = vld [vmem:[#allocation14 + $0x3c0] sm:$0xff]
        %v5752 = vld [vmem:[#allocation14 + $0x3c8] sm:$0xff]
        %v5753 = vld [vmem:[#allocation14 + $0x3d0] sm:$0xff]
        %v5754 = vld [vmem:[#allocation14 + $0x3d8] sm:$0xff]
        %v5755 = vld [vmem:[#allocation14 + $0x3e0] sm:$0xff]
        %v5756 = vld [vmem:[#allocation14 + $0x3e8] sm:$0xff]
        %v5757 = vld [vmem:[#allocation14 + $0x3f0] sm:$0xff]
        %v5758 = vld [vmem:[#allocation14 + $0x3f8] sm:$0xff]
        %v5759 = vld [vmem:[#allocation14 + $0x400] sm:$0xff]
        %v5760 = vld [vmem:[#allocation14 + $0x408] sm:$0xff]
        %v5761 = vld [vmem:[#allocation14 + $0x410] sm:$0xff]
        %v5762 = vld [vmem:[#allocation14 + $0x418] sm:$0xff]
        %v5763 = vld [vmem:[#allocation14 + $0x420] sm:$0xff]
        %v5764 = vld [vmem:[#allocation14 + $0x428] sm:$0xff]
        %v5765 = vld [vmem:[#allocation14 + $0x430] sm:$0xff]
        %v5766 = vld [vmem:[#allocation14 + $0x438] sm:$0xff]
        %v5767 = vld [vmem:[#allocation14 + $0x440] sm:$0xff]
        %v5768 = vld [vmem:[#allocation14 + $0x448] sm:$0xff]
        %v5769 = vld [vmem:[#allocation14 + $0x450] sm:$0xff]
        %v5770 = vld [vmem:[#allocation14 + $0x458] sm:$0xff]
        %v5771 = vld [vmem:[#allocation14 + $0x460] sm:$0xff]
        %v5772 = vld [vmem:[#allocation14 + $0x468] sm:$0xff]
        %v5773 = vld [vmem:[#allocation14 + $0x470] sm:$0xff]
        %v5774 = vld [vmem:[#allocation14 + $0x478] sm:$0xff]
        %v5775 = vld [vmem:[#allocation14 + $0x480] sm:$0xff]
        %v5776 = vld [vmem:[#allocation14 + $0x488] sm:$0xff]
        %v5777 = vld [vmem:[#allocation14 + $0x490] sm:$0xff]
        %v5778 = vld [vmem:[#allocation14 + $0x498] sm:$0xff]
        %v5779 = vld [vmem:[#allocation14 + $0x4a0] sm:$0xff]
        %v5780 = vld [vmem:[#allocation14 + $0x4a8] sm:$0xff]
        %v5781 = vld [vmem:[#allocation14 + $0x4b0] sm:$0xff]
        %v5782 = vld [vmem:[#allocation14 + $0x4b8] sm:$0xff]
        %v5783 = vld [vmem:[#allocation14 + $0x4c0] sm:$0xff]
        %v5784 = vld [vmem:[#allocation14 + $0x4c8] sm:$0xff]
        %v5785 = vld [vmem:[#allocation14 + $0x4d0] sm:$0xff]
        %v5786 = vld [vmem:[#allocation14 + $0x4d8] sm:$0xff]
        %v5787 = vld [vmem:[#allocation14 + $0x4e0] sm:$0xff]
        %v5788 = vld [vmem:[#allocation14 + $0x4e8] sm:$0xff]
        %v5789 = vld [vmem:[#allocation14 + $0x4f0] sm:$0xff]
        %v5790 = vld [vmem:[#allocation14 + $0x4f8] sm:$0xff]
        %v5791 = vld [vmem:[#allocation14 + $0x500] sm:$0xff]
        %v5792 = vld [vmem:[#allocation14 + $0x508] sm:$0xff]
        %v5793 = vld [vmem:[#allocation14 + $0x510] sm:$0xff]
        %v5794 = vld [vmem:[#allocation14 + $0x518] sm:$0xff]
        %v5795 = vld [vmem:[#allocation14 + $0x520] sm:$0xff]
        %v5796 = vld [vmem:[#allocation14 + $0x528] sm:$0xff]
        %v5797 = vld [vmem:[#allocation14 + $0x530] sm:$0xff]
        %v5798 = vld [vmem:[#allocation14 + $0x538] sm:$0xff]
        %v5799 = vld [vmem:[#allocation14 + $0x540] sm:$0xff]
        %v5800 = vld [vmem:[#allocation14 + $0x548] sm:$0xff]
        %v5801 = vld [vmem:[#allocation14 + $0x550] sm:$0xff]
        %v5802 = vld [vmem:[#allocation14 + $0x558] sm:$0xff]
        %v5803 = vld [vmem:[#allocation14 + $0x560] sm:$0xff]
        %v5804 = vld [vmem:[#allocation14 + $0x568] sm:$0xff]
        %v5805 = vld [vmem:[#allocation14 + $0x570] sm:$0xff]
        %v5806 = vld [vmem:[#allocation14 + $0x578] sm:$0xff]
        %v5807 = vld [vmem:[#allocation14 + $0x580] sm:$0xff]
        %v5808 = vld [vmem:[#allocation14 + $0x588] sm:$0xff]
        %v5809 = vld [vmem:[#allocation14 + $0x590] sm:$0xff]
        %v5810 = vld [vmem:[#allocation14 + $0x598] sm:$0xff]
        %v5811 = vld [vmem:[#allocation14 + $0x5a0] sm:$0xff]
        %v5812 = vld [vmem:[#allocation14 + $0x5a8] sm:$0xff]
        %v5813 = vld [vmem:[#allocation14 + $0x5b0] sm:$0xff]
        %v5814 = vld [vmem:[#allocation14 + $0x5b8] sm:$0xff]
        %v5815 = vld [vmem:[#allocation14 + $0x5c0] sm:$0xff]
        %v5816 = vld [vmem:[#allocation14 + $0x5c8] sm:$0xff]
        %v5817 = vld [vmem:[#allocation14 + $0x5d0] sm:$0xff]
        %v5818 = vld [vmem:[#allocation14 + $0x5d8] sm:$0xff]
        %v5819 = vld [vmem:[#allocation14 + $0x5e0] sm:$0xff]
        %v5820 = vld [vmem:[#allocation14 + $0x5e8] sm:$0xff]
        %v5821 = vld [vmem:[#allocation14 + $0x5f0] sm:$0xff]
        %v5822 = vld [vmem:[#allocation14 + $0x5f8] sm:$0xff]
        %v5823 = vld [vmem:[#allocation14 + $0x600] sm:$0xff]
        %v5824 = vld [vmem:[#allocation14 + $0x608] sm:$0xff]
        %v5825 = vld [vmem:[#allocation14 + $0x610] sm:$0xff]
        %v5826 = vld [vmem:[#allocation14 + $0x618] sm:$0xff]
        %v5827 = vld [vmem:[#allocation14 + $0x620] sm:$0xff]
        %v5828 = vld [vmem:[#allocation14 + $0x628] sm:$0xff]
        %v5829 = vld [vmem:[#allocation14 + $0x630] sm:$0xff]
        %v5830 = vld [vmem:[#allocation14 + $0x638] sm:$0xff]
        %v5831 = vld [vmem:[#allocation14 + $0x640] sm:$0xff]
        %v5832 = vld [vmem:[#allocation14 + $0x648] sm:$0xff]
        %v5833 = vld [vmem:[#allocation14 + $0x650] sm:$0xff]
        %v5834 = vld [vmem:[#allocation14 + $0x658] sm:$0xff]
        %v5835 = vld [vmem:[#allocation14 + $0x660] sm:$0xff]
        %v5836 = vld [vmem:[#allocation14 + $0x668] sm:$0xff]
        %v5837 = vld [vmem:[#allocation14 + $0x670] sm:$0xff]
        %v5838 = vld [vmem:[#allocation14 + $0x678] sm:$0xff]
        %v5839 = vld [vmem:[#allocation14 + $0x680] sm:$0xff]
        %v5840 = vld [vmem:[#allocation14 + $0x688] sm:$0xff]
        %v5841 = vld [vmem:[#allocation14 + $0x690] sm:$0xff]
        %v5842 = vld [vmem:[#allocation14 + $0x698] sm:$0xff]
        %v5843 = vld [vmem:[#allocation14 + $0x6a0] sm:$0xff]
        %v5844 = vld [vmem:[#allocation14 + $0x6a8] sm:$0xff]
        %v5845 = vld [vmem:[#allocation14 + $0x6b0] sm:$0xff]
        %v5846 = vld [vmem:[#allocation14 + $0x6b8] sm:$0xff]
        %v5847 = vld [vmem:[#allocation14 + $0x6c0] sm:$0xff]
        %v5848 = vld [vmem:[#allocation14 + $0x6c8] sm:$0xff]
        %v5849 = vld [vmem:[#allocation14 + $0x6d0] sm:$0xff]
        %v5850 = vld [vmem:[#allocation14 + $0x6d8] sm:$0xff]
        %v5851 = vld [vmem:[#allocation14 + $0x6e0] sm:$0xff]
        %v5852 = vld [vmem:[#allocation14 + $0x6e8] sm:$0xff]
        %v5853 = vld [vmem:[#allocation14 + $0x6f0] sm:$0xff]
        %v5854 = vld [vmem:[#allocation14 + $0x6f8] sm:$0xff]
        %v5855 = vld [vmem:[#allocation14 + $0x700] sm:$0xff]
        %v5856 = vld [vmem:[#allocation14 + $0x708] sm:$0xff]
        %v5857 = vld [vmem:[#allocation14 + $0x710] sm:$0xff]
        %v5858 = vld [vmem:[#allocation14 + $0x718] sm:$0xff]
        %v5859 = vld [vmem:[#allocation14 + $0x720] sm:$0xff]
        %v5860 = vld [vmem:[#allocation14 + $0x728] sm:$0xff]
        %v5861 = vld [vmem:[#allocation14 + $0x730] sm:$0xff]
        %v5862 = vld [vmem:[#allocation14 + $0x738] sm:$0xff]
        %v5863 = vld [vmem:[#allocation14 + $0x740] sm:$0xff]
        %v5864 = vld [vmem:[#allocation14 + $0x748] sm:$0xff]
        %v5865 = vld [vmem:[#allocation14 + $0x750] sm:$0xff]
        %v5866 = vld [vmem:[#allocation14 + $0x758] sm:$0xff]
        %v5867 = vld [vmem:[#allocation14 + $0x760] sm:$0xff]
        %v5868 = vld [vmem:[#allocation14 + $0x768] sm:$0xff]
        %v5869 = vld [vmem:[#allocation14 + $0x770] sm:$0xff]
        %v5870 = vld [vmem:[#allocation14 + $0x778] sm:$0xff]
        %v5871 = vld [vmem:[#allocation14 + $0x780] sm:$0xff]
        %v5872 = vld [vmem:[#allocation14 + $0x788] sm:$0xff]
        %v5873 = vld [vmem:[#allocation14 + $0x790] sm:$0xff]
        %v5874 = vld [vmem:[#allocation14 + $0x798] sm:$0xff]
        %v5875 = vld [vmem:[#allocation14 + $0x7a0] sm:$0xff]
        %v5876 = vld [vmem:[#allocation14 + $0x7a8] sm:$0xff]
        %v5877 = vld [vmem:[#allocation14 + $0x7b0] sm:$0xff]
        %v5878 = vld [vmem:[#allocation14 + $0x7b8] sm:$0xff]
        %v5879 = vld [vmem:[#allocation14 + $0x7c0] sm:$0xff]
        %v5880 = vld [vmem:[#allocation14 + $0x7c8] sm:$0xff]
        %v5881 = vld [vmem:[#allocation14 + $0x7d0] sm:$0xff]
        %v5882 = vld [vmem:[#allocation14 + $0x7d8] sm:$0xff]
        %v5883 = vld [vmem:[#allocation14 + $0x7e0] sm:$0xff]
        %v5884 = vld [vmem:[#allocation14 + $0x7e8] sm:$0xff]
        %v5885 = vld [vmem:[#allocation14 + $0x7f0] sm:$0xff]
        %v5886 = vld [vmem:[#allocation14 + $0x7f8] sm:$0xff]
        %v5887 = vld [vmem:[%s14] sm:$0xff]
        %v5889 = vlaneseq
        %v5890 = vshrl.u32 %v5889, 7
        %v5891 = vsub.s32 0, %v5890
        %v5892 = vrot.slane %v5887, %v5891
        %v5893 = vlaneseq
        %v5894 = vshrl.u32 %v5893, 7
        %v5895 = vsub.s32 1, %v5894
        %v5896 = vrot.slane %v5887, %v5895
        %v5897 = vlaneseq
        %v5898 = vshrl.u32 %v5897, 7
        %v5899 = vsub.s32 2, %v5898
        %v5900 = vrot.slane %v5887, %v5899
        %v5901 = vlaneseq
        %v5902 = vshrl.u32 %v5901, 7
        %v5903 = vsub.s32 3, %v5902
        %v5904 = vrot.slane %v5887, %v5903
        %v5905 = vlaneseq
        %v5906 = vshrl.u32 %v5905, 7
        %v5907 = vsub.s32 4, %v5906
        %v5908 = vrot.slane %v5887, %v5907
        %v5909 = vlaneseq
        %v5910 = vshrl.u32 %v5909, 7
        %v5911 = vsub.s32 5, %v5910
        %v5912 = vrot.slane %v5887, %v5911
        %v5913 = vlaneseq
        %v5914 = vshrl.u32 %v5913, 7
        %v5915 = vsub.s32 6, %v5914
        %v5916 = vrot.slane %v5887, %v5915
        %v5917 = vlaneseq
        %v5918 = vshrl.u32 %v5917, 7
        %v5919 = vsub.s32 7, %v5918
        %v5920 = vrot.slane %v5887, %v5919
        %v6185 = vunpack.c.l.b16 %v5631
        %v6186 = vunpack.c.h.b16 %v5631
        %v6187 = vunpack.c.l.b16 %v5632
        %v6188 = vunpack.c.h.b16 %v5632
        %v6189 = vunpack.c.l.b16 %v5633
        %v6190 = vunpack.c.h.b16 %v5633
        %v6191 = vunpack.c.l.b16 %v5634
        %v6192 = vunpack.c.h.b16 %v5634
        %v6193 = vunpack.c.l.b16 %v5635
        %v6194 = vunpack.c.h.b16 %v5635
        %v6195 = vunpack.c.l.b16 %v5636
        %v6196 = vunpack.c.h.b16 %v5636
        %v6197 = vunpack.c.l.b16 %v5637
        %v6198 = vunpack.c.h.b16 %v5637
        %v6199 = vunpack.c.l.b16 %v5638
        %v6200 = vunpack.c.h.b16 %v5638
        %v6201 = vunpack.c.l.b16 %v5639
        %v6202 = vunpack.c.h.b16 %v5639
        %v6203 = vunpack.c.l.b16 %v5640
        %v6204 = vunpack.c.h.b16 %v5640
        %v6205 = vunpack.c.l.b16 %v5641
        %v6206 = vunpack.c.h.b16 %v5641
        %v6207 = vunpack.c.l.b16 %v5642
        %v6208 = vunpack.c.h.b16 %v5642
        %v6209 = vunpack.c.l.b16 %v5643
        %v6210 = vunpack.c.h.b16 %v5643
        %v6211 = vunpack.c.l.b16 %v5644
        %v6212 = vunpack.c.h.b16 %v5644
        %v6213 = vunpack.c.l.b16 %v5645
        %v6214 = vunpack.c.h.b16 %v5645
        %v6215 = vunpack.c.l.b16 %v5646
        %v6216 = vunpack.c.h.b16 %v5646
        %v6217 = vunpack.c.l.b16 %v5647
        %v6218 = vunpack.c.h.b16 %v5647
        %v6219 = vunpack.c.l.b16 %v5648
        %v6220 = vunpack.c.h.b16 %v5648
        %v6221 = vunpack.c.l.b16 %v5649
        %v6222 = vunpack.c.h.b16 %v5649
        %v6223 = vunpack.c.l.b16 %v5650
        %v6224 = vunpack.c.h.b16 %v5650
        %v6225 = vunpack.c.l.b16 %v5651
        %v6226 = vunpack.c.h.b16 %v5651
        %v6227 = vunpack.c.l.b16 %v5652
        %v6228 = vunpack.c.h.b16 %v5652
        %v6229 = vunpack.c.l.b16 %v5653
        %v6230 = vunpack.c.h.b16 %v5653
        %v6231 = vunpack.c.l.b16 %v5654
        %v6232 = vunpack.c.h.b16 %v5654
        %v6233 = vunpack.c.l.b16 %v5655
        %v6234 = vunpack.c.h.b16 %v5655
        %v6235 = vunpack.c.l.b16 %v5656
        %v6236 = vunpack.c.h.b16 %v5656
        %v6237 = vunpack.c.l.b16 %v5657
        %v6238 = vunpack.c.h.b16 %v5657
        %v6239 = vunpack.c.l.b16 %v5658
        %v6240 = vunpack.c.h.b16 %v5658
        %v6241 = vunpack.c.l.b16 %v5659
        %v6242 = vunpack.c.h.b16 %v5659
        %v6243 = vunpack.c.l.b16 %v5660
        %v6244 = vunpack.c.h.b16 %v5660
        %v6245 = vunpack.c.l.b16 %v5661
        %v6246 = vunpack.c.h.b16 %v5661
        %v6247 = vunpack.c.l.b16 %v5662
        %v6248 = vunpack.c.h.b16 %v5662
        %v6249 = vunpack.c.l.b16 %v5663
        %v6250 = vunpack.c.h.b16 %v5663
        %v6251 = vunpack.c.l.b16 %v5664
        %v6252 = vunpack.c.h.b16 %v5664
        %v6253 = vunpack.c.l.b16 %v5665
        %v6254 = vunpack.c.h.b16 %v5665
        %v6255 = vunpack.c.l.b16 %v5666
        %v6256 = vunpack.c.h.b16 %v5666
        %v6257 = vunpack.c.l.b16 %v5667
        %v6258 = vunpack.c.h.b16 %v5667
        %v6259 = vunpack.c.l.b16 %v5668
        %v6260 = vunpack.c.h.b16 %v5668
        %v6261 = vunpack.c.l.b16 %v5669
        %v6262 = vunpack.c.h.b16 %v5669
        %v6263 = vunpack.c.l.b16 %v5670
        %v6264 = vunpack.c.h.b16 %v5670
        %v6265 = vunpack.c.l.b16 %v5671
        %v6266 = vunpack.c.h.b16 %v5671
        %v6267 = vunpack.c.l.b16 %v5672
        %v6268 = vunpack.c.h.b16 %v5672
        %v6269 = vunpack.c.l.b16 %v5673
        %v6270 = vunpack.c.h.b16 %v5673
        %v6271 = vunpack.c.l.b16 %v5674
        %v6272 = vunpack.c.h.b16 %v5674
        %v6273 = vunpack.c.l.b16 %v5675
        %v6274 = vunpack.c.h.b16 %v5675
        %v6275 = vunpack.c.l.b16 %v5676
        %v6276 = vunpack.c.h.b16 %v5676
        %v6277 = vunpack.c.l.b16 %v5677
        %v6278 = vunpack.c.h.b16 %v5677
        %v6279 = vunpack.c.l.b16 %v5678
        %v6280 = vunpack.c.h.b16 %v5678
        %v6281 = vunpack.c.l.b16 %v5679
        %v6282 = vunpack.c.h.b16 %v5679
        %v6283 = vunpack.c.l.b16 %v5680
        %v6284 = vunpack.c.h.b16 %v5680
        %v6285 = vunpack.c.l.b16 %v5681
        %v6286 = vunpack.c.h.b16 %v5681
        %v6287 = vunpack.c.l.b16 %v5682
        %v6288 = vunpack.c.h.b16 %v5682
        %v6289 = vunpack.c.l.b16 %v5683
        %v6290 = vunpack.c.h.b16 %v5683
        %v6291 = vunpack.c.l.b16 %v5684
        %v6292 = vunpack.c.h.b16 %v5684
        %v6293 = vunpack.c.l.b16 %v5685
        %v6294 = vunpack.c.h.b16 %v5685
        %v6295 = vunpack.c.l.b16 %v5686
        %v6296 = vunpack.c.h.b16 %v5686
        %v6297 = vunpack.c.l.b16 %v5687
        %v6298 = vunpack.c.h.b16 %v5687
        %v6299 = vunpack.c.l.b16 %v5688
        %v6300 = vunpack.c.h.b16 %v5688
        %v6301 = vunpack.c.l.b16 %v5689
        %v6302 = vunpack.c.h.b16 %v5689
        %v6303 = vunpack.c.l.b16 %v5690
        %v6304 = vunpack.c.h.b16 %v5690
        %v6305 = vunpack.c.l.b16 %v5691
        %v6306 = vunpack.c.h.b16 %v5691
        %v6307 = vunpack.c.l.b16 %v5692
        %v6308 = vunpack.c.h.b16 %v5692
        %v6309 = vunpack.c.l.b16 %v5693
        %v6310 = vunpack.c.h.b16 %v5693
        %v6311 = vunpack.c.l.b16 %v5694
        %v6312 = vunpack.c.h.b16 %v5694
        %v6313 = vunpack.c.l.b16 %v5695
        %v6314 = vunpack.c.h.b16 %v5695
        %v6315 = vunpack.c.l.b16 %v5696
        %v6316 = vunpack.c.h.b16 %v5696
        %v6317 = vunpack.c.l.b16 %v5697
        %v6318 = vunpack.c.h.b16 %v5697
        %v6319 = vunpack.c.l.b16 %v5698
        %v6320 = vunpack.c.h.b16 %v5698
        %v6321 = vunpack.c.l.b16 %v5699
        %v6322 = vunpack.c.h.b16 %v5699
        %v6323 = vunpack.c.l.b16 %v5700
        %v6324 = vunpack.c.h.b16 %v5700
        %v6325 = vunpack.c.l.b16 %v5701
        %v6326 = vunpack.c.h.b16 %v5701
        %v6327 = vunpack.c.l.b16 %v5702
        %v6328 = vunpack.c.h.b16 %v5702
        %v6329 = vunpack.c.l.b16 %v5703
        %v6330 = vunpack.c.h.b16 %v5703
        %v6331 = vunpack.c.l.b16 %v5704
        %v6332 = vunpack.c.h.b16 %v5704
        %v6333 = vunpack.c.l.b16 %v5705
        %v6334 = vunpack.c.h.b16 %v5705
        %v6335 = vunpack.c.l.b16 %v5706
        %v6336 = vunpack.c.h.b16 %v5706
        %v6337 = vunpack.c.l.b16 %v5707
        %v6338 = vunpack.c.h.b16 %v5707
        %v6339 = vunpack.c.l.b16 %v5708
        %v6340 = vunpack.c.h.b16 %v5708
        %v6341 = vunpack.c.l.b16 %v5709
        %v6342 = vunpack.c.h.b16 %v5709
        %v6343 = vunpack.c.l.b16 %v5710
        %v6344 = vunpack.c.h.b16 %v5710
        %v6345 = vunpack.c.l.b16 %v5711
        %v6346 = vunpack.c.h.b16 %v5711
        %v6347 = vunpack.c.l.b16 %v5712
        %v6348 = vunpack.c.h.b16 %v5712
        %v6349 = vunpack.c.l.b16 %v5713
        %v6350 = vunpack.c.h.b16 %v5713
        %v6351 = vunpack.c.l.b16 %v5714
        %v6352 = vunpack.c.h.b16 %v5714
        %v6353 = vunpack.c.l.b16 %v5715
        %v6354 = vunpack.c.h.b16 %v5715
        %v6355 = vunpack.c.l.b16 %v5716
        %v6356 = vunpack.c.h.b16 %v5716
        %v6357 = vunpack.c.l.b16 %v5717
        %v6358 = vunpack.c.h.b16 %v5717
        %v6359 = vunpack.c.l.b16 %v5718
        %v6360 = vunpack.c.h.b16 %v5718
        %v6361 = vunpack.c.l.b16 %v5719
        %v6362 = vunpack.c.h.b16 %v5719
        %v6363 = vunpack.c.l.b16 %v5720
        %v6364 = vunpack.c.h.b16 %v5720
        %v6365 = vunpack.c.l.b16 %v5721
        %v6366 = vunpack.c.h.b16 %v5721
        %v6367 = vunpack.c.l.b16 %v5722
        %v6368 = vunpack.c.h.b16 %v5722
        %v6369 = vunpack.c.l.b16 %v5723
        %v6370 = vunpack.c.h.b16 %v5723
        %v6371 = vunpack.c.l.b16 %v5724
        %v6372 = vunpack.c.h.b16 %v5724
        %v6373 = vunpack.c.l.b16 %v5725
        %v6374 = vunpack.c.h.b16 %v5725
        %v6375 = vunpack.c.l.b16 %v5726
        %v6376 = vunpack.c.h.b16 %v5726
        %v6377 = vunpack.c.l.b16 %v5727
        %v6378 = vunpack.c.h.b16 %v5727
        %v6379 = vunpack.c.l.b16 %v5728
        %v6380 = vunpack.c.h.b16 %v5728
        %v6381 = vunpack.c.l.b16 %v5729
        %v6382 = vunpack.c.h.b16 %v5729
        %v6383 = vunpack.c.l.b16 %v5730
        %v6384 = vunpack.c.h.b16 %v5730
        %v6385 = vunpack.c.l.b16 %v5731
        %v6386 = vunpack.c.h.b16 %v5731
        %v6387 = vunpack.c.l.b16 %v5732
        %v6388 = vunpack.c.h.b16 %v5732
        %v6389 = vunpack.c.l.b16 %v5733
        %v6390 = vunpack.c.h.b16 %v5733
        %v6391 = vunpack.c.l.b16 %v5734
        %v6392 = vunpack.c.h.b16 %v5734
        %v6393 = vunpack.c.l.b16 %v5735
        %v6394 = vunpack.c.h.b16 %v5735
        %v6395 = vunpack.c.l.b16 %v5736
        %v6396 = vunpack.c.h.b16 %v5736
        %v6397 = vunpack.c.l.b16 %v5737
        %v6398 = vunpack.c.h.b16 %v5737
        %v6399 = vunpack.c.l.b16 %v5738
        %v6400 = vunpack.c.h.b16 %v5738
        %v6401 = vunpack.c.l.b16 %v5739
        %v6402 = vunpack.c.h.b16 %v5739
        %v6403 = vunpack.c.l.b16 %v5740
        %v6404 = vunpack.c.h.b16 %v5740
        %v6405 = vunpack.c.l.b16 %v5741
        %v6406 = vunpack.c.h.b16 %v5741
        %v6407 = vunpack.c.l.b16 %v5742
        %v6408 = vunpack.c.h.b16 %v5742
        %v6409 = vunpack.c.l.b16 %v5743
        %v6410 = vunpack.c.h.b16 %v5743
        %v6411 = vunpack.c.l.b16 %v5744
        %v6412 = vunpack.c.h.b16 %v5744
        %v6413 = vunpack.c.l.b16 %v5745
        %v6414 = vunpack.c.h.b16 %v5745
        %v6415 = vunpack.c.l.b16 %v5746
        %v6416 = vunpack.c.h.b16 %v5746
        %v6417 = vunpack.c.l.b16 %v5747
        %v6418 = vunpack.c.h.b16 %v5747
        %v6419 = vunpack.c.l.b16 %v5748
        %v6420 = vunpack.c.h.b16 %v5748
        %v6421 = vunpack.c.l.b16 %v5749
        %v6422 = vunpack.c.h.b16 %v5749
        %v6423 = vunpack.c.l.b16 %v5750
        %v6424 = vunpack.c.h.b16 %v5750
        %v6425 = vunpack.c.l.b16 %v5751
        %v6426 = vunpack.c.h.b16 %v5751
        %v6427 = vunpack.c.l.b16 %v5752
        %v6428 = vunpack.c.h.b16 %v5752
        %v6429 = vunpack.c.l.b16 %v5753
        %v6430 = vunpack.c.h.b16 %v5753
        %v6431 = vunpack.c.l.b16 %v5754
        %v6432 = vunpack.c.h.b16 %v5754
        %v6433 = vunpack.c.l.b16 %v5755
        %v6434 = vunpack.c.h.b16 %v5755
        %v6435 = vunpack.c.l.b16 %v5756
        %v6436 = vunpack.c.h.b16 %v5756
        %v6437 = vunpack.c.l.b16 %v5757
        %v6438 = vunpack.c.h.b16 %v5757
        %v6439 = vunpack.c.l.b16 %v5758
        %v6440 = vunpack.c.h.b16 %v5758
        %v6441 = vunpack.c.l.b16 %v5759
        %v6442 = vunpack.c.h.b16 %v5759
        %v6443 = vunpack.c.l.b16 %v5760
        %v6444 = vunpack.c.h.b16 %v5760
        %v6445 = vunpack.c.l.b16 %v5761
        %v6446 = vunpack.c.h.b16 %v5761
        %v6447 = vunpack.c.l.b16 %v5762
        %v6448 = vunpack.c.h.b16 %v5762
        %v6449 = vunpack.c.l.b16 %v5763
        %v6450 = vunpack.c.h.b16 %v5763
        %v6451 = vunpack.c.l.b16 %v5764
        %v6452 = vunpack.c.h.b16 %v5764
        %v6453 = vunpack.c.l.b16 %v5765
        %v6454 = vunpack.c.h.b16 %v5765
        %v6455 = vunpack.c.l.b16 %v5766
        %v6456 = vunpack.c.h.b16 %v5766
        %v6457 = vunpack.c.l.b16 %v5767
        %v6458 = vunpack.c.h.b16 %v5767
        %v6459 = vunpack.c.l.b16 %v5768
        %v6460 = vunpack.c.h.b16 %v5768
        %v6461 = vunpack.c.l.b16 %v5769
        %v6462 = vunpack.c.h.b16 %v5769
        %v6463 = vunpack.c.l.b16 %v5770
        %v6464 = vunpack.c.h.b16 %v5770
        %v6465 = vunpack.c.l.b16 %v5771
        %v6466 = vunpack.c.h.b16 %v5771
        %v6467 = vunpack.c.l.b16 %v5772
        %v6468 = vunpack.c.h.b16 %v5772
        %v6469 = vunpack.c.l.b16 %v5773
        %v6470 = vunpack.c.h.b16 %v5773
        %v6471 = vunpack.c.l.b16 %v5774
        %v6472 = vunpack.c.h.b16 %v5774
        %v6473 = vunpack.c.l.b16 %v5775
        %v6474 = vunpack.c.h.b16 %v5775
        %v6475 = vunpack.c.l.b16 %v5776
        %v6476 = vunpack.c.h.b16 %v5776
        %v6477 = vunpack.c.l.b16 %v5777
        %v6478 = vunpack.c.h.b16 %v5777
        %v6479 = vunpack.c.l.b16 %v5778
        %v6480 = vunpack.c.h.b16 %v5778
        %v6481 = vunpack.c.l.b16 %v5779
        %v6482 = vunpack.c.h.b16 %v5779
        %v6483 = vunpack.c.l.b16 %v5780
        %v6484 = vunpack.c.h.b16 %v5780
        %v6485 = vunpack.c.l.b16 %v5781
        %v6486 = vunpack.c.h.b16 %v5781
        %v6487 = vunpack.c.l.b16 %v5782
        %v6488 = vunpack.c.h.b16 %v5782
        %v6489 = vunpack.c.l.b16 %v5783
        %v6490 = vunpack.c.h.b16 %v5783
        %v6491 = vunpack.c.l.b16 %v5784
        %v6492 = vunpack.c.h.b16 %v5784
        %v6493 = vunpack.c.l.b16 %v5785
        %v6494 = vunpack.c.h.b16 %v5785
        %v6495 = vunpack.c.l.b16 %v5786
        %v6496 = vunpack.c.h.b16 %v5786
        %v6497 = vunpack.c.l.b16 %v5787
        %v6498 = vunpack.c.h.b16 %v5787
        %v6499 = vunpack.c.l.b16 %v5788
        %v6500 = vunpack.c.h.b16 %v5788
        %v6501 = vunpack.c.l.b16 %v5789
        %v6502 = vunpack.c.h.b16 %v5789
        %v6503 = vunpack.c.l.b16 %v5790
        %v6504 = vunpack.c.h.b16 %v5790
        %v6505 = vunpack.c.l.b16 %v5791
        %v6506 = vunpack.c.h.b16 %v5791
        %v6507 = vunpack.c.l.b16 %v5792
        %v6508 = vunpack.c.h.b16 %v5792
        %v6509 = vunpack.c.l.b16 %v5793
        %v6510 = vunpack.c.h.b16 %v5793
        %v6511 = vunpack.c.l.b16 %v5794
        %v6512 = vunpack.c.h.b16 %v5794
        %v6513 = vunpack.c.l.b16 %v5795
        %v6514 = vunpack.c.h.b16 %v5795
        %v6515 = vunpack.c.l.b16 %v5796
        %v6516 = vunpack.c.h.b16 %v5796
        %v6517 = vunpack.c.l.b16 %v5797
        %v6518 = vunpack.c.h.b16 %v5797
        %v6519 = vunpack.c.l.b16 %v5798
        %v6520 = vunpack.c.h.b16 %v5798
        %v6521 = vunpack.c.l.b16 %v5799
        %v6522 = vunpack.c.h.b16 %v5799
        %v6523 = vunpack.c.l.b16 %v5800
        %v6524 = vunpack.c.h.b16 %v5800
        %v6525 = vunpack.c.l.b16 %v5801
        %v6526 = vunpack.c.h.b16 %v5801
        %v6527 = vunpack.c.l.b16 %v5802
        %v6528 = vunpack.c.h.b16 %v5802
        %v6529 = vunpack.c.l.b16 %v5803
        %v6530 = vunpack.c.h.b16 %v5803
        %v6531 = vunpack.c.l.b16 %v5804
        %v6532 = vunpack.c.h.b16 %v5804
        %v6533 = vunpack.c.l.b16 %v5805
        %v6534 = vunpack.c.h.b16 %v5805
        %v6535 = vunpack.c.l.b16 %v5806
        %v6536 = vunpack.c.h.b16 %v5806
        %v6537 = vunpack.c.l.b16 %v5807
        %v6538 = vunpack.c.h.b16 %v5807
        %v6539 = vunpack.c.l.b16 %v5808
        %v6540 = vunpack.c.h.b16 %v5808
        %v6541 = vunpack.c.l.b16 %v5809
        %v6542 = vunpack.c.h.b16 %v5809
        %v6543 = vunpack.c.l.b16 %v5810
        %v6544 = vunpack.c.h.b16 %v5810
        %v6545 = vunpack.c.l.b16 %v5811
        %v6546 = vunpack.c.h.b16 %v5811
        %v6547 = vunpack.c.l.b16 %v5812
        %v6548 = vunpack.c.h.b16 %v5812
        %v6549 = vunpack.c.l.b16 %v5813
        %v6550 = vunpack.c.h.b16 %v5813
        %v6551 = vunpack.c.l.b16 %v5814
        %v6552 = vunpack.c.h.b16 %v5814
        %v6553 = vunpack.c.l.b16 %v5815
        %v6554 = vunpack.c.h.b16 %v5815
        %v6555 = vunpack.c.l.b16 %v5816
        %v6556 = vunpack.c.h.b16 %v5816
        %v6557 = vunpack.c.l.b16 %v5817
        %v6558 = vunpack.c.h.b16 %v5817
        %v6559 = vunpack.c.l.b16 %v5818
        %v6560 = vunpack.c.h.b16 %v5818
        %v6561 = vunpack.c.l.b16 %v5819
        %v6562 = vunpack.c.h.b16 %v5819
        %v6563 = vunpack.c.l.b16 %v5820
        %v6564 = vunpack.c.h.b16 %v5820
        %v6565 = vunpack.c.l.b16 %v5821
        %v6566 = vunpack.c.h.b16 %v5821
        %v6567 = vunpack.c.l.b16 %v5822
        %v6568 = vunpack.c.h.b16 %v5822
        %v6569 = vunpack.c.l.b16 %v5823
        %v6570 = vunpack.c.h.b16 %v5823
        %v6571 = vunpack.c.l.b16 %v5824
        %v6572 = vunpack.c.h.b16 %v5824
        %v6573 = vunpack.c.l.b16 %v5825
        %v6574 = vunpack.c.h.b16 %v5825
        %v6575 = vunpack.c.l.b16 %v5826
        %v6576 = vunpack.c.h.b16 %v5826
        %v6577 = vunpack.c.l.b16 %v5827
        %v6578 = vunpack.c.h.b16 %v5827
        %v6579 = vunpack.c.l.b16 %v5828
        %v6580 = vunpack.c.h.b16 %v5828
        %v6581 = vunpack.c.l.b16 %v5829
        %v6582 = vunpack.c.h.b16 %v5829
        %v6583 = vunpack.c.l.b16 %v5830
        %v6584 = vunpack.c.h.b16 %v5830
        %v6585 = vunpack.c.l.b16 %v5831
        %v6586 = vunpack.c.h.b16 %v5831
        %v6587 = vunpack.c.l.b16 %v5832
        %v6588 = vunpack.c.h.b16 %v5832
        %v6589 = vunpack.c.l.b16 %v5833
        %v6590 = vunpack.c.h.b16 %v5833
        %v6591 = vunpack.c.l.b16 %v5834
        %v6592 = vunpack.c.h.b16 %v5834
        %v6593 = vunpack.c.l.b16 %v5835
        %v6594 = vunpack.c.h.b16 %v5835
        %v6595 = vunpack.c.l.b16 %v5836
        %v6596 = vunpack.c.h.b16 %v5836
        %v6597 = vunpack.c.l.b16 %v5837
        %v6598 = vunpack.c.h.b16 %v5837
        %v6599 = vunpack.c.l.b16 %v5838
        %v6600 = vunpack.c.h.b16 %v5838
        %v6601 = vunpack.c.l.b16 %v5839
        %v6602 = vunpack.c.h.b16 %v5839
        %v6603 = vunpack.c.l.b16 %v5840
        %v6604 = vunpack.c.h.b16 %v5840
        %v6605 = vunpack.c.l.b16 %v5841
        %v6606 = vunpack.c.h.b16 %v5841
        %v6607 = vunpack.c.l.b16 %v5842
        %v6608 = vunpack.c.h.b16 %v5842
        %v6609 = vunpack.c.l.b16 %v5843
        %v6610 = vunpack.c.h.b16 %v5843
        %v6611 = vunpack.c.l.b16 %v5844
        %v6612 = vunpack.c.h.b16 %v5844
        %v6613 = vunpack.c.l.b16 %v5845
        %v6614 = vunpack.c.h.b16 %v5845
        %v6615 = vunpack.c.l.b16 %v5846
        %v6616 = vunpack.c.h.b16 %v5846
        %v6617 = vunpack.c.l.b16 %v5847
        %v6618 = vunpack.c.h.b16 %v5847
        %v6619 = vunpack.c.l.b16 %v5848
        %v6620 = vunpack.c.h.b16 %v5848
        %v6621 = vunpack.c.l.b16 %v5849
        %v6622 = vunpack.c.h.b16 %v5849
        %v6623 = vunpack.c.l.b16 %v5850
        %v6624 = vunpack.c.h.b16 %v5850
        %v6625 = vunpack.c.l.b16 %v5851
        %v6626 = vunpack.c.h.b16 %v5851
        %v6627 = vunpack.c.l.b16 %v5852
        %v6628 = vunpack.c.h.b16 %v5852
        %v6629 = vunpack.c.l.b16 %v5853
        %v6630 = vunpack.c.h.b16 %v5853
        %v6631 = vunpack.c.l.b16 %v5854
        %v6632 = vunpack.c.h.b16 %v5854
        %v6633 = vunpack.c.l.b16 %v5855
        %v6634 = vunpack.c.h.b16 %v5855
        %v6635 = vunpack.c.l.b16 %v5856
        %v6636 = vunpack.c.h.b16 %v5856
        %v6637 = vunpack.c.l.b16 %v5857
        %v6638 = vunpack.c.h.b16 %v5857
        %v6639 = vunpack.c.l.b16 %v5858
        %v6640 = vunpack.c.h.b16 %v5858
        %v6641 = vunpack.c.l.b16 %v5859
        %v6642 = vunpack.c.h.b16 %v5859
        %v6643 = vunpack.c.l.b16 %v5860
        %v6644 = vunpack.c.h.b16 %v5860
        %v6645 = vunpack.c.l.b16 %v5861
        %v6646 = vunpack.c.h.b16 %v5861
        %v6647 = vunpack.c.l.b16 %v5862
        %v6648 = vunpack.c.h.b16 %v5862
        %v6649 = vunpack.c.l.b16 %v5863
        %v6650 = vunpack.c.h.b16 %v5863
        %v6651 = vunpack.c.l.b16 %v5864
        %v6652 = vunpack.c.h.b16 %v5864
        %v6653 = vunpack.c.l.b16 %v5865
        %v6654 = vunpack.c.h.b16 %v5865
        %v6655 = vunpack.c.l.b16 %v5866
        %v6656 = vunpack.c.h.b16 %v5866
        %v6657 = vunpack.c.l.b16 %v5867
        %v6658 = vunpack.c.h.b16 %v5867
        %v6659 = vunpack.c.l.b16 %v5868
        %v6660 = vunpack.c.h.b16 %v5868
        %v6661 = vunpack.c.l.b16 %v5869
        %v6662 = vunpack.c.h.b16 %v5869
        %v6663 = vunpack.c.l.b16 %v5870
        %v6664 = vunpack.c.h.b16 %v5870
        %v6665 = vunpack.c.l.b16 %v5871
        %v6666 = vunpack.c.h.b16 %v5871
        %v6667 = vunpack.c.l.b16 %v5872
        %v6668 = vunpack.c.h.b16 %v5872
        %v6669 = vunpack.c.l.b16 %v5873
        %v6670 = vunpack.c.h.b16 %v5873
        %v6671 = vunpack.c.l.b16 %v5874
        %v6672 = vunpack.c.h.b16 %v5874
        %v6673 = vunpack.c.l.b16 %v5875
        %v6674 = vunpack.c.h.b16 %v5875
        %v6675 = vunpack.c.l.b16 %v5876
        %v6676 = vunpack.c.h.b16 %v5876
        %v6677 = vunpack.c.l.b16 %v5877
        %v6678 = vunpack.c.h.b16 %v5877
        %v6679 = vunpack.c.l.b16 %v5878
        %v6680 = vunpack.c.h.b16 %v5878
        %v6681 = vunpack.c.l.b16 %v5879
        %v6682 = vunpack.c.h.b16 %v5879
        %v6683 = vunpack.c.l.b16 %v5880
        %v6684 = vunpack.c.h.b16 %v5880
        %v6685 = vunpack.c.l.b16 %v5881
        %v6686 = vunpack.c.h.b16 %v5881
        %v6687 = vunpack.c.l.b16 %v5882
        %v6688 = vunpack.c.h.b16 %v5882
        %v6689 = vunpack.c.l.b16 %v5883
        %v6690 = vunpack.c.h.b16 %v5883
        %v6691 = vunpack.c.l.b16 %v5884
        %v6692 = vunpack.c.h.b16 %v5884
        %v6693 = vunpack.c.l.b16 %v5885
        %v6694 = vunpack.c.h.b16 %v5885
        %v6695 = vunpack.c.l.b16 %v5886
        %v6696 = vunpack.c.h.b16 %v5886
        %v6697 = vpack.c.b16 %v6193, %v6185
        %v6698 = vpack.c.b16 %v6194, %v6186
        %v6699 = vpack.c.b16 %v6195, %v6187
        %v6700 = vpack.c.b16 %v6196, %v6188
        %v6701 = vpack.c.b16 %v6197, %v6189
        %v6702 = vpack.c.b16 %v6198, %v6190
        %v6703 = vpack.c.b16 %v6199, %v6191
        %v6704 = vpack.c.b16 %v6200, %v6192
        %v6705 = vpack.c.b16 %v6209, %v6201
        %v6706 = vpack.c.b16 %v6210, %v6202
        %v6707 = vpack.c.b16 %v6211, %v6203
        %v6708 = vpack.c.b16 %v6212, %v6204
        %v6709 = vpack.c.b16 %v6213, %v6205
        %v6710 = vpack.c.b16 %v6214, %v6206
        %v6711 = vpack.c.b16 %v6215, %v6207
        %v6712 = vpack.c.b16 %v6216, %v6208
        %v6713 = vpack.c.b16 %v6225, %v6217
        %v6714 = vpack.c.b16 %v6226, %v6218
        %v6715 = vpack.c.b16 %v6227, %v6219
        %v6716 = vpack.c.b16 %v6228, %v6220
        %v6717 = vpack.c.b16 %v6229, %v6221
        %v6718 = vpack.c.b16 %v6230, %v6222
        %v6719 = vpack.c.b16 %v6231, %v6223
        %v6720 = vpack.c.b16 %v6232, %v6224
        %v6721 = vpack.c.b16 %v6241, %v6233
        %v6722 = vpack.c.b16 %v6242, %v6234
        %v6723 = vpack.c.b16 %v6243, %v6235
        %v6724 = vpack.c.b16 %v6244, %v6236
        %v6725 = vpack.c.b16 %v6245, %v6237
        %v6726 = vpack.c.b16 %v6246, %v6238
        %v6727 = vpack.c.b16 %v6247, %v6239
        %v6728 = vpack.c.b16 %v6248, %v6240
        %v6729 = vpack.c.b16 %v6257, %v6249
        %v6730 = vpack.c.b16 %v6258, %v6250
        %v6731 = vpack.c.b16 %v6259, %v6251
        %v6732 = vpack.c.b16 %v6260, %v6252
        %v6733 = vpack.c.b16 %v6261, %v6253
        %v6734 = vpack.c.b16 %v6262, %v6254
        %v6735 = vpack.c.b16 %v6263, %v6255
        %v6736 = vpack.c.b16 %v6264, %v6256
        %v6737 = vpack.c.b16 %v6273, %v6265
        %v6738 = vpack.c.b16 %v6274, %v6266
        %v6739 = vpack.c.b16 %v6275, %v6267
        %v6740 = vpack.c.b16 %v6276, %v6268
        %v6741 = vpack.c.b16 %v6277, %v6269
        %v6742 = vpack.c.b16 %v6278, %v6270
        %v6743 = vpack.c.b16 %v6279, %v6271
        %v6744 = vpack.c.b16 %v6280, %v6272
        %v6745 = vpack.c.b16 %v6289, %v6281
        %v6746 = vpack.c.b16 %v6290, %v6282
        %v6747 = vpack.c.b16 %v6291, %v6283
        %v6748 = vpack.c.b16 %v6292, %v6284
        %v6749 = vpack.c.b16 %v6293, %v6285
        %v6750 = vpack.c.b16 %v6294, %v6286
        %v6751 = vpack.c.b16 %v6295, %v6287
        %v6752 = vpack.c.b16 %v6296, %v6288
        %v6753 = vpack.c.b16 %v6305, %v6297
        %v6754 = vpack.c.b16 %v6306, %v6298
        %v6755 = vpack.c.b16 %v6307, %v6299
        %v6756 = vpack.c.b16 %v6308, %v6300
        %v6757 = vpack.c.b16 %v6309, %v6301
        %v6758 = vpack.c.b16 %v6310, %v6302
        %v6759 = vpack.c.b16 %v6311, %v6303
        %v6760 = vpack.c.b16 %v6312, %v6304
        %v6761 = vpack.c.b16 %v6321, %v6313
        %v6762 = vpack.c.b16 %v6322, %v6314
        %v6763 = vpack.c.b16 %v6323, %v6315
        %v6764 = vpack.c.b16 %v6324, %v6316
        %v6765 = vpack.c.b16 %v6325, %v6317
        %v6766 = vpack.c.b16 %v6326, %v6318
        %v6767 = vpack.c.b16 %v6327, %v6319
        %v6768 = vpack.c.b16 %v6328, %v6320
        %v6769 = vpack.c.b16 %v6337, %v6329
        %v6770 = vpack.c.b16 %v6338, %v6330
        %v6771 = vpack.c.b16 %v6339, %v6331
        %v6772 = vpack.c.b16 %v6340, %v6332
        %v6773 = vpack.c.b16 %v6341, %v6333
        %v6774 = vpack.c.b16 %v6342, %v6334
        %v6775 = vpack.c.b16 %v6343, %v6335
        %v6776 = vpack.c.b16 %v6344, %v6336
        %v6777 = vpack.c.b16 %v6353, %v6345
        %v6778 = vpack.c.b16 %v6354, %v6346
        %v6779 = vpack.c.b16 %v6355, %v6347
        %v6780 = vpack.c.b16 %v6356, %v6348
        %v6781 = vpack.c.b16 %v6357, %v6349
        %v6782 = vpack.c.b16 %v6358, %v6350
        %v6783 = vpack.c.b16 %v6359, %v6351
        %v6784 = vpack.c.b16 %v6360, %v6352
        %v6785 = vpack.c.b16 %v6369, %v6361
        %v6786 = vpack.c.b16 %v6370, %v6362
        %v6787 = vpack.c.b16 %v6371, %v6363
        %v6788 = vpack.c.b16 %v6372, %v6364
        %v6789 = vpack.c.b16 %v6373, %v6365
        %v6790 = vpack.c.b16 %v6374, %v6366
        %v6791 = vpack.c.b16 %v6375, %v6367
        %v6792 = vpack.c.b16 %v6376, %v6368
        %v6793 = vpack.c.b16 %v6385, %v6377
        %v6794 = vpack.c.b16 %v6386, %v6378
        %v6795 = vpack.c.b16 %v6387, %v6379
        %v6796 = vpack.c.b16 %v6388, %v6380
        %v6797 = vpack.c.b16 %v6389, %v6381
        %v6798 = vpack.c.b16 %v6390, %v6382
        %v6799 = vpack.c.b16 %v6391, %v6383
        %v6800 = vpack.c.b16 %v6392, %v6384
        %v6801 = vpack.c.b16 %v6401, %v6393
        %v6802 = vpack.c.b16 %v6402, %v6394
        %v6803 = vpack.c.b16 %v6403, %v6395
        %v6804 = vpack.c.b16 %v6404, %v6396
        %v6805 = vpack.c.b16 %v6405, %v6397
        %v6806 = vpack.c.b16 %v6406, %v6398
        %v6807 = vpack.c.b16 %v6407, %v6399
        %v6808 = vpack.c.b16 %v6408, %v6400
        %v6809 = vpack.c.b16 %v6417, %v6409
        %v6810 = vpack.c.b16 %v6418, %v6410
        %v6811 = vpack.c.b16 %v6419, %v6411
        %v6812 = vpack.c.b16 %v6420, %v6412
        %v6813 = vpack.c.b16 %v6421, %v6413
        %v6814 = vpack.c.b16 %v6422, %v6414
        %v6815 = vpack.c.b16 %v6423, %v6415
        %v6816 = vpack.c.b16 %v6424, %v6416
        %v6817 = vpack.c.b16 %v6433, %v6425
        %v6818 = vpack.c.b16 %v6434, %v6426
        %v6819 = vpack.c.b16 %v6435, %v6427
        %v6820 = vpack.c.b16 %v6436, %v6428
        %v6821 = vpack.c.b16 %v6437, %v6429
        %v6822 = vpack.c.b16 %v6438, %v6430
        %v6823 = vpack.c.b16 %v6439, %v6431
        %v6824 = vpack.c.b16 %v6440, %v6432
        %v6825 = vpack.c.b16 %v6449, %v6441
        %v6826 = vpack.c.b16 %v6450, %v6442
        %v6827 = vpack.c.b16 %v6451, %v6443
        %v6828 = vpack.c.b16 %v6452, %v6444
        %v6829 = vpack.c.b16 %v6453, %v6445
        %v6830 = vpack.c.b16 %v6454, %v6446
        %v6831 = vpack.c.b16 %v6455, %v6447
        %v6832 = vpack.c.b16 %v6456, %v6448
        %v6833 = vpack.c.b16 %v6465, %v6457
        %v6834 = vpack.c.b16 %v6466, %v6458
        %v6835 = vpack.c.b16 %v6467, %v6459
        %v6836 = vpack.c.b16 %v6468, %v6460
        %v6837 = vpack.c.b16 %v6469, %v6461
        %v6838 = vpack.c.b16 %v6470, %v6462
        %v6839 = vpack.c.b16 %v6471, %v6463
        %v6840 = vpack.c.b16 %v6472, %v6464
        %v6841 = vpack.c.b16 %v6481, %v6473
        %v6842 = vpack.c.b16 %v6482, %v6474
        %v6843 = vpack.c.b16 %v6483, %v6475
        %v6844 = vpack.c.b16 %v6484, %v6476
        %v6845 = vpack.c.b16 %v6485, %v6477
        %v6846 = vpack.c.b16 %v6486, %v6478
        %v6847 = vpack.c.b16 %v6487, %v6479
        %v6848 = vpack.c.b16 %v6488, %v6480
        %v6849 = vpack.c.b16 %v6497, %v6489
        %v6850 = vpack.c.b16 %v6498, %v6490
        %v6851 = vpack.c.b16 %v6499, %v6491
        %v6852 = vpack.c.b16 %v6500, %v6492
        %v6853 = vpack.c.b16 %v6501, %v6493
        %v6854 = vpack.c.b16 %v6502, %v6494
        %v6855 = vpack.c.b16 %v6503, %v6495
        %v6856 = vpack.c.b16 %v6504, %v6496
        %v6857 = vpack.c.b16 %v6513, %v6505
        %v6858 = vpack.c.b16 %v6514, %v6506
        %v6859 = vpack.c.b16 %v6515, %v6507
        %v6860 = vpack.c.b16 %v6516, %v6508
        %v6861 = vpack.c.b16 %v6517, %v6509
        %v6862 = vpack.c.b16 %v6518, %v6510
        %v6863 = vpack.c.b16 %v6519, %v6511
        %v6864 = vpack.c.b16 %v6520, %v6512
        %v6865 = vpack.c.b16 %v6529, %v6521
        %v6866 = vpack.c.b16 %v6530, %v6522
        %v6867 = vpack.c.b16 %v6531, %v6523
        %v6868 = vpack.c.b16 %v6532, %v6524
        %v6869 = vpack.c.b16 %v6533, %v6525
        %v6870 = vpack.c.b16 %v6534, %v6526
        %v6871 = vpack.c.b16 %v6535, %v6527
        %v6872 = vpack.c.b16 %v6536, %v6528
        %v6873 = vpack.c.b16 %v6545, %v6537
        %v6874 = vpack.c.b16 %v6546, %v6538
        %v6875 = vpack.c.b16 %v6547, %v6539
        %v6876 = vpack.c.b16 %v6548, %v6540
        %v6877 = vpack.c.b16 %v6549, %v6541
        %v6878 = vpack.c.b16 %v6550, %v6542
        %v6879 = vpack.c.b16 %v6551, %v6543
        %v6880 = vpack.c.b16 %v6552, %v6544
        %v6881 = vpack.c.b16 %v6561, %v6553
        %v6882 = vpack.c.b16 %v6562, %v6554
        %v6883 = vpack.c.b16 %v6563, %v6555
        %v6884 = vpack.c.b16 %v6564, %v6556
        %v6885 = vpack.c.b16 %v6565, %v6557
        %v6886 = vpack.c.b16 %v6566, %v6558
        %v6887 = vpack.c.b16 %v6567, %v6559
        %v6888 = vpack.c.b16 %v6568, %v6560
        %v6889 = vpack.c.b16 %v6577, %v6569
        %v6890 = vpack.c.b16 %v6578, %v6570
        %v6891 = vpack.c.b16 %v6579, %v6571
        %v6892 = vpack.c.b16 %v6580, %v6572
        %v6893 = vpack.c.b16 %v6581, %v6573
        %v6894 = vpack.c.b16 %v6582, %v6574
        %v6895 = vpack.c.b16 %v6583, %v6575
        %v6896 = vpack.c.b16 %v6584, %v6576
        %v6897 = vpack.c.b16 %v6593, %v6585
        %v6898 = vpack.c.b16 %v6594, %v6586
        %v6899 = vpack.c.b16 %v6595, %v6587
        %v6900 = vpack.c.b16 %v6596, %v6588
        %v6901 = vpack.c.b16 %v6597, %v6589
        %v6902 = vpack.c.b16 %v6598, %v6590
        %v6903 = vpack.c.b16 %v6599, %v6591
        %v6904 = vpack.c.b16 %v6600, %v6592
        %v6905 = vpack.c.b16 %v6609, %v6601
        %v6906 = vpack.c.b16 %v6610, %v6602
        %v6907 = vpack.c.b16 %v6611, %v6603
        %v6908 = vpack.c.b16 %v6612, %v6604
        %v6909 = vpack.c.b16 %v6613, %v6605
        %v6910 = vpack.c.b16 %v6614, %v6606
        %v6911 = vpack.c.b16 %v6615, %v6607
        %v6912 = vpack.c.b16 %v6616, %v6608
        %v6913 = vpack.c.b16 %v6625, %v6617
        %v6914 = vpack.c.b16 %v6626, %v6618
        %v6915 = vpack.c.b16 %v6627, %v6619
        %v6916 = vpack.c.b16 %v6628, %v6620
        %v6917 = vpack.c.b16 %v6629, %v6621
        %v6918 = vpack.c.b16 %v6630, %v6622
        %v6919 = vpack.c.b16 %v6631, %v6623
        %v6920 = vpack.c.b16 %v6632, %v6624
        %v6921 = vpack.c.b16 %v6641, %v6633
        %v6922 = vpack.c.b16 %v6642, %v6634
        %v6923 = vpack.c.b16 %v6643, %v6635
        %v6924 = vpack.c.b16 %v6644, %v6636
        %v6925 = vpack.c.b16 %v6645, %v6637
        %v6926 = vpack.c.b16 %v6646, %v6638
        %v6927 = vpack.c.b16 %v6647, %v6639
        %v6928 = vpack.c.b16 %v6648, %v6640
        %v6929 = vpack.c.b16 %v6657, %v6649
        %v6930 = vpack.c.b16 %v6658, %v6650
        %v6931 = vpack.c.b16 %v6659, %v6651
        %v6932 = vpack.c.b16 %v6660, %v6652
        %v6933 = vpack.c.b16 %v6661, %v6653
        %v6934 = vpack.c.b16 %v6662, %v6654
        %v6935 = vpack.c.b16 %v6663, %v6655
        %v6936 = vpack.c.b16 %v6664, %v6656
        %v6937 = vpack.c.b16 %v6673, %v6665
        %v6938 = vpack.c.b16 %v6674, %v6666
        %v6939 = vpack.c.b16 %v6675, %v6667
        %v6940 = vpack.c.b16 %v6676, %v6668
        %v6941 = vpack.c.b16 %v6677, %v6669
        %v6942 = vpack.c.b16 %v6678, %v6670
        %v6943 = vpack.c.b16 %v6679, %v6671
        %v6944 = vpack.c.b16 %v6680, %v6672
        %v6945 = vpack.c.b16 %v6689, %v6681
        %v6946 = vpack.c.b16 %v6690, %v6682
        %v6947 = vpack.c.b16 %v6691, %v6683
        %v6948 = vpack.c.b16 %v6692, %v6684
        %v6949 = vpack.c.b16 %v6693, %v6685
        %v6950 = vpack.c.b16 %v6694, %v6686
        %v6951 = vpack.c.b16 %v6695, %v6687
        %v6952 = vpack.c.b16 %v6696, %v6688
        %7209 = vmatprep.subr.bf16.mxu0 %v6698
        %7210 = vmatpush1.bf16.msra.mxu0 %v6697
        %7211 = vmatprep.subr.bf16.mxu0 %v6706
        %7212 = vmatpush1.bf16.msra.mxu0 %v6705
        %7213 = vmatprep.subr.bf16.mxu0 %v6714
        %7214 = vmatpush1.bf16.msra.mxu0 %v6713
        %7215 = vmatprep.subr.bf16.mxu0 %v6722
        %7216 = vmatpush1.bf16.msra.mxu0 %v6721
        %7217 = vmatprep.subr.bf16.mxu0 %v6730
        %7218 = vmatpush1.bf16.msra.mxu0 %v6729
        %7219 = vmatprep.subr.bf16.mxu0 %v6738
        %7220 = vmatpush1.bf16.msra.mxu0 %v6737
        %7221 = vmatprep.subr.bf16.mxu0 %v6746
        %7222 = vmatpush1.bf16.msra.mxu0 %v6745
        %7223 = vmatprep.subr.bf16.mxu0 %v6754
        %7224 = vmatpush1.bf16.msra.mxu0 %v6753
        %7225 = vmatprep.subr.bf16.mxu0 %v6762
        %7226 = vmatpush1.bf16.msra.mxu0 %v6761
        %7227 = vmatprep.subr.bf16.mxu0 %v6770
        %7228 = vmatpush1.bf16.msra.mxu0 %v6769
        %7229 = vmatprep.subr.bf16.mxu0 %v6778
        %7230 = vmatpush1.bf16.msra.mxu0 %v6777
        %7231 = vmatprep.subr.bf16.mxu0 %v6786
        %7232 = vmatpush1.bf16.msra.mxu0 %v6785
        %7233 = vmatprep.subr.bf16.mxu0 %v6794
        %7234 = vmatpush1.bf16.msra.mxu0 %v6793
        %7235 = vmatprep.subr.bf16.mxu0 %v6802
        %7236 = vmatpush1.bf16.msra.mxu0 %v6801
        %7237 = vmatprep.subr.bf16.mxu0 %v6810
        %7238 = vmatpush1.bf16.msra.mxu0 %v6809
        %7239 = vmatprep.subr.bf16.mxu0 %v6818
        %7240 = vmatpush1.bf16.msra.mxu0 %v6817
        %7241 = vmatprep.mubr.bf16.mxu0 %v5628
        %7242 = vmatmul.mubr.bf16.gmra.mrb[0].mxu0 %v5627
        %v7243 = vpop.f32.mrb[0].mxu0
        %v7244 = vadd.f32 %v5892, %v7243
        %v7245 = vpop.f32.mrb[0].mxu0
        %v7246 = vadd.f32 %v5896, %v7245
        %v7247 = vpop.f32.mrb[0].mxu0
        %v7248 = vadd.f32 %v5892, %v7247
        %v7249 = vpop.f32.mrb[0].mxu0
        %v7250 = vadd.f32 %v5896, %v7249
        %7251 = vdwg.mxu0
        %7252 = vmatprep.subr.bf16.mxu0 %v6826
        %7253 = vmatpush1.bf16.msra.mxu0 %v6825
        %7254 = vmatprep.subr.bf16.mxu0 %v6834
        %7255 = vmatpush1.bf16.msra.mxu0 %v6833
        %7256 = vmatprep.subr.bf16.mxu0 %v6842
        %7257 = vmatpush1.bf16.msra.mxu0 %v6841
        %7258 = vmatprep.subr.bf16.mxu0 %v6850
        %7259 = vmatpush1.bf16.msra.mxu0 %v6849
        %7260 = vmatprep.subr.bf16.mxu0 %v6858
        %7261 = vmatpush1.bf16.msra.mxu0 %v6857
        %7262 = vmatprep.subr.bf16.mxu0 %v6866
        %7263 = vmatpush1.bf16.msra.mxu0 %v6865
        %7264 = vmatprep.subr.bf16.mxu0 %v6874
        %7265 = vmatpush1.bf16.msra.mxu0 %v6873
        %7266 = vmatprep.subr.bf16.mxu0 %v6882
        %7267 = vmatpush1.bf16.msra.mxu0 %v6881
        %7268 = vmatprep.subr.bf16.mxu0 %v6890
        %7269 = vmatpush1.bf16.msra.mxu0 %v6889
        %7270 = vmatprep.subr.bf16.mxu0 %v6898
        %7271 = vmatpush1.bf16.msra.mxu0 %v6897
        %7272 = vmatprep.subr.bf16.mxu0 %v6906
        %7273 = vmatpush1.bf16.msra.mxu0 %v6905
        %7274 = vmatprep.subr.bf16.mxu0 %v6914
        %7275 = vmatpush1.bf16.msra.mxu0 %v6913
        %7276 = vmatprep.subr.bf16.mxu0 %v6922
        %7277 = vmatpush1.bf16.msra.mxu0 %v6921
        %7278 = vmatprep.subr.bf16.mxu0 %v6930
        %7279 = vmatpush1.bf16.msra.mxu0 %v6929
        %7280 = vmatprep.subr.bf16.mxu0 %v6938
        %7281 = vmatpush1.bf16.msra.mxu0 %v6937
        %7282 = vmatprep.subr.bf16.mxu0 %v6946
        %7283 = vmatpush1.bf16.msra.mxu0 %v6945
        %7284 = vmatprep.mubr.bf16.mxu0 %v5630
        %7285 = vmatmul.mubr.bf16.gmra.mrb[0].mxu0 %v5629
        %v7286 = vpop.f32.mrb[0].mxu0
        %v7287 = vadd.f32 %v7244, %v7286
        %v7288 = vpop.f32.mrb[0].mxu0
        %v7289 = vadd.f32 %v7246, %v7288
        %v7290 = vpop.f32.mrb[0].mxu0
        %v7291 = vadd.f32 %v7248, %v7290
        %v7292 = vpop.f32.mrb[0].mxu0
        %v7293 = vadd.f32 %v7250, %v7292
        %7294 = vdwg.mxu0
        %7295 = vmatprep.subr.bf16.mxu0 %v6700
        %7296 = vmatpush1.bf16.msra.mxu0 %v6699
        %7297 = vmatprep.subr.bf16.mxu0 %v6708
        %7298 = vmatpush1.bf16.msra.mxu0 %v6707
        %7299 = vmatprep.subr.bf16.mxu0 %v6716
        %7300 = vmatpush1.bf16.msra.mxu0 %v6715
        %7301 = vmatprep.subr.bf16.mxu0 %v6724
        %7302 = vmatpush1.bf16.msra.mxu0 %v6723
        %7303 = vmatprep.subr.bf16.mxu0 %v6732
        %7304 = vmatpush1.bf16.msra.mxu0 %v6731
        %7305 = vmatprep.subr.bf16.mxu0 %v6740
        %7306 = vmatpush1.bf16.msra.mxu0 %v6739
        %7307 = vmatprep.subr.bf16.mxu0 %v6748
        %7308 = vmatpush1.bf16.msra.mxu0 %v6747
        %7309 = vmatprep.subr.bf16.mxu0 %v6756
        %7310 = vmatpush1.bf16.msra.mxu0 %v6755
        %7311 = vmatprep.subr.bf16.mxu0 %v6764
        %7312 = vmatpush1.bf16.msra.mxu0 %v6763
        %7313 = vmatprep.subr.bf16.mxu0 %v6772
        %7314 = vmatpush1.bf16.msra.mxu0 %v6771
        %7315 = vmatprep.subr.bf16.mxu0 %v6780
        %7316 = vmatpush1.bf16.msra.mxu0 %v6779
        %7317 = vmatprep.subr.bf16.mxu0 %v6788
        %7318 = vmatpush1.bf16.msra.mxu0 %v6787
        %7319 = vmatprep.subr.bf16.mxu0 %v6796
        %7320 = vmatpush1.bf16.msra.mxu0 %v6795
        %7321 = vmatprep.subr.bf16.mxu0 %v6804
        %7322 = vmatpush1.bf16.msra.mxu0 %v6803
        %7323 = vmatprep.subr.bf16.mxu0 %v6812
        %7324 = vmatpush1.bf16.msra.mxu0 %v6811
        %7325 = vmatprep.subr.bf16.mxu0 %v6820
        %7326 = vmatpush1.bf16.msra.mxu0 %v6819
        %7327 = vmatprep.mubr.bf16.mxu0 %v5628
        %7328 = vmatmul.mubr.bf16.gmra.mrb[0].mxu0 %v5627
        %v7329 = vpop.f32.mrb[0].mxu0
        %v7330 = vadd.f32 %v5900, %v7329
        %v7331 = vpop.f32.mrb[0].mxu0
        %v7332 = vadd.f32 %v5904, %v7331
        %v7333 = vpop.f32.mrb[0].mxu0
        %v7334 = vadd.f32 %v5900, %v7333
        %v7335 = vpop.f32.mrb[0].mxu0
        %v7336 = vadd.f32 %v5904, %v7335
        %7337 = vdwg.mxu0
        %7338 = vmatprep.subr.bf16.mxu0 %v6828
        %7339 = vmatpush1.bf16.msra.mxu0 %v6827
        %7340 = vmatprep.subr.bf16.mxu0 %v6836
        %7341 = vmatpush1.bf16.msra.mxu0 %v6835
        %7342 = vmatprep.subr.bf16.mxu0 %v6844
        %7343 = vmatpush1.bf16.msra.mxu0 %v6843
        %7344 = vmatprep.subr.bf16.mxu0 %v6852
        %7345 = vmatpush1.bf16.msra.mxu0 %v6851
        %7346 = vmatprep.subr.bf16.mxu0 %v6860
        %7347 = vmatpush1.bf16.msra.mxu0 %v6859
        %7348 = vmatprep.subr.bf16.mxu0 %v6868
        %7349 = vmatpush1.bf16.msra.mxu0 %v6867
        %7350 = vmatprep.subr.bf16.mxu0 %v6876
        %7351 = vmatpush1.bf16.msra.mxu0 %v6875
        %7352 = vmatprep.subr.bf16.mxu0 %v6884
        %7353 = vmatpush1.bf16.msra.mxu0 %v6883
        %7354 = vmatprep.subr.bf16.mxu0 %v6892
        %7355 = vmatpush1.bf16.msra.mxu0 %v6891
        %7356 = vmatprep.subr.bf16.mxu0 %v6900
        %7357 = vmatpush1.bf16.msra.mxu0 %v6899
        %7358 = vmatprep.subr.bf16.mxu0 %v6908
        %7359 = vmatpush1.bf16.msra.mxu0 %v6907
        %7360 = vmatprep.subr.bf16.mxu0 %v6916
        %7361 = vmatpush1.bf16.msra.mxu0 %v6915
        %7362 = vmatprep.subr.bf16.mxu0 %v6924
        %7363 = vmatpush1.bf16.msra.mxu0 %v6923
        %7364 = vmatprep.subr.bf16.mxu0 %v6932
        %7365 = vmatpush1.bf16.msra.mxu0 %v6931
        %7366 = vmatprep.subr.bf16.mxu0 %v6940
        %7367 = vmatpush1.bf16.msra.mxu0 %v6939
        %7368 = vmatprep.subr.bf16.mxu0 %v6948
        %7369 = vmatpush1.bf16.msra.mxu0 %v6947
        %7370 = vmatprep.mubr.bf16.mxu0 %v5630
        %7371 = vmatmul.mubr.bf16.gmra.mrb[0].mxu0 %v5629
        %v7372 = vpop.f32.mrb[0].mxu0
        %v7373 = vadd.f32 %v7330, %v7372
        %v7374 = vpop.f32.mrb[0].mxu0
        %v7375 = vadd.f32 %v7332, %v7374
        %v7376 = vpop.f32.mrb[0].mxu0
        %v7377 = vadd.f32 %v7334, %v7376
        %v7378 = vpop.f32.mrb[0].mxu0
        %v7379 = vadd.f32 %v7336, %v7378
        %7380 = vdwg.mxu0
        %7381 = vmatprep.subr.bf16.mxu0 %v6702
        %7382 = vmatpush1.bf16.msra.mxu0 %v6701
        %7383 = vmatprep.subr.bf16.mxu0 %v6710
        %7384 = vmatpush1.bf16.msra.mxu0 %v6709
        %7385 = vmatprep.subr.bf16.mxu0 %v6718
        %7386 = vmatpush1.bf16.msra.mxu0 %v6717
        %7387 = vmatprep.subr.bf16.mxu0 %v6726
        %7388 = vmatpush1.bf16.msra.mxu0 %v6725
        %7389 = vmatprep.subr.bf16.mxu0 %v6734
        %7390 = vmatpush1.bf16.msra.mxu0 %v6733
        %7391 = vmatprep.subr.bf16.mxu0 %v6742
        %7392 = vmatpush1.bf16.msra.mxu0 %v6741
        %7393 = vmatprep.subr.bf16.mxu0 %v6750
        %7394 = vmatpush1.bf16.msra.mxu0 %v6749
        %7395 = vmatprep.subr.bf16.mxu0 %v6758
        %7396 = vmatpush1.bf16.msra.mxu0 %v6757
        %7397 = vmatprep.subr.bf16.mxu0 %v6766
        %7398 = vmatpush1.bf16.msra.mxu0 %v6765
        %7399 = vmatprep.subr.bf16.mxu0 %v6774
        %7400 = vmatpush1.bf16.msra.mxu0 %v6773
        %7401 = vmatprep.subr.bf16.mxu0 %v6782
        %7402 = vmatpush1.bf16.msra.mxu0 %v6781
        %7403 = vmatprep.subr.bf16.mxu0 %v6790
        %7404 = vmatpush1.bf16.msra.mxu0 %v6789
        %7405 = vmatprep.subr.bf16.mxu0 %v6798
        %7406 = vmatpush1.bf16.msra.mxu0 %v6797
        %7407 = vmatprep.subr.bf16.mxu0 %v6806
        %7408 = vmatpush1.bf16.msra.mxu0 %v6805
        %7409 = vmatprep.subr.bf16.mxu0 %v6814
        %7410 = vmatpush1.bf16.msra.mxu0 %v6813
        %7411 = vmatprep.subr.bf16.mxu0 %v6822
        %7412 = vmatpush1.bf16.msra.mxu0 %v6821
        %7413 = vmatprep.mubr.bf16.mxu0 %v5628
        %7414 = vmatmul.mubr.bf16.gmra.mrb[0].mxu0 %v5627
        %v7415 = vpop.f32.mrb[0].mxu0
        %v7416 = vadd.f32 %v5908, %v7415
        %v7417 = vpop.f32.mrb[0].mxu0
        %v7418 = vadd.f32 %v5912, %v7417
        %v7419 = vpop.f32.mrb[0].mxu0
        %v7420 = vadd.f32 %v5908, %v7419
        %v7421 = vpop.f32.mrb[0].mxu0
        %v7422 = vadd.f32 %v5912, %v7421
        %7423 = vdwg.mxu0
        %7424 = vmatprep.subr.bf16.mxu0 %v6830
        %7425 = vmatpush1.bf16.msra.mxu0 %v6829
        %7426 = vmatprep.subr.bf16.mxu0 %v6838
        %7427 = vmatpush1.bf16.msra.mxu0 %v6837
        %7428 = vmatprep.subr.bf16.mxu0 %v6846
        %7429 = vmatpush1.bf16.msra.mxu0 %v6845
        %7430 = vmatprep.subr.bf16.mxu0 %v6854
        %7431 = vmatpush1.bf16.msra.mxu0 %v6853
        %7432 = vmatprep.subr.bf16.mxu0 %v6862
        %7433 = vmatpush1.bf16.msra.mxu0 %v6861
        %7434 = vmatprep.subr.bf16.mxu0 %v6870
        %7435 = vmatpush1.bf16.msra.mxu0 %v6869
        %7436 = vmatprep.subr.bf16.mxu0 %v6878
        %7437 = vmatpush1.bf16.msra.mxu0 %v6877
        %7438 = vmatprep.subr.bf16.mxu0 %v6886
        %7439 = vmatpush1.bf16.msra.mxu0 %v6885
        %7440 = vmatprep.subr.bf16.mxu0 %v6894
        %7441 = vmatpush1.bf16.msra.mxu0 %v6893
        %7442 = vmatprep.subr.bf16.mxu0 %v6902
        %7443 = vmatpush1.bf16.msra.mxu0 %v6901
        %7444 = vmatprep.subr.bf16.mxu0 %v6910
        %7445 = vmatpush1.bf16.msra.mxu0 %v6909
        %7446 = vmatprep.subr.bf16.mxu0 %v6918
        %7447 = vmatpush1.bf16.msra.mxu0 %v6917
        %7448 = vmatprep.subr.bf16.mxu0 %v6926
        %7449 = vmatpush1.bf16.msra.mxu0 %v6925
        %7450 = vmatprep.subr.bf16.mxu0 %v6934
        %7451 = vmatpush1.bf16.msra.mxu0 %v6933
        %7452 = vmatprep.subr.bf16.mxu0 %v6942
        %7453 = vmatpush1.bf16.msra.mxu0 %v6941
        %7454 = vmatprep.subr.bf16.mxu0 %v6950
        %7455 = vmatpush1.bf16.msra.mxu0 %v6949
        %7456 = vmatprep.mubr.bf16.mxu0 %v5630
        %7457 = vmatmul.mubr.bf16.gmra.mrb[0].mxu0 %v5629
        %v7458 = vpop.f32.mrb[0].mxu0
        %v7459 = vadd.f32 %v7416, %v7458
        %v7460 = vpop.f32.mrb[0].mxu0
        %v7461 = vadd.f32 %v7418, %v7460
        %v7462 = vpop.f32.mrb[0].mxu0
        %v7463 = vadd.f32 %v7420, %v7462
        %v7464 = vpop.f32.mrb[0].mxu0
        %v7465 = vadd.f32 %v7422, %v7464
        %7466 = vdwg.mxu0
        %7467 = vmatprep.subr.bf16.mxu0 %v6704
        %7468 = vmatpush1.bf16.msra.mxu0 %v6703
        %7469 = vmatprep.subr.bf16.mxu0 %v6712
        %7470 = vmatpush1.bf16.msra.mxu0 %v6711
        %7471 = vmatprep.subr.bf16.mxu0 %v6720
        %7472 = vmatpush1.bf16.msra.mxu0 %v6719
        %7473 = vmatprep.subr.bf16.mxu0 %v6728
        %7474 = vmatpush1.bf16.msra.mxu0 %v6727
        %7475 = vmatprep.subr.bf16.mxu0 %v6736
        %7476 = vmatpush1.bf16.msra.mxu0 %v6735
        %7477 = vmatprep.subr.bf16.mxu0 %v6744
        %7478 = vmatpush1.bf16.msra.mxu0 %v6743
        %7479 = vmatprep.subr.bf16.mxu0 %v6752
        %7480 = vmatpush1.bf16.msra.mxu0 %v6751
        %7481 = vmatprep.subr.bf16.mxu0 %v6760
        %7482 = vmatpush1.bf16.msra.mxu0 %v6759
        %7483 = vmatprep.subr.bf16.mxu0 %v6768
        %7484 = vmatpush1.bf16.msra.mxu0 %v6767
        %7485 = vmatprep.subr.bf16.mxu0 %v6776
        %7486 = vmatpush1.bf16.msra.mxu0 %v6775
        %7487 = vmatprep.subr.bf16.mxu0 %v6784
        %7488 = vmatpush1.bf16.msra.mxu0 %v6783
        %7489 = vmatprep.subr.bf16.mxu0 %v6792
        %7490 = vmatpush1.bf16.msra.mxu0 %v6791
        %7491 = vmatprep.subr.bf16.mxu0 %v6800
        %7492 = vmatpush1.bf16.msra.mxu0 %v6799
        %7493 = vmatprep.subr.bf16.mxu0 %v6808
        %7494 = vmatpush1.bf16.msra.mxu0 %v6807
        %7495 = vmatprep.subr.bf16.mxu0 %v6816
        %7496 = vmatpush1.bf16.msra.mxu0 %v6815
        %7497 = vmatprep.subr.bf16.mxu0 %v6824
        %7498 = vmatpush1.bf16.msra.mxu0 %v6823
        %7499 = vmatprep.mubr.bf16.mxu0 %v5628
        %7500 = vmatmul.mubr.bf16.gmra.mrb[0].mxu0 %v5627
        %v7501 = vpop.f32.mrb[0].mxu0
        %v7502 = vadd.f32 %v5916, %v7501
        %v7503 = vpop.f32.mrb[0].mxu0
        %v7504 = vadd.f32 %v5920, %v7503
        %v7505 = vpop.f32.mrb[0].mxu0
        %v7506 = vadd.f32 %v5916, %v7505
        %v7507 = vpop.f32.mrb[0].mxu0
        %v7508 = vadd.f32 %v5920, %v7507
        %7509 = vdwg.mxu0
        %7510 = vmatprep.subr.bf16.mxu0 %v6832
        %7511 = vmatpush1.bf16.msra.mxu0 %v6831
        %7512 = vmatprep.subr.bf16.mxu0 %v6840
        %7513 = vmatpush1.bf16.msra.mxu0 %v6839
        %7514 = vmatprep.subr.bf16.mxu0 %v6848
        %7515 = vmatpush1.bf16.msra.mxu0 %v6847
        %7516 = vmatprep.subr.bf16.mxu0 %v6856
        %7517 = vmatpush1.bf16.msra.mxu0 %v6855
        %7518 = vmatprep.subr.bf16.mxu0 %v6864
        %7519 = vmatpush1.bf16.msra.mxu0 %v6863
        %7520 = vmatprep.subr.bf16.mxu0 %v6872
        %7521 = vmatpush1.bf16.msra.mxu0 %v6871
        %7522 = vmatprep.subr.bf16.mxu0 %v6880
        %7523 = vmatpush1.bf16.msra.mxu0 %v6879
        %7524 = vmatprep.subr.bf16.mxu0 %v6888
        %7525 = vmatpush1.bf16.msra.mxu0 %v6887
        %7526 = vmatprep.subr.bf16.mxu0 %v6896
        %7527 = vmatpush1.bf16.msra.mxu0 %v6895
        %7528 = vmatprep.subr.bf16.mxu0 %v6904
        %7529 = vmatpush1.bf16.msra.mxu0 %v6903
        %7530 = vmatprep.subr.bf16.mxu0 %v6912
        %7531 = vmatpush1.bf16.msra.mxu0 %v6911
        %7532 = vmatprep.subr.bf16.mxu0 %v6920
        %7533 = vmatpush1.bf16.msra.mxu0 %v6919
        %7534 = vmatprep.subr.bf16.mxu0 %v6928
        %7535 = vmatpush1.bf16.msra.mxu0 %v6927
        %7536 = vmatprep.subr.bf16.mxu0 %v6936
        %7537 = vmatpush1.bf16.msra.mxu0 %v6935
        %7538 = vmatprep.subr.bf16.mxu0 %v6944
        %7539 = vmatpush1.bf16.msra.mxu0 %v6943
        %7540 = vmatprep.subr.bf16.mxu0 %v6952
        %7541 = vmatpush1.bf16.msra.mxu0 %v6951
        %7542 = vmatprep.mubr.bf16.mxu0 %v5630
        %7543 = vmatmul.mubr.bf16.gmra.mrb[0].mxu0 %v5629
        %v7544 = vpop.f32.mrb[0].mxu0
        %v7545 = vadd.f32 %v7502, %v7544
        %v7546 = vpop.f32.mrb[0].mxu0
        %v7547 = vadd.f32 %v7504, %v7546
        %v7548 = vpop.f32.mrb[0].mxu0
        %v7549 = vadd.f32 %v7506, %v7548
        %v7550 = vpop.f32.mrb[0].mxu0
        %v7551 = vadd.f32 %v7508, %v7550
        %7552 = vdwg.mxu0
        %v7553 = vmax.f32 %v7287, 0.0
        %v7554 = vmax.f32 %v7289, 0.0
        %v7555 = vmax.f32 %v7373, 0.0
        %v7556 = vmax.f32 %v7375, 0.0
        %v7557 = vmax.f32 %v7459, 0.0
        %v7558 = vmax.f32 %v7461, 0.0
        %v7559 = vmax.f32 %v7545, 0.0
        %v7560 = vmax.f32 %v7547, 0.0
        %v7561 = vmax.f32 %v7291, 0.0
        %v7562 = vmax.f32 %v7293, 0.0
        %v7563 = vmax.f32 %v7377, 0.0
        %v7564 = vmax.f32 %v7379, 0.0
        %v7565 = vmax.f32 %v7463, 0.0
        %v7566 = vmax.f32 %v7465, 0.0
        %v7567 = vmax.f32 %v7549, 0.0
        %v7568 = vmax.f32 %v7551, 0.0
        %v7569 = vpack.c.bf16 %v7561, %v7553
        %v7570 = vpack.c.bf16 %v7562, %v7554
        %v7571 = vpack.c.bf16 %v7563, %v7555
        %v7572 = vpack.c.bf16 %v7564, %v7556
        %v7573 = vpack.c.bf16 %v7565, %v7557
        %v7574 = vpack.c.bf16 %v7566, %v7558
        %v7575 = vpack.c.bf16 %v7567, %v7559
        %v7576 = vpack.c.bf16 %v7568, %v7560
        %v7577 = vld [vmem:[#allocation16] sm:$0xff]
        %v7578 = vld [vmem:[#allocation16 + $0x8] sm:$0xff]
        %v7579 = vld [vmem:[#allocation16 + $0x10] sm:$0xff]
        %v7580 = vld [vmem:[#allocation16 + $0x18] sm:$0xff]
        %v7581 = vld [vmem:[#allocation16 + $0x20] sm:$0xff]
        %v7582 = vld [vmem:[#allocation16 + $0x28] sm:$0xff]
        %v7583 = vld [vmem:[#allocation16 + $0x30] sm:$0xff]
        %v7584 = vld [vmem:[#allocation16 + $0x38] sm:$0xff]
        %v7585 = vld [vmem:[#allocation16 + $0x40] sm:$0xff]
        %v7586 = vld [vmem:[#allocation16 + $0x48] sm:$0xff]
        %v7587 = vld [vmem:[#allocation16 + $0x50] sm:$0xff]
        %v7588 = vld [vmem:[#allocation16 + $0x58] sm:$0xff]
        %v7589 = vld [vmem:[#allocation16 + $0x60] sm:$0xff]
        %v7590 = vld [vmem:[#allocation16 + $0x68] sm:$0xff]
        %v7591 = vld [vmem:[#allocation16 + $0x70] sm:$0xff]
        %v7592 = vld [vmem:[#allocation16 + $0x78] sm:$0xff]
        %v7593 = vld [vmem:[#allocation16 + $0x80] sm:$0xff]
        %v7594 = vld [vmem:[#allocation16 + $0x88] sm:$0xff]
        %v7595 = vld [vmem:[#allocation16 + $0x90] sm:$0xff]
        %v7596 = vld [vmem:[#allocation16 + $0x98] sm:$0xff]
        %v7597 = vld [vmem:[#allocation16 + $0xa0] sm:$0xff]
        %v7598 = vld [vmem:[#allocation16 + $0xa8] sm:$0xff]
        %v7599 = vld [vmem:[#allocation16 + $0xb0] sm:$0xff]
        %v7600 = vld [vmem:[#allocation16 + $0xb8] sm:$0xff]
        %v7601 = vld [vmem:[#allocation16 + $0xc0] sm:$0xff]
        %v7602 = vld [vmem:[#allocation16 + $0xc8] sm:$0xff]
        %v7603 = vld [vmem:[#allocation16 + $0xd0] sm:$0xff]
        %v7604 = vld [vmem:[#allocation16 + $0xd8] sm:$0xff]
        %v7605 = vld [vmem:[#allocation16 + $0xe0] sm:$0xff]
        %v7606 = vld [vmem:[#allocation16 + $0xe8] sm:$0xff]
        %v7607 = vld [vmem:[#allocation16 + $0xf0] sm:$0xff]
        %v7608 = vld [vmem:[#allocation16 + $0xf8] sm:$0xff]
        %v7609 = vld [vmem:[#allocation16 + $0x100] sm:$0xff]
        %v7610 = vld [vmem:[#allocation16 + $0x108] sm:$0xff]
        %v7611 = vld [vmem:[#allocation16 + $0x110] sm:$0xff]
        %v7612 = vld [vmem:[#allocation16 + $0x118] sm:$0xff]
        %v7613 = vld [vmem:[#allocation16 + $0x120] sm:$0xff]
        %v7614 = vld [vmem:[#allocation16 + $0x128] sm:$0xff]
        %v7615 = vld [vmem:[#allocation16 + $0x130] sm:$0xff]
        %v7616 = vld [vmem:[#allocation16 + $0x138] sm:$0xff]
        %v7617 = vld [vmem:[#allocation16 + $0x140] sm:$0xff]
        %v7618 = vld [vmem:[#allocation16 + $0x148] sm:$0xff]
        %v7619 = vld [vmem:[#allocation16 + $0x150] sm:$0xff]
        %v7620 = vld [vmem:[#allocation16 + $0x158] sm:$0xff]
        %v7621 = vld [vmem:[#allocation16 + $0x160] sm:$0xff]
        %v7622 = vld [vmem:[#allocation16 + $0x168] sm:$0xff]
        %v7623 = vld [vmem:[#allocation16 + $0x170] sm:$0xff]
        %v7624 = vld [vmem:[#allocation16 + $0x178] sm:$0xff]
        %v7625 = vld [vmem:[#allocation16 + $0x180] sm:$0xff]
        %v7626 = vld [vmem:[#allocation16 + $0x188] sm:$0xff]
        %v7627 = vld [vmem:[#allocation16 + $0x190] sm:$0xff]
        %v7628 = vld [vmem:[#allocation16 + $0x198] sm:$0xff]
        %v7629 = vld [vmem:[#allocation16 + $0x1a0] sm:$0xff]
        %v7630 = vld [vmem:[#allocation16 + $0x1a8] sm:$0xff]
        %v7631 = vld [vmem:[#allocation16 + $0x1b0] sm:$0xff]
        %v7632 = vld [vmem:[#allocation16 + $0x1b8] sm:$0xff]
        %v7633 = vld [vmem:[#allocation16 + $0x1c0] sm:$0xff]
        %v7634 = vld [vmem:[#allocation16 + $0x1c8] sm:$0xff]
        %v7635 = vld [vmem:[#allocation16 + $0x1d0] sm:$0xff]
        %v7636 = vld [vmem:[#allocation16 + $0x1d8] sm:$0xff]
        %v7637 = vld [vmem:[#allocation16 + $0x1e0] sm:$0xff]
        %v7638 = vld [vmem:[#allocation16 + $0x1e8] sm:$0xff]
        %v7639 = vld [vmem:[#allocation16 + $0x1f0] sm:$0xff]
        %v7640 = vld [vmem:[#allocation16 + $0x1f8] sm:$0xff]
        %v7641 = vld [vmem:[#allocation16 + $0x200] sm:$0xff]
        %v7642 = vld [vmem:[#allocation16 + $0x208] sm:$0xff]
        %v7643 = vld [vmem:[#allocation16 + $0x210] sm:$0xff]
        %v7644 = vld [vmem:[#allocation16 + $0x218] sm:$0xff]
        %v7645 = vld [vmem:[#allocation16 + $0x220] sm:$0xff]
        %v7646 = vld [vmem:[#allocation16 + $0x228] sm:$0xff]
        %v7647 = vld [vmem:[#allocation16 + $0x230] sm:$0xff]
        %v7648 = vld [vmem:[#allocation16 + $0x238] sm:$0xff]
        %v7649 = vld [vmem:[#allocation16 + $0x240] sm:$0xff]
        %v7650 = vld [vmem:[#allocation16 + $0x248] sm:$0xff]
        %v7651 = vld [vmem:[#allocation16 + $0x250] sm:$0xff]
        %v7652 = vld [vmem:[#allocation16 + $0x258] sm:$0xff]
        %v7653 = vld [vmem:[#allocation16 + $0x260] sm:$0xff]
        %v7654 = vld [vmem:[#allocation16 + $0x268] sm:$0xff]
        %v7655 = vld [vmem:[#allocation16 + $0x270] sm:$0xff]
        %v7656 = vld [vmem:[#allocation16 + $0x278] sm:$0xff]
        %v7657 = vld [vmem:[#allocation16 + $0x280] sm:$0xff]
        %v7658 = vld [vmem:[#allocation16 + $0x288] sm:$0xff]
        %v7659 = vld [vmem:[#allocation16 + $0x290] sm:$0xff]
        %v7660 = vld [vmem:[#allocation16 + $0x298] sm:$0xff]
        %v7661 = vld [vmem:[#allocation16 + $0x2a0] sm:$0xff]
        %v7662 = vld [vmem:[#allocation16 + $0x2a8] sm:$0xff]
        %v7663 = vld [vmem:[#allocation16 + $0x2b0] sm:$0xff]
        %v7664 = vld [vmem:[#allocation16 + $0x2b8] sm:$0xff]
        %v7665 = vld [vmem:[#allocation16 + $0x2c0] sm:$0xff]
        %v7666 = vld [vmem:[#allocation16 + $0x2c8] sm:$0xff]
        %v7667 = vld [vmem:[#allocation16 + $0x2d0] sm:$0xff]
        %v7668 = vld [vmem:[#allocation16 + $0x2d8] sm:$0xff]
        %v7669 = vld [vmem:[#allocation16 + $0x2e0] sm:$0xff]
        %v7670 = vld [vmem:[#allocation16 + $0x2e8] sm:$0xff]
        %v7671 = vld [vmem:[#allocation16 + $0x2f0] sm:$0xff]
        %v7672 = vld [vmem:[#allocation16 + $0x2f8] sm:$0xff]
        %v7673 = vld [vmem:[#allocation16 + $0x300] sm:$0xff]
        %v7674 = vld [vmem:[#allocation16 + $0x308] sm:$0xff]
        %v7675 = vld [vmem:[#allocation16 + $0x310] sm:$0xff]
        %v7676 = vld [vmem:[#allocation16 + $0x318] sm:$0xff]
        %v7677 = vld [vmem:[#allocation16 + $0x320] sm:$0xff]
        %v7678 = vld [vmem:[#allocation16 + $0x328] sm:$0xff]
        %v7679 = vld [vmem:[#allocation16 + $0x330] sm:$0xff]
        %v7680 = vld [vmem:[#allocation16 + $0x338] sm:$0xff]
        %v7681 = vld [vmem:[#allocation16 + $0x340] sm:$0xff]
        %v7682 = vld [vmem:[#allocation16 + $0x348] sm:$0xff]
        %v7683 = vld [vmem:[#allocation16 + $0x350] sm:$0xff]
        %v7684 = vld [vmem:[#allocation16 + $0x358] sm:$0xff]
        %v7685 = vld [vmem:[#allocation16 + $0x360] sm:$0xff]
        %v7686 = vld [vmem:[#allocation16 + $0x368] sm:$0xff]
        %v7687 = vld [vmem:[#allocation16 + $0x370] sm:$0xff]
        %v7688 = vld [vmem:[#allocation16 + $0x378] sm:$0xff]
        %v7689 = vld [vmem:[#allocation16 + $0x380] sm:$0xff]
        %v7690 = vld [vmem:[#allocation16 + $0x388] sm:$0xff]
        %v7691 = vld [vmem:[#allocation16 + $0x390] sm:$0xff]
        %v7692 = vld [vmem:[#allocation16 + $0x398] sm:$0xff]
        %v7693 = vld [vmem:[#allocation16 + $0x3a0] sm:$0xff]
        %v7694 = vld [vmem:[#allocation16 + $0x3a8] sm:$0xff]
        %v7695 = vld [vmem:[#allocation16 + $0x3b0] sm:$0xff]
        %v7696 = vld [vmem:[#allocation16 + $0x3b8] sm:$0xff]
        %v7697 = vld [vmem:[#allocation16 + $0x3c0] sm:$0xff]
        %v7698 = vld [vmem:[#allocation16 + $0x3c8] sm:$0xff]
        %v7699 = vld [vmem:[#allocation16 + $0x3d0] sm:$0xff]
        %v7700 = vld [vmem:[#allocation16 + $0x3d8] sm:$0xff]
        %v7701 = vld [vmem:[#allocation16 + $0x3e0] sm:$0xff]
        %v7702 = vld [vmem:[#allocation16 + $0x3e8] sm:$0xff]
        %v7703 = vld [vmem:[#allocation16 + $0x3f0] sm:$0xff]
        %v7704 = vld [vmem:[#allocation16 + $0x3f8] sm:$0xff]
        %v7705 = vld [vmem:[#allocation16 + $0x400] sm:$0xff]
        %v7706 = vld [vmem:[#allocation16 + $0x408] sm:$0xff]
        %v7707 = vld [vmem:[#allocation16 + $0x410] sm:$0xff]
        %v7708 = vld [vmem:[#allocation16 + $0x418] sm:$0xff]
        %v7709 = vld [vmem:[#allocation16 + $0x420] sm:$0xff]
        %v7710 = vld [vmem:[#allocation16 + $0x428] sm:$0xff]
        %v7711 = vld [vmem:[#allocation16 + $0x430] sm:$0xff]
        %v7712 = vld [vmem:[#allocation16 + $0x438] sm:$0xff]
        %v7713 = vld [vmem:[#allocation16 + $0x440] sm:$0xff]
        %v7714 = vld [vmem:[#allocation16 + $0x448] sm:$0xff]
        %v7715 = vld [vmem:[#allocation16 + $0x450] sm:$0xff]
        %v7716 = vld [vmem:[#allocation16 + $0x458] sm:$0xff]
        %v7717 = vld [vmem:[#allocation16 + $0x460] sm:$0xff]
        %v7718 = vld [vmem:[#allocation16 + $0x468] sm:$0xff]
        %v7719 = vld [vmem:[#allocation16 + $0x470] sm:$0xff]
        %v7720 = vld [vmem:[#allocation16 + $0x478] sm:$0xff]
        %v7721 = vld [vmem:[#allocation16 + $0x480] sm:$0xff]
        %v7722 = vld [vmem:[#allocation16 + $0x488] sm:$0xff]
        %v7723 = vld [vmem:[#allocation16 + $0x490] sm:$0xff]
        %v7724 = vld [vmem:[#allocation16 + $0x498] sm:$0xff]
        %v7725 = vld [vmem:[#allocation16 + $0x4a0] sm:$0xff]
        %v7726 = vld [vmem:[#allocation16 + $0x4a8] sm:$0xff]
        %v7727 = vld [vmem:[#allocation16 + $0x4b0] sm:$0xff]
        %v7728 = vld [vmem:[#allocation16 + $0x4b8] sm:$0xff]
        %v7729 = vld [vmem:[#allocation16 + $0x4c0] sm:$0xff]
        %v7730 = vld [vmem:[#allocation16 + $0x4c8] sm:$0xff]
        %v7731 = vld [vmem:[#allocation16 + $0x4d0] sm:$0xff]
        %v7732 = vld [vmem:[#allocation16 + $0x4d8] sm:$0xff]
        %v7733 = vld [vmem:[#allocation16 + $0x4e0] sm:$0xff]
        %v7734 = vld [vmem:[#allocation16 + $0x4e8] sm:$0xff]
        %v7735 = vld [vmem:[#allocation16 + $0x4f0] sm:$0xff]
        %v7736 = vld [vmem:[#allocation16 + $0x4f8] sm:$0xff]
        %v7737 = vld [vmem:[#allocation16 + $0x500] sm:$0xff]
        %v7738 = vld [vmem:[#allocation16 + $0x508] sm:$0xff]
        %v7739 = vld [vmem:[#allocation16 + $0x510] sm:$0xff]
        %v7740 = vld [vmem:[#allocation16 + $0x518] sm:$0xff]
        %v7741 = vld [vmem:[#allocation16 + $0x520] sm:$0xff]
        %v7742 = vld [vmem:[#allocation16 + $0x528] sm:$0xff]
        %v7743 = vld [vmem:[#allocation16 + $0x530] sm:$0xff]
        %v7744 = vld [vmem:[#allocation16 + $0x538] sm:$0xff]
        %v7745 = vld [vmem:[#allocation16 + $0x540] sm:$0xff]
        %v7746 = vld [vmem:[#allocation16 + $0x548] sm:$0xff]
        %v7747 = vld [vmem:[#allocation16 + $0x550] sm:$0xff]
        %v7748 = vld [vmem:[#allocation16 + $0x558] sm:$0xff]
        %v7749 = vld [vmem:[#allocation16 + $0x560] sm:$0xff]
        %v7750 = vld [vmem:[#allocation16 + $0x568] sm:$0xff]
        %v7751 = vld [vmem:[#allocation16 + $0x570] sm:$0xff]
        %v7752 = vld [vmem:[#allocation16 + $0x578] sm:$0xff]
        %v7753 = vld [vmem:[#allocation16 + $0x580] sm:$0xff]
        %v7754 = vld [vmem:[#allocation16 + $0x588] sm:$0xff]
        %v7755 = vld [vmem:[#allocation16 + $0x590] sm:$0xff]
        %v7756 = vld [vmem:[#allocation16 + $0x598] sm:$0xff]
        %v7757 = vld [vmem:[#allocation16 + $0x5a0] sm:$0xff]
        %v7758 = vld [vmem:[#allocation16 + $0x5a8] sm:$0xff]
        %v7759 = vld [vmem:[#allocation16 + $0x5b0] sm:$0xff]
        %v7760 = vld [vmem:[#allocation16 + $0x5b8] sm:$0xff]
        %v7761 = vld [vmem:[#allocation16 + $0x5c0] sm:$0xff]
        %v7762 = vld [vmem:[#allocation16 + $0x5c8] sm:$0xff]
        %v7763 = vld [vmem:[#allocation16 + $0x5d0] sm:$0xff]
        %v7764 = vld [vmem:[#allocation16 + $0x5d8] sm:$0xff]
        %v7765 = vld [vmem:[#allocation16 + $0x5e0] sm:$0xff]
        %v7766 = vld [vmem:[#allocation16 + $0x5e8] sm:$0xff]
        %v7767 = vld [vmem:[#allocation16 + $0x5f0] sm:$0xff]
        %v7768 = vld [vmem:[#allocation16 + $0x5f8] sm:$0xff]
        %v7769 = vld [vmem:[#allocation16 + $0x600] sm:$0xff]
        %v7770 = vld [vmem:[#allocation16 + $0x608] sm:$0xff]
        %v7771 = vld [vmem:[#allocation16 + $0x610] sm:$0xff]
        %v7772 = vld [vmem:[#allocation16 + $0x618] sm:$0xff]
        %v7773 = vld [vmem:[#allocation16 + $0x620] sm:$0xff]
        %v7774 = vld [vmem:[#allocation16 + $0x628] sm:$0xff]
        %v7775 = vld [vmem:[#allocation16 + $0x630] sm:$0xff]
        %v7776 = vld [vmem:[#allocation16 + $0x638] sm:$0xff]
        %v7777 = vld [vmem:[#allocation16 + $0x640] sm:$0xff]
        %v7778 = vld [vmem:[#allocation16 + $0x648] sm:$0xff]
        %v7779 = vld [vmem:[#allocation16 + $0x650] sm:$0xff]
        %v7780 = vld [vmem:[#allocation16 + $0x658] sm:$0xff]
        %v7781 = vld [vmem:[#allocation16 + $0x660] sm:$0xff]
        %v7782 = vld [vmem:[#allocation16 + $0x668] sm:$0xff]
        %v7783 = vld [vmem:[#allocation16 + $0x670] sm:$0xff]
        %v7784 = vld [vmem:[#allocation16 + $0x678] sm:$0xff]
        %v7785 = vld [vmem:[#allocation16 + $0x680] sm:$0xff]
        %v7786 = vld [vmem:[#allocation16 + $0x688] sm:$0xff]
        %v7787 = vld [vmem:[#allocation16 + $0x690] sm:$0xff]
        %v7788 = vld [vmem:[#allocation16 + $0x698] sm:$0xff]
        %v7789 = vld [vmem:[#allocation16 + $0x6a0] sm:$0xff]
        %v7790 = vld [vmem:[#allocation16 + $0x6a8] sm:$0xff]
        %v7791 = vld [vmem:[#allocation16 + $0x6b0] sm:$0xff]
        %v7792 = vld [vmem:[#allocation16 + $0x6b8] sm:$0xff]
        %v7793 = vld [vmem:[#allocation16 + $0x6c0] sm:$0xff]
        %v7794 = vld [vmem:[#allocation16 + $0x6c8] sm:$0xff]
        %v7795 = vld [vmem:[#allocation16 + $0x6d0] sm:$0xff]
        %v7796 = vld [vmem:[#allocation16 + $0x6d8] sm:$0xff]
        %v7797 = vld [vmem:[#allocation16 + $0x6e0] sm:$0xff]
        %v7798 = vld [vmem:[#allocation16 + $0x6e8] sm:$0xff]
        %v7799 = vld [vmem:[#allocation16 + $0x6f0] sm:$0xff]
        %v7800 = vld [vmem:[#allocation16 + $0x6f8] sm:$0xff]
        %v7801 = vld [vmem:[#allocation16 + $0x700] sm:$0xff]
        %v7802 = vld [vmem:[#allocation16 + $0x708] sm:$0xff]
        %v7803 = vld [vmem:[#allocation16 + $0x710] sm:$0xff]
        %v7804 = vld [vmem:[#allocation16 + $0x718] sm:$0xff]
        %v7805 = vld [vmem:[#allocation16 + $0x720] sm:$0xff]
        %v7806 = vld [vmem:[#allocation16 + $0x728] sm:$0xff]
        %v7807 = vld [vmem:[#allocation16 + $0x730] sm:$0xff]
        %v7808 = vld [vmem:[#allocation16 + $0x738] sm:$0xff]
        %v7809 = vld [vmem:[#allocation16 + $0x740] sm:$0xff]
        %v7810 = vld [vmem:[#allocation16 + $0x748] sm:$0xff]
        %v7811 = vld [vmem:[#allocation16 + $0x750] sm:$0xff]
        %v7812 = vld [vmem:[#allocation16 + $0x758] sm:$0xff]
        %v7813 = vld [vmem:[#allocation16 + $0x760] sm:$0xff]
        %v7814 = vld [vmem:[#allocation16 + $0x768] sm:$0xff]
        %v7815 = vld [vmem:[#allocation16 + $0x770] sm:$0xff]
        %v7816 = vld [vmem:[#allocation16 + $0x778] sm:$0xff]
        %v7817 = vld [vmem:[#allocation16 + $0x780] sm:$0xff]
        %v7818 = vld [vmem:[#allocation16 + $0x788] sm:$0xff]
        %v7819 = vld [vmem:[#allocation16 + $0x790] sm:$0xff]
        %v7820 = vld [vmem:[#allocation16 + $0x798] sm:$0xff]
        %v7821 = vld [vmem:[#allocation16 + $0x7a0] sm:$0xff]
        %v7822 = vld [vmem:[#allocation16 + $0x7a8] sm:$0xff]
        %v7823 = vld [vmem:[#allocation16 + $0x7b0] sm:$0xff]
        %v7824 = vld [vmem:[#allocation16 + $0x7b8] sm:$0xff]
        %v7825 = vld [vmem:[#allocation16 + $0x7c0] sm:$0xff]
        %v7826 = vld [vmem:[#allocation16 + $0x7c8] sm:$0xff]
        %v7827 = vld [vmem:[#allocation16 + $0x7d0] sm:$0xff]
        %v7828 = vld [vmem:[#allocation16 + $0x7d8] sm:$0xff]
        %v7829 = vld [vmem:[#allocation16 + $0x7e0] sm:$0xff]
        %v7830 = vld [vmem:[#allocation16 + $0x7e8] sm:$0xff]
        %v7831 = vld [vmem:[#allocation16 + $0x7f0] sm:$0xff]
        %v7832 = vld [vmem:[#allocation16 + $0x7f8] sm:$0xff]
        %v8089 = vunpack.c.l.b16 %v7577
        %v8090 = vunpack.c.h.b16 %v7577
        %v8091 = vunpack.c.l.b16 %v7578
        %v8092 = vunpack.c.h.b16 %v7578
        %v8093 = vunpack.c.l.b16 %v7579
        %v8094 = vunpack.c.h.b16 %v7579
        %v8095 = vunpack.c.l.b16 %v7580
        %v8096 = vunpack.c.h.b16 %v7580
        %v8097 = vunpack.c.l.b16 %v7581
        %v8098 = vunpack.c.h.b16 %v7581
        %v8099 = vunpack.c.l.b16 %v7582
        %v8100 = vunpack.c.h.b16 %v7582
        %v8101 = vunpack.c.l.b16 %v7583
        %v8102 = vunpack.c.h.b16 %v7583
        %v8103 = vunpack.c.l.b16 %v7584
        %v8104 = vunpack.c.h.b16 %v7584
        %v8105 = vunpack.c.l.b16 %v7585
        %v8106 = vunpack.c.h.b16 %v7585
        %v8107 = vunpack.c.l.b16 %v7586
        %v8108 = vunpack.c.h.b16 %v7586
        %v8109 = vunpack.c.l.b16 %v7587
        %v8110 = vunpack.c.h.b16 %v7587
        %v8111 = vunpack.c.l.b16 %v7588
        %v8112 = vunpack.c.h.b16 %v7588
        %v8113 = vunpack.c.l.b16 %v7589
        %v8114 = vunpack.c.h.b16 %v7589
        %v8115 = vunpack.c.l.b16 %v7590
        %v8116 = vunpack.c.h.b16 %v7590
        %v8117 = vunpack.c.l.b16 %v7591
        %v8118 = vunpack.c.h.b16 %v7591
        %v8119 = vunpack.c.l.b16 %v7592
        %v8120 = vunpack.c.h.b16 %v7592
        %v8121 = vunpack.c.l.b16 %v7593
        %v8122 = vunpack.c.h.b16 %v7593
        %v8123 = vunpack.c.l.b16 %v7594
        %v8124 = vunpack.c.h.b16 %v7594
        %v8125 = vunpack.c.l.b16 %v7595
        %v8126 = vunpack.c.h.b16 %v7595
        %v8127 = vunpack.c.l.b16 %v7596
        %v8128 = vunpack.c.h.b16 %v7596
        %v8129 = vunpack.c.l.b16 %v7597
        %v8130 = vunpack.c.h.b16 %v7597
        %v8131 = vunpack.c.l.b16 %v7598
        %v8132 = vunpack.c.h.b16 %v7598
        %v8133 = vunpack.c.l.b16 %v7599
        %v8134 = vunpack.c.h.b16 %v7599
        %v8135 = vunpack.c.l.b16 %v7600
        %v8136 = vunpack.c.h.b16 %v7600
        %v8137 = vunpack.c.l.b16 %v7601
        %v8138 = vunpack.c.h.b16 %v7601
        %v8139 = vunpack.c.l.b16 %v7602
        %v8140 = vunpack.c.h.b16 %v7602
        %v8141 = vunpack.c.l.b16 %v7603
        %v8142 = vunpack.c.h.b16 %v7603
        %v8143 = vunpack.c.l.b16 %v7604
        %v8144 = vunpack.c.h.b16 %v7604
        %v8145 = vunpack.c.l.b16 %v7605
        %v8146 = vunpack.c.h.b16 %v7605
        %v8147 = vunpack.c.l.b16 %v7606
        %v8148 = vunpack.c.h.b16 %v7606
        %v8149 = vunpack.c.l.b16 %v7607
        %v8150 = vunpack.c.h.b16 %v7607
        %v8151 = vunpack.c.l.b16 %v7608
        %v8152 = vunpack.c.h.b16 %v7608
        %v8153 = vunpack.c.l.b16 %v7609
        %v8154 = vunpack.c.h.b16 %v7609
        %v8155 = vunpack.c.l.b16 %v7610
        %v8156 = vunpack.c.h.b16 %v7610
        %v8157 = vunpack.c.l.b16 %v7611
        %v8158 = vunpack.c.h.b16 %v7611
        %v8159 = vunpack.c.l.b16 %v7612
        %v8160 = vunpack.c.h.b16 %v7612
        %v8161 = vunpack.c.l.b16 %v7613
        %v8162 = vunpack.c.h.b16 %v7613
        %v8163 = vunpack.c.l.b16 %v7614
        %v8164 = vunpack.c.h.b16 %v7614
        %v8165 = vunpack.c.l.b16 %v7615
        %v8166 = vunpack.c.h.b16 %v7615
        %v8167 = vunpack.c.l.b16 %v7616
        %v8168 = vunpack.c.h.b16 %v7616
        %v8169 = vunpack.c.l.b16 %v7617
        %v8170 = vunpack.c.h.b16 %v7617
        %v8171 = vunpack.c.l.b16 %v7618
        %v8172 = vunpack.c.h.b16 %v7618
        %v8173 = vunpack.c.l.b16 %v7619
        %v8174 = vunpack.c.h.b16 %v7619
        %v8175 = vunpack.c.l.b16 %v7620
        %v8176 = vunpack.c.h.b16 %v7620
        %v8177 = vunpack.c.l.b16 %v7621
        %v8178 = vunpack.c.h.b16 %v7621
        %v8179 = vunpack.c.l.b16 %v7622
        %v8180 = vunpack.c.h.b16 %v7622
        %v8181 = vunpack.c.l.b16 %v7623
        %v8182 = vunpack.c.h.b16 %v7623
        %v8183 = vunpack.c.l.b16 %v7624
        %v8184 = vunpack.c.h.b16 %v7624
        %v8185 = vunpack.c.l.b16 %v7625
        %v8186 = vunpack.c.h.b16 %v7625
        %v8187 = vunpack.c.l.b16 %v7626
        %v8188 = vunpack.c.h.b16 %v7626
        %v8189 = vunpack.c.l.b16 %v7627
        %v8190 = vunpack.c.h.b16 %v7627
        %v8191 = vunpack.c.l.b16 %v7628
        %v8192 = vunpack.c.h.b16 %v7628
        %v8193 = vunpack.c.l.b16 %v7629
        %v8194 = vunpack.c.h.b16 %v7629
        %v8195 = vunpack.c.l.b16 %v7630
        %v8196 = vunpack.c.h.b16 %v7630
        %v8197 = vunpack.c.l.b16 %v7631
        %v8198 = vunpack.c.h.b16 %v7631
        %v8199 = vunpack.c.l.b16 %v7632
        %v8200 = vunpack.c.h.b16 %v7632
        %v8201 = vunpack.c.l.b16 %v7633
        %v8202 = vunpack.c.h.b16 %v7633
        %v8203 = vunpack.c.l.b16 %v7634
        %v8204 = vunpack.c.h.b16 %v7634
        %v8205 = vunpack.c.l.b16 %v7635
        %v8206 = vunpack.c.h.b16 %v7635
        %v8207 = vunpack.c.l.b16 %v7636
        %v8208 = vunpack.c.h.b16 %v7636
        %v8209 = vunpack.c.l.b16 %v7637
        %v8210 = vunpack.c.h.b16 %v7637
        %v8211 = vunpack.c.l.b16 %v7638
        %v8212 = vunpack.c.h.b16 %v7638
        %v8213 = vunpack.c.l.b16 %v7639
        %v8214 = vunpack.c.h.b16 %v7639
        %v8215 = vunpack.c.l.b16 %v7640
        %v8216 = vunpack.c.h.b16 %v7640
        %v8217 = vunpack.c.l.b16 %v7641
        %v8218 = vunpack.c.h.b16 %v7641
        %v8219 = vunpack.c.l.b16 %v7642
        %v8220 = vunpack.c.h.b16 %v7642
        %v8221 = vunpack.c.l.b16 %v7643
        %v8222 = vunpack.c.h.b16 %v7643
        %v8223 = vunpack.c.l.b16 %v7644
        %v8224 = vunpack.c.h.b16 %v7644
        %v8225 = vunpack.c.l.b16 %v7645
        %v8226 = vunpack.c.h.b16 %v7645
        %v8227 = vunpack.c.l.b16 %v7646
        %v8228 = vunpack.c.h.b16 %v7646
        %v8229 = vunpack.c.l.b16 %v7647
        %v8230 = vunpack.c.h.b16 %v7647
        %v8231 = vunpack.c.l.b16 %v7648
        %v8232 = vunpack.c.h.b16 %v7648
        %v8233 = vunpack.c.l.b16 %v7649
        %v8234 = vunpack.c.h.b16 %v7649
        %v8235 = vunpack.c.l.b16 %v7650
        %v8236 = vunpack.c.h.b16 %v7650
        %v8237 = vunpack.c.l.b16 %v7651
        %v8238 = vunpack.c.h.b16 %v7651
        %v8239 = vunpack.c.l.b16 %v7652
        %v8240 = vunpack.c.h.b16 %v7652
        %v8241 = vunpack.c.l.b16 %v7653
        %v8242 = vunpack.c.h.b16 %v7653
        %v8243 = vunpack.c.l.b16 %v7654
        %v8244 = vunpack.c.h.b16 %v7654
        %v8245 = vunpack.c.l.b16 %v7655
        %v8246 = vunpack.c.h.b16 %v7655
        %v8247 = vunpack.c.l.b16 %v7656
        %v8248 = vunpack.c.h.b16 %v7656
        %v8249 = vunpack.c.l.b16 %v7657
        %v8250 = vunpack.c.h.b16 %v7657
        %v8251 = vunpack.c.l.b16 %v7658
        %v8252 = vunpack.c.h.b16 %v7658
        %v8253 = vunpack.c.l.b16 %v7659
        %v8254 = vunpack.c.h.b16 %v7659
        %v8255 = vunpack.c.l.b16 %v7660
        %v8256 = vunpack.c.h.b16 %v7660
        %v8257 = vunpack.c.l.b16 %v7661
        %v8258 = vunpack.c.h.b16 %v7661
        %v8259 = vunpack.c.l.b16 %v7662
        %v8260 = vunpack.c.h.b16 %v7662
        %v8261 = vunpack.c.l.b16 %v7663
        %v8262 = vunpack.c.h.b16 %v7663
        %v8263 = vunpack.c.l.b16 %v7664
        %v8264 = vunpack.c.h.b16 %v7664
        %v8265 = vunpack.c.l.b16 %v7665
        %v8266 = vunpack.c.h.b16 %v7665
        %v8267 = vunpack.c.l.b16 %v7666
        %v8268 = vunpack.c.h.b16 %v7666
        %v8269 = vunpack.c.l.b16 %v7667
        %v8270 = vunpack.c.h.b16 %v7667
        %v8271 = vunpack.c.l.b16 %v7668
        %v8272 = vunpack.c.h.b16 %v7668
        %v8273 = vunpack.c.l.b16 %v7669
        %v8274 = vunpack.c.h.b16 %v7669
        %v8275 = vunpack.c.l.b16 %v7670
        %v8276 = vunpack.c.h.b16 %v7670
        %v8277 = vunpack.c.l.b16 %v7671
        %v8278 = vunpack.c.h.b16 %v7671
        %v8279 = vunpack.c.l.b16 %v7672
        %v8280 = vunpack.c.h.b16 %v7672
        %v8281 = vunpack.c.l.b16 %v7673
        %v8282 = vunpack.c.h.b16 %v7673
        %v8283 = vunpack.c.l.b16 %v7674
        %v8284 = vunpack.c.h.b16 %v7674
        %v8285 = vunpack.c.l.b16 %v7675
        %v8286 = vunpack.c.h.b16 %v7675
        %v8287 = vunpack.c.l.b16 %v7676
        %v8288 = vunpack.c.h.b16 %v7676
        %v8289 = vunpack.c.l.b16 %v7677
        %v8290 = vunpack.c.h.b16 %v7677
        %v8291 = vunpack.c.l.b16 %v7678
        %v8292 = vunpack.c.h.b16 %v7678
        %v8293 = vunpack.c.l.b16 %v7679
        %v8294 = vunpack.c.h.b16 %v7679
        %v8295 = vunpack.c.l.b16 %v7680
        %v8296 = vunpack.c.h.b16 %v7680
        %v8297 = vunpack.c.l.b16 %v7681
        %v8298 = vunpack.c.h.b16 %v7681
        %v8299 = vunpack.c.l.b16 %v7682
        %v8300 = vunpack.c.h.b16 %v7682
        %v8301 = vunpack.c.l.b16 %v7683
        %v8302 = vunpack.c.h.b16 %v7683
        %v8303 = vunpack.c.l.b16 %v7684
        %v8304 = vunpack.c.h.b16 %v7684
        %v8305 = vunpack.c.l.b16 %v7685
        %v8306 = vunpack.c.h.b16 %v7685
        %v8307 = vunpack.c.l.b16 %v7686
        %v8308 = vunpack.c.h.b16 %v7686
        %v8309 = vunpack.c.l.b16 %v7687
        %v8310 = vunpack.c.h.b16 %v7687
        %v8311 = vunpack.c.l.b16 %v7688
        %v8312 = vunpack.c.h.b16 %v7688
        %v8313 = vunpack.c.l.b16 %v7689
        %v8314 = vunpack.c.h.b16 %v7689
        %v8315 = vunpack.c.l.b16 %v7690
        %v8316 = vunpack.c.h.b16 %v7690
        %v8317 = vunpack.c.l.b16 %v7691
        %v8318 = vunpack.c.h.b16 %v7691
        %v8319 = vunpack.c.l.b16 %v7692
        %v8320 = vunpack.c.h.b16 %v7692
        %v8321 = vunpack.c.l.b16 %v7693
        %v8322 = vunpack.c.h.b16 %v7693
        %v8323 = vunpack.c.l.b16 %v7694
        %v8324 = vunpack.c.h.b16 %v7694
        %v8325 = vunpack.c.l.b16 %v7695
        %v8326 = vunpack.c.h.b16 %v7695
        %v8327 = vunpack.c.l.b16 %v7696
        %v8328 = vunpack.c.h.b16 %v7696
        %v8329 = vunpack.c.l.b16 %v7697
        %v8330 = vunpack.c.h.b16 %v7697
        %v8331 = vunpack.c.l.b16 %v7698
        %v8332 = vunpack.c.h.b16 %v7698
        %v8333 = vunpack.c.l.b16 %v7699
        %v8334 = vunpack.c.h.b16 %v7699
        %v8335 = vunpack.c.l.b16 %v7700
        %v8336 = vunpack.c.h.b16 %v7700
        %v8337 = vunpack.c.l.b16 %v7701
        %v8338 = vunpack.c.h.b16 %v7701
        %v8339 = vunpack.c.l.b16 %v7702
        %v8340 = vunpack.c.h.b16 %v7702
        %v8341 = vunpack.c.l.b16 %v7703
        %v8342 = vunpack.c.h.b16 %v7703
        %v8343 = vunpack.c.l.b16 %v7704
        %v8344 = vunpack.c.h.b16 %v7704
        %v8345 = vunpack.c.l.b16 %v7705
        %v8346 = vunpack.c.h.b16 %v7705
        %v8347 = vunpack.c.l.b16 %v7706
        %v8348 = vunpack.c.h.b16 %v7706
        %v8349 = vunpack.c.l.b16 %v7707
        %v8350 = vunpack.c.h.b16 %v7707
        %v8351 = vunpack.c.l.b16 %v7708
        %v8352 = vunpack.c.h.b16 %v7708
        %v8353 = vunpack.c.l.b16 %v7709
        %v8354 = vunpack.c.h.b16 %v7709
        %v8355 = vunpack.c.l.b16 %v7710
        %v8356 = vunpack.c.h.b16 %v7710
        %v8357 = vunpack.c.l.b16 %v7711
        %v8358 = vunpack.c.h.b16 %v7711
        %v8359 = vunpack.c.l.b16 %v7712
        %v8360 = vunpack.c.h.b16 %v7712
        %v8361 = vunpack.c.l.b16 %v7713
        %v8362 = vunpack.c.h.b16 %v7713
        %v8363 = vunpack.c.l.b16 %v7714
        %v8364 = vunpack.c.h.b16 %v7714
        %v8365 = vunpack.c.l.b16 %v7715
        %v8366 = vunpack.c.h.b16 %v7715
        %v8367 = vunpack.c.l.b16 %v7716
        %v8368 = vunpack.c.h.b16 %v7716
        %v8369 = vunpack.c.l.b16 %v7717
        %v8370 = vunpack.c.h.b16 %v7717
        %v8371 = vunpack.c.l.b16 %v7718
        %v8372 = vunpack.c.h.b16 %v7718
        %v8373 = vunpack.c.l.b16 %v7719
        %v8374 = vunpack.c.h.b16 %v7719
        %v8375 = vunpack.c.l.b16 %v7720
        %v8376 = vunpack.c.h.b16 %v7720
        %v8377 = vunpack.c.l.b16 %v7721
        %v8378 = vunpack.c.h.b16 %v7721
        %v8379 = vunpack.c.l.b16 %v7722
        %v8380 = vunpack.c.h.b16 %v7722
        %v8381 = vunpack.c.l.b16 %v7723
        %v8382 = vunpack.c.h.b16 %v7723
        %v8383 = vunpack.c.l.b16 %v7724
        %v8384 = vunpack.c.h.b16 %v7724
        %v8385 = vunpack.c.l.b16 %v7725
        %v8386 = vunpack.c.h.b16 %v7725
        %v8387 = vunpack.c.l.b16 %v7726
        %v8388 = vunpack.c.h.b16 %v7726
        %v8389 = vunpack.c.l.b16 %v7727
        %v8390 = vunpack.c.h.b16 %v7727
        %v8391 = vunpack.c.l.b16 %v7728
        %v8392 = vunpack.c.h.b16 %v7728
        %v8393 = vunpack.c.l.b16 %v7729
        %v8394 = vunpack.c.h.b16 %v7729
        %v8395 = vunpack.c.l.b16 %v7730
        %v8396 = vunpack.c.h.b16 %v7730
        %v8397 = vunpack.c.l.b16 %v7731
        %v8398 = vunpack.c.h.b16 %v7731
        %v8399 = vunpack.c.l.b16 %v7732
        %v8400 = vunpack.c.h.b16 %v7732
        %v8401 = vunpack.c.l.b16 %v7733
        %v8402 = vunpack.c.h.b16 %v7733
        %v8403 = vunpack.c.l.b16 %v7734
        %v8404 = vunpack.c.h.b16 %v7734
        %v8405 = vunpack.c.l.b16 %v7735
        %v8406 = vunpack.c.h.b16 %v7735
        %v8407 = vunpack.c.l.b16 %v7736
        %v8408 = vunpack.c.h.b16 %v7736
        %v8409 = vunpack.c.l.b16 %v7737
        %v8410 = vunpack.c.h.b16 %v7737
        %v8411 = vunpack.c.l.b16 %v7738
        %v8412 = vunpack.c.h.b16 %v7738
        %v8413 = vunpack.c.l.b16 %v7739
        %v8414 = vunpack.c.h.b16 %v7739
        %v8415 = vunpack.c.l.b16 %v7740
        %v8416 = vunpack.c.h.b16 %v7740
        %v8417 = vunpack.c.l.b16 %v7741
        %v8418 = vunpack.c.h.b16 %v7741
        %v8419 = vunpack.c.l.b16 %v7742
        %v8420 = vunpack.c.h.b16 %v7742
        %v8421 = vunpack.c.l.b16 %v7743
        %v8422 = vunpack.c.h.b16 %v7743
        %v8423 = vunpack.c.l.b16 %v7744
        %v8424 = vunpack.c.h.b16 %v7744
        %v8425 = vunpack.c.l.b16 %v7745
        %v8426 = vunpack.c.h.b16 %v7745
        %v8427 = vunpack.c.l.b16 %v7746
        %v8428 = vunpack.c.h.b16 %v7746
        %v8429 = vunpack.c.l.b16 %v7747
        %v8430 = vunpack.c.h.b16 %v7747
        %v8431 = vunpack.c.l.b16 %v7748
        %v8432 = vunpack.c.h.b16 %v7748
        %v8433 = vunpack.c.l.b16 %v7749
        %v8434 = vunpack.c.h.b16 %v7749
        %v8435 = vunpack.c.l.b16 %v7750
        %v8436 = vunpack.c.h.b16 %v7750
        %v8437 = vunpack.c.l.b16 %v7751
        %v8438 = vunpack.c.h.b16 %v7751
        %v8439 = vunpack.c.l.b16 %v7752
        %v8440 = vunpack.c.h.b16 %v7752
        %v8441 = vunpack.c.l.b16 %v7753
        %v8442 = vunpack.c.h.b16 %v7753
        %v8443 = vunpack.c.l.b16 %v7754
        %v8444 = vunpack.c.h.b16 %v7754
        %v8445 = vunpack.c.l.b16 %v7755
        %v8446 = vunpack.c.h.b16 %v7755
        %v8447 = vunpack.c.l.b16 %v7756
        %v8448 = vunpack.c.h.b16 %v7756
        %v8449 = vunpack.c.l.b16 %v7757
        %v8450 = vunpack.c.h.b16 %v7757
        %v8451 = vunpack.c.l.b16 %v7758
        %v8452 = vunpack.c.h.b16 %v7758
        %v8453 = vunpack.c.l.b16 %v7759
        %v8454 = vunpack.c.h.b16 %v7759
        %v8455 = vunpack.c.l.b16 %v7760
        %v8456 = vunpack.c.h.b16 %v7760
        %v8457 = vunpack.c.l.b16 %v7761
        %v8458 = vunpack.c.h.b16 %v7761
        %v8459 = vunpack.c.l.b16 %v7762
        %v8460 = vunpack.c.h.b16 %v7762
        %v8461 = vunpack.c.l.b16 %v7763
        %v8462 = vunpack.c.h.b16 %v7763
        %v8463 = vunpack.c.l.b16 %v7764
        %v8464 = vunpack.c.h.b16 %v7764
        %v8465 = vunpack.c.l.b16 %v7765
        %v8466 = vunpack.c.h.b16 %v7765
        %v8467 = vunpack.c.l.b16 %v7766
        %v8468 = vunpack.c.h.b16 %v7766
        %v8469 = vunpack.c.l.b16 %v7767
        %v8470 = vunpack.c.h.b16 %v7767
        %v8471 = vunpack.c.l.b16 %v7768
        %v8472 = vunpack.c.h.b16 %v7768
        %v8473 = vunpack.c.l.b16 %v7769
        %v8474 = vunpack.c.h.b16 %v7769
        %v8475 = vunpack.c.l.b16 %v7770
        %v8476 = vunpack.c.h.b16 %v7770
        %v8477 = vunpack.c.l.b16 %v7771
        %v8478 = vunpack.c.h.b16 %v7771
        %v8479 = vunpack.c.l.b16 %v7772
        %v8480 = vunpack.c.h.b16 %v7772
        %v8481 = vunpack.c.l.b16 %v7773
        %v8482 = vunpack.c.h.b16 %v7773
        %v8483 = vunpack.c.l.b16 %v7774
        %v8484 = vunpack.c.h.b16 %v7774
        %v8485 = vunpack.c.l.b16 %v7775
        %v8486 = vunpack.c.h.b16 %v7775
        %v8487 = vunpack.c.l.b16 %v7776
        %v8488 = vunpack.c.h.b16 %v7776
        %v8489 = vunpack.c.l.b16 %v7777
        %v8490 = vunpack.c.h.b16 %v7777
        %v8491 = vunpack.c.l.b16 %v7778
        %v8492 = vunpack.c.h.b16 %v7778
        %v8493 = vunpack.c.l.b16 %v7779
        %v8494 = vunpack.c.h.b16 %v7779
        %v8495 = vunpack.c.l.b16 %v7780
        %v8496 = vunpack.c.h.b16 %v7780
        %v8497 = vunpack.c.l.b16 %v7781
        %v8498 = vunpack.c.h.b16 %v7781
        %v8499 = vunpack.c.l.b16 %v7782
        %v8500 = vunpack.c.h.b16 %v7782
        %v8501 = vunpack.c.l.b16 %v7783
        %v8502 = vunpack.c.h.b16 %v7783
        %v8503 = vunpack.c.l.b16 %v7784
        %v8504 = vunpack.c.h.b16 %v7784
        %v8505 = vunpack.c.l.b16 %v7785
        %v8506 = vunpack.c.h.b16 %v7785
        %v8507 = vunpack.c.l.b16 %v7786
        %v8508 = vunpack.c.h.b16 %v7786
        %v8509 = vunpack.c.l.b16 %v7787
        %v8510 = vunpack.c.h.b16 %v7787
        %v8511 = vunpack.c.l.b16 %v7788
        %v8512 = vunpack.c.h.b16 %v7788
        %v8513 = vunpack.c.l.b16 %v7789
        %v8514 = vunpack.c.h.b16 %v7789
        %v8515 = vunpack.c.l.b16 %v7790
        %v8516 = vunpack.c.h.b16 %v7790
        %v8517 = vunpack.c.l.b16 %v7791
        %v8518 = vunpack.c.h.b16 %v7791
        %v8519 = vunpack.c.l.b16 %v7792
        %v8520 = vunpack.c.h.b16 %v7792
        %v8521 = vunpack.c.l.b16 %v7793
        %v8522 = vunpack.c.h.b16 %v7793
        %v8523 = vunpack.c.l.b16 %v7794
        %v8524 = vunpack.c.h.b16 %v7794
        %v8525 = vunpack.c.l.b16 %v7795
        %v8526 = vunpack.c.h.b16 %v7795
        %v8527 = vunpack.c.l.b16 %v7796
        %v8528 = vunpack.c.h.b16 %v7796
        %v8529 = vunpack.c.l.b16 %v7797
        %v8530 = vunpack.c.h.b16 %v7797
        %v8531 = vunpack.c.l.b16 %v7798
        %v8532 = vunpack.c.h.b16 %v7798
        %v8533 = vunpack.c.l.b16 %v7799
        %v8534 = vunpack.c.h.b16 %v7799
        %v8535 = vunpack.c.l.b16 %v7800
        %v8536 = vunpack.c.h.b16 %v7800
        %v8537 = vunpack.c.l.b16 %v7801
        %v8538 = vunpack.c.h.b16 %v7801
        %v8539 = vunpack.c.l.b16 %v7802
        %v8540 = vunpack.c.h.b16 %v7802
        %v8541 = vunpack.c.l.b16 %v7803
        %v8542 = vunpack.c.h.b16 %v7803
        %v8543 = vunpack.c.l.b16 %v7804
        %v8544 = vunpack.c.h.b16 %v7804
        %v8545 = vunpack.c.l.b16 %v7805
        %v8546 = vunpack.c.h.b16 %v7805
        %v8547 = vunpack.c.l.b16 %v7806
        %v8548 = vunpack.c.h.b16 %v7806
        %v8549 = vunpack.c.l.b16 %v7807
        %v8550 = vunpack.c.h.b16 %v7807
        %v8551 = vunpack.c.l.b16 %v7808
        %v8552 = vunpack.c.h.b16 %v7808
        %v8553 = vunpack.c.l.b16 %v7809
        %v8554 = vunpack.c.h.b16 %v7809
        %v8555 = vunpack.c.l.b16 %v7810
        %v8556 = vunpack.c.h.b16 %v7810
        %v8557 = vunpack.c.l.b16 %v7811
        %v8558 = vunpack.c.h.b16 %v7811
        %v8559 = vunpack.c.l.b16 %v7812
        %v8560 = vunpack.c.h.b16 %v7812
        %v8561 = vunpack.c.l.b16 %v7813
        %v8562 = vunpack.c.h.b16 %v7813
        %v8563 = vunpack.c.l.b16 %v7814
        %v8564 = vunpack.c.h.b16 %v7814
        %v8565 = vunpack.c.l.b16 %v7815
        %v8566 = vunpack.c.h.b16 %v7815
        %v8567 = vunpack.c.l.b16 %v7816
        %v8568 = vunpack.c.h.b16 %v7816
        %v8569 = vunpack.c.l.b16 %v7817
        %v8570 = vunpack.c.h.b16 %v7817
        %v8571 = vunpack.c.l.b16 %v7818
        %v8572 = vunpack.c.h.b16 %v7818
        %v8573 = vunpack.c.l.b16 %v7819
        %v8574 = vunpack.c.h.b16 %v7819
        %v8575 = vunpack.c.l.b16 %v7820
        %v8576 = vunpack.c.h.b16 %v7820
        %v8577 = vunpack.c.l.b16 %v7821
        %v8578 = vunpack.c.h.b16 %v7821
        %v8579 = vunpack.c.l.b16 %v7822
        %v8580 = vunpack.c.h.b16 %v7822
        %v8581 = vunpack.c.l.b16 %v7823
        %v8582 = vunpack.c.h.b16 %v7823
        %v8583 = vunpack.c.l.b16 %v7824
        %v8584 = vunpack.c.h.b16 %v7824
        %v8585 = vunpack.c.l.b16 %v7825
        %v8586 = vunpack.c.h.b16 %v7825
        %v8587 = vunpack.c.l.b16 %v7826
        %v8588 = vunpack.c.h.b16 %v7826
        %v8589 = vunpack.c.l.b16 %v7827
        %v8590 = vunpack.c.h.b16 %v7827
        %v8591 = vunpack.c.l.b16 %v7828
        %v8592 = vunpack.c.h.b16 %v7828
        %v8593 = vunpack.c.l.b16 %v7829
        %v8594 = vunpack.c.h.b16 %v7829
        %v8595 = vunpack.c.l.b16 %v7830
        %v8596 = vunpack.c.h.b16 %v7830
        %v8597 = vunpack.c.l.b16 %v7831
        %v8598 = vunpack.c.h.b16 %v7831
        %v8599 = vunpack.c.l.b16 %v7832
        %v8600 = vunpack.c.h.b16 %v7832
        %v8601 = vpack.c.b16 %v8093, %v8089
        %v8602 = vpack.c.b16 %v8094, %v8090
        %v8603 = vpack.c.b16 %v8095, %v8091
        %v8604 = vpack.c.b16 %v8096, %v8092
        %v8605 = vpack.c.b16 %v8101, %v8097
        %v8606 = vpack.c.b16 %v8102, %v8098
        %v8607 = vpack.c.b16 %v8103, %v8099
        %v8608 = vpack.c.b16 %v8104, %v8100
        %v8609 = vpack.c.b16 %v8109, %v8105
        %v8610 = vpack.c.b16 %v8110, %v8106
        %v8611 = vpack.c.b16 %v8111, %v8107
        %v8612 = vpack.c.b16 %v8112, %v8108
        %v8613 = vpack.c.b16 %v8117, %v8113
        %v8614 = vpack.c.b16 %v8118, %v8114
        %v8615 = vpack.c.b16 %v8119, %v8115
        %v8616 = vpack.c.b16 %v8120, %v8116
        %v8617 = vpack.c.b16 %v8125, %v8121
        %v8618 = vpack.c.b16 %v8126, %v8122
        %v8619 = vpack.c.b16 %v8127, %v8123
        %v8620 = vpack.c.b16 %v8128, %v8124
        %v8621 = vpack.c.b16 %v8133, %v8129
        %v8622 = vpack.c.b16 %v8134, %v8130
        %v8623 = vpack.c.b16 %v8135, %v8131
        %v8624 = vpack.c.b16 %v8136, %v8132
        %v8625 = vpack.c.b16 %v8141, %v8137
        %v8626 = vpack.c.b16 %v8142, %v8138
        %v8627 = vpack.c.b16 %v8143, %v8139
        %v8628 = vpack.c.b16 %v8144, %v8140
        %v8629 = vpack.c.b16 %v8149, %v8145
        %v8630 = vpack.c.b16 %v8150, %v8146
        %v8631 = vpack.c.b16 %v8151, %v8147
        %v8632 = vpack.c.b16 %v8152, %v8148
        %v8633 = vpack.c.b16 %v8157, %v8153
        %v8634 = vpack.c.b16 %v8158, %v8154
        %v8635 = vpack.c.b16 %v8159, %v8155
        %v8636 = vpack.c.b16 %v8160, %v8156
        %v8637 = vpack.c.b16 %v8165, %v8161
        %v8638 = vpack.c.b16 %v8166, %v8162
        %v8639 = vpack.c.b16 %v8167, %v8163
        %v8640 = vpack.c.b16 %v8168, %v8164
        %v8641 = vpack.c.b16 %v8173, %v8169
        %v8642 = vpack.c.b16 %v8174, %v8170
        %v8643 = vpack.c.b16 %v8175, %v8171
        %v8644 = vpack.c.b16 %v8176, %v8172
        %v8645 = vpack.c.b16 %v8181, %v8177
        %v8646 = vpack.c.b16 %v8182, %v8178
        %v8647 = vpack.c.b16 %v8183, %v8179
        %v8648 = vpack.c.b16 %v8184, %v8180
        %v8649 = vpack.c.b16 %v8189, %v8185
        %v8650 = vpack.c.b16 %v8190, %v8186
        %v8651 = vpack.c.b16 %v8191, %v8187
        %v8652 = vpack.c.b16 %v8192, %v8188
        %v8653 = vpack.c.b16 %v8197, %v8193
        %v8654 = vpack.c.b16 %v8198, %v8194
        %v8655 = vpack.c.b16 %v8199, %v8195
        %v8656 = vpack.c.b16 %v8200, %v8196
        %v8657 = vpack.c.b16 %v8205, %v8201
        %v8658 = vpack.c.b16 %v8206, %v8202
        %v8659 = vpack.c.b16 %v8207, %v8203
        %v8660 = vpack.c.b16 %v8208, %v8204
        %v8661 = vpack.c.b16 %v8213, %v8209
        %v8662 = vpack.c.b16 %v8214, %v8210
        %v8663 = vpack.c.b16 %v8215, %v8211
        %v8664 = vpack.c.b16 %v8216, %v8212
        %v8665 = vpack.c.b16 %v8221, %v8217
        %v8666 = vpack.c.b16 %v8222, %v8218
        %v8667 = vpack.c.b16 %v8223, %v8219
        %v8668 = vpack.c.b16 %v8224, %v8220
        %v8669 = vpack.c.b16 %v8229, %v8225
        %v8670 = vpack.c.b16 %v8230, %v8226
        %v8671 = vpack.c.b16 %v8231, %v8227
        %v8672 = vpack.c.b16 %v8232, %v8228
        %v8673 = vpack.c.b16 %v8237, %v8233
        %v8674 = vpack.c.b16 %v8238, %v8234
        %v8675 = vpack.c.b16 %v8239, %v8235
        %v8676 = vpack.c.b16 %v8240, %v8236
        %v8677 = vpack.c.b16 %v8245, %v8241
        %v8678 = vpack.c.b16 %v8246, %v8242
        %v8679 = vpack.c.b16 %v8247, %v8243
        %v8680 = vpack.c.b16 %v8248, %v8244
        %v8681 = vpack.c.b16 %v8253, %v8249
        %v8682 = vpack.c.b16 %v8254, %v8250
        %v8683 = vpack.c.b16 %v8255, %v8251
        %v8684 = vpack.c.b16 %v8256, %v8252
        %v8685 = vpack.c.b16 %v8261, %v8257
        %v8686 = vpack.c.b16 %v8262, %v8258
        %v8687 = vpack.c.b16 %v8263, %v8259
        %v8688 = vpack.c.b16 %v8264, %v8260
        %v8689 = vpack.c.b16 %v8269, %v8265
        %v8690 = vpack.c.b16 %v8270, %v8266
        %v8691 = vpack.c.b16 %v8271, %v8267
        %v8692 = vpack.c.b16 %v8272, %v8268
        %v8693 = vpack.c.b16 %v8277, %v8273
        %v8694 = vpack.c.b16 %v8278, %v8274
        %v8695 = vpack.c.b16 %v8279, %v8275
        %v8696 = vpack.c.b16 %v8280, %v8276
        %v8697 = vpack.c.b16 %v8285, %v8281
        %v8698 = vpack.c.b16 %v8286, %v8282
        %v8699 = vpack.c.b16 %v8287, %v8283
        %v8700 = vpack.c.b16 %v8288, %v8284
        %v8701 = vpack.c.b16 %v8293, %v8289
        %v8702 = vpack.c.b16 %v8294, %v8290
        %v8703 = vpack.c.b16 %v8295, %v8291
        %v8704 = vpack.c.b16 %v8296, %v8292
        %v8705 = vpack.c.b16 %v8301, %v8297
        %v8706 = vpack.c.b16 %v8302, %v8298
        %v8707 = vpack.c.b16 %v8303, %v8299
        %v8708 = vpack.c.b16 %v8304, %v8300
        %v8709 = vpack.c.b16 %v8309, %v8305
        %v8710 = vpack.c.b16 %v8310, %v8306
        %v8711 = vpack.c.b16 %v8311, %v8307
        %v8712 = vpack.c.b16 %v8312, %v8308
        %v8713 = vpack.c.b16 %v8317, %v8313
        %v8714 = vpack.c.b16 %v8318, %v8314
        %v8715 = vpack.c.b16 %v8319, %v8315
        %v8716 = vpack.c.b16 %v8320, %v8316
        %v8717 = vpack.c.b16 %v8325, %v8321
        %v8718 = vpack.c.b16 %v8326, %v8322
        %v8719 = vpack.c.b16 %v8327, %v8323
        %v8720 = vpack.c.b16 %v8328, %v8324
        %v8721 = vpack.c.b16 %v8333, %v8329
        %v8722 = vpack.c.b16 %v8334, %v8330
        %v8723 = vpack.c.b16 %v8335, %v8331
        %v8724 = vpack.c.b16 %v8336, %v8332
        %v8725 = vpack.c.b16 %v8341, %v8337
        %v8726 = vpack.c.b16 %v8342, %v8338
        %v8727 = vpack.c.b16 %v8343, %v8339
        %v8728 = vpack.c.b16 %v8344, %v8340
        %v8729 = vpack.c.b16 %v8349, %v8345
        %v8730 = vpack.c.b16 %v8350, %v8346
        %v8731 = vpack.c.b16 %v8351, %v8347
        %v8732 = vpack.c.b16 %v8352, %v8348
        %v8733 = vpack.c.b16 %v8357, %v8353
        %v8734 = vpack.c.b16 %v8358, %v8354
        %v8735 = vpack.c.b16 %v8359, %v8355
        %v8736 = vpack.c.b16 %v8360, %v8356
        %v8737 = vpack.c.b16 %v8365, %v8361
        %v8738 = vpack.c.b16 %v8366, %v8362
        %v8739 = vpack.c.b16 %v8367, %v8363
        %v8740 = vpack.c.b16 %v8368, %v8364
        %v8741 = vpack.c.b16 %v8373, %v8369
        %v8742 = vpack.c.b16 %v8374, %v8370
        %v8743 = vpack.c.b16 %v8375, %v8371
        %v8744 = vpack.c.b16 %v8376, %v8372
        %v8745 = vpack.c.b16 %v8381, %v8377
        %v8746 = vpack.c.b16 %v8382, %v8378
        %v8747 = vpack.c.b16 %v8383, %v8379
        %v8748 = vpack.c.b16 %v8384, %v8380
        %v8749 = vpack.c.b16 %v8389, %v8385
        %v8750 = vpack.c.b16 %v8390, %v8386
        %v8751 = vpack.c.b16 %v8391, %v8387
        %v8752 = vpack.c.b16 %v8392, %v8388
        %v8753 = vpack.c.b16 %v8397, %v8393
        %v8754 = vpack.c.b16 %v8398, %v8394
        %v8755 = vpack.c.b16 %v8399, %v8395
        %v8756 = vpack.c.b16 %v8400, %v8396
        %v8757 = vpack.c.b16 %v8405, %v8401
        %v8758 = vpack.c.b16 %v8406, %v8402
        %v8759 = vpack.c.b16 %v8407, %v8403
        %v8760 = vpack.c.b16 %v8408, %v8404
        %v8761 = vpack.c.b16 %v8413, %v8409
        %v8762 = vpack.c.b16 %v8414, %v8410
        %v8763 = vpack.c.b16 %v8415, %v8411
        %v8764 = vpack.c.b16 %v8416, %v8412
        %v8765 = vpack.c.b16 %v8421, %v8417
        %v8766 = vpack.c.b16 %v8422, %v8418
        %v8767 = vpack.c.b16 %v8423, %v8419
        %v8768 = vpack.c.b16 %v8424, %v8420
        %v8769 = vpack.c.b16 %v8429, %v8425
        %v8770 = vpack.c.b16 %v8430, %v8426
        %v8771 = vpack.c.b16 %v8431, %v8427
        %v8772 = vpack.c.b16 %v8432, %v8428
        %v8773 = vpack.c.b16 %v8437, %v8433
        %v8774 = vpack.c.b16 %v8438, %v8434
        %v8775 = vpack.c.b16 %v8439, %v8435
        %v8776 = vpack.c.b16 %v8440, %v8436
        %v8777 = vpack.c.b16 %v8445, %v8441
        %v8778 = vpack.c.b16 %v8446, %v8442
        %v8779 = vpack.c.b16 %v8447, %v8443
        %v8780 = vpack.c.b16 %v8448, %v8444
        %v8781 = vpack.c.b16 %v8453, %v8449
        %v8782 = vpack.c.b16 %v8454, %v8450
        %v8783 = vpack.c.b16 %v8455, %v8451
        %v8784 = vpack.c.b16 %v8456, %v8452
        %v8785 = vpack.c.b16 %v8461, %v8457
        %v8786 = vpack.c.b16 %v8462, %v8458
        %v8787 = vpack.c.b16 %v8463, %v8459
        %v8788 = vpack.c.b16 %v8464, %v8460
        %v8789 = vpack.c.b16 %v8469, %v8465
        %v8790 = vpack.c.b16 %v8470, %v8466
        %v8791 = vpack.c.b16 %v8471, %v8467
        %v8792 = vpack.c.b16 %v8472, %v8468
        %v8793 = vpack.c.b16 %v8477, %v8473
        %v8794 = vpack.c.b16 %v8478, %v8474
        %v8795 = vpack.c.b16 %v8479, %v8475
        %v8796 = vpack.c.b16 %v8480, %v8476
        %v8797 = vpack.c.b16 %v8485, %v8481
        %v8798 = vpack.c.b16 %v8486, %v8482
        %v8799 = vpack.c.b16 %v8487, %v8483
        %v8800 = vpack.c.b16 %v8488, %v8484
        %v8801 = vpack.c.b16 %v8493, %v8489
        %v8802 = vpack.c.b16 %v8494, %v8490
        %v8803 = vpack.c.b16 %v8495, %v8491
        %v8804 = vpack.c.b16 %v8496, %v8492
        %v8805 = vpack.c.b16 %v8501, %v8497
        %v8806 = vpack.c.b16 %v8502, %v8498
        %v8807 = vpack.c.b16 %v8503, %v8499
        %v8808 = vpack.c.b16 %v8504, %v8500
        %v8809 = vpack.c.b16 %v8509, %v8505
        %v8810 = vpack.c.b16 %v8510, %v8506
        %v8811 = vpack.c.b16 %v8511, %v8507
        %v8812 = vpack.c.b16 %v8512, %v8508
        %v8813 = vpack.c.b16 %v8517, %v8513
        %v8814 = vpack.c.b16 %v8518, %v8514
        %v8815 = vpack.c.b16 %v8519, %v8515
        %v8816 = vpack.c.b16 %v8520, %v8516
        %v8817 = vpack.c.b16 %v8525, %v8521
        %v8818 = vpack.c.b16 %v8526, %v8522
        %v8819 = vpack.c.b16 %v8527, %v8523
        %v8820 = vpack.c.b16 %v8528, %v8524
        %v8821 = vpack.c.b16 %v8533, %v8529
        %v8822 = vpack.c.b16 %v8534, %v8530
        %v8823 = vpack.c.b16 %v8535, %v8531
        %v8824 = vpack.c.b16 %v8536, %v8532
        %v8825 = vpack.c.b16 %v8541, %v8537
        %v8826 = vpack.c.b16 %v8542, %v8538
        %v8827 = vpack.c.b16 %v8543, %v8539
        %v8828 = vpack.c.b16 %v8544, %v8540
        %v8829 = vpack.c.b16 %v8549, %v8545
        %v8830 = vpack.c.b16 %v8550, %v8546
        %v8831 = vpack.c.b16 %v8551, %v8547
        %v8832 = vpack.c.b16 %v8552, %v8548
        %v8833 = vpack.c.b16 %v8557, %v8553
        %v8834 = vpack.c.b16 %v8558, %v8554
        %v8835 = vpack.c.b16 %v8559, %v8555
        %v8836 = vpack.c.b16 %v8560, %v8556
        %v8837 = vpack.c.b16 %v8565, %v8561
        %v8838 = vpack.c.b16 %v8566, %v8562
        %v8839 = vpack.c.b16 %v8567, %v8563
        %v8840 = vpack.c.b16 %v8568, %v8564
        %v8841 = vpack.c.b16 %v8573, %v8569
        %v8842 = vpack.c.b16 %v8574, %v8570
        %v8843 = vpack.c.b16 %v8575, %v8571
        %v8844 = vpack.c.b16 %v8576, %v8572
        %v8845 = vpack.c.b16 %v8581, %v8577
        %v8846 = vpack.c.b16 %v8582, %v8578
        %v8847 = vpack.c.b16 %v8583, %v8579
        %v8848 = vpack.c.b16 %v8584, %v8580
        %v8849 = vpack.c.b16 %v8589, %v8585
        %v8850 = vpack.c.b16 %v8590, %v8586
        %v8851 = vpack.c.b16 %v8591, %v8587
        %v8852 = vpack.c.b16 %v8592, %v8588
        %v8853 = vpack.c.b16 %v8597, %v8593
        %v8854 = vpack.c.b16 %v8598, %v8594
        %v8855 = vpack.c.b16 %v8599, %v8595
        %v8856 = vpack.c.b16 %v8600, %v8596
        %9113 = vmatprep.subr.bf16.mxu0 %v8602
        %9114 = vmatpush1.bf16.msra.mxu0 %v8601
        %9115 = vmatprep.subr.bf16.mxu0 %v8606
        %9116 = vmatpush1.bf16.msra.mxu0 %v8605
        %9117 = vmatprep.subr.bf16.mxu0 %v8610
        %9118 = vmatpush1.bf16.msra.mxu0 %v8609
        %9119 = vmatprep.subr.bf16.mxu0 %v8614
        %9120 = vmatpush1.bf16.msra.mxu0 %v8613
        %9121 = vmatprep.subr.bf16.mxu0 %v8618
        %9122 = vmatpush1.bf16.msra.mxu0 %v8617
        %9123 = vmatprep.subr.bf16.mxu0 %v8622
        %9124 = vmatpush1.bf16.msra.mxu0 %v8621
        %9125 = vmatprep.subr.bf16.mxu0 %v8626
        %9126 = vmatpush1.bf16.msra.mxu0 %v8625
        %9127 = vmatprep.subr.bf16.mxu0 %v8630
        %9128 = vmatpush1.bf16.msra.mxu0 %v8629
        %9129 = vmatprep.subr.bf16.mxu0 %v8634
        %9130 = vmatpush1.bf16.msra.mxu0 %v8633
        %9131 = vmatprep.subr.bf16.mxu0 %v8638
        %9132 = vmatpush1.bf16.msra.mxu0 %v8637
        %9133 = vmatprep.subr.bf16.mxu0 %v8642
        %9134 = vmatpush1.bf16.msra.mxu0 %v8641
        %9135 = vmatprep.subr.bf16.mxu0 %v8646
        %9136 = vmatpush1.bf16.msra.mxu0 %v8645
        %9137 = vmatprep.subr.bf16.mxu0 %v8650
        %9138 = vmatpush1.bf16.msra.mxu0 %v8649
        %9139 = vmatprep.subr.bf16.mxu0 %v8654
        %9140 = vmatpush1.bf16.msra.mxu0 %v8653
        %9141 = vmatprep.subr.bf16.mxu0 %v8658
        %9142 = vmatpush1.bf16.msra.mxu0 %v8657
        %9143 = vmatprep.subr.bf16.mxu0 %v8662
        %9144 = vmatpush1.bf16.msra.mxu0 %v8661
        %9145 = vmatprep.mubr.bf16.mxu0 %v7570
        %9146 = vmatmul.mubr.bf16.gmra.mrb[0].mxu0 %v7569
        %v9147 = vpop.f32.mrb[0].mxu0
        %v9148 = vadd.f32 0.0, %v9147
        %v9149 = vpop.f32.mrb[0].mxu0
        %v9150 = vadd.f32 0.0, %v9149
        %v9151 = vpop.f32.mrb[0].mxu0
        %v9152 = vadd.f32 0.0, %v9151
        %v9153 = vpop.f32.mrb[0].mxu0
        %v9154 = vadd.f32 0.0, %v9153
        %9155 = vdwg.mxu0
        %9156 = vmatprep.subr.bf16.mxu0 %v8666
        %9157 = vmatpush1.bf16.msra.mxu0 %v8665
        %9158 = vmatprep.subr.bf16.mxu0 %v8670
        %9159 = vmatpush1.bf16.msra.mxu0 %v8669
        %9160 = vmatprep.subr.bf16.mxu0 %v8674
        %9161 = vmatpush1.bf16.msra.mxu0 %v8673
        %9162 = vmatprep.subr.bf16.mxu0 %v8678
        %9163 = vmatpush1.bf16.msra.mxu0 %v8677
        %9164 = vmatprep.subr.bf16.mxu0 %v8682
        %9165 = vmatpush1.bf16.msra.mxu0 %v8681
        %9166 = vmatprep.subr.bf16.mxu0 %v8686
        %9167 = vmatpush1.bf16.msra.mxu0 %v8685
        %9168 = vmatprep.subr.bf16.mxu0 %v8690
        %9169 = vmatpush1.bf16.msra.mxu0 %v8689
        %9170 = vmatprep.subr.bf16.mxu0 %v8694
        %9171 = vmatpush1.bf16.msra.mxu0 %v8693
        %9172 = vmatprep.subr.bf16.mxu0 %v8698
        %9173 = vmatpush1.bf16.msra.mxu0 %v8697
        %9174 = vmatprep.subr.bf16.mxu0 %v8702
        %9175 = vmatpush1.bf16.msra.mxu0 %v8701
        %9176 = vmatprep.subr.bf16.mxu0 %v8706
        %9177 = vmatpush1.bf16.msra.mxu0 %v8705
        %9178 = vmatprep.subr.bf16.mxu0 %v8710
        %9179 = vmatpush1.bf16.msra.mxu0 %v8709
        %9180 = vmatprep.subr.bf16.mxu0 %v8714
        %9181 = vmatpush1.bf16.msra.mxu0 %v8713
        %9182 = vmatprep.subr.bf16.mxu0 %v8718
        %9183 = vmatpush1.bf16.msra.mxu0 %v8717
        %9184 = vmatprep.subr.bf16.mxu0 %v8722
        %9185 = vmatpush1.bf16.msra.mxu0 %v8721
        %9186 = vmatprep.subr.bf16.mxu0 %v8726
        %9187 = vmatpush1.bf16.msra.mxu0 %v8725
        %9188 = vmatprep.mubr.bf16.mxu0 %v7572
        %9189 = vmatmul.mubr.bf16.gmra.mrb[0].mxu0 %v7571
        %v9190 = vpop.f32.mrb[0].mxu0
        %v9191 = vadd.f32 %v9148, %v9190
        %v9192 = vpop.f32.mrb[0].mxu0
        %v9193 = vadd.f32 %v9150, %v9192
        %v9194 = vpop.f32.mrb[0].mxu0
        %v9195 = vadd.f32 %v9152, %v9194
        %v9196 = vpop.f32.mrb[0].mxu0
        %v9197 = vadd.f32 %v9154, %v9196
        %9198 = vdwg.mxu0
        %9199 = vmatprep.subr.bf16.mxu0 %v8730
        %9200 = vmatpush1.bf16.msra.mxu0 %v8729
        %9201 = vmatprep.subr.bf16.mxu0 %v8734
        %9202 = vmatpush1.bf16.msra.mxu0 %v8733
        %9203 = vmatprep.subr.bf16.mxu0 %v8738
        %9204 = vmatpush1.bf16.msra.mxu0 %v8737
        %9205 = vmatprep.subr.bf16.mxu0 %v8742
        %9206 = vmatpush1.bf16.msra.mxu0 %v8741
        %9207 = vmatprep.subr.bf16.mxu0 %v8746
        %9208 = vmatpush1.bf16.msra.mxu0 %v8745
        %9209 = vmatprep.subr.bf16.mxu0 %v8750
        %9210 = vmatpush1.bf16.msra.mxu0 %v8749
        %9211 = vmatprep.subr.bf16.mxu0 %v8754
        %9212 = vmatpush1.bf16.msra.mxu0 %v8753
        %9213 = vmatprep.subr.bf16.mxu0 %v8758
        %9214 = vmatpush1.bf16.msra.mxu0 %v8757
        %9215 = vmatprep.subr.bf16.mxu0 %v8762
        %9216 = vmatpush1.bf16.msra.mxu0 %v8761
        %9217 = vmatprep.subr.bf16.mxu0 %v8766
        %9218 = vmatpush1.bf16.msra.mxu0 %v8765
        %9219 = vmatprep.subr.bf16.mxu0 %v8770
        %9220 = vmatpush1.bf16.msra.mxu0 %v8769
        %9221 = vmatprep.subr.bf16.mxu0 %v8774
        %9222 = vmatpush1.bf16.msra.mxu0 %v8773
        %9223 = vmatprep.subr.bf16.mxu0 %v8778
        %9224 = vmatpush1.bf16.msra.mxu0 %v8777
        %9225 = vmatprep.subr.bf16.mxu0 %v8782
        %9226 = vmatpush1.bf16.msra.mxu0 %v8781
        %9227 = vmatprep.subr.bf16.mxu0 %v8786
        %9228 = vmatpush1.bf16.msra.mxu0 %v8785
        %9229 = vmatprep.subr.bf16.mxu0 %v8790
        %9230 = vmatpush1.bf16.msra.mxu0 %v8789
        %9231 = vmatprep.mubr.bf16.mxu0 %v7574
        %9232 = vmatmul.mubr.bf16.gmra.mrb[0].mxu0 %v7573
        %v9233 = vpop.f32.mrb[0].mxu0
        %v9234 = vadd.f32 %v9191, %v9233
        %v9235 = vpop.f32.mrb[0].mxu0
        %v9236 = vadd.f32 %v9193, %v9235
        %v9237 = vpop.f32.mrb[0].mxu0
        %v9238 = vadd.f32 %v9195, %v9237
        %v9239 = vpop.f32.mrb[0].mxu0
        %v9240 = vadd.f32 %v9197, %v9239
        %9241 = vdwg.mxu0
        %9242 = vmatprep.subr.bf16.mxu0 %v8794
        %9243 = vmatpush1.bf16.msra.mxu0 %v8793
        %9244 = vmatprep.subr.bf16.mxu0 %v8798
        %9245 = vmatpush1.bf16.msra.mxu0 %v8797
        %9246 = vmatprep.subr.bf16.mxu0 %v8802
        %9247 = vmatpush1.bf16.msra.mxu0 %v8801
        %9248 = vmatprep.subr.bf16.mxu0 %v8806
        %9249 = vmatpush1.bf16.msra.mxu0 %v8805
        %9250 = vmatprep.subr.bf16.mxu0 %v8810
        %9251 = vmatpush1.bf16.msra.mxu0 %v8809
        %9252 = vmatprep.subr.bf16.mxu0 %v8814
        %9253 = vmatpush1.bf16.msra.mxu0 %v8813
        %9254 = vmatprep.subr.bf16.mxu0 %v8818
        %9255 = vmatpush1.bf16.msra.mxu0 %v8817
        %9256 = vmatprep.subr.bf16.mxu0 %v8822
        %9257 = vmatpush1.bf16.msra.mxu0 %v8821
        %9258 = vmatprep.subr.bf16.mxu0 %v8826
        %9259 = vmatpush1.bf16.msra.mxu0 %v8825
        %9260 = vmatprep.subr.bf16.mxu0 %v8830
        %9261 = vmatpush1.bf16.msra.mxu0 %v8829
        %9262 = vmatprep.subr.bf16.mxu0 %v8834
        %9263 = vmatpush1.bf16.msra.mxu0 %v8833
        %9264 = vmatprep.subr.bf16.mxu0 %v8838
        %9265 = vmatpush1.bf16.msra.mxu0 %v8837
        %9266 = vmatprep.subr.bf16.mxu0 %v8842
        %9267 = vmatpush1.bf16.msra.mxu0 %v8841
        %9268 = vmatprep.subr.bf16.mxu0 %v8846
        %9269 = vmatpush1.bf16.msra.mxu0 %v8845
        %9270 = vmatprep.subr.bf16.mxu0 %v8850
        %9271 = vmatpush1.bf16.msra.mxu0 %v8849
        %9272 = vmatprep.subr.bf16.mxu0 %v8854
        %9273 = vmatpush1.bf16.msra.mxu0 %v8853
        %9274 = vmatprep.mubr.bf16.mxu0 %v7576
        %9275 = vmatmul.mubr.bf16.gmra.mrb[0].mxu0 %v7575
        %v9276 = vpop.f32.mrb[0].mxu0
        %v9277 = vadd.f32 %v9234, %v9276
        %v9278 = vpop.f32.mrb[0].mxu0
        %v9279 = vadd.f32 %v9236, %v9278
        %v9280 = vpop.f32.mrb[0].mxu0
        %v9281 = vadd.f32 %v9238, %v9280
        %v9282 = vpop.f32.mrb[0].mxu0
        %v9283 = vadd.f32 %v9240, %v9282
        %9284 = vdwg.mxu0
        %9285 = vmatprep.subr.bf16.mxu0 %v8604
        %9286 = vmatpush1.bf16.msra.mxu0 %v8603
        %9287 = vmatprep.subr.bf16.mxu0 %v8608
        %9288 = vmatpush1.bf16.msra.mxu0 %v8607
        %9289 = vmatprep.subr.bf16.mxu0 %v8612
        %9290 = vmatpush1.bf16.msra.mxu0 %v8611
        %9291 = vmatprep.subr.bf16.mxu0 %v8616
        %9292 = vmatpush1.bf16.msra.mxu0 %v8615
        %9293 = vmatprep.subr.bf16.mxu0 %v8620
        %9294 = vmatpush1.bf16.msra.mxu0 %v8619
        %9295 = vmatprep.subr.bf16.mxu0 %v8624
        %9296 = vmatpush1.bf16.msra.mxu0 %v8623
        %9297 = vmatprep.subr.bf16.mxu0 %v8628
        %9298 = vmatpush1.bf16.msra.mxu0 %v8627
        %9299 = vmatprep.subr.bf16.mxu0 %v8632
        %9300 = vmatpush1.bf16.msra.mxu0 %v8631
        %9301 = vmatprep.subr.bf16.mxu0 %v8636
        %9302 = vmatpush1.bf16.msra.mxu0 %v8635
        %9303 = vmatprep.subr.bf16.mxu0 %v8640
        %9304 = vmatpush1.bf16.msra.mxu0 %v8639
        %9305 = vmatprep.subr.bf16.mxu0 %v8644
        %9306 = vmatpush1.bf16.msra.mxu0 %v8643
        %9307 = vmatprep.subr.bf16.mxu0 %v8648
        %9308 = vmatpush1.bf16.msra.mxu0 %v8647
        %9309 = vmatprep.subr.bf16.mxu0 %v8652
        %9310 = vmatpush1.bf16.msra.mxu0 %v8651
        %9311 = vmatprep.subr.bf16.mxu0 %v8656
        %9312 = vmatpush1.bf16.msra.mxu0 %v8655
        %9313 = vmatprep.subr.bf16.mxu0 %v8660
        %9314 = vmatpush1.bf16.msra.mxu0 %v8659
        %9315 = vmatprep.subr.bf16.mxu0 %v8664
        %9316 = vmatpush1.bf16.msra.mxu0 %v8663
        %9317 = vmatprep.mubr.bf16.mxu0 %v7570
        %9318 = vmatmul.mubr.bf16.gmra.mrb[0].mxu0 %v7569
        %v9319 = vpop.f32.mrb[0].mxu0
        %v9320 = vadd.f32 0.0, %v9319
        %v9321 = vpop.f32.mrb[0].mxu0
        %v9322 = vadd.f32 0.0, %v9321
        %v9323 = vpop.f32.mrb[0].mxu0
        %v9324 = vadd.f32 0.0, %v9323
        %v9325 = vpop.f32.mrb[0].mxu0
        %v9326 = vadd.f32 0.0, %v9325
        %9327 = vdwg.mxu0
        %9328 = vmatprep.subr.bf16.mxu0 %v8668
        %9329 = vmatpush1.bf16.msra.mxu0 %v8667
        %9330 = vmatprep.subr.bf16.mxu0 %v8672
        %9331 = vmatpush1.bf16.msra.mxu0 %v8671
        %9332 = vmatprep.subr.bf16.mxu0 %v8676
        %9333 = vmatpush1.bf16.msra.mxu0 %v8675
        %9334 = vmatprep.subr.bf16.mxu0 %v8680
        %9335 = vmatpush1.bf16.msra.mxu0 %v8679
        %9336 = vmatprep.subr.bf16.mxu0 %v8684
        %9337 = vmatpush1.bf16.msra.mxu0 %v8683
        %9338 = vmatprep.subr.bf16.mxu0 %v8688
        %9339 = vmatpush1.bf16.msra.mxu0 %v8687
        %9340 = vmatprep.subr.bf16.mxu0 %v8692
        %9341 = vmatpush1.bf16.msra.mxu0 %v8691
        %9342 = vmatprep.subr.bf16.mxu0 %v8696
        %9343 = vmatpush1.bf16.msra.mxu0 %v8695
        %9344 = vmatprep.subr.bf16.mxu0 %v8700
        %9345 = vmatpush1.bf16.msra.mxu0 %v8699
        %9346 = vmatprep.subr.bf16.mxu0 %v8704
        %9347 = vmatpush1.bf16.msra.mxu0 %v8703
        %9348 = vmatprep.subr.bf16.mxu0 %v8708
        %9349 = vmatpush1.bf16.msra.mxu0 %v8707
        %9350 = vmatprep.subr.bf16.mxu0 %v8712
        %9351 = vmatpush1.bf16.msra.mxu0 %v8711
        %9352 = vmatprep.subr.bf16.mxu0 %v8716
        %9353 = vmatpush1.bf16.msra.mxu0 %v8715
        %9354 = vmatprep.subr.bf16.mxu0 %v8720
        %9355 = vmatpush1.bf16.msra.mxu0 %v8719
        %9356 = vmatprep.subr.bf16.mxu0 %v8724
        %9357 = vmatpush1.bf16.msra.mxu0 %v8723
        %9358 = vmatprep.subr.bf16.mxu0 %v8728
        %9359 = vmatpush1.bf16.msra.mxu0 %v8727
        %9360 = vmatprep.mubr.bf16.mxu0 %v7572
        %9361 = vmatmul.mubr.bf16.gmra.mrb[0].mxu0 %v7571
        %v9362 = vpop.f32.mrb[0].mxu0
        %v9363 = vadd.f32 %v9320, %v9362
        %v9364 = vpop.f32.mrb[0].mxu0
        %v9365 = vadd.f32 %v9322, %v9364
        %v9366 = vpop.f32.mrb[0].mxu0
        %v9367 = vadd.f32 %v9324, %v9366
        %v9368 = vpop.f32.mrb[0].mxu0
        %v9369 = vadd.f32 %v9326, %v9368
        %9370 = vdwg.mxu0
        %9371 = vmatprep.subr.bf16.mxu0 %v8732
        %9372 = vmatpush1.bf16.msra.mxu0 %v8731
        %9373 = vmatprep.subr.bf16.mxu0 %v8736
        %9374 = vmatpush1.bf16.msra.mxu0 %v8735
        %9375 = vmatprep.subr.bf16.mxu0 %v8740
        %9376 = vmatpush1.bf16.msra.mxu0 %v8739
        %9377 = vmatprep.subr.bf16.mxu0 %v8744
        %9378 = vmatpush1.bf16.msra.mxu0 %v8743
        %9379 = vmatprep.subr.bf16.mxu0 %v8748
        %9380 = vmatpush1.bf16.msra.mxu0 %v8747
        %9381 = vmatprep.subr.bf16.mxu0 %v8752
        %9382 = vmatpush1.bf16.msra.mxu0 %v8751
        %9383 = vmatprep.subr.bf16.mxu0 %v8756
        %9384 = vmatpush1.bf16.msra.mxu0 %v8755
        %9385 = vmatprep.subr.bf16.mxu0 %v8760
        %9386 = vmatpush1.bf16.msra.mxu0 %v8759
        %9387 = vmatprep.subr.bf16.mxu0 %v8764
        %9388 = vmatpush1.bf16.msra.mxu0 %v8763
        %9389 = vmatprep.subr.bf16.mxu0 %v8768
        %9390 = vmatpush1.bf16.msra.mxu0 %v8767
        %9391 = vmatprep.subr.bf16.mxu0 %v8772
        %9392 = vmatpush1.bf16.msra.mxu0 %v8771
        %9393 = vmatprep.subr.bf16.mxu0 %v8776
        %9394 = vmatpush1.bf16.msra.mxu0 %v8775
        %9395 = vmatprep.subr.bf16.mxu0 %v8780
        %9396 = vmatpush1.bf16.msra.mxu0 %v8779
        %9397 = vmatprep.subr.bf16.mxu0 %v8784
        %9398 = vmatpush1.bf16.msra.mxu0 %v8783
        %9399 = vmatprep.subr.bf16.mxu0 %v8788
        %9400 = vmatpush1.bf16.msra.mxu0 %v8787
        %9401 = vmatprep.subr.bf16.mxu0 %v8792
        %9402 = vmatpush1.bf16.msra.mxu0 %v8791
        %9403 = vmatprep.mubr.bf16.mxu0 %v7574
        %9404 = vmatmul.mubr.bf16.gmra.mrb[0].mxu0 %v7573
        %v9405 = vpop.f32.mrb[0].mxu0
        %v9406 = vadd.f32 %v9363, %v9405
        %v9407 = vpop.f32.mrb[0].mxu0
        %v9408 = vadd.f32 %v9365, %v9407
        %v9409 = vpop.f32.mrb[0].mxu0
        %v9410 = vadd.f32 %v9367, %v9409
        %v9411 = vpop.f32.mrb[0].mxu0
        %v9412 = vadd.f32 %v9369, %v9411
        %9413 = vdwg.mxu0
        %9414 = vmatprep.subr.bf16.mxu0 %v8796
        %9415 = vmatpush1.bf16.msra.mxu0 %v8795
        %9416 = vmatprep.subr.bf16.mxu0 %v8800
        %9417 = vmatpush1.bf16.msra.mxu0 %v8799
        %9418 = vmatprep.subr.bf16.mxu0 %v8804
        %9419 = vmatpush1.bf16.msra.mxu0 %v8803
        %9420 = vmatprep.subr.bf16.mxu0 %v8808
        %9421 = vmatpush1.bf16.msra.mxu0 %v8807
        %9422 = vmatprep.subr.bf16.mxu0 %v8812
        %9423 = vmatpush1.bf16.msra.mxu0 %v8811
        %9424 = vmatprep.subr.bf16.mxu0 %v8816
        %9425 = vmatpush1.bf16.msra.mxu0 %v8815
        %9426 = vmatprep.subr.bf16.mxu0 %v8820
        %9427 = vmatpush1.bf16.msra.mxu0 %v8819
        %9428 = vmatprep.subr.bf16.mxu0 %v8824
        %9429 = vmatpush1.bf16.msra.mxu0 %v8823
        %9430 = vmatprep.subr.bf16.mxu0 %v8828
        %9431 = vmatpush1.bf16.msra.mxu0 %v8827
        %9432 = vmatprep.subr.bf16.mxu0 %v8832
        %9433 = vmatpush1.bf16.msra.mxu0 %v8831
        %9434 = vmatprep.subr.bf16.mxu0 %v8836
        %9435 = vmatpush1.bf16.msra.mxu0 %v8835
        %9436 = vmatprep.subr.bf16.mxu0 %v8840
        %9437 = vmatpush1.bf16.msra.mxu0 %v8839
        %9438 = vmatprep.subr.bf16.mxu0 %v8844
        %9439 = vmatpush1.bf16.msra.mxu0 %v8843
        %9440 = vmatprep.subr.bf16.mxu0 %v8848
        %9441 = vmatpush1.bf16.msra.mxu0 %v8847
        %9442 = vmatprep.subr.bf16.mxu0 %v8852
        %9443 = vmatpush1.bf16.msra.mxu0 %v8851
        %9444 = vmatprep.subr.bf16.mxu0 %v8856
        %9445 = vmatpush1.bf16.msra.mxu0 %v8855
        %9446 = vmatprep.mubr.bf16.mxu0 %v7576
        %9447 = vmatmul.mubr.bf16.gmra.mrb[0].mxu0 %v7575
        %v9448 = vpop.f32.mrb[0].mxu0
        %v9449 = vadd.f32 %v9406, %v9448
        %v9450 = vpop.f32.mrb[0].mxu0
        %v9451 = vadd.f32 %v9408, %v9450
        %v9452 = vpop.f32.mrb[0].mxu0
        %v9453 = vadd.f32 %v9410, %v9452
        %v9454 = vpop.f32.mrb[0].mxu0
        %v9455 = vadd.f32 %v9412, %v9454
        %9456 = vdwg.mxu0
        %v9457 = vadd.f32 %v5507, %v9277
        %v9458 = vadd.f32 %v5508, %v9279
        %v9459 = vadd.f32 %v5509, %v9449
        %v9460 = vadd.f32 %v5510, %v9451
        %v9461 = vadd.f32 %v5511, %v9281
        %v9462 = vadd.f32 %v5512, %v9283
        %v9463 = vadd.f32 %v5513, %v9453
        %v9464 = vadd.f32 %v5514, %v9455
        %v9465 = vld [vmem:[%s16] sm:$0xf]
        %v9467 = vlaneseq
        %v9468 = vshrl.u32 %v9467, 7
        %v9469 = vsub.s32 0, %v9468
        %v9470 = vrot.slane %v9465, %v9469
        %v9471 = vlaneseq
        %v9472 = vshrl.u32 %v9471, 7
        %v9473 = vsub.s32 1, %v9472
        %v9474 = vrot.slane %v9465, %v9473
        %v9475 = vlaneseq
        %v9476 = vshrl.u32 %v9475, 7
        %v9477 = vsub.s32 2, %v9476
        %v9478 = vrot.slane %v9465, %v9477
        %v9479 = vlaneseq
        %v9480 = vshrl.u32 %v9479, 7
        %v9481 = vsub.s32 3, %v9480
        %v9482 = vrot.slane %v9465, %v9481
        %v9487 = vadd.f32 %v9457, %v9470
        %v9488 = vadd.f32 %v9458, %v9474
        %v9489 = vadd.f32 %v9459, %v9478
        %v9490 = vadd.f32 %v9460, %v9482
        %v9491 = vadd.f32 %v9461, %v9470
        %v9492 = vadd.f32 %v9462, %v9474
        %v9493 = vadd.f32 %v9463, %v9478
        %v9494 = vadd.f32 %v9464, %v9482
        %9495 = vst [vmem:[%s795] sm:$0xff] %v9487
        %9496 = vst [vmem:[%s795 + $0x8] sm:$0xff] %v9488
        %9497 = vst [vmem:[%s795 + $0x10] sm:$0xff] %v9489
        %9498 = vst [vmem:[%s795 + $0x18] sm:$0xff] %v9490
        %9499 = vst [vmem:[%s795 + $0x20] sm:$0xff] %v9491
        %9500 = vst [vmem:[%s795 + $0x28] sm:$0xff] %v9492
        %9501 = vst [vmem:[%s795 + $0x30] sm:$0xff] %v9493
        %9502 = vst [vmem:[%s795 + $0x38] sm:$0xff] %v9494
        %s9503 = sand.u32 %s480, 1
        %s9504 = scalar_lea.sflag [#allocation4], %s9503
        %s9505 = sand.u32 %s480, 1
        %s9506 = smul.addr %s9505, 64
        %s9507 = scalar_lea.vmem [#allocation17], %s9506
        // Predicated region
        $region133: #{tpu_custom_call.1} parent=95 // pred_check
          %p9508 = pneg %p490
        $region134: #{tpu_custom_call.1} parent=95 // pred_check_branch
          %9510 = sbr.rel (%p9508) target = $region136
        $region135: #{tpu_custom_call.1} parent=95 // pred_region
          %s9511 = smul.u32 2, %s47
          %s9513 = ssub.s32 1024, 1024
          %9514 = vsyncadd %s9504, %s9513
          %s9515 = smul.addr %s9511, 4
          %s9516 = smul.addr %s46, 8
          %s9517 = sadd.s32 %s9515, %s9516
          %s9518 = smul.addr %s9517, 128
          %s9519 = scalar_lea.hbm %s19, %s9518
          %s9520 = sshll.u32 %s9507, 4
          %s9521 = int_to_ptr.vmem [resolvable:$true] %s9520
          %9526 = dma.vmem_to_hbm [thread:$0]  %s9521, 1024, %s9519, %s9504, 512, 512, 32
        $region136: #{tpu_custom_call.1} parent=95 // pred_fallthru
          _
      $region96: #{tpu_custom_call.1} parent=5 // pred_fallthru
        _
      %p9527 = scmp.le.s32.totalorder 2, %s37
      // Predicated region
      $region137: #{tpu_custom_call.1} parent=5 // pred_check
        %p9528 = pneg %p9527
      $region138: #{tpu_custom_call.1} parent=5 // pred_check_branch
        %9530 = sbr.rel (%p9528) target = $region140
      $region139: #{tpu_custom_call.1} parent=5 // pred_region
        %s9531 = ssub.s32 %s37, 2
        // Predicated region
        $region141: #{tpu_custom_call.1} parent=139 // pred_check
          %p9532 = pneg %p496
        $region142: #{tpu_custom_call.1} parent=139 // pred_check_branch
          %9534 = sbr.rel (%p9532) target = $region144
        $region143: #{tpu_custom_call.1} parent=139 // pred_region
          %s9535 = sand.u32 %s481, 1
          %s9536 = scalar_lea.sflag [#allocation4], %s9535
          %s9537 = sand.u32 %s481, 1
          %s9538 = smul.addr %s9537, 64
          %s9539 = scalar_lea.vmem [#allocation17], %s9538
          %9540 = dma.done %s9536, 1024
        $region144: #{tpu_custom_call.1} parent=139 // pred_fallthru
          _
      $region140: #{tpu_custom_call.1} parent=5 // pred_fallthru
        _
    $region6: #{tpu_custom_call.1} parent=1 // loop_footer
      %s41 = sadd.s32 1, %s37
    $region7: #{tpu_custom_call.1} parent=1 // loop_footer_branch
      %36 = sbr.rel target = $region3
    $region8: #{tpu_custom_call.1} parent=1 // loop_exit
      _
    %9541 = vsyncpa [#allocation3], 1
    %s9542 = scalar_lea.sflag [#allocation3], 1
    %9543 = vsyncpa %s9542, 1
    %9544 = vsyncpa [#allocation6], 1
    %s9545 = scalar_lea.sflag [#allocation6], 1
    %9546 = vsyncpa %s9545, 1
    %9547 = vsyncpa [#allocation9], 1
    %9548 = vsyncpa [#allocation12], 1
    %9549 = vsyncpa [#allocation15], 1
    %9550 = vsyncpa [#allocation4], 1
    %s9551 = scalar_lea.sflag [#allocation4], 1
    %9552 = vsyncpa %s9551, 1

</llo_original>
